<compile_context>
chip_gen: v6e
topology: v6e:2x2x1
jax: 0.10.0
libtpu: 0.0.40
codegen_flags: <defaults>
</compile_context>

<pallas_src>
import jax
import jax.numpy as jnp
from jax.experimental import pallas as pl
from jax.experimental.pallas import tpu as pltpu

KH, KW = 15, 150          # conv1 kernel
W_IN = 285                # input width implied by view(-1, 6*136)
OW = W_IN - KW + 1        # 136 conv output width
C_OUT = 6                 # conv1 out channels
FLAT = C_OUT * OW         # 816
K_IN = KH * W_IN          # 4275 flattened input features
HID = 20                  # fc1 out features


def _round_up(a, b):
    return (a + b - 1) // b * b


# ------------------------- Fused kernel: conv1+ReLU -> fc1+ReLU -> predict -------------------------
def fused_forward_kernel(x_ref, t_ref, cb_ref, w1_ref, b1_ref, wp_ref, bp_ref, o_ref):
    # x_ref:  (BT, 4275)   raw flattened input rows
    # t_ref:  (4275, 816)  Toeplitz-expanded conv1 weights (resident in VMEM)
    # cb_ref: (1, 816)     conv bias broadcast to channel-major flat order
    # w1_ref: (816, 20)    fc1 weight (transposed)      b1_ref: (1, 20)
    # wp_ref: (20, 1)      predict weight (transposed)  bp_ref: (1, 1)
    # o_ref:  (BT, 1)
    h = jnp.dot(x_ref[...], t_ref[...], preferred_element_type=jnp.float32) + cb_ref[...]
    h = jnp.maximum(h, 0.0)            # == relu(conv1(x)).view(-1, 816) (channel-major)
    z = jnp.dot(h, w1_ref[...], preferred_element_type=jnp.float32) + b1_ref[...]
    z = jnp.maximum(z, 0.0)            # relu(fc1)
    o_ref[...] = jnp.dot(z, wp_ref[...], preferred_element_type=jnp.float32) + bp_ref[...]


def _conv1_as_toeplitz(conv_w):
    """Expand conv1 weight (6,1,15,150) into T (4275, 816) with
    T[kh*285 + j, c*136 + w] = conv_w[c, 0, kh, j - w]  (0 <= j - w < 150), else 0.
    Then x.reshape(N, 4275) @ T == conv1(x) flattened in torch's view(-1, 816) order.
    Pure weight transform (ideally hoisted/cached outside the hot path)."""
    Wc = conv_w[:, 0]                                       # (6, 15, 150)
    j = jnp.arange(W_IN)
    w = jnp.arange(OW)
    kw = j[None, :] - w[:, None]                            # (OW, W_IN)
    valid = (kw >= 0) & (kw < KW)
    kw_safe = jnp.clip(kw, 0, KW - 1)
    G = Wc[:, :, kw_safe] * valid[None, None].astype(conv_w.dtype)   # (6, 15, OW, W_IN)
    return jnp.transpose(G, (1, 3, 0, 2)).reshape(K_IN, FLAT)        # (4275, 816)


def net_translational_forward(x, conv_w, conv_b, fc1_w, fc1_b, pred_w, pred_b, *, b_tile=128):
    # x: (N, 1, 15, 285) NCHW float32 (same layout as PyTorch)
    n = x.shape[0]
    x_flat = x.reshape(n, K_IN).astype(jnp.float32)         # contiguous reshape, no gather

    T = _conv1_as_toeplitz(conv_w.astype(jnp.float32))      # (4275, 816)
    cb = jnp.repeat(conv_b.astype(jnp.float32), OW).reshape(1, FLAT)
    w1t = fc1_w.astype(jnp.float32).T                       # (816, 20)
    b1 = fc1_b.astype(jnp.float32).reshape(1, HID)
    wpt = pred_w.astype(jnp.float32).T                      # (20, 1)
    bp = pred_b.astype(jnp.float32).reshape(1, 1)

    # Batch tile: up to 128 samples per grid step (multiple of 8 for sublane alignment).
    bt = min(b_tile, _round_up(max(n, 1), 8))
    n_pad = _round_up(n, bt)
    if n_pad != n:
        x_flat = jnp.pad(x_flat, ((0, n_pad - n), (0, 0)))

    y = pl.pallas_call(
        fused_forward_kernel,
        out_shape=jax.ShapeDtypeStruct((n_pad, 1), jnp.float32),
        grid=(n_pad // bt,),
        in_specs=[
            pl.BlockSpec((bt, K_IN), lambda i: (i, 0)),       # input rows, streamed per tile
            pl.BlockSpec((K_IN, FLAT), lambda i: (0, 0)),     # Toeplitz conv weights (resident)
            pl.BlockSpec((1, FLAT), lambda i: (0, 0)),
            pl.BlockSpec((FLAT, HID), lambda i: (0, 0)),
            pl.BlockSpec((1, HID), lambda i: (0, 0)),
            pl.BlockSpec((HID, 1), lambda i: (0, 0)),
            pl.BlockSpec((1, 1), lambda i: (0, 0)),
        ],
        out_specs=pl.BlockSpec((bt, 1), lambda i: (i, 0)),
        compiler_params=pltpu.CompilerParams(
            dimension_semantics=("parallel",),                # megacore batch sharding on v7x
            vmem_limit_bytes=48 * 1024 * 1024,                # fits v7x 64 MiB w/ headroom
        ),
    )(x_flat, T, cb, w1t, b1, wpt, bp)
    return y[:n]                                              # (N, 1)


if __name__ == "__main__":
    key = jax.random.PRNGKey(0)
    ks = jax.random.split(key, 7)

    N = 2
    x = jax.random.normal(ks[0], (N, 1, KH, W_IN), dtype=jnp.float32)

    # Deterministic synthetic parameters (shapes match the PyTorch module).
    conv_w = jax.random.normal(ks[1], (C_OUT, 1, KH, KW), dtype=jnp.float32) * 0.02
    conv_b = jax.random.normal(ks[2], (C_OUT,), dtype=jnp.float32) * 0.02
    fc1_w  = jax.random.normal(ks[3], (HID, FLAT), dtype=jnp.float32) * 0.02
    fc1_b  = jax.random.normal(ks[4], (HID,), dtype=jnp.float32) * 0.02
    pred_w = jax.random.normal(ks[5], (1, HID), dtype=jnp.float32) * 0.1
    pred_b = jax.random.normal(ks[6], (1,), dtype=jnp.float32) * 0.1

    fwd = jax.jit(net_translational_forward)
    y = jax.block_until_ready(fwd(x, conv_w, conv_b, fc1_w, fc1_b, pred_w, pred_b))
    assert y.shape == (N, 1) and y.dtype == jnp.float32

    # Plain-JAX high-precision reference to sanity-check the fused kernel.
    hp = jax.lax.Precision.HIGHEST
    ref_h = jax.lax.conv_general_dilated(
        x, conv_w, window_strides=(1, 1), padding="VALID",
        dimension_numbers=("NCHW", "OIHW", "NCHW"), precision=hp)
    ref_h = jnp.maximum(ref_h + conv_b[None, :, None, None], 0.0)   # (N, 6, 1, 136)
    ref_f = ref_h.reshape(N, FLAT)                                   # channel-major, == torch view
    ref_z = jnp.maximum(jnp.dot(ref_f, fc1_w.T, precision=hp) + fc1_b, 0.0)
    y_ref = jnp.dot(ref_z, pred_w.T, precision=hp) + pred_b
    assert jnp.allclose(y, y_ref, atol=2e-2, rtol=2e-2)

    print("KERNEL_OK")
</pallas_src>

<mosaic_0001>
module attributes {stable_mosaic.version = 11 : i64} {
  func.func @fused_forward_kernel(%arg0: i32, %arg1: memref<8x4275xf32, #tpu.memory_space<vmem>>, %arg2: memref<4275x816xf32, #tpu.memory_space<vmem>>, %arg3: memref<1x816xf32, #tpu.memory_space<vmem>>, %arg4: memref<816x20xf32, #tpu.memory_space<vmem>>, %arg5: memref<1x20xf32, #tpu.memory_space<vmem>>, %arg6: memref<20x1xf32, #tpu.memory_space<vmem>>, %arg7: memref<1x1xf32, #tpu.memory_space<vmem>>, %arg8: memref<8x1xf32, #tpu.memory_space<vmem>>) attributes {dimension_semantics = [#tpu.dimension_semantics<parallel>], iteration_bounds = array<i64: 1>, scalar_prefetch = 0 : i64, scratch_operands = 0 : i64, tpu.core_type = #tpu.core_type<tc>, window_params = [{transform_indices = @transform_0, window_bounds = array<i64: 8, 4275>}, {pipeline_mode = #tpu.pipeline_mode<synchronous>, transform_indices = @transform_1, window_bounds = array<i64: 4275, 816>}, {pipeline_mode = #tpu.pipeline_mode<synchronous>, transform_indices = @transform_2, window_bounds = array<i64: 1, 816>}, {pipeline_mode = #tpu.pipeline_mode<synchronous>, transform_indices = @transform_3, window_bounds = array<i64: 816, 20>}, {pipeline_mode = #tpu.pipeline_mode<synchronous>, transform_indices = @transform_4, window_bounds = array<i64: 1, 20>}, {pipeline_mode = #tpu.pipeline_mode<synchronous>, transform_indices = @transform_5, window_bounds = array<i64: 20, 1>}, {pipeline_mode = #tpu.pipeline_mode<synchronous>, transform_indices = @transform_6, window_bounds = array<i64: 1, 1>}, {transform_indices = @transform_7, window_bounds = array<i64: 8, 1>}]} {
    %c0 = arith.constant 0 : index
    %c0_0 = arith.constant 0 : index
    %0 = vector.load %arg1[%c0, %c0_0] : memref<8x4275xf32, #tpu.memory_space<vmem>>, vector<8x4275xf32>
    %c0_1 = arith.constant 0 : index
    %c0_2 = arith.constant 0 : index
    %1 = vector.load %arg2[%c0_1, %c0_2] : memref<4275x816xf32, #tpu.memory_space<vmem>>, vector<4275x816xf32>
    %cst = arith.constant dense<0.000000e+00> : vector<8x816xf32>
    %2 = tpu.matmul %0, %1, %cst {dimension_numbers = #tpu.dot_dimension_numbers<[1], [0], [0], [1], [0, 0, 1, 1], [], []>} : vector<8x4275xf32>, vector<4275x816xf32>, vector<8x816xf32> -> vector<8x816xf32>
    %c0_3 = arith.constant 0 : index
    %c0_4 = arith.constant 0 : index
    %3 = vector.load %arg3[%c0_3, %c0_4] : memref<1x816xf32, #tpu.memory_space<vmem>>, vector<1x816xf32>
    %4 = vector.broadcast %3 : vector<1x816xf32> to vector<8x816xf32>
    %5 = arith.addf %2, %4 : vector<8x816xf32>
    %cst_5 = arith.constant 0.000000e+00 : f32
    %6 = vector.broadcast %cst_5 : f32 to vector<8x816xf32>
    %7 = arith.maximumf %5, %6 : vector<8x816xf32>
    %c0_6 = arith.constant 0 : index
    %c0_7 = arith.constant 0 : index
    %8 = vector.load %arg4[%c0_6, %c0_7] : memref<816x20xf32, #tpu.memory_space<vmem>>, vector<816x20xf32>
    %cst_8 = arith.constant dense<0.000000e+00> : vector<8x20xf32>
    %9 = tpu.matmul %7, %8, %cst_8 {dimension_numbers = #tpu.dot_dimension_numbers<[1], [0], [0], [1], [0, 0, 1, 1], [], []>} : vector<8x816xf32>, vector<816x20xf32>, vector<8x20xf32> -> vector<8x20xf32>
    %c0_9 = arith.constant 0 : index
    %c0_10 = arith.constant 0 : index
    %10 = vector.load %arg5[%c0_9, %c0_10] : memref<1x20xf32, #tpu.memory_space<vmem>>, vector<1x20xf32>
    %11 = vector.broadcast %10 : vector<1x20xf32> to vector<8x20xf32>
    %12 = arith.addf %9, %11 : vector<8x20xf32>
    %cst_11 = arith.constant 0.000000e+00 : f32
    %13 = vector.broadcast %cst_11 : f32 to vector<8x20xf32>
    %14 = arith.maximumf %12, %13 : vector<8x20xf32>
    %c0_12 = arith.constant 0 : index
    %c0_13 = arith.constant 0 : index
    %15 = vector.load %arg6[%c0_12, %c0_13] : memref<20x1xf32, #tpu.memory_space<vmem>>, vector<20x1xf32>
    %cst_14 = arith.constant dense<0.000000e+00> : vector<8x1xf32>
    %16 = tpu.matmul %14, %15, %cst_14 {dimension_numbers = #tpu.dot_dimension_numbers<[1], [0], [0], [1], [0, 0, 1, 1], [], []>} : vector<8x20xf32>, vector<20x1xf32>, vector<8x1xf32> -> vector<8x1xf32>
    %c0_15 = arith.constant 0 : index
    %c0_16 = arith.constant 0 : index
    %17 = vector.load %arg7[%c0_15, %c0_16] : memref<1x1xf32, #tpu.memory_space<vmem>>, vector<1x1xf32>
    %18 = vector.broadcast %17 : vector<1x1xf32> to vector<8x1xf32>
    %19 = arith.addf %16, %18 : vector<8x1xf32>
    %c0_17 = arith.constant 0 : index
    %c0_18 = arith.constant 0 : index
    %20 = vector.load %arg8[%c0_17, %c0_18] : memref<8x1xf32, #tpu.memory_space<vmem>>, vector<8x1xf32>
    tpu.vector_store %arg8[%c0_17, %c0_18], %19 {strides = array<i32>} : memref<8x1xf32, #tpu.memory_space<vmem>>, vector<8x1xf32>,
    return
  }
  func.func @transform_0(%arg0: i32) -> (i32, i32) {
    %c0_i32 = arith.constant 0 : i32
    %c0_i32_0 = arith.constant 0 : i32
    return %arg0, %c0_i32 : i32, i32
  }
  func.func @transform_1(%arg0: i32) -> (i32, i32) {
    %c0_i32 = arith.constant 0 : i32
    %c0_i32_0 = arith.constant 0 : i32
    %c0_i32_1 = arith.constant 0 : i32
    return %c0_i32, %c0_i32_0 : i32, i32
  }
  func.func @transform_2(%arg0: i32) -> (i32, i32) {
    %c0_i32 = arith.constant 0 : i32
    %c0_i32_0 = arith.constant 0 : i32
    %c0_i32_1 = arith.constant 0 : i32
    return %c0_i32, %c0_i32_0 : i32, i32
  }
  func.func @transform_3(%arg0: i32) -> (i32, i32) {
    %c0_i32 = arith.constant 0 : i32
    %c0_i32_0 = arith.constant 0 : i32
    %c0_i32_1 = arith.constant 0 : i32
    return %c0_i32, %c0_i32_0 : i32, i32
  }
  func.func @transform_4(%arg0: i32) -> (i32, i32) {
    %c0_i32 = arith.constant 0 : i32
    %c0_i32_0 = arith.constant 0 : i32
    %c0_i32_1 = arith.constant 0 : i32
    return %c0_i32, %c0_i32_0 : i32, i32
  }
  func.func @transform_5(%arg0: i32) -> (i32, i32) {
    %c0_i32 = arith.constant 0 : i32
    %c0_i32_0 = arith.constant 0 : i32
    %c0_i32_1 = arith.constant 0 : i32
    return %c0_i32, %c0_i32_0 : i32, i32
  }
  func.func @transform_6(%arg0: i32) -> (i32, i32) {
    %c0_i32 = arith.constant 0 : i32
    %c0_i32_0 = arith.constant 0 : i32
    %c0_i32_1 = arith.constant 0 : i32
    return %c0_i32, %c0_i32_0 : i32, i32
  }
  func.func @transform_7(%arg0: i32) -> (i32, i32) {
    %c0_i32 = arith.constant 0 : i32
    %c0_i32_0 = arith.constant 0 : i32
    return %arg0, %c0_i32 : i32, i32
  }
}

</mosaic_0001>

<llo_original>
// kernel: net_translational_forward.1
$region0: #{net_translational_forward.1}
  #allocation0 [shape = 'u32[]', space=smem, size = 0x4, offset = 0x4, fixed_abs, tag = 'smem constant byte address 0x4 - core index']
  #allocation1 [shape = 'u32[144,128]{1,0:T(1,128)}', space=vmem, size = 0x12000, scoped, tag = 'internal scratch']
  #allocation2 [shape = 'f32[1,1]{1,0:T(1,128)S(1)}', space=vmem, size = 0x200, scoped, tag = 'scoped memory for net_translational_forward.1']
  %s0 = inlined_call_operand.vmem [shape: f32[8,4275], index: 0, kind: input, shape index: {}]
  %s1 = inlined_call_operand.vmem [shape: f32[4275,816], index: 1, kind: input, shape index: {}]
  %s2 = inlined_call_operand.vmem [shape: f32[1,816], index: 2, kind: input, shape index: {}]
  %s3 = inlined_call_operand.vmem [shape: f32[816,20], index: 3, kind: input, shape index: {}]
  %s4 = inlined_call_operand.vmem [shape: f32[1,20], index: 4, kind: input, shape index: {}]
  %s5 = inlined_call_operand.vmem [shape: f32[20,1], index: 5, kind: input, shape index: {}]
  %s6 = inlined_call_operand.<no memory space> [shape: f32[1,1], index: 6, kind: input, shape index: {}]
  %s7 = inlined_call_operand.vmem [shape: f32[8,1], index: 7, kind: output, shape index: {}]
  %s8 = sld [smem:[#allocation0]]
  $region38: #{net_translational_forward.1} parent=0
    _
  %s10 = ssub.s32 1, %s8
  %s11 = scalar_select 0, %s10, %s8
  %v12 = vstv %s6
  %13 = vst [vmem:[#allocation2] sm:$0x1] %v12
  // Predicated region
  $region2: #{net_translational_forward.1} parent=0 // pred_check
    _
  $region3: #{net_translational_forward.1} parent=0 // pred_check_branch
    %15 = sbr.rel (0) target = $region5
  $region4: #{net_translational_forward.1} parent=0 // pred_region
    _
  $region5: #{net_translational_forward.1} parent=0 // pred_fallthru
    _
  // Predicated region
  $region6: #{net_translational_forward.1} parent=0 // pred_check
    _
  $region7: #{net_translational_forward.1} parent=0 // pred_check_branch
    %17 = sbr.rel (0) target = $region9
  $region8: #{net_translational_forward.1} parent=0 // pred_region
    _
  $region9: #{net_translational_forward.1} parent=0 // pred_fallthru
    _
  // Predicated region
  $region10: #{net_translational_forward.1} parent=0 // pred_check
    _
  $region11: #{net_translational_forward.1} parent=0 // pred_check_branch
    %19 = sbr.rel (0) target = $region13
  $region12: #{net_translational_forward.1} parent=0 // pred_region
    _
  $region13: #{net_translational_forward.1} parent=0 // pred_fallthru
    _
  // Predicated region
  $region14: #{net_translational_forward.1} parent=0 // pred_check
    _
  $region15: #{net_translational_forward.1} parent=0 // pred_check_branch
    %21 = sbr.rel (0) target = $region17
  $region16: #{net_translational_forward.1} parent=0 // pred_region
    _
  $region17: #{net_translational_forward.1} parent=0 // pred_fallthru
    _
  // Predicated region
  $region18: #{net_translational_forward.1} parent=0 // pred_check
    _
  $region19: #{net_translational_forward.1} parent=0 // pred_check_branch
    %23 = sbr.rel (0) target = $region21
  $region20: #{net_translational_forward.1} parent=0 // pred_region
    _
  $region21: #{net_translational_forward.1} parent=0 // pred_fallthru
    _
  // Predicated region
  $region22: #{net_translational_forward.1} parent=0 // pred_check
    _
  $region23: #{net_translational_forward.1} parent=0 // pred_check_branch
    %25 = sbr.rel (0) target = $region25
  $region24: #{net_translational_forward.1} parent=0 // pred_region
    _
  $region25: #{net_translational_forward.1} parent=0 // pred_fallthru
    _
  // Predicated region
  $region26: #{net_translational_forward.1} parent=0 // pred_check
    _
  $region27: #{net_translational_forward.1} parent=0 // pred_check_branch
    %27 = sbr.rel (0) target = $region29
  $region28: #{net_translational_forward.1} parent=0 // pred_region
    _
  $region29: #{net_translational_forward.1} parent=0 // pred_fallthru
    _
  %v28 = vld [vmem:[%s0] sm:$0xff]
  %v29 = vld [vmem:[%s0 + $0x8] sm:$0xff]
  %v30 = vld [vmem:[%s0 + $0x10] sm:$0xff]
  %v31 = vld [vmem:[%s0 + $0x18] sm:$0xff]
  %v32 = vld [vmem:[%s0 + $0x20] sm:$0xff]
  %v33 = vld [vmem:[%s0 + $0x28] sm:$0xff]
  %v34 = vld [vmem:[%s0 + $0x30] sm:$0xff]
  %v35 = vld [vmem:[%s0 + $0x38] sm:$0xff]
  %v36 = vld [vmem:[%s0 + $0x40] sm:$0xff]
  %v37 = vld [vmem:[%s0 + $0x48] sm:$0xff]
  %v38 = vld [vmem:[%s0 + $0x50] sm:$0xff]
  %v39 = vld [vmem:[%s0 + $0x58] sm:$0xff]
  %v40 = vld [vmem:[%s0 + $0x60] sm:$0xff]
  %v41 = vld [vmem:[%s0 + $0x68] sm:$0xff]
  %v42 = vld [vmem:[%s0 + $0x70] sm:$0xff]
  %v43 = vld [vmem:[%s0 + $0x78] sm:$0xff]
  %v44 = vld [vmem:[%s0 + $0x80] sm:$0xff]
  %v45 = vld [vmem:[%s0 + $0x88] sm:$0xff]
  %v46 = vld [vmem:[%s0 + $0x90] sm:$0xff]
  %v47 = vld [vmem:[%s0 + $0x98] sm:$0xff]
  %v48 = vld [vmem:[%s0 + $0xa0] sm:$0xff]
  %v49 = vld [vmem:[%s0 + $0xa8] sm:$0xff]
  %v50 = vld [vmem:[%s0 + $0xb0] sm:$0xff]
  %v51 = vld [vmem:[%s0 + $0xb8] sm:$0xff]
  %v52 = vld [vmem:[%s0 + $0xc0] sm:$0xff]
  %v53 = vld [vmem:[%s0 + $0xc8] sm:$0xff]
  %v54 = vld [vmem:[%s0 + $0xd0] sm:$0xff]
  %v55 = vld [vmem:[%s0 + $0xd8] sm:$0xff]
  %v56 = vld [vmem:[%s0 + $0xe0] sm:$0xff]
  %v57 = vld [vmem:[%s0 + $0xe8] sm:$0xff]
  %v58 = vld [vmem:[%s0 + $0xf0] sm:$0xff]
  %v59 = vld [vmem:[%s0 + $0xf8] sm:$0xff]
  %v60 = vld [vmem:[%s0 + $0x100] sm:$0xff]
  %v61 = vld [vmem:[%s0 + $0x108] sm:$0xff]
  %v62 = vld [vmem:[%s1] sm:$0xff]
  %v63 = vld [vmem:[%s1 + $0x8] sm:$0xff]
  %v64 = vld [vmem:[%s1 + $0x10] sm:$0xff]
  %v65 = vld [vmem:[%s1 + $0x18] sm:$0xff]
  %v66 = vld [vmem:[%s1 + $0x20] sm:$0xff]
  %v67 = vld [vmem:[%s1 + $0x28] sm:$0xff]
  %v68 = vld [vmem:[%s1 + $0x30] sm:$0xff]
  %v69 = vld [vmem:[%s1 + $0x38] sm:$0xff]
  %v70 = vld [vmem:[%s1 + $0x40] sm:$0xff]
  %v71 = vld [vmem:[%s1 + $0x48] sm:$0xff]
  %v72 = vld [vmem:[%s1 + $0x50] sm:$0xff]
  %v73 = vld [vmem:[%s1 + $0x58] sm:$0xff]
  %v74 = vld [vmem:[%s1 + $0x60] sm:$0xff]
  %v75 = vld [vmem:[%s1 + $0x68] sm:$0xff]
  %v76 = vld [vmem:[%s1 + $0x70] sm:$0xff]
  %v77 = vld [vmem:[%s1 + $0x78] sm:$0xff]
  %v78 = vld [vmem:[%s1 + $0x80] sm:$0xff]
  %v79 = vld [vmem:[%s1 + $0x88] sm:$0xff]
  %v80 = vld [vmem:[%s1 + $0x90] sm:$0xff]
  %v81 = vld [vmem:[%s1 + $0x98] sm:$0xff]
  %v82 = vld [vmem:[%s1 + $0xa0] sm:$0xff]
  %v83 = vld [vmem:[%s1 + $0xa8] sm:$0xff]
  %v84 = vld [vmem:[%s1 + $0xb0] sm:$0xff]
  %v85 = vld [vmem:[%s1 + $0xb8] sm:$0xff]
  %v86 = vld [vmem:[%s1 + $0xc0] sm:$0xff]
  %v87 = vld [vmem:[%s1 + $0xc8] sm:$0xff]
  %v88 = vld [vmem:[%s1 + $0xd0] sm:$0xff]
  %v89 = vld [vmem:[%s1 + $0xd8] sm:$0xff]
  %v90 = vld [vmem:[%s1 + $0xe0] sm:$0xff]
  %v91 = vld [vmem:[%s1 + $0xe8] sm:$0xff]
  %v92 = vld [vmem:[%s1 + $0xf0] sm:$0xff]
  %v93 = vld [vmem:[%s1 + $0xf8] sm:$0xff]
  %v94 = vld [vmem:[%s1 + $0x100] sm:$0xff]
  %v95 = vld [vmem:[%s1 + $0x108] sm:$0xff]
  %v96 = vld [vmem:[%s1 + $0x110] sm:$0xff]
  %v97 = vld [vmem:[%s1 + $0x118] sm:$0xff]
  %v98 = vld [vmem:[%s1 + $0x120] sm:$0xff]
  %v99 = vld [vmem:[%s1 + $0x128] sm:$0xff]
  %v100 = vld [vmem:[%s1 + $0x130] sm:$0xff]
  %v101 = vld [vmem:[%s1 + $0x138] sm:$0xff]
  %v102 = vld [vmem:[%s1 + $0x140] sm:$0xff]
  %v103 = vld [vmem:[%s1 + $0x148] sm:$0xff]
  %v104 = vld [vmem:[%s1 + $0x150] sm:$0xff]
  %v105 = vld [vmem:[%s1 + $0x158] sm:$0xff]
  %v106 = vld [vmem:[%s1 + $0x160] sm:$0xff]
  %v107 = vld [vmem:[%s1 + $0x168] sm:$0xff]
  %v108 = vld [vmem:[%s1 + $0x170] sm:$0xff]
  %v109 = vld [vmem:[%s1 + $0x178] sm:$0xff]
  %v110 = vld [vmem:[%s1 + $0x180] sm:$0xff]
  %v111 = vld [vmem:[%s1 + $0x188] sm:$0xff]
  %v112 = vld [vmem:[%s1 + $0x190] sm:$0xff]
  %v113 = vld [vmem:[%s1 + $0x198] sm:$0xff]
  %v114 = vld [vmem:[%s1 + $0x1a0] sm:$0xff]
  %v115 = vld [vmem:[%s1 + $0x1a8] sm:$0xff]
  %v116 = vld [vmem:[%s1 + $0x1b0] sm:$0xff]
  %v117 = vld [vmem:[%s1 + $0x1b8] sm:$0xff]
  %v118 = vld [vmem:[%s1 + $0x1c0] sm:$0xff]
  %v119 = vld [vmem:[%s1 + $0x1c8] sm:$0xff]
  %v120 = vld [vmem:[%s1 + $0x1d0] sm:$0xff]
  %v121 = vld [vmem:[%s1 + $0x1d8] sm:$0xff]
  %v122 = vld [vmem:[%s1 + $0x1e0] sm:$0xff]
  %v123 = vld [vmem:[%s1 + $0x1e8] sm:$0xff]
  %v124 = vld [vmem:[%s1 + $0x1f0] sm:$0xff]
  %v125 = vld [vmem:[%s1 + $0x1f8] sm:$0xff]
  %v126 = vld [vmem:[%s1 + $0x200] sm:$0xff]
  %v127 = vld [vmem:[%s1 + $0x208] sm:$0xff]
  %v128 = vld [vmem:[%s1 + $0x210] sm:$0xff]
  %v129 = vld [vmem:[%s1 + $0x218] sm:$0xff]
  %v130 = vld [vmem:[%s1 + $0x220] sm:$0xff]
  %v131 = vld [vmem:[%s1 + $0x228] sm:$0xff]
  %v132 = vld [vmem:[%s1 + $0x230] sm:$0xff]
  %v133 = vld [vmem:[%s1 + $0x238] sm:$0xff]
  %v134 = vld [vmem:[%s1 + $0x240] sm:$0xff]
  %v135 = vld [vmem:[%s1 + $0x248] sm:$0xff]
  %v136 = vld [vmem:[%s1 + $0x250] sm:$0xff]
  %v137 = vld [vmem:[%s1 + $0x258] sm:$0xff]
  %v138 = vld [vmem:[%s1 + $0x260] sm:$0xff]
  %v139 = vld [vmem:[%s1 + $0x268] sm:$0xff]
  %v140 = vld [vmem:[%s1 + $0x270] sm:$0xff]
  %v141 = vld [vmem:[%s1 + $0x278] sm:$0xff]
  %v142 = vld [vmem:[%s1 + $0x280] sm:$0xff]
  %v143 = vld [vmem:[%s1 + $0x288] sm:$0xff]
  %v144 = vld [vmem:[%s1 + $0x290] sm:$0xff]
  %v145 = vld [vmem:[%s1 + $0x298] sm:$0xff]
  %v146 = vld [vmem:[%s1 + $0x2a0] sm:$0xff]
  %v147 = vld [vmem:[%s1 + $0x2a8] sm:$0xff]
  %v148 = vld [vmem:[%s1 + $0x2b0] sm:$0xff]
  %v149 = vld [vmem:[%s1 + $0x2b8] sm:$0xff]
  %v150 = vld [vmem:[%s1 + $0x2c0] sm:$0xff]
  %v151 = vld [vmem:[%s1 + $0x2c8] sm:$0xff]
  %v152 = vld [vmem:[%s1 + $0x2d0] sm:$0xff]
  %v153 = vld [vmem:[%s1 + $0x2d8] sm:$0xff]
  %v154 = vld [vmem:[%s1 + $0x2e0] sm:$0xff]
  %v155 = vld [vmem:[%s1 + $0x2e8] sm:$0xff]
  %v156 = vld [vmem:[%s1 + $0x2f0] sm:$0xff]
  %v157 = vld [vmem:[%s1 + $0x2f8] sm:$0xff]
  %v158 = vld [vmem:[%s1 + $0x300] sm:$0xff]
  %v159 = vld [vmem:[%s1 + $0x308] sm:$0xff]
  %v160 = vld [vmem:[%s1 + $0x310] sm:$0xff]
  %v161 = vld [vmem:[%s1 + $0x318] sm:$0xff]
  %v162 = vld [vmem:[%s1 + $0x320] sm:$0xff]
  %v163 = vld [vmem:[%s1 + $0x328] sm:$0xff]
  %v164 = vld [vmem:[%s1 + $0x330] sm:$0xff]
  %v165 = vld [vmem:[%s1 + $0x338] sm:$0xff]
  %v166 = vld [vmem:[%s1 + $0x340] sm:$0xff]
  %v167 = vld [vmem:[%s1 + $0x348] sm:$0xff]
  %v168 = vld [vmem:[%s1 + $0x350] sm:$0xff]
  %v169 = vld [vmem:[%s1 + $0x358] sm:$0xff]
  %v170 = vld [vmem:[%s1 + $0x360] sm:$0xff]
  %v171 = vld [vmem:[%s1 + $0x368] sm:$0xff]
  %v172 = vld [vmem:[%s1 + $0x370] sm:$0xff]
  %v173 = vld [vmem:[%s1 + $0x378] sm:$0xff]
  %v174 = vld [vmem:[%s1 + $0x380] sm:$0xff]
  %v175 = vld [vmem:[%s1 + $0x388] sm:$0xff]
  %v176 = vld [vmem:[%s1 + $0x390] sm:$0xff]
  %v177 = vld [vmem:[%s1 + $0x398] sm:$0xff]
  %v178 = vld [vmem:[%s1 + $0x3a0] sm:$0xff]
  %v179 = vld [vmem:[%s1 + $0x3a8] sm:$0xff]
  %v180 = vld [vmem:[%s1 + $0x3b0] sm:$0xff]
  %v181 = vld [vmem:[%s1 + $0x3b8] sm:$0xff]
  %v182 = vld [vmem:[%s1 + $0x3c0] sm:$0xff]
  %v183 = vld [vmem:[%s1 + $0x3c8] sm:$0xff]
  %v184 = vld [vmem:[%s1 + $0x3d0] sm:$0xff]
  %v185 = vld [vmem:[%s1 + $0x3d8] sm:$0xff]
  %v186 = vld [vmem:[%s1 + $0x3e0] sm:$0xff]
  %v187 = vld [vmem:[%s1 + $0x3e8] sm:$0xff]
  %v188 = vld [vmem:[%s1 + $0x3f0] sm:$0xff]
  %v189 = vld [vmem:[%s1 + $0x3f8] sm:$0xff]
  %v190 = vld [vmem:[%s1 + $0x400] sm:$0xff]
  %v191 = vld [vmem:[%s1 + $0x408] sm:$0xff]
  %v192 = vld [vmem:[%s1 + $0x410] sm:$0xff]
  %v193 = vld [vmem:[%s1 + $0x418] sm:$0xff]
  %v194 = vld [vmem:[%s1 + $0x420] sm:$0xff]
  %v195 = vld [vmem:[%s1 + $0x428] sm:$0xff]
  %v196 = vld [vmem:[%s1 + $0x430] sm:$0xff]
  %v197 = vld [vmem:[%s1 + $0x438] sm:$0xff]
  %v198 = vld [vmem:[%s1 + $0x440] sm:$0xff]
  %v199 = vld [vmem:[%s1 + $0x448] sm:$0xff]
  %v200 = vld [vmem:[%s1 + $0x450] sm:$0xff]
  %v201 = vld [vmem:[%s1 + $0x458] sm:$0xff]
  %v202 = vld [vmem:[%s1 + $0x460] sm:$0xff]
  %v203 = vld [vmem:[%s1 + $0x468] sm:$0xff]
  %v204 = vld [vmem:[%s1 + $0x470] sm:$0xff]
  %v205 = vld [vmem:[%s1 + $0x478] sm:$0xff]
  %v206 = vld [vmem:[%s1 + $0x480] sm:$0xff]
  %v207 = vld [vmem:[%s1 + $0x488] sm:$0xff]
  %v208 = vld [vmem:[%s1 + $0x490] sm:$0xff]
  %v209 = vld [vmem:[%s1 + $0x498] sm:$0xff]
  %v210 = vld [vmem:[%s1 + $0x4a0] sm:$0xff]
  %v211 = vld [vmem:[%s1 + $0x4a8] sm:$0xff]
  %v212 = vld [vmem:[%s1 + $0x4b0] sm:$0xff]
  %v213 = vld [vmem:[%s1 + $0x4b8] sm:$0xff]
  %v214 = vld [vmem:[%s1 + $0x4c0] sm:$0xff]
  %v215 = vld [vmem:[%s1 + $0x4c8] sm:$0xff]
  %v216 = vld [vmem:[%s1 + $0x4d0] sm:$0xff]
  %v217 = vld [vmem:[%s1 + $0x4d8] sm:$0xff]
  %v218 = vld [vmem:[%s1 + $0x4e0] sm:$0xff]
  %v219 = vld [vmem:[%s1 + $0x4e8] sm:$0xff]
  %v220 = vld [vmem:[%s1 + $0x4f0] sm:$0xff]
  %v221 = vld [vmem:[%s1 + $0x4f8] sm:$0xff]
  %v222 = vld [vmem:[%s1 + $0x500] sm:$0xff]
  %v223 = vld [vmem:[%s1 + $0x508] sm:$0xff]
  %v224 = vld [vmem:[%s1 + $0x510] sm:$0xff]
  %v225 = vld [vmem:[%s1 + $0x518] sm:$0xff]
  %v226 = vld [vmem:[%s1 + $0x520] sm:$0xff]
  %v227 = vld [vmem:[%s1 + $0x528] sm:$0xff]
  %v228 = vld [vmem:[%s1 + $0x530] sm:$0xff]
  %v229 = vld [vmem:[%s1 + $0x538] sm:$0xff]
  %v230 = vld [vmem:[%s1 + $0x540] sm:$0xff]
  %v231 = vld [vmem:[%s1 + $0x548] sm:$0xff]
  %v232 = vld [vmem:[%s1 + $0x550] sm:$0xff]
  %v233 = vld [vmem:[%s1 + $0x558] sm:$0xff]
  %v234 = vld [vmem:[%s1 + $0x560] sm:$0xff]
  %v235 = vld [vmem:[%s1 + $0x568] sm:$0xff]
  %v236 = vld [vmem:[%s1 + $0x570] sm:$0xff]
  %v237 = vld [vmem:[%s1 + $0x578] sm:$0xff]
  %v238 = vld [vmem:[%s1 + $0x580] sm:$0xff]
  %v239 = vld [vmem:[%s1 + $0x588] sm:$0xff]
  %v240 = vld [vmem:[%s1 + $0x590] sm:$0xff]
  %v241 = vld [vmem:[%s1 + $0x598] sm:$0xff]
  %v242 = vld [vmem:[%s1 + $0x5a0] sm:$0xff]
  %v243 = vld [vmem:[%s1 + $0x5a8] sm:$0xff]
  %v244 = vld [vmem:[%s1 + $0x5b0] sm:$0xff]
  %v245 = vld [vmem:[%s1 + $0x5b8] sm:$0xff]
  %v246 = vld [vmem:[%s1 + $0x5c0] sm:$0xff]
  %v247 = vld [vmem:[%s1 + $0x5c8] sm:$0xff]
  %v248 = vld [vmem:[%s1 + $0x5d0] sm:$0xff]
  %v249 = vld [vmem:[%s1 + $0x5d8] sm:$0xff]
  %v250 = vld [vmem:[%s1 + $0x5e0] sm:$0xff]
  %v251 = vld [vmem:[%s1 + $0x5e8] sm:$0xff]
  %v252 = vld [vmem:[%s1 + $0x5f0] sm:$0xff]
  %v253 = vld [vmem:[%s1 + $0x5f8] sm:$0xff]
  %v254 = vld [vmem:[%s1 + $0x600] sm:$0xff]
  %v255 = vld [vmem:[%s1 + $0x608] sm:$0xff]
  %v256 = vld [vmem:[%s1 + $0x610] sm:$0xff]
  %v257 = vld [vmem:[%s1 + $0x618] sm:$0xff]
  %v258 = vld [vmem:[%s1 + $0x620] sm:$0xff]
  %v259 = vld [vmem:[%s1 + $0x628] sm:$0xff]
  %v260 = vld [vmem:[%s1 + $0x630] sm:$0xff]
  %v261 = vld [vmem:[%s1 + $0x638] sm:$0xff]
  %v262 = vld [vmem:[%s1 + $0x640] sm:$0xff]
  %v263 = vld [vmem:[%s1 + $0x648] sm:$0xff]
  %v264 = vld [vmem:[%s1 + $0x650] sm:$0xff]
  %v265 = vld [vmem:[%s1 + $0x658] sm:$0xff]
  %v266 = vld [vmem:[%s1 + $0x660] sm:$0xff]
  %v267 = vld [vmem:[%s1 + $0x668] sm:$0xff]
  %v268 = vld [vmem:[%s1 + $0x670] sm:$0xff]
  %v269 = vld [vmem:[%s1 + $0x678] sm:$0xff]
  %v270 = vld [vmem:[%s1 + $0x680] sm:$0xff]
  %v271 = vld [vmem:[%s1 + $0x688] sm:$0xff]
  %v272 = vld [vmem:[%s1 + $0x690] sm:$0xff]
  %v273 = vld [vmem:[%s1 + $0x698] sm:$0xff]
  %v274 = vld [vmem:[%s1 + $0x6a0] sm:$0xff]
  %v275 = vld [vmem:[%s1 + $0x6a8] sm:$0xff]
  %v276 = vld [vmem:[%s1 + $0x6b0] sm:$0xff]
  %v277 = vld [vmem:[%s1 + $0x6b8] sm:$0xff]
  %v278 = vld [vmem:[%s1 + $0x6c0] sm:$0xff]
  %v279 = vld [vmem:[%s1 + $0x6c8] sm:$0xff]
  %v280 = vld [vmem:[%s1 + $0x6d0] sm:$0xff]
  %v281 = vld [vmem:[%s1 + $0x6d8] sm:$0xff]
  %v282 = vld [vmem:[%s1 + $0x6e0] sm:$0xff]
  %v283 = vld [vmem:[%s1 + $0x6e8] sm:$0xff]
  %v284 = vld [vmem:[%s1 + $0x6f0] sm:$0xff]
  %v285 = vld [vmem:[%s1 + $0x6f8] sm:$0xff]
  %v286 = vld [vmem:[%s1 + $0x700] sm:$0xff]
  %v287 = vld [vmem:[%s1 + $0x708] sm:$0xff]
  %v288 = vld [vmem:[%s1 + $0x710] sm:$0xff]
  %v289 = vld [vmem:[%s1 + $0x718] sm:$0xff]
  %v290 = vld [vmem:[%s1 + $0x720] sm:$0xff]
  %v291 = vld [vmem:[%s1 + $0x728] sm:$0xff]
  %v292 = vld [vmem:[%s1 + $0x730] sm:$0xff]
  %v293 = vld [vmem:[%s1 + $0x738] sm:$0xff]
  %v294 = vld [vmem:[%s1 + $0x740] sm:$0xff]
  %v295 = vld [vmem:[%s1 + $0x748] sm:$0xff]
  %v296 = vld [vmem:[%s1 + $0x750] sm:$0xff]
  %v297 = vld [vmem:[%s1 + $0x758] sm:$0xff]
  %v298 = vld [vmem:[%s1 + $0x760] sm:$0xff]
  %v299 = vld [vmem:[%s1 + $0x768] sm:$0xff]
  %v300 = vld [vmem:[%s1 + $0x770] sm:$0xff]
  %v301 = vld [vmem:[%s1 + $0x778] sm:$0xff]
  %v302 = vld [vmem:[%s1 + $0x780] sm:$0xff]
  %v303 = vld [vmem:[%s1 + $0x788] sm:$0xff]
  %v304 = vld [vmem:[%s1 + $0x790] sm:$0xff]
  %v305 = vld [vmem:[%s1 + $0x798] sm:$0xff]
  %v306 = vld [vmem:[%s1 + $0x7a0] sm:$0xff]
  %v307 = vld [vmem:[%s1 + $0x7a8] sm:$0xff]
  %v308 = vld [vmem:[%s1 + $0x7b0] sm:$0xff]
  %v309 = vld [vmem:[%s1 + $0x7b8] sm:$0xff]
  %v310 = vld [vmem:[%s1 + $0x7c0] sm:$0xff]
  %v311 = vld [vmem:[%s1 + $0x7c8] sm:$0xff]
  %v312 = vld [vmem:[%s1 + $0x7d0] sm:$0xff]
  %v313 = vld [vmem:[%s1 + $0x7d8] sm:$0xff]
  %v314 = vld [vmem:[%s1 + $0x7e0] sm:$0xff]
  %v315 = vld [vmem:[%s1 + $0x7e8] sm:$0xff]
  %v316 = vld [vmem:[%s1 + $0x7f0] sm:$0xff]
  %v317 = vld [vmem:[%s1 + $0x7f8] sm:$0xff]
  %v318 = vld [vmem:[%s1 + $0x800] sm:$0xff]
  %v319 = vld [vmem:[%s1 + $0x808] sm:$0xff]
  %v320 = vld [vmem:[%s1 + $0x810] sm:$0xff]
  %v321 = vld [vmem:[%s1 + $0x818] sm:$0xff]
  %v322 = vld [vmem:[%s1 + $0x820] sm:$0xff]
  %v323 = vld [vmem:[%s1 + $0x828] sm:$0xff]
  %v324 = vld [vmem:[%s1 + $0x830] sm:$0xff]
  %v325 = vld [vmem:[%s1 + $0x838] sm:$0xff]
  %v326 = vld [vmem:[%s1 + $0x840] sm:$0xff]
  %v327 = vld [vmem:[%s1 + $0x848] sm:$0xff]
  %v328 = vld [vmem:[%s1 + $0x850] sm:$0xff]
  %v329 = vld [vmem:[%s1 + $0x858] sm:$0xff]
  %v330 = vld [vmem:[%s1 + $0x860] sm:$0xff]
  %v331 = vld [vmem:[%s1 + $0x868] sm:$0xff]
  %v332 = vld [vmem:[%s1 + $0x870] sm:$0xff]
  %v333 = vld [vmem:[%s1 + $0x878] sm:$0xff]
  %v334 = vld [vmem:[%s1 + $0x880] sm:$0xff]
  %v335 = vld [vmem:[%s1 + $0x888] sm:$0xff]
  %v336 = vld [vmem:[%s1 + $0x890] sm:$0xff]
  %v337 = vld [vmem:[%s1 + $0x898] sm:$0xff]
  %v338 = vld [vmem:[%s1 + $0x8a0] sm:$0xff]
  %v339 = vld [vmem:[%s1 + $0x8a8] sm:$0xff]
  %v340 = vld [vmem:[%s1 + $0x8b0] sm:$0xff]
  %v341 = vld [vmem:[%s1 + $0x8b8] sm:$0xff]
  %v342 = vld [vmem:[%s1 + $0x8c0] sm:$0xff]
  %v343 = vld [vmem:[%s1 + $0x8c8] sm:$0xff]
  %v344 = vld [vmem:[%s1 + $0x8d0] sm:$0xff]
  %v345 = vld [vmem:[%s1 + $0x8d8] sm:$0xff]
  %v346 = vld [vmem:[%s1 + $0x8e0] sm:$0xff]
  %v347 = vld [vmem:[%s1 + $0x8e8] sm:$0xff]
  %v348 = vld [vmem:[%s1 + $0x8f0] sm:$0xff]
  %v349 = vld [vmem:[%s1 + $0x8f8] sm:$0xff]
  %v350 = vld [vmem:[%s1 + $0x900] sm:$0xff]
  %v351 = vld [vmem:[%s1 + $0x908] sm:$0xff]
  %v352 = vld [vmem:[%s1 + $0x910] sm:$0xff]
  %v353 = vld [vmem:[%s1 + $0x918] sm:$0xff]
  %v354 = vld [vmem:[%s1 + $0x920] sm:$0xff]
  %v355 = vld [vmem:[%s1 + $0x928] sm:$0xff]
  %v356 = vld [vmem:[%s1 + $0x930] sm:$0xff]
  %v357 = vld [vmem:[%s1 + $0x938] sm:$0xff]
  %v358 = vld [vmem:[%s1 + $0x940] sm:$0xff]
  %v359 = vld [vmem:[%s1 + $0x948] sm:$0xff]
  %v360 = vld [vmem:[%s1 + $0x950] sm:$0xff]
  %v361 = vld [vmem:[%s1 + $0x958] sm:$0xff]
  %v362 = vld [vmem:[%s1 + $0x960] sm:$0xff]
  %v363 = vld [vmem:[%s1 + $0x968] sm:$0xff]
  %v364 = vld [vmem:[%s1 + $0x970] sm:$0xff]
  %v365 = vld [vmem:[%s1 + $0x978] sm:$0xff]
  %v366 = vld [vmem:[%s1 + $0x980] sm:$0xff]
  %v367 = vld [vmem:[%s1 + $0x988] sm:$0xff]
  %v368 = vld [vmem:[%s1 + $0x990] sm:$0xff]
  %v369 = vld [vmem:[%s1 + $0x998] sm:$0xff]
  %v370 = vld [vmem:[%s1 + $0x9a0] sm:$0xff]
  %v371 = vld [vmem:[%s1 + $0x9a8] sm:$0xff]
  %v372 = vld [vmem:[%s1 + $0x9b0] sm:$0xff]
  %v373 = vld [vmem:[%s1 + $0x9b8] sm:$0xff]
  %v374 = vld [vmem:[%s1 + $0x9c0] sm:$0xff]
  %v375 = vld [vmem:[%s1 + $0x9c8] sm:$0xff]
  %v376 = vld [vmem:[%s1 + $0x9d0] sm:$0xff]
  %v377 = vld [vmem:[%s1 + $0x9d8] sm:$0xff]
  %v378 = vld [vmem:[%s1 + $0x9e0] sm:$0xff]
  %v379 = vld [vmem:[%s1 + $0x9e8] sm:$0xff]
  %v380 = vld [vmem:[%s1 + $0x9f0] sm:$0xff]
  %v381 = vld [vmem:[%s1 + $0x9f8] sm:$0xff]
  %v382 = vld [vmem:[%s1 + $0xa00] sm:$0xff]
  %v383 = vld [vmem:[%s1 + $0xa08] sm:$0xff]
  %v384 = vld [vmem:[%s1 + $0xa10] sm:$0xff]
  %v385 = vld [vmem:[%s1 + $0xa18] sm:$0xff]
  %v386 = vld [vmem:[%s1 + $0xa20] sm:$0xff]
  %v387 = vld [vmem:[%s1 + $0xa28] sm:$0xff]
  %v388 = vld [vmem:[%s1 + $0xa30] sm:$0xff]
  %v389 = vld [vmem:[%s1 + $0xa38] sm:$0xff]
  %v390 = vld [vmem:[%s1 + $0xa40] sm:$0xff]
  %v391 = vld [vmem:[%s1 + $0xa48] sm:$0xff]
  %v392 = vld [vmem:[%s1 + $0xa50] sm:$0xff]
  %v393 = vld [vmem:[%s1 + $0xa58] sm:$0xff]
  %v394 = vld [vmem:[%s1 + $0xa60] sm:$0xff]
  %v395 = vld [vmem:[%s1 + $0xa68] sm:$0xff]
  %v396 = vld [vmem:[%s1 + $0xa70] sm:$0xff]
  %v397 = vld [vmem:[%s1 + $0xa78] sm:$0xff]
  %v398 = vld [vmem:[%s1 + $0xa80] sm:$0xff]
  %v399 = vld [vmem:[%s1 + $0xa88] sm:$0xff]
  %v400 = vld [vmem:[%s1 + $0xa90] sm:$0xff]
  %v401 = vld [vmem:[%s1 + $0xa98] sm:$0xff]
  %v402 = vld [vmem:[%s1 + $0xaa0] sm:$0xff]
  %v403 = vld [vmem:[%s1 + $0xaa8] sm:$0xff]
  %v404 = vld [vmem:[%s1 + $0xab0] sm:$0xff]
  %v405 = vld [vmem:[%s1 + $0xab8] sm:$0xff]
  %v406 = vld [vmem:[%s1 + $0xac0] sm:$0xff]
  %v407 = vld [vmem:[%s1 + $0xac8] sm:$0xff]
  %v408 = vld [vmem:[%s1 + $0xad0] sm:$0xff]
  %v409 = vld [vmem:[%s1 + $0xad8] sm:$0xff]
  %v410 = vld [vmem:[%s1 + $0xae0] sm:$0xff]
  %v411 = vld [vmem:[%s1 + $0xae8] sm:$0xff]
  %v412 = vld [vmem:[%s1 + $0xaf0] sm:$0xff]
  %v413 = vld [vmem:[%s1 + $0xaf8] sm:$0xff]
  %v414 = vld [vmem:[%s1 + $0xb00] sm:$0xff]
  %v415 = vld [vmem:[%s1 + $0xb08] sm:$0xff]
  %v416 = vld [vmem:[%s1 + $0xb10] sm:$0xff]
  %v417 = vld [vmem:[%s1 + $0xb18] sm:$0xff]
  %v418 = vld [vmem:[%s1 + $0xb20] sm:$0xff]
  %v419 = vld [vmem:[%s1 + $0xb28] sm:$0xff]
  %v420 = vld [vmem:[%s1 + $0xb30] sm:$0xff]
  %v421 = vld [vmem:[%s1 + $0xb38] sm:$0xff]
  %v422 = vld [vmem:[%s1 + $0xb40] sm:$0xff]
  %v423 = vld [vmem:[%s1 + $0xb48] sm:$0xff]
  %v424 = vld [vmem:[%s1 + $0xb50] sm:$0xff]
  %v425 = vld [vmem:[%s1 + $0xb58] sm:$0xff]
  %v426 = vld [vmem:[%s1 + $0xb60] sm:$0xff]
  %v427 = vld [vmem:[%s1 + $0xb68] sm:$0xff]
  %v428 = vld [vmem:[%s1 + $0xb70] sm:$0xff]
  %v429 = vld [vmem:[%s1 + $0xb78] sm:$0xff]
  %v430 = vld [vmem:[%s1 + $0xb80] sm:$0xff]
  %v431 = vld [vmem:[%s1 + $0xb88] sm:$0xff]
  %v432 = vld [vmem:[%s1 + $0xb90] sm:$0xff]
  %v433 = vld [vmem:[%s1 + $0xb98] sm:$0xff]
  %v434 = vld [vmem:[%s1 + $0xba0] sm:$0xff]
  %v435 = vld [vmem:[%s1 + $0xba8] sm:$0xff]
  %v436 = vld [vmem:[%s1 + $0xbb0] sm:$0xff]
  %v437 = vld [vmem:[%s1 + $0xbb8] sm:$0xff]
  %v438 = vld [vmem:[%s1 + $0xbc0] sm:$0xff]
  %v439 = vld [vmem:[%s1 + $0xbc8] sm:$0xff]
  %v440 = vld [vmem:[%s1 + $0xbd0] sm:$0xff]
  %v441 = vld [vmem:[%s1 + $0xbd8] sm:$0xff]
  %v442 = vld [vmem:[%s1 + $0xbe0] sm:$0xff]
  %v443 = vld [vmem:[%s1 + $0xbe8] sm:$0xff]
  %v444 = vld [vmem:[%s1 + $0xbf0] sm:$0xff]
  %v445 = vld [vmem:[%s1 + $0xbf8] sm:$0xff]
  %v446 = vld [vmem:[%s1 + $0xc00] sm:$0xff]
  %v447 = vld [vmem:[%s1 + $0xc08] sm:$0xff]
  %v448 = vld [vmem:[%s1 + $0xc10] sm:$0xff]
  %v449 = vld [vmem:[%s1 + $0xc18] sm:$0xff]
  %v450 = vld [vmem:[%s1 + $0xc20] sm:$0xff]
  %v451 = vld [vmem:[%s1 + $0xc28] sm:$0xff]
  %v452 = vld [vmem:[%s1 + $0xc30] sm:$0xff]
  %v453 = vld [vmem:[%s1 + $0xc38] sm:$0xff]
  %v454 = vld [vmem:[%s1 + $0xc40] sm:$0xff]
  %v455 = vld [vmem:[%s1 + $0xc48] sm:$0xff]
  %v456 = vld [vmem:[%s1 + $0xc50] sm:$0xff]
  %v457 = vld [vmem:[%s1 + $0xc58] sm:$0xff]
  %v458 = vld [vmem:[%s1 + $0xc60] sm:$0xff]
  %v459 = vld [vmem:[%s1 + $0xc68] sm:$0xff]
  %v460 = vld [vmem:[%s1 + $0xc70] sm:$0xff]
  %v461 = vld [vmem:[%s1 + $0xc78] sm:$0xff]
  %v462 = vld [vmem:[%s1 + $0xc80] sm:$0xff]
  %v463 = vld [vmem:[%s1 + $0xc88] sm:$0xff]
  %v464 = vld [vmem:[%s1 + $0xc90] sm:$0xff]
  %v465 = vld [vmem:[%s1 + $0xc98] sm:$0xff]
  %v466 = vld [vmem:[%s1 + $0xca0] sm:$0xff]
  %v467 = vld [vmem:[%s1 + $0xca8] sm:$0xff]
  %v468 = vld [vmem:[%s1 + $0xcb0] sm:$0xff]
  %v469 = vld [vmem:[%s1 + $0xcb8] sm:$0xff]
  %v470 = vld [vmem:[%s1 + $0xcc0] sm:$0xff]
  %v471 = vld [vmem:[%s1 + $0xcc8] sm:$0xff]
  %v472 = vld [vmem:[%s1 + $0xcd0] sm:$0xff]
  %v473 = vld [vmem:[%s1 + $0xcd8] sm:$0xff]
  %v474 = vld [vmem:[%s1 + $0xce0] sm:$0xff]
  %v475 = vld [vmem:[%s1 + $0xce8] sm:$0xff]
  %v476 = vld [vmem:[%s1 + $0xcf0] sm:$0xff]
  %v477 = vld [vmem:[%s1 + $0xcf8] sm:$0xff]
  %v478 = vld [vmem:[%s1 + $0xd00] sm:$0xff]
  %v479 = vld [vmem:[%s1 + $0xd08] sm:$0xff]
  %v480 = vld [vmem:[%s1 + $0xd10] sm:$0xff]
  %v481 = vld [vmem:[%s1 + $0xd18] sm:$0xff]
  %v482 = vld [vmem:[%s1 + $0xd20] sm:$0xff]
  %v483 = vld [vmem:[%s1 + $0xd28] sm:$0xff]
  %v484 = vld [vmem:[%s1 + $0xd30] sm:$0xff]
  %v485 = vld [vmem:[%s1 + $0xd38] sm:$0xff]
  %v486 = vld [vmem:[%s1 + $0xd40] sm:$0xff]
  %v487 = vld [vmem:[%s1 + $0xd48] sm:$0xff]
  %v488 = vld [vmem:[%s1 + $0xd50] sm:$0xff]
  %v489 = vld [vmem:[%s1 + $0xd58] sm:$0xff]
  %v490 = vld [vmem:[%s1 + $0xd60] sm:$0xff]
  %v491 = vld [vmem:[%s1 + $0xd68] sm:$0xff]
  %v492 = vld [vmem:[%s1 + $0xd70] sm:$0xff]
  %v493 = vld [vmem:[%s1 + $0xd78] sm:$0xff]
  %v494 = vld [vmem:[%s1 + $0xd80] sm:$0xff]
  %v495 = vld [vmem:[%s1 + $0xd88] sm:$0xff]
  %v496 = vld [vmem:[%s1 + $0xd90] sm:$0xff]
  %v497 = vld [vmem:[%s1 + $0xd98] sm:$0xff]
  %v498 = vld [vmem:[%s1 + $0xda0] sm:$0xff]
  %v499 = vld [vmem:[%s1 + $0xda8] sm:$0xff]
  %v500 = vld [vmem:[%s1 + $0xdb0] sm:$0xff]
  %v501 = vld [vmem:[%s1 + $0xdb8] sm:$0xff]
  %v502 = vld [vmem:[%s1 + $0xdc0] sm:$0xff]
  %v503 = vld [vmem:[%s1 + $0xdc8] sm:$0xff]
  %v504 = vld [vmem:[%s1 + $0xdd0] sm:$0xff]
  %v505 = vld [vmem:[%s1 + $0xdd8] sm:$0xff]
  %v506 = vld [vmem:[%s1 + $0xde0] sm:$0xff]
  %v507 = vld [vmem:[%s1 + $0xde8] sm:$0xff]
  %v508 = vld [vmem:[%s1 + $0xdf0] sm:$0xff]
  %v509 = vld [vmem:[%s1 + $0xdf8] sm:$0xff]
  %v510 = vld [vmem:[%s1 + $0xe00] sm:$0xff]
  %v511 = vld [vmem:[%s1 + $0xe08] sm:$0xff]
  %v512 = vld [vmem:[%s1 + $0xe10] sm:$0xff]
  %v513 = vld [vmem:[%s1 + $0xe18] sm:$0xff]
  %v514 = vld [vmem:[%s1 + $0xe20] sm:$0xff]
  %v515 = vld [vmem:[%s1 + $0xe28] sm:$0xff]
  %v516 = vld [vmem:[%s1 + $0xe30] sm:$0xff]
  %v517 = vld [vmem:[%s1 + $0xe38] sm:$0xff]
  %v518 = vld [vmem:[%s1 + $0xe40] sm:$0xff]
  %v519 = vld [vmem:[%s1 + $0xe48] sm:$0xff]
  %v520 = vld [vmem:[%s1 + $0xe50] sm:$0xff]
  %v521 = vld [vmem:[%s1 + $0xe58] sm:$0xff]
  %v522 = vld [vmem:[%s1 + $0xe60] sm:$0xff]
  %v523 = vld [vmem:[%s1 + $0xe68] sm:$0xff]
  %v524 = vld [vmem:[%s1 + $0xe70] sm:$0xff]
  %v525 = vld [vmem:[%s1 + $0xe78] sm:$0xff]
  %v526 = vld [vmem:[%s1 + $0xe80] sm:$0xff]
  %v527 = vld [vmem:[%s1 + $0xe88] sm:$0xff]
  %v528 = vld [vmem:[%s1 + $0xe90] sm:$0xff]
  %v529 = vld [vmem:[%s1 + $0xe98] sm:$0xff]
  %v530 = vld [vmem:[%s1 + $0xea0] sm:$0xff]
  %v531 = vld [vmem:[%s1 + $0xea8] sm:$0xff]
  %v532 = vld [vmem:[%s1 + $0xeb0] sm:$0xff]
  %v533 = vld [vmem:[%s1 + $0xeb8] sm:$0xff]
  %v534 = vld [vmem:[%s1 + $0xec0] sm:$0xff]
  %v535 = vld [vmem:[%s1 + $0xec8] sm:$0xff]
  %v536 = vld [vmem:[%s1 + $0xed0] sm:$0xff]
  %v537 = vld [vmem:[%s1 + $0xed8] sm:$0xff]
  %v538 = vld [vmem:[%s1 + $0xee0] sm:$0xff]
  %v539 = vld [vmem:[%s1 + $0xee8] sm:$0xff]
  %v540 = vld [vmem:[%s1 + $0xef0] sm:$0xff]
  %v541 = vld [vmem:[%s1 + $0xef8] sm:$0xff]
  %v542 = vld [vmem:[%s1 + $0xf00] sm:$0xff]
  %v543 = vld [vmem:[%s1 + $0xf08] sm:$0xff]
  %v544 = vld [vmem:[%s1 + $0xf10] sm:$0xff]
  %v545 = vld [vmem:[%s1 + $0xf18] sm:$0xff]
  %v546 = vld [vmem:[%s1 + $0xf20] sm:$0xff]
  %v547 = vld [vmem:[%s1 + $0xf28] sm:$0xff]
  %v548 = vld [vmem:[%s1 + $0xf30] sm:$0xff]
  %v549 = vld [vmem:[%s1 + $0xf38] sm:$0xff]
  %v550 = vld [vmem:[%s1 + $0xf40] sm:$0xff]
  %v551 = vld [vmem:[%s1 + $0xf48] sm:$0xff]
  %v552 = vld [vmem:[%s1 + $0xf50] sm:$0xff]
  %v553 = vld [vmem:[%s1 + $0xf58] sm:$0xff]
  %v554 = vld [vmem:[%s1 + $0xf60] sm:$0xff]
  %v555 = vld [vmem:[%s1 + $0xf68] sm:$0xff]
  %v556 = vld [vmem:[%s1 + $0xf70] sm:$0xff]
  %v557 = vld [vmem:[%s1 + $0xf78] sm:$0xff]
  %v558 = vld [vmem:[%s1 + $0xf80] sm:$0xff]
  %v559 = vld [vmem:[%s1 + $0xf88] sm:$0xff]
  %v560 = vld [vmem:[%s1 + $0xf90] sm:$0xff]
  %v561 = vld [vmem:[%s1 + $0xf98] sm:$0xff]
  %v562 = vld [vmem:[%s1 + $0xfa0] sm:$0xff]
  %v563 = vld [vmem:[%s1 + $0xfa8] sm:$0xff]
  %v564 = vld [vmem:[%s1 + $0xfb0] sm:$0xff]
  %v565 = vld [vmem:[%s1 + $0xfb8] sm:$0xff]
  %v566 = vld [vmem:[%s1 + $0xfc0] sm:$0xff]
  %v567 = vld [vmem:[%s1 + $0xfc8] sm:$0xff]
  %v568 = vld [vmem:[%s1 + $0xfd0] sm:$0xff]
  %v569 = vld [vmem:[%s1 + $0xfd8] sm:$0xff]
  %v570 = vld [vmem:[%s1 + $0xfe0] sm:$0xff]
  %v571 = vld [vmem:[%s1 + $0xfe8] sm:$0xff]
  %v572 = vld [vmem:[%s1 + $0xff0] sm:$0xff]
  %v573 = vld [vmem:[%s1 + $0xff8] sm:$0xff]
  %v574 = vld [vmem:[%s1 + $0x1000] sm:$0xff]
  %v575 = vld [vmem:[%s1 + $0x1008] sm:$0xff]
  %v576 = vld [vmem:[%s1 + $0x1010] sm:$0xff]
  %v577 = vld [vmem:[%s1 + $0x1018] sm:$0xff]
  %v578 = vld [vmem:[%s1 + $0x1020] sm:$0xff]
  %v579 = vld [vmem:[%s1 + $0x1028] sm:$0xff]
  %v580 = vld [vmem:[%s1 + $0x1030] sm:$0xff]
  %v581 = vld [vmem:[%s1 + $0x1038] sm:$0xff]
  %v582 = vld [vmem:[%s1 + $0x1040] sm:$0xff]
  %v583 = vld [vmem:[%s1 + $0x1048] sm:$0xff]
  %v584 = vld [vmem:[%s1 + $0x1050] sm:$0xff]
  %v585 = vld [vmem:[%s1 + $0x1058] sm:$0xff]
  %v586 = vld [vmem:[%s1 + $0x1060] sm:$0xff]
  %v587 = vld [vmem:[%s1 + $0x1068] sm:$0xff]
  %v588 = vld [vmem:[%s1 + $0x1070] sm:$0xff]
  %v589 = vld [vmem:[%s1 + $0x1078] sm:$0xff]
  %v590 = vld [vmem:[%s1 + $0x1080] sm:$0xff]
  %v591 = vld [vmem:[%s1 + $0x1088] sm:$0xff]
  %v592 = vld [vmem:[%s1 + $0x1090] sm:$0xff]
  %v593 = vld [vmem:[%s1 + $0x1098] sm:$0xff]
  %v594 = vld [vmem:[%s1 + $0x10a0] sm:$0xff]
  %v595 = vld [vmem:[%s1 + $0x10a8] sm:$0xff]
  %v596 = vld [vmem:[%s1 + $0x10b0] sm:$0xff]
  %v597 = vld [vmem:[%s1 + $0x10b8] sm:$0xff]
  %v598 = vld [vmem:[%s1 + $0x10c0] sm:$0xff]
  %v599 = vld [vmem:[%s1 + $0x10c8] sm:$0xff]
  %v600 = vld [vmem:[%s1 + $0x10d0] sm:$0xff]
  %v601 = vld [vmem:[%s1 + $0x10d8] sm:$0xff]
  %v602 = vld [vmem:[%s1 + $0x10e0] sm:$0xff]
  %v603 = vld [vmem:[%s1 + $0x10e8] sm:$0xff]
  %v604 = vld [vmem:[%s1 + $0x10f0] sm:$0xff]
  %v605 = vld [vmem:[%s1 + $0x10f8] sm:$0xff]
  %v606 = vld [vmem:[%s1 + $0x1100] sm:$0xff]
  %v607 = vld [vmem:[%s1 + $0x1108] sm:$0xff]
  %v608 = vld [vmem:[%s1 + $0x1110] sm:$0xff]
  %v609 = vld [vmem:[%s1 + $0x1118] sm:$0xff]
  %v610 = vld [vmem:[%s1 + $0x1120] sm:$0xff]
  %v611 = vld [vmem:[%s1 + $0x1128] sm:$0xff]
  %v612 = vld [vmem:[%s1 + $0x1130] sm:$0xff]
  %v613 = vld [vmem:[%s1 + $0x1138] sm:$0xff]
  %v614 = vld [vmem:[%s1 + $0x1140] sm:$0xff]
  %v615 = vld [vmem:[%s1 + $0x1148] sm:$0xff]
  %v616 = vld [vmem:[%s1 + $0x1150] sm:$0xff]
  %v617 = vld [vmem:[%s1 + $0x1158] sm:$0xff]
  %v618 = vld [vmem:[%s1 + $0x1160] sm:$0xff]
  %v619 = vld [vmem:[%s1 + $0x1168] sm:$0xff]
  %v620 = vld [vmem:[%s1 + $0x1170] sm:$0xff]
  %v621 = vld [vmem:[%s1 + $0x1178] sm:$0xff]
  %v622 = vld [vmem:[%s1 + $0x1180] sm:$0xff]
  %v623 = vld [vmem:[%s1 + $0x1188] sm:$0xff]
  %v624 = vld [vmem:[%s1 + $0x1190] sm:$0xff]
  %v625 = vld [vmem:[%s1 + $0x1198] sm:$0xff]
  %v626 = vld [vmem:[%s1 + $0x11a0] sm:$0xff]
  %v627 = vld [vmem:[%s1 + $0x11a8] sm:$0xff]
  %v628 = vld [vmem:[%s1 + $0x11b0] sm:$0xff]
  %v629 = vld [vmem:[%s1 + $0x11b8] sm:$0xff]
  %v630 = vld [vmem:[%s1 + $0x11c0] sm:$0xff]
  %v631 = vld [vmem:[%s1 + $0x11c8] sm:$0xff]
  %v632 = vld [vmem:[%s1 + $0x11d0] sm:$0xff]
  %v633 = vld [vmem:[%s1 + $0x11d8] sm:$0xff]
  %v634 = vld [vmem:[%s1 + $0x11e0] sm:$0xff]
  %v635 = vld [vmem:[%s1 + $0x11e8] sm:$0xff]
  %v636 = vld [vmem:[%s1 + $0x11f0] sm:$0xff]
  %v637 = vld [vmem:[%s1 + $0x11f8] sm:$0xff]
  %v638 = vld [vmem:[%s1 + $0x1200] sm:$0xff]
  %v639 = vld [vmem:[%s1 + $0x1208] sm:$0xff]
  %v640 = vld [vmem:[%s1 + $0x1210] sm:$0xff]
  %v641 = vld [vmem:[%s1 + $0x1218] sm:$0xff]
  %v642 = vld [vmem:[%s1 + $0x1220] sm:$0xff]
  %v643 = vld [vmem:[%s1 + $0x1228] sm:$0xff]
  %v644 = vld [vmem:[%s1 + $0x1230] sm:$0xff]
  %v645 = vld [vmem:[%s1 + $0x1238] sm:$0xff]
  %v646 = vld [vmem:[%s1 + $0x1240] sm:$0xff]
  %v647 = vld [vmem:[%s1 + $0x1248] sm:$0xff]
  %v648 = vld [vmem:[%s1 + $0x1250] sm:$0xff]
  %v649 = vld [vmem:[%s1 + $0x1258] sm:$0xff]
  %v650 = vld [vmem:[%s1 + $0x1260] sm:$0xff]
  %v651 = vld [vmem:[%s1 + $0x1268] sm:$0xff]
  %v652 = vld [vmem:[%s1 + $0x1270] sm:$0xff]
  %v653 = vld [vmem:[%s1 + $0x1278] sm:$0xff]
  %v654 = vld [vmem:[%s1 + $0x1280] sm:$0xff]
  %v655 = vld [vmem:[%s1 + $0x1288] sm:$0xff]
  %v656 = vld [vmem:[%s1 + $0x1290] sm:$0xff]
  %v657 = vld [vmem:[%s1 + $0x1298] sm:$0xff]
  %v658 = vld [vmem:[%s1 + $0x12a0] sm:$0xff]
  %v659 = vld [vmem:[%s1 + $0x12a8] sm:$0xff]
  %v660 = vld [vmem:[%s1 + $0x12b0] sm:$0xff]
  %v661 = vld [vmem:[%s1 + $0x12b8] sm:$0xff]
  %v662 = vld [vmem:[%s1 + $0x12c0] sm:$0xff]
  %v663 = vld [vmem:[%s1 + $0x12c8] sm:$0xff]
  %v664 = vld [vmem:[%s1 + $0x12d0] sm:$0xff]
  %v665 = vld [vmem:[%s1 + $0x12d8] sm:$0xff]
  %v666 = vld [vmem:[%s1 + $0x12e0] sm:$0xff]
  %v667 = vld [vmem:[%s1 + $0x12e8] sm:$0xff]
  %v668 = vld [vmem:[%s1 + $0x12f0] sm:$0xff]
  %v669 = vld [vmem:[%s1 + $0x12f8] sm:$0xff]
  %v670 = vld [vmem:[%s1 + $0x1300] sm:$0xff]
  %v671 = vld [vmem:[%s1 + $0x1308] sm:$0xff]
  %v672 = vld [vmem:[%s1 + $0x1310] sm:$0xff]
  %v673 = vld [vmem:[%s1 + $0x1318] sm:$0xff]
  %v674 = vld [vmem:[%s1 + $0x1320] sm:$0xff]
  %v675 = vld [vmem:[%s1 + $0x1328] sm:$0xff]
  %v676 = vld [vmem:[%s1 + $0x1330] sm:$0xff]
  %v677 = vld [vmem:[%s1 + $0x1338] sm:$0xff]
  %v678 = vld [vmem:[%s1 + $0x1340] sm:$0xff]
  %v679 = vld [vmem:[%s1 + $0x1348] sm:$0xff]
  %v680 = vld [vmem:[%s1 + $0x1350] sm:$0xff]
  %v681 = vld [vmem:[%s1 + $0x1358] sm:$0xff]
  %v682 = vld [vmem:[%s1 + $0x1360] sm:$0xff]
  %v683 = vld [vmem:[%s1 + $0x1368] sm:$0xff]
  %v684 = vld [vmem:[%s1 + $0x1370] sm:$0xff]
  %v685 = vld [vmem:[%s1 + $0x1378] sm:$0xff]
  %v686 = vld [vmem:[%s1 + $0x1380] sm:$0xff]
  %v687 = vld [vmem:[%s1 + $0x1388] sm:$0xff]
  %v688 = vld [vmem:[%s1 + $0x1390] sm:$0xff]
  %v689 = vld [vmem:[%s1 + $0x1398] sm:$0xff]
  %v690 = vld [vmem:[%s1 + $0x13a0] sm:$0xff]
  %v691 = vld [vmem:[%s1 + $0x13a8] sm:$0xff]
  %v692 = vld [vmem:[%s1 + $0x13b0] sm:$0xff]
  %v693 = vld [vmem:[%s1 + $0x13b8] sm:$0xff]
  %v694 = vld [vmem:[%s1 + $0x13c0] sm:$0xff]
  %v695 = vld [vmem:[%s1 + $0x13c8] sm:$0xff]
  %v696 = vld [vmem:[%s1 + $0x13d0] sm:$0xff]
  %v697 = vld [vmem:[%s1 + $0x13d8] sm:$0xff]
  %v698 = vld [vmem:[%s1 + $0x13e0] sm:$0xff]
  %v699 = vld [vmem:[%s1 + $0x13e8] sm:$0xff]
  %v700 = vld [vmem:[%s1 + $0x13f0] sm:$0xff]
  %v701 = vld [vmem:[%s1 + $0x13f8] sm:$0xff]
  %v702 = vld [vmem:[%s1 + $0x1400] sm:$0xff]
  %v703 = vld [vmem:[%s1 + $0x1408] sm:$0xff]
  %v704 = vld [vmem:[%s1 + $0x1410] sm:$0xff]
  %v705 = vld [vmem:[%s1 + $0x1418] sm:$0xff]
  %v706 = vld [vmem:[%s1 + $0x1420] sm:$0xff]
  %v707 = vld [vmem:[%s1 + $0x1428] sm:$0xff]
  %v708 = vld [vmem:[%s1 + $0x1430] sm:$0xff]
  %v709 = vld [vmem:[%s1 + $0x1438] sm:$0xff]
  %v710 = vld [vmem:[%s1 + $0x1440] sm:$0xff]
  %v711 = vld [vmem:[%s1 + $0x1448] sm:$0xff]
  %v712 = vld [vmem:[%s1 + $0x1450] sm:$0xff]
  %v713 = vld [vmem:[%s1 + $0x1458] sm:$0xff]
  %v714 = vld [vmem:[%s1 + $0x1460] sm:$0xff]
  %v715 = vld [vmem:[%s1 + $0x1468] sm:$0xff]
  %v716 = vld [vmem:[%s1 + $0x1470] sm:$0xff]
  %v717 = vld [vmem:[%s1 + $0x1478] sm:$0xff]
  %v718 = vld [vmem:[%s1 + $0x1480] sm:$0xff]
  %v719 = vld [vmem:[%s1 + $0x1488] sm:$0xff]
  %v720 = vld [vmem:[%s1 + $0x1490] sm:$0xff]
  %v721 = vld [vmem:[%s1 + $0x1498] sm:$0xff]
  %v722 = vld [vmem:[%s1 + $0x14a0] sm:$0xff]
  %v723 = vld [vmem:[%s1 + $0x14a8] sm:$0xff]
  %v724 = vld [vmem:[%s1 + $0x14b0] sm:$0xff]
  %v725 = vld [vmem:[%s1 + $0x14b8] sm:$0xff]
  %v726 = vld [vmem:[%s1 + $0x14c0] sm:$0xff]
  %v727 = vld [vmem:[%s1 + $0x14c8] sm:$0xff]
  %v728 = vld [vmem:[%s1 + $0x14d0] sm:$0xff]
  %v729 = vld [vmem:[%s1 + $0x14d8] sm:$0xff]
  %v730 = vld [vmem:[%s1 + $0x14e0] sm:$0xff]
  %v731 = vld [vmem:[%s1 + $0x14e8] sm:$0xff]
  %v732 = vld [vmem:[%s1 + $0x14f0] sm:$0xff]
  %v733 = vld [vmem:[%s1 + $0x14f8] sm:$0xff]
  %v734 = vld [vmem:[%s1 + $0x1500] sm:$0xff]
  %v735 = vld [vmem:[%s1 + $0x1508] sm:$0xff]
  %v736 = vld [vmem:[%s1 + $0x1510] sm:$0xff]
  %v737 = vld [vmem:[%s1 + $0x1518] sm:$0xff]
  %v738 = vld [vmem:[%s1 + $0x1520] sm:$0xff]
  %v739 = vld [vmem:[%s1 + $0x1528] sm:$0xff]
  %v740 = vld [vmem:[%s1 + $0x1530] sm:$0xff]
  %v741 = vld [vmem:[%s1 + $0x1538] sm:$0xff]
  %v742 = vld [vmem:[%s1 + $0x1540] sm:$0xff]
  %v743 = vld [vmem:[%s1 + $0x1548] sm:$0xff]
  %v744 = vld [vmem:[%s1 + $0x1550] sm:$0xff]
  %v745 = vld [vmem:[%s1 + $0x1558] sm:$0xff]
  %v746 = vld [vmem:[%s1 + $0x1560] sm:$0xff]
  %v747 = vld [vmem:[%s1 + $0x1568] sm:$0xff]
  %v748 = vld [vmem:[%s1 + $0x1570] sm:$0xff]
  %v749 = vld [vmem:[%s1 + $0x1578] sm:$0xff]
  %v750 = vld [vmem:[%s1 + $0x1580] sm:$0xff]
  %v751 = vld [vmem:[%s1 + $0x1588] sm:$0xff]
  %v752 = vld [vmem:[%s1 + $0x1590] sm:$0xff]
  %v753 = vld [vmem:[%s1 + $0x1598] sm:$0xff]
  %v754 = vld [vmem:[%s1 + $0x15a0] sm:$0xff]
  %v755 = vld [vmem:[%s1 + $0x15a8] sm:$0xff]
  %v756 = vld [vmem:[%s1 + $0x15b0] sm:$0xff]
  %v757 = vld [vmem:[%s1 + $0x15b8] sm:$0xff]
  %v758 = vld [vmem:[%s1 + $0x15c0] sm:$0xff]
  %v759 = vld [vmem:[%s1 + $0x15c8] sm:$0xff]
  %v760 = vld [vmem:[%s1 + $0x15d0] sm:$0xff]
  %v761 = vld [vmem:[%s1 + $0x15d8] sm:$0xff]
  %v762 = vld [vmem:[%s1 + $0x15e0] sm:$0xff]
  %v763 = vld [vmem:[%s1 + $0x15e8] sm:$0xff]
  %v764 = vld [vmem:[%s1 + $0x15f0] sm:$0xff]
  %v765 = vld [vmem:[%s1 + $0x15f8] sm:$0xff]
  %v766 = vld [vmem:[%s1 + $0x1600] sm:$0xff]
  %v767 = vld [vmem:[%s1 + $0x1608] sm:$0xff]
  %v768 = vld [vmem:[%s1 + $0x1610] sm:$0xff]
  %v769 = vld [vmem:[%s1 + $0x1618] sm:$0xff]
  %v770 = vld [vmem:[%s1 + $0x1620] sm:$0xff]
  %v771 = vld [vmem:[%s1 + $0x1628] sm:$0xff]
  %v772 = vld [vmem:[%s1 + $0x1630] sm:$0xff]
  %v773 = vld [vmem:[%s1 + $0x1638] sm:$0xff]
  %v774 = vld [vmem:[%s1 + $0x1640] sm:$0xff]
  %v775 = vld [vmem:[%s1 + $0x1648] sm:$0xff]
  %v776 = vld [vmem:[%s1 + $0x1650] sm:$0xff]
  %v777 = vld [vmem:[%s1 + $0x1658] sm:$0xff]
  %v778 = vld [vmem:[%s1 + $0x1660] sm:$0xff]
  %v779 = vld [vmem:[%s1 + $0x1668] sm:$0xff]
  %v780 = vld [vmem:[%s1 + $0x1670] sm:$0xff]
  %v781 = vld [vmem:[%s1 + $0x1678] sm:$0xff]
  %v782 = vld [vmem:[%s1 + $0x1680] sm:$0xff]
  %v783 = vld [vmem:[%s1 + $0x1688] sm:$0xff]
  %v784 = vld [vmem:[%s1 + $0x1690] sm:$0xff]
  %v785 = vld [vmem:[%s1 + $0x1698] sm:$0xff]
  %v786 = vld [vmem:[%s1 + $0x16a0] sm:$0xff]
  %v787 = vld [vmem:[%s1 + $0x16a8] sm:$0xff]
  %v788 = vld [vmem:[%s1 + $0x16b0] sm:$0xff]
  %v789 = vld [vmem:[%s1 + $0x16b8] sm:$0xff]
  %v790 = vld [vmem:[%s1 + $0x16c0] sm:$0xff]
  %v791 = vld [vmem:[%s1 + $0x16c8] sm:$0xff]
  %v792 = vld [vmem:[%s1 + $0x16d0] sm:$0xff]
  %v793 = vld [vmem:[%s1 + $0x16d8] sm:$0xff]
  %v794 = vld [vmem:[%s1 + $0x16e0] sm:$0xff]
  %v795 = vld [vmem:[%s1 + $0x16e8] sm:$0xff]
  %v796 = vld [vmem:[%s1 + $0x16f0] sm:$0xff]
  %v797 = vld [vmem:[%s1 + $0x16f8] sm:$0xff]
  %v798 = vld [vmem:[%s1 + $0x1700] sm:$0xff]
  %v799 = vld [vmem:[%s1 + $0x1708] sm:$0xff]
  %v800 = vld [vmem:[%s1 + $0x1710] sm:$0xff]
  %v801 = vld [vmem:[%s1 + $0x1718] sm:$0xff]
  %v802 = vld [vmem:[%s1 + $0x1720] sm:$0xff]
  %v803 = vld [vmem:[%s1 + $0x1728] sm:$0xff]
  %v804 = vld [vmem:[%s1 + $0x1730] sm:$0xff]
  %v805 = vld [vmem:[%s1 + $0x1738] sm:$0xff]
  %v806 = vld [vmem:[%s1 + $0x1740] sm:$0xff]
  %v807 = vld [vmem:[%s1 + $0x1748] sm:$0xff]
  %v808 = vld [vmem:[%s1 + $0x1750] sm:$0xff]
  %v809 = vld [vmem:[%s1 + $0x1758] sm:$0xff]
  %v810 = vld [vmem:[%s1 + $0x1760] sm:$0xff]
  %v811 = vld [vmem:[%s1 + $0x1768] sm:$0xff]
  %v812 = vld [vmem:[%s1 + $0x1770] sm:$0xff]
  %v813 = vld [vmem:[%s1 + $0x1778] sm:$0xff]
  %v814 = vld [vmem:[%s1 + $0x1780] sm:$0xff]
  %v815 = vld [vmem:[%s1 + $0x1788] sm:$0xff]
  %v816 = vld [vmem:[%s1 + $0x1790] sm:$0xff]
  %v817 = vld [vmem:[%s1 + $0x1798] sm:$0xff]
  %v818 = vld [vmem:[%s1 + $0x17a0] sm:$0xff]
  %v819 = vld [vmem:[%s1 + $0x17a8] sm:$0xff]
  %v820 = vld [vmem:[%s1 + $0x17b0] sm:$0xff]
  %v821 = vld [vmem:[%s1 + $0x17b8] sm:$0xff]
  %v822 = vld [vmem:[%s1 + $0x17c0] sm:$0xff]
  %v823 = vld [vmem:[%s1 + $0x17c8] sm:$0xff]
  %v824 = vld [vmem:[%s1 + $0x17d0] sm:$0xff]
  %v825 = vld [vmem:[%s1 + $0x17d8] sm:$0xff]
  %v826 = vld [vmem:[%s1 + $0x17e0] sm:$0xff]
  %v827 = vld [vmem:[%s1 + $0x17e8] sm:$0xff]
  %v828 = vld [vmem:[%s1 + $0x17f0] sm:$0xff]
  %v829 = vld [vmem:[%s1 + $0x17f8] sm:$0xff]
  %v830 = vld [vmem:[%s1 + $0x1800] sm:$0xff]
  %v831 = vld [vmem:[%s1 + $0x1808] sm:$0xff]
  %v832 = vld [vmem:[%s1 + $0x1810] sm:$0xff]
  %v833 = vld [vmem:[%s1 + $0x1818] sm:$0xff]
  %v834 = vld [vmem:[%s1 + $0x1820] sm:$0xff]
  %v835 = vld [vmem:[%s1 + $0x1828] sm:$0xff]
  %v836 = vld [vmem:[%s1 + $0x1830] sm:$0xff]
  %v837 = vld [vmem:[%s1 + $0x1838] sm:$0xff]
  %v838 = vld [vmem:[%s1 + $0x1840] sm:$0xff]
  %v839 = vld [vmem:[%s1 + $0x1848] sm:$0xff]
  %v840 = vld [vmem:[%s1 + $0x1850] sm:$0xff]
  %v841 = vld [vmem:[%s1 + $0x1858] sm:$0xff]
  %v842 = vld [vmem:[%s1 + $0x1860] sm:$0xff]
  %v843 = vld [vmem:[%s1 + $0x1868] sm:$0xff]
  %v844 = vld [vmem:[%s1 + $0x1870] sm:$0xff]
  %v845 = vld [vmem:[%s1 + $0x1878] sm:$0xff]
  %v846 = vld [vmem:[%s1 + $0x1880] sm:$0xff]
  %v847 = vld [vmem:[%s1 + $0x1888] sm:$0xff]
  %v848 = vld [vmem:[%s1 + $0x1890] sm:$0xff]
  %v849 = vld [vmem:[%s1 + $0x1898] sm:$0xff]
  %v850 = vld [vmem:[%s1 + $0x18a0] sm:$0xff]
  %v851 = vld [vmem:[%s1 + $0x18a8] sm:$0xff]
  %v852 = vld [vmem:[%s1 + $0x18b0] sm:$0xff]
  %v853 = vld [vmem:[%s1 + $0x18b8] sm:$0xff]
  %v854 = vld [vmem:[%s1 + $0x18c0] sm:$0xff]
  %v855 = vld [vmem:[%s1 + $0x18c8] sm:$0xff]
  %v856 = vld [vmem:[%s1 + $0x18d0] sm:$0xff]
  %v857 = vld [vmem:[%s1 + $0x18d8] sm:$0xff]
  %v858 = vld [vmem:[%s1 + $0x18e0] sm:$0xff]
  %v859 = vld [vmem:[%s1 + $0x18e8] sm:$0xff]
  %v860 = vld [vmem:[%s1 + $0x18f0] sm:$0xff]
  %v861 = vld [vmem:[%s1 + $0x18f8] sm:$0xff]
  %v862 = vld [vmem:[%s1 + $0x1900] sm:$0xff]
  %v863 = vld [vmem:[%s1 + $0x1908] sm:$0xff]
  %v864 = vld [vmem:[%s1 + $0x1910] sm:$0xff]
  %v865 = vld [vmem:[%s1 + $0x1918] sm:$0xff]
  %v866 = vld [vmem:[%s1 + $0x1920] sm:$0xff]
  %v867 = vld [vmem:[%s1 + $0x1928] sm:$0xff]
  %v868 = vld [vmem:[%s1 + $0x1930] sm:$0xff]
  %v869 = vld [vmem:[%s1 + $0x1938] sm:$0xff]
  %v870 = vld [vmem:[%s1 + $0x1940] sm:$0xff]
  %v871 = vld [vmem:[%s1 + $0x1948] sm:$0xff]
  %v872 = vld [vmem:[%s1 + $0x1950] sm:$0xff]
  %v873 = vld [vmem:[%s1 + $0x1958] sm:$0xff]
  %v874 = vld [vmem:[%s1 + $0x1960] sm:$0xff]
  %v875 = vld [vmem:[%s1 + $0x1968] sm:$0xff]
  %v876 = vld [vmem:[%s1 + $0x1970] sm:$0xff]
  %v877 = vld [vmem:[%s1 + $0x1978] sm:$0xff]
  %v878 = vld [vmem:[%s1 + $0x1980] sm:$0xff]
  %v879 = vld [vmem:[%s1 + $0x1988] sm:$0xff]
  %v880 = vld [vmem:[%s1 + $0x1990] sm:$0xff]
  %v881 = vld [vmem:[%s1 + $0x1998] sm:$0xff]
  %v882 = vld [vmem:[%s1 + $0x19a0] sm:$0xff]
  %v883 = vld [vmem:[%s1 + $0x19a8] sm:$0xff]
  %v884 = vld [vmem:[%s1 + $0x19b0] sm:$0xff]
  %v885 = vld [vmem:[%s1 + $0x19b8] sm:$0xff]
  %v886 = vld [vmem:[%s1 + $0x19c0] sm:$0xff]
  %v887 = vld [vmem:[%s1 + $0x19c8] sm:$0xff]
  %v888 = vld [vmem:[%s1 + $0x19d0] sm:$0xff]
  %v889 = vld [vmem:[%s1 + $0x19d8] sm:$0xff]
  %v890 = vld [vmem:[%s1 + $0x19e0] sm:$0xff]
  %v891 = vld [vmem:[%s1 + $0x19e8] sm:$0xff]
  %v892 = vld [vmem:[%s1 + $0x19f0] sm:$0xff]
  %v893 = vld [vmem:[%s1 + $0x19f8] sm:$0xff]
  %v894 = vld [vmem:[%s1 + $0x1a00] sm:$0xff]
  %v895 = vld [vmem:[%s1 + $0x1a08] sm:$0xff]
  %v896 = vld [vmem:[%s1 + $0x1a10] sm:$0xff]
  %v897 = vld [vmem:[%s1 + $0x1a18] sm:$0xff]
  %v898 = vld [vmem:[%s1 + $0x1a20] sm:$0xff]
  %v899 = vld [vmem:[%s1 + $0x1a28] sm:$0xff]
  %v900 = vld [vmem:[%s1 + $0x1a30] sm:$0xff]
  %v901 = vld [vmem:[%s1 + $0x1a38] sm:$0xff]
  %v902 = vld [vmem:[%s1 + $0x1a40] sm:$0xff]
  %v903 = vld [vmem:[%s1 + $0x1a48] sm:$0xff]
  %v904 = vld [vmem:[%s1 + $0x1a50] sm:$0xff]
  %v905 = vld [vmem:[%s1 + $0x1a58] sm:$0xff]
  %v906 = vld [vmem:[%s1 + $0x1a60] sm:$0xff]
  %v907 = vld [vmem:[%s1 + $0x1a68] sm:$0xff]
  %v908 = vld [vmem:[%s1 + $0x1a70] sm:$0xff]
  %v909 = vld [vmem:[%s1 + $0x1a78] sm:$0xff]
  %v910 = vld [vmem:[%s1 + $0x1a80] sm:$0xff]
  %v911 = vld [vmem:[%s1 + $0x1a88] sm:$0xff]
  %v912 = vld [vmem:[%s1 + $0x1a90] sm:$0xff]
  %v913 = vld [vmem:[%s1 + $0x1a98] sm:$0xff]
  %v914 = vld [vmem:[%s1 + $0x1aa0] sm:$0xff]
  %v915 = vld [vmem:[%s1 + $0x1aa8] sm:$0xff]
  %v916 = vld [vmem:[%s1 + $0x1ab0] sm:$0xff]
  %v917 = vld [vmem:[%s1 + $0x1ab8] sm:$0xff]
  %v918 = vld [vmem:[%s1 + $0x1ac0] sm:$0xff]
  %v919 = vld [vmem:[%s1 + $0x1ac8] sm:$0xff]
  %v920 = vld [vmem:[%s1 + $0x1ad0] sm:$0xff]
  %v921 = vld [vmem:[%s1 + $0x1ad8] sm:$0xff]
  %v922 = vld [vmem:[%s1 + $0x1ae0] sm:$0xff]
  %v923 = vld [vmem:[%s1 + $0x1ae8] sm:$0xff]
  %v924 = vld [vmem:[%s1 + $0x1af0] sm:$0xff]
  %v925 = vld [vmem:[%s1 + $0x1af8] sm:$0xff]
  %v926 = vld [vmem:[%s1 + $0x1b00] sm:$0xff]
  %v927 = vld [vmem:[%s1 + $0x1b08] sm:$0xff]
  %v928 = vld [vmem:[%s1 + $0x1b10] sm:$0xff]
  %v929 = vld [vmem:[%s1 + $0x1b18] sm:$0xff]
  %v930 = vld [vmem:[%s1 + $0x1b20] sm:$0xff]
  %v931 = vld [vmem:[%s1 + $0x1b28] sm:$0xff]
  %v932 = vld [vmem:[%s1 + $0x1b30] sm:$0xff]
  %v933 = vld [vmem:[%s1 + $0x1b38] sm:$0xff]
  %v934 = vld [vmem:[%s1 + $0x1b40] sm:$0xff]
  %v935 = vld [vmem:[%s1 + $0x1b48] sm:$0xff]
  %v936 = vld [vmem:[%s1 + $0x1b50] sm:$0xff]
  %v937 = vld [vmem:[%s1 + $0x1b58] sm:$0xff]
  %v938 = vld [vmem:[%s1 + $0x1b60] sm:$0xff]
  %v939 = vld [vmem:[%s1 + $0x1b68] sm:$0xff]
  %v940 = vld [vmem:[%s1 + $0x1b70] sm:$0xff]
  %v941 = vld [vmem:[%s1 + $0x1b78] sm:$0xff]
  %v942 = vld [vmem:[%s1 + $0x1b80] sm:$0xff]
  %v943 = vld [vmem:[%s1 + $0x1b88] sm:$0xff]
  %v944 = vld [vmem:[%s1 + $0x1b90] sm:$0xff]
  %v945 = vld [vmem:[%s1 + $0x1b98] sm:$0xff]
  %v946 = vld [vmem:[%s1 + $0x1ba0] sm:$0xff]
  %v947 = vld [vmem:[%s1 + $0x1ba8] sm:$0xff]
  %v948 = vld [vmem:[%s1 + $0x1bb0] sm:$0xff]
  %v949 = vld [vmem:[%s1 + $0x1bb8] sm:$0xff]
  %v950 = vld [vmem:[%s1 + $0x1bc0] sm:$0xff]
  %v951 = vld [vmem:[%s1 + $0x1bc8] sm:$0xff]
  %v952 = vld [vmem:[%s1 + $0x1bd0] sm:$0xff]
  %v953 = vld [vmem:[%s1 + $0x1bd8] sm:$0xff]
  %v954 = vld [vmem:[%s1 + $0x1be0] sm:$0xff]
  %v955 = vld [vmem:[%s1 + $0x1be8] sm:$0xff]
  %v956 = vld [vmem:[%s1 + $0x1bf0] sm:$0xff]
  %v957 = vld [vmem:[%s1 + $0x1bf8] sm:$0xff]
  %v958 = vld [vmem:[%s1 + $0x1c00] sm:$0xff]
  %v959 = vld [vmem:[%s1 + $0x1c08] sm:$0xff]
  %v960 = vld [vmem:[%s1 + $0x1c10] sm:$0xff]
  %v961 = vld [vmem:[%s1 + $0x1c18] sm:$0xff]
  %v962 = vld [vmem:[%s1 + $0x1c20] sm:$0xff]
  %v963 = vld [vmem:[%s1 + $0x1c28] sm:$0xff]
  %v964 = vld [vmem:[%s1 + $0x1c30] sm:$0xff]
  %v965 = vld [vmem:[%s1 + $0x1c38] sm:$0xff]
  %v966 = vld [vmem:[%s1 + $0x1c40] sm:$0xff]
  %v967 = vld [vmem:[%s1 + $0x1c48] sm:$0xff]
  %v968 = vld [vmem:[%s1 + $0x1c50] sm:$0xff]
  %v969 = vld [vmem:[%s1 + $0x1c58] sm:$0xff]
  %v970 = vld [vmem:[%s1 + $0x1c60] sm:$0xff]
  %v971 = vld [vmem:[%s1 + $0x1c68] sm:$0xff]
  %v972 = vld [vmem:[%s1 + $0x1c70] sm:$0xff]
  %v973 = vld [vmem:[%s1 + $0x1c78] sm:$0xff]
  %v974 = vld [vmem:[%s1 + $0x1c80] sm:$0xff]
  %v975 = vld [vmem:[%s1 + $0x1c88] sm:$0xff]
  %v976 = vld [vmem:[%s1 + $0x1c90] sm:$0xff]
  %v977 = vld [vmem:[%s1 + $0x1c98] sm:$0xff]
  %v978 = vld [vmem:[%s1 + $0x1ca0] sm:$0xff]
  %v979 = vld [vmem:[%s1 + $0x1ca8] sm:$0xff]
  %v980 = vld [vmem:[%s1 + $0x1cb0] sm:$0xff]
  %v981 = vld [vmem:[%s1 + $0x1cb8] sm:$0xff]
  %v982 = vld [vmem:[%s1 + $0x1cc0] sm:$0xff]
  %v983 = vld [vmem:[%s1 + $0x1cc8] sm:$0xff]
  %v984 = vld [vmem:[%s1 + $0x1cd0] sm:$0xff]
  %v985 = vld [vmem:[%s1 + $0x1cd8] sm:$0xff]
  %v986 = vld [vmem:[%s1 + $0x1ce0] sm:$0xff]
  %v987 = vld [vmem:[%s1 + $0x1ce8] sm:$0xff]
  %v988 = vld [vmem:[%s1 + $0x1cf0] sm:$0xff]
  %v989 = vld [vmem:[%s1 + $0x1cf8] sm:$0xff]
  %v990 = vld [vmem:[%s1 + $0x1d00] sm:$0xff]
  %v991 = vld [vmem:[%s1 + $0x1d08] sm:$0xff]
  %v992 = vld [vmem:[%s1 + $0x1d10] sm:$0xff]
  %v993 = vld [vmem:[%s1 + $0x1d18] sm:$0xff]
  %v994 = vld [vmem:[%s1 + $0x1d20] sm:$0xff]
  %v995 = vld [vmem:[%s1 + $0x1d28] sm:$0xff]
  %v996 = vld [vmem:[%s1 + $0x1d30] sm:$0xff]
  %v997 = vld [vmem:[%s1 + $0x1d38] sm:$0xff]
  %v998 = vld [vmem:[%s1 + $0x1d40] sm:$0xff]
  %v999 = vld [vmem:[%s1 + $0x1d48] sm:$0xff]
  %v1000 = vld [vmem:[%s1 + $0x1d50] sm:$0xff]
  %v1001 = vld [vmem:[%s1 + $0x1d58] sm:$0xff]
  %v1002 = vld [vmem:[%s1 + $0x1d60] sm:$0xff]
  %v1003 = vld [vmem:[%s1 + $0x1d68] sm:$0xff]
  %v1004 = vld [vmem:[%s1 + $0x1d70] sm:$0xff]
  %v1005 = vld [vmem:[%s1 + $0x1d78] sm:$0xff]
  %v1006 = vld [vmem:[%s1 + $0x1d80] sm:$0xff]
  %v1007 = vld [vmem:[%s1 + $0x1d88] sm:$0xff]
  %v1008 = vld [vmem:[%s1 + $0x1d90] sm:$0xff]
  %v1009 = vld [vmem:[%s1 + $0x1d98] sm:$0xff]
  %v1010 = vld [vmem:[%s1 + $0x1da0] sm:$0xff]
  %v1011 = vld [vmem:[%s1 + $0x1da8] sm:$0xff]
  %v1012 = vld [vmem:[%s1 + $0x1db0] sm:$0xff]
  %v1013 = vld [vmem:[%s1 + $0x1db8] sm:$0xff]
  %v1014 = vld [vmem:[%s1 + $0x1dc0] sm:$0xff]
  %v1015 = vld [vmem:[%s1 + $0x1dc8] sm:$0xff]
  %v1016 = vld [vmem:[%s1 + $0x1dd0] sm:$0xff]
  %v1017 = vld [vmem:[%s1 + $0x1dd8] sm:$0xff]
  %v1018 = vld [vmem:[%s1 + $0x1de0] sm:$0xff]
  %v1019 = vld [vmem:[%s1 + $0x1de8] sm:$0xff]
  %v1020 = vld [vmem:[%s1 + $0x1df0] sm:$0xff]
  %v1021 = vld [vmem:[%s1 + $0x1df8] sm:$0xff]
  %v1022 = vld [vmem:[%s1 + $0x1e00] sm:$0xff]
  %v1023 = vld [vmem:[%s1 + $0x1e08] sm:$0xff]
  %v1024 = vld [vmem:[%s1 + $0x1e10] sm:$0xff]
  %v1025 = vld [vmem:[%s1 + $0x1e18] sm:$0xff]
  %v1026 = vld [vmem:[%s1 + $0x1e20] sm:$0xff]
  %v1027 = vld [vmem:[%s1 + $0x1e28] sm:$0xff]
  %v1028 = vld [vmem:[%s1 + $0x1e30] sm:$0xff]
  %v1029 = vld [vmem:[%s1 + $0x1e38] sm:$0xff]
  %v1030 = vld [vmem:[%s1 + $0x1e40] sm:$0xff]
  %v1031 = vld [vmem:[%s1 + $0x1e48] sm:$0xff]
  %v1032 = vld [vmem:[%s1 + $0x1e50] sm:$0xff]
  %v1033 = vld [vmem:[%s1 + $0x1e58] sm:$0xff]
  %v1034 = vld [vmem:[%s1 + $0x1e60] sm:$0xff]
  %v1035 = vld [vmem:[%s1 + $0x1e68] sm:$0xff]
  %v1036 = vld [vmem:[%s1 + $0x1e70] sm:$0xff]
  %v1037 = vld [vmem:[%s1 + $0x1e78] sm:$0xff]
  %v1038 = vld [vmem:[%s1 + $0x1e80] sm:$0xff]
  %v1039 = vld [vmem:[%s1 + $0x1e88] sm:$0xff]
  %v1040 = vld [vmem:[%s1 + $0x1e90] sm:$0xff]
  %v1041 = vld [vmem:[%s1 + $0x1e98] sm:$0xff]
  %v1042 = vld [vmem:[%s1 + $0x1ea0] sm:$0xff]
  %v1043 = vld [vmem:[%s1 + $0x1ea8] sm:$0xff]
  %v1044 = vld [vmem:[%s1 + $0x1eb0] sm:$0xff]
  %v1045 = vld [vmem:[%s1 + $0x1eb8] sm:$0xff]
  %v1046 = vld [vmem:[%s1 + $0x1ec0] sm:$0xff]
  %v1047 = vld [vmem:[%s1 + $0x1ec8] sm:$0xff]
  %v1048 = vld [vmem:[%s1 + $0x1ed0] sm:$0xff]
  %v1049 = vld [vmem:[%s1 + $0x1ed8] sm:$0xff]
  %v1050 = vld [vmem:[%s1 + $0x1ee0] sm:$0xff]
  %v1051 = vld [vmem:[%s1 + $0x1ee8] sm:$0xff]
  %v1052 = vld [vmem:[%s1 + $0x1ef0] sm:$0xff]
  %v1053 = vld [vmem:[%s1 + $0x1ef8] sm:$0xff]
  %v1054 = vld [vmem:[%s1 + $0x1f00] sm:$0xff]
  %v1055 = vld [vmem:[%s1 + $0x1f08] sm:$0xff]
  %v1056 = vld [vmem:[%s1 + $0x1f10] sm:$0xff]
  %v1057 = vld [vmem:[%s1 + $0x1f18] sm:$0xff]
  %v1058 = vld [vmem:[%s1 + $0x1f20] sm:$0xff]
  %v1059 = vld [vmem:[%s1 + $0x1f28] sm:$0xff]
  %v1060 = vld [vmem:[%s1 + $0x1f30] sm:$0xff]
  %v1061 = vld [vmem:[%s1 + $0x1f38] sm:$0xff]
  %v1062 = vld [vmem:[%s1 + $0x1f40] sm:$0xff]
  %v1063 = vld [vmem:[%s1 + $0x1f48] sm:$0xff]
  %v1064 = vld [vmem:[%s1 + $0x1f50] sm:$0xff]
  %v1065 = vld [vmem:[%s1 + $0x1f58] sm:$0xff]
  %v1066 = vld [vmem:[%s1 + $0x1f60] sm:$0xff]
  %v1067 = vld [vmem:[%s1 + $0x1f68] sm:$0xff]
  %v1068 = vld [vmem:[%s1 + $0x1f70] sm:$0xff]
  %v1069 = vld [vmem:[%s1 + $0x1f78] sm:$0xff]
  %v1070 = vld [vmem:[%s1 + $0x1f80] sm:$0xff]
  %v1071 = vld [vmem:[%s1 + $0x1f88] sm:$0xff]
  %v1072 = vld [vmem:[%s1 + $0x1f90] sm:$0xff]
  %v1073 = vld [vmem:[%s1 + $0x1f98] sm:$0xff]
  %v1074 = vld [vmem:[%s1 + $0x1fa0] sm:$0xff]
  %v1075 = vld [vmem:[%s1 + $0x1fa8] sm:$0xff]
  %v1076 = vld [vmem:[%s1 + $0x1fb0] sm:$0xff]
  %v1077 = vld [vmem:[%s1 + $0x1fb8] sm:$0xff]
  %v1078 = vld [vmem:[%s1 + $0x1fc0] sm:$0xff]
  %v1079 = vld [vmem:[%s1 + $0x1fc8] sm:$0xff]
  %v1080 = vld [vmem:[%s1 + $0x1fd0] sm:$0xff]
  %v1081 = vld [vmem:[%s1 + $0x1fd8] sm:$0xff]
  %v1082 = vld [vmem:[%s1 + $0x1fe0] sm:$0xff]
  %v1083 = vld [vmem:[%s1 + $0x1fe8] sm:$0xff]
  %v1084 = vld [vmem:[%s1 + $0x1ff0] sm:$0xff]
  %v1085 = vld [vmem:[%s1 + $0x1ff8] sm:$0xff]
  %v1086 = vld [vmem:[%s1 + $0x2000] sm:$0xff]
  %v1087 = vld [vmem:[%s1 + $0x2008] sm:$0xff]
  %v1088 = vld [vmem:[%s1 + $0x2010] sm:$0xff]
  %v1089 = vld [vmem:[%s1 + $0x2018] sm:$0xff]
  %v1090 = vld [vmem:[%s1 + $0x2020] sm:$0xff]
  %v1091 = vld [vmem:[%s1 + $0x2028] sm:$0xff]
  %v1092 = vld [vmem:[%s1 + $0x2030] sm:$0xff]
  %v1093 = vld [vmem:[%s1 + $0x2038] sm:$0xff]
  %v1094 = vld [vmem:[%s1 + $0x2040] sm:$0xff]
  %v1095 = vld [vmem:[%s1 + $0x2048] sm:$0xff]
  %v1096 = vld [vmem:[%s1 + $0x2050] sm:$0xff]
  %v1097 = vld [vmem:[%s1 + $0x2058] sm:$0xff]
  %v1098 = vld [vmem:[%s1 + $0x2060] sm:$0xff]
  %v1099 = vld [vmem:[%s1 + $0x2068] sm:$0xff]
  %v1100 = vld [vmem:[%s1 + $0x2070] sm:$0xff]
  %v1101 = vld [vmem:[%s1 + $0x2078] sm:$0xff]
  %v1102 = vld [vmem:[%s1 + $0x2080] sm:$0xff]
  %v1103 = vld [vmem:[%s1 + $0x2088] sm:$0xff]
  %v1104 = vld [vmem:[%s1 + $0x2090] sm:$0xff]
  %v1105 = vld [vmem:[%s1 + $0x2098] sm:$0xff]
  %v1106 = vld [vmem:[%s1 + $0x20a0] sm:$0xff]
  %v1107 = vld [vmem:[%s1 + $0x20a8] sm:$0xff]
  %v1108 = vld [vmem:[%s1 + $0x20b0] sm:$0xff]
  %v1109 = vld [vmem:[%s1 + $0x20b8] sm:$0xff]
  %v1110 = vld [vmem:[%s1 + $0x20c0] sm:$0xff]
  %v1111 = vld [vmem:[%s1 + $0x20c8] sm:$0xff]
  %v1112 = vld [vmem:[%s1 + $0x20d0] sm:$0xff]
  %v1113 = vld [vmem:[%s1 + $0x20d8] sm:$0xff]
  %v1114 = vld [vmem:[%s1 + $0x20e0] sm:$0xff]
  %v1115 = vld [vmem:[%s1 + $0x20e8] sm:$0xff]
  %v1116 = vld [vmem:[%s1 + $0x20f0] sm:$0xff]
  %v1117 = vld [vmem:[%s1 + $0x20f8] sm:$0xff]
  %v1118 = vld [vmem:[%s1 + $0x2100] sm:$0xff]
  %v1119 = vld [vmem:[%s1 + $0x2108] sm:$0xff]
  %v1120 = vld [vmem:[%s1 + $0x2110] sm:$0xff]
  %v1121 = vld [vmem:[%s1 + $0x2118] sm:$0xff]
  %v1122 = vld [vmem:[%s1 + $0x2120] sm:$0xff]
  %v1123 = vld [vmem:[%s1 + $0x2128] sm:$0xff]
  %v1124 = vld [vmem:[%s1 + $0x2130] sm:$0xff]
  %v1125 = vld [vmem:[%s1 + $0x2138] sm:$0xff]
  %v1126 = vld [vmem:[%s1 + $0x2140] sm:$0xff]
  %v1127 = vld [vmem:[%s1 + $0x2148] sm:$0xff]
  %v1128 = vld [vmem:[%s1 + $0x2150] sm:$0xff]
  %v1129 = vld [vmem:[%s1 + $0x2158] sm:$0xff]
  %v1130 = vld [vmem:[%s1 + $0x2160] sm:$0xff]
  %v1131 = vld [vmem:[%s1 + $0x2168] sm:$0xff]
  %v1132 = vld [vmem:[%s1 + $0x2170] sm:$0xff]
  %v1133 = vld [vmem:[%s1 + $0x2178] sm:$0xff]
  %v1134 = vld [vmem:[%s1 + $0x2180] sm:$0xff]
  %v1135 = vld [vmem:[%s1 + $0x2188] sm:$0xff]
  %v1136 = vld [vmem:[%s1 + $0x2190] sm:$0xff]
  %v1137 = vld [vmem:[%s1 + $0x2198] sm:$0xff]
  %v1138 = vld [vmem:[%s1 + $0x21a0] sm:$0xff]
  %v1139 = vld [vmem:[%s1 + $0x21a8] sm:$0xff]
  %v1140 = vld [vmem:[%s1 + $0x21b0] sm:$0xff]
  %v1141 = vld [vmem:[%s1 + $0x21b8] sm:$0xff]
  %v1142 = vld [vmem:[%s1 + $0x21c0] sm:$0xff]
  %v1143 = vld [vmem:[%s1 + $0x21c8] sm:$0xff]
  %v1144 = vld [vmem:[%s1 + $0x21d0] sm:$0xff]
  %v1145 = vld [vmem:[%s1 + $0x21d8] sm:$0xff]
  %v1146 = vld [vmem:[%s1 + $0x21e0] sm:$0xff]
  %v1147 = vld [vmem:[%s1 + $0x21e8] sm:$0xff]
  %v1148 = vld [vmem:[%s1 + $0x21f0] sm:$0xff]
  %v1149 = vld [vmem:[%s1 + $0x21f8] sm:$0xff]
  %v1150 = vld [vmem:[%s1 + $0x2200] sm:$0xff]
  %v1151 = vld [vmem:[%s1 + $0x2208] sm:$0xff]
  %v1152 = vld [vmem:[%s1 + $0x2210] sm:$0xff]
  %v1153 = vld [vmem:[%s1 + $0x2218] sm:$0xff]
  %v1154 = vld [vmem:[%s1 + $0x2220] sm:$0xff]
  %v1155 = vld [vmem:[%s1 + $0x2228] sm:$0xff]
  %v1156 = vld [vmem:[%s1 + $0x2230] sm:$0xff]
  %v1157 = vld [vmem:[%s1 + $0x2238] sm:$0xff]
  %v1158 = vld [vmem:[%s1 + $0x2240] sm:$0xff]
  %v1159 = vld [vmem:[%s1 + $0x2248] sm:$0xff]
  %v1160 = vld [vmem:[%s1 + $0x2250] sm:$0xff]
  %v1161 = vld [vmem:[%s1 + $0x2258] sm:$0xff]
  %v1162 = vld [vmem:[%s1 + $0x2260] sm:$0xff]
  %v1163 = vld [vmem:[%s1 + $0x2268] sm:$0xff]
  %v1164 = vld [vmem:[%s1 + $0x2270] sm:$0xff]
  %v1165 = vld [vmem:[%s1 + $0x2278] sm:$0xff]
  %v1166 = vld [vmem:[%s1 + $0x2280] sm:$0xff]
  %v1167 = vld [vmem:[%s1 + $0x2288] sm:$0xff]
  %v1168 = vld [vmem:[%s1 + $0x2290] sm:$0xff]
  %v1169 = vld [vmem:[%s1 + $0x2298] sm:$0xff]
  %v1170 = vld [vmem:[%s1 + $0x22a0] sm:$0xff]
  %v1171 = vld [vmem:[%s1 + $0x22a8] sm:$0xff]
  %v1172 = vld [vmem:[%s1 + $0x22b0] sm:$0xff]
  %v1173 = vld [vmem:[%s1 + $0x22b8] sm:$0xff]
  %v1174 = vld [vmem:[%s1 + $0x22c0] sm:$0xff]
  %v1175 = vld [vmem:[%s1 + $0x22c8] sm:$0xff]
  %v1176 = vld [vmem:[%s1 + $0x22d0] sm:$0xff]
  %v1177 = vld [vmem:[%s1 + $0x22d8] sm:$0xff]
  %v1178 = vld [vmem:[%s1 + $0x22e0] sm:$0xff]
  %v1179 = vld [vmem:[%s1 + $0x22e8] sm:$0xff]
  %v1180 = vld [vmem:[%s1 + $0x22f0] sm:$0xff]
  %v1181 = vld [vmem:[%s1 + $0x22f8] sm:$0xff]
  %v1182 = vld [vmem:[%s1 + $0x2300] sm:$0xff]
  %v1183 = vld [vmem:[%s1 + $0x2308] sm:$0xff]
  %v1184 = vld [vmem:[%s1 + $0x2310] sm:$0xff]
  %v1185 = vld [vmem:[%s1 + $0x2318] sm:$0xff]
  %v1186 = vld [vmem:[%s1 + $0x2320] sm:$0xff]
  %v1187 = vld [vmem:[%s1 + $0x2328] sm:$0xff]
  %v1188 = vld [vmem:[%s1 + $0x2330] sm:$0xff]
  %v1189 = vld [vmem:[%s1 + $0x2338] sm:$0xff]
  %v1190 = vld [vmem:[%s1 + $0x2340] sm:$0xff]
  %v1191 = vld [vmem:[%s1 + $0x2348] sm:$0xff]
  %v1192 = vld [vmem:[%s1 + $0x2350] sm:$0xff]
  %v1193 = vld [vmem:[%s1 + $0x2358] sm:$0xff]
  %v1194 = vld [vmem:[%s1 + $0x2360] sm:$0xff]
  %v1195 = vld [vmem:[%s1 + $0x2368] sm:$0xff]
  %v1196 = vld [vmem:[%s1 + $0x2370] sm:$0xff]
  %v1197 = vld [vmem:[%s1 + $0x2378] sm:$0xff]
  %v1198 = vld [vmem:[%s1 + $0x2380] sm:$0xff]
  %v1199 = vld [vmem:[%s1 + $0x2388] sm:$0xff]
  %v1200 = vld [vmem:[%s1 + $0x2390] sm:$0xff]
  %v1201 = vld [vmem:[%s1 + $0x2398] sm:$0xff]
  %v1202 = vld [vmem:[%s1 + $0x23a0] sm:$0xff]
  %v1203 = vld [vmem:[%s1 + $0x23a8] sm:$0xff]
  %v1204 = vld [vmem:[%s1 + $0x23b0] sm:$0xff]
  %v1205 = vld [vmem:[%s1 + $0x23b8] sm:$0xff]
  %v1206 = vld [vmem:[%s1 + $0x23c0] sm:$0xff]
  %v1207 = vld [vmem:[%s1 + $0x23c8] sm:$0xff]
  %v1208 = vld [vmem:[%s1 + $0x23d0] sm:$0xff]
  %v1209 = vld [vmem:[%s1 + $0x23d8] sm:$0xff]
  %v1210 = vld [vmem:[%s1 + $0x23e0] sm:$0xff]
  %v1211 = vld [vmem:[%s1 + $0x23e8] sm:$0xff]
  %v1212 = vld [vmem:[%s1 + $0x23f0] sm:$0xff]
  %v1213 = vld [vmem:[%s1 + $0x23f8] sm:$0xff]
  %v1214 = vld [vmem:[%s1 + $0x2400] sm:$0xff]
  %v1215 = vld [vmem:[%s1 + $0x2408] sm:$0xff]
  %v1216 = vld [vmem:[%s1 + $0x2410] sm:$0xff]
  %v1217 = vld [vmem:[%s1 + $0x2418] sm:$0xff]
  %v1218 = vld [vmem:[%s1 + $0x2420] sm:$0xff]
  %v1219 = vld [vmem:[%s1 + $0x2428] sm:$0xff]
  %v1220 = vld [vmem:[%s1 + $0x2430] sm:$0xff]
  %v1221 = vld [vmem:[%s1 + $0x2438] sm:$0xff]
  %v1222 = vld [vmem:[%s1 + $0x2440] sm:$0xff]
  %v1223 = vld [vmem:[%s1 + $0x2448] sm:$0xff]
  %v1224 = vld [vmem:[%s1 + $0x2450] sm:$0xff]
  %v1225 = vld [vmem:[%s1 + $0x2458] sm:$0xff]
  %v1226 = vld [vmem:[%s1 + $0x2460] sm:$0xff]
  %v1227 = vld [vmem:[%s1 + $0x2468] sm:$0xff]
  %v1228 = vld [vmem:[%s1 + $0x2470] sm:$0xff]
  %v1229 = vld [vmem:[%s1 + $0x2478] sm:$0xff]
  %v1230 = vld [vmem:[%s1 + $0x2480] sm:$0xff]
  %v1231 = vld [vmem:[%s1 + $0x2488] sm:$0xff]
  %v1232 = vld [vmem:[%s1 + $0x2490] sm:$0xff]
  %v1233 = vld [vmem:[%s1 + $0x2498] sm:$0xff]
  %v1234 = vld [vmem:[%s1 + $0x24a0] sm:$0xff]
  %v1235 = vld [vmem:[%s1 + $0x24a8] sm:$0xff]
  %v1236 = vld [vmem:[%s1 + $0x24b0] sm:$0xff]
  %v1237 = vld [vmem:[%s1 + $0x24b8] sm:$0xff]
  %v1238 = vld [vmem:[%s1 + $0x24c0] sm:$0xff]
  %v1239 = vld [vmem:[%s1 + $0x24c8] sm:$0xff]
  %v1240 = vld [vmem:[%s1 + $0x24d0] sm:$0xff]
  %v1241 = vld [vmem:[%s1 + $0x24d8] sm:$0xff]
  %v1242 = vld [vmem:[%s1 + $0x24e0] sm:$0xff]
  %v1243 = vld [vmem:[%s1 + $0x24e8] sm:$0xff]
  %v1244 = vld [vmem:[%s1 + $0x24f0] sm:$0xff]
  %v1245 = vld [vmem:[%s1 + $0x24f8] sm:$0xff]
  %v1246 = vld [vmem:[%s1 + $0x2500] sm:$0xff]
  %v1247 = vld [vmem:[%s1 + $0x2508] sm:$0xff]
  %v1248 = vld [vmem:[%s1 + $0x2510] sm:$0xff]
  %v1249 = vld [vmem:[%s1 + $0x2518] sm:$0xff]
  %v1250 = vld [vmem:[%s1 + $0x2520] sm:$0xff]
  %v1251 = vld [vmem:[%s1 + $0x2528] sm:$0xff]
  %v1252 = vld [vmem:[%s1 + $0x2530] sm:$0xff]
  %v1253 = vld [vmem:[%s1 + $0x2538] sm:$0xff]
  %v1254 = vld [vmem:[%s1 + $0x2540] sm:$0xff]
  %v1255 = vld [vmem:[%s1 + $0x2548] sm:$0xff]
  %v1256 = vld [vmem:[%s1 + $0x2550] sm:$0xff]
  %v1257 = vld [vmem:[%s1 + $0x2558] sm:$0xff]
  %v1258 = vld [vmem:[%s1 + $0x2560] sm:$0xff]
  %v1259 = vld [vmem:[%s1 + $0x2568] sm:$0xff]
  %v1260 = vld [vmem:[%s1 + $0x2570] sm:$0xff]
  %v1261 = vld [vmem:[%s1 + $0x2578] sm:$0xff]
  %v1262 = vld [vmem:[%s1 + $0x2580] sm:$0xff]
  %v1263 = vld [vmem:[%s1 + $0x2588] sm:$0xff]
  %v1264 = vld [vmem:[%s1 + $0x2590] sm:$0xff]
  %v1265 = vld [vmem:[%s1 + $0x2598] sm:$0xff]
  %v1266 = vld [vmem:[%s1 + $0x25a0] sm:$0xff]
  %v1267 = vld [vmem:[%s1 + $0x25a8] sm:$0xff]
  %v1268 = vld [vmem:[%s1 + $0x25b0] sm:$0xff]
  %v1269 = vld [vmem:[%s1 + $0x25b8] sm:$0xff]
  %v1270 = vld [vmem:[%s1 + $0x25c0] sm:$0xff]
  %v1271 = vld [vmem:[%s1 + $0x25c8] sm:$0xff]
  %v1272 = vld [vmem:[%s1 + $0x25d0] sm:$0xff]
  %v1273 = vld [vmem:[%s1 + $0x25d8] sm:$0xff]
  %v1274 = vld [vmem:[%s1 + $0x25e0] sm:$0xff]
  %v1275 = vld [vmem:[%s1 + $0x25e8] sm:$0xff]
  %v1276 = vld [vmem:[%s1 + $0x25f0] sm:$0xff]
  %v1277 = vld [vmem:[%s1 + $0x25f8] sm:$0xff]
  %v1278 = vld [vmem:[%s1 + $0x2600] sm:$0xff]
  %v1279 = vld [vmem:[%s1 + $0x2608] sm:$0xff]
  %v1280 = vld [vmem:[%s1 + $0x2610] sm:$0xff]
  %v1281 = vld [vmem:[%s1 + $0x2618] sm:$0xff]
  %v1282 = vld [vmem:[%s1 + $0x2620] sm:$0xff]
  %v1283 = vld [vmem:[%s1 + $0x2628] sm:$0xff]
  %v1284 = vld [vmem:[%s1 + $0x2630] sm:$0xff]
  %v1285 = vld [vmem:[%s1 + $0x2638] sm:$0xff]
  %v1286 = vld [vmem:[%s1 + $0x2640] sm:$0xff]
  %v1287 = vld [vmem:[%s1 + $0x2648] sm:$0xff]
  %v1288 = vld [vmem:[%s1 + $0x2650] sm:$0xff]
  %v1289 = vld [vmem:[%s1 + $0x2658] sm:$0xff]
  %v1290 = vld [vmem:[%s1 + $0x2660] sm:$0xff]
  %v1291 = vld [vmem:[%s1 + $0x2668] sm:$0xff]
  %v1292 = vld [vmem:[%s1 + $0x2670] sm:$0xff]
  %v1293 = vld [vmem:[%s1 + $0x2678] sm:$0xff]
  %v1294 = vld [vmem:[%s1 + $0x2680] sm:$0xff]
  %v1295 = vld [vmem:[%s1 + $0x2688] sm:$0xff]
  %v1296 = vld [vmem:[%s1 + $0x2690] sm:$0xff]
  %v1297 = vld [vmem:[%s1 + $0x2698] sm:$0xff]
  %v1298 = vld [vmem:[%s1 + $0x26a0] sm:$0xff]
  %v1299 = vld [vmem:[%s1 + $0x26a8] sm:$0xff]
  %v1300 = vld [vmem:[%s1 + $0x26b0] sm:$0xff]
  %v1301 = vld [vmem:[%s1 + $0x26b8] sm:$0xff]
  %v1302 = vld [vmem:[%s1 + $0x26c0] sm:$0xff]
  %v1303 = vld [vmem:[%s1 + $0x26c8] sm:$0xff]
  %v1304 = vld [vmem:[%s1 + $0x26d0] sm:$0xff]
  %v1305 = vld [vmem:[%s1 + $0x26d8] sm:$0xff]
  %v1306 = vld [vmem:[%s1 + $0x26e0] sm:$0xff]
  %v1307 = vld [vmem:[%s1 + $0x26e8] sm:$0xff]
  %v1308 = vld [vmem:[%s1 + $0x26f0] sm:$0xff]
  %v1309 = vld [vmem:[%s1 + $0x26f8] sm:$0xff]
  %v1310 = vld [vmem:[%s1 + $0x2700] sm:$0xff]
  %v1311 = vld [vmem:[%s1 + $0x2708] sm:$0xff]
  %v1312 = vld [vmem:[%s1 + $0x2710] sm:$0xff]
  %v1313 = vld [vmem:[%s1 + $0x2718] sm:$0xff]
  %v1314 = vld [vmem:[%s1 + $0x2720] sm:$0xff]
  %v1315 = vld [vmem:[%s1 + $0x2728] sm:$0xff]
  %v1316 = vld [vmem:[%s1 + $0x2730] sm:$0xff]
  %v1317 = vld [vmem:[%s1 + $0x2738] sm:$0xff]
  %v1318 = vld [vmem:[%s1 + $0x2740] sm:$0xff]
  %v1319 = vld [vmem:[%s1 + $0x2748] sm:$0xff]
  %v1320 = vld [vmem:[%s1 + $0x2750] sm:$0xff]
  %v1321 = vld [vmem:[%s1 + $0x2758] sm:$0xff]
  %v1322 = vld [vmem:[%s1 + $0x2760] sm:$0xff]
  %v1323 = vld [vmem:[%s1 + $0x2768] sm:$0xff]
  %v1324 = vld [vmem:[%s1 + $0x2770] sm:$0xff]
  %v1325 = vld [vmem:[%s1 + $0x2778] sm:$0xff]
  %v1326 = vld [vmem:[%s1 + $0x2780] sm:$0xff]
  %v1327 = vld [vmem:[%s1 + $0x2788] sm:$0xff]
  %v1328 = vld [vmem:[%s1 + $0x2790] sm:$0xff]
  %v1329 = vld [vmem:[%s1 + $0x2798] sm:$0xff]
  %v1330 = vld [vmem:[%s1 + $0x27a0] sm:$0xff]
  %v1331 = vld [vmem:[%s1 + $0x27a8] sm:$0xff]
  %v1332 = vld [vmem:[%s1 + $0x27b0] sm:$0xff]
  %v1333 = vld [vmem:[%s1 + $0x27b8] sm:$0xff]
  %v1334 = vld [vmem:[%s1 + $0x27c0] sm:$0xff]
  %v1335 = vld [vmem:[%s1 + $0x27c8] sm:$0xff]
  %v1336 = vld [vmem:[%s1 + $0x27d0] sm:$0xff]
  %v1337 = vld [vmem:[%s1 + $0x27d8] sm:$0xff]
  %v1338 = vld [vmem:[%s1 + $0x27e0] sm:$0xff]
  %v1339 = vld [vmem:[%s1 + $0x27e8] sm:$0xff]
  %v1340 = vld [vmem:[%s1 + $0x27f0] sm:$0xff]
  %v1341 = vld [vmem:[%s1 + $0x27f8] sm:$0xff]
  %v1342 = vld [vmem:[%s1 + $0x2800] sm:$0xff]
  %v1343 = vld [vmem:[%s1 + $0x2808] sm:$0xff]
  %v1344 = vld [vmem:[%s1 + $0x2810] sm:$0xff]
  %v1345 = vld [vmem:[%s1 + $0x2818] sm:$0xff]
  %v1346 = vld [vmem:[%s1 + $0x2820] sm:$0xff]
  %v1347 = vld [vmem:[%s1 + $0x2828] sm:$0xff]
  %v1348 = vld [vmem:[%s1 + $0x2830] sm:$0xff]
  %v1349 = vld [vmem:[%s1 + $0x2838] sm:$0xff]
  %v1350 = vld [vmem:[%s1 + $0x2840] sm:$0xff]
  %v1351 = vld [vmem:[%s1 + $0x2848] sm:$0xff]
  %v1352 = vld [vmem:[%s1 + $0x2850] sm:$0xff]
  %v1353 = vld [vmem:[%s1 + $0x2858] sm:$0xff]
  %v1354 = vld [vmem:[%s1 + $0x2860] sm:$0xff]
  %v1355 = vld [vmem:[%s1 + $0x2868] sm:$0xff]
  %v1356 = vld [vmem:[%s1 + $0x2870] sm:$0xff]
  %v1357 = vld [vmem:[%s1 + $0x2878] sm:$0xff]
  %v1358 = vld [vmem:[%s1 + $0x2880] sm:$0xff]
  %v1359 = vld [vmem:[%s1 + $0x2888] sm:$0xff]
  %v1360 = vld [vmem:[%s1 + $0x2890] sm:$0xff]
  %v1361 = vld [vmem:[%s1 + $0x2898] sm:$0xff]
  %v1362 = vld [vmem:[%s1 + $0x28a0] sm:$0xff]
  %v1363 = vld [vmem:[%s1 + $0x28a8] sm:$0xff]
  %v1364 = vld [vmem:[%s1 + $0x28b0] sm:$0xff]
  %v1365 = vld [vmem:[%s1 + $0x28b8] sm:$0xff]
  %v1366 = vld [vmem:[%s1 + $0x28c0] sm:$0xff]
  %v1367 = vld [vmem:[%s1 + $0x28c8] sm:$0xff]
  %v1368 = vld [vmem:[%s1 + $0x28d0] sm:$0xff]
  %v1369 = vld [vmem:[%s1 + $0x28d8] sm:$0xff]
  %v1370 = vld [vmem:[%s1 + $0x28e0] sm:$0xff]
  %v1371 = vld [vmem:[%s1 + $0x28e8] sm:$0xff]
  %v1372 = vld [vmem:[%s1 + $0x28f0] sm:$0xff]
  %v1373 = vld [vmem:[%s1 + $0x28f8] sm:$0xff]
  %v1374 = vld [vmem:[%s1 + $0x2900] sm:$0xff]
  %v1375 = vld [vmem:[%s1 + $0x2908] sm:$0xff]
  %v1376 = vld [vmem:[%s1 + $0x2910] sm:$0xff]
  %v1377 = vld [vmem:[%s1 + $0x2918] sm:$0xff]
  %v1378 = vld [vmem:[%s1 + $0x2920] sm:$0xff]
  %v1379 = vld [vmem:[%s1 + $0x2928] sm:$0xff]
  %v1380 = vld [vmem:[%s1 + $0x2930] sm:$0xff]
  %v1381 = vld [vmem:[%s1 + $0x2938] sm:$0xff]
  %v1382 = vld [vmem:[%s1 + $0x2940] sm:$0xff]
  %v1383 = vld [vmem:[%s1 + $0x2948] sm:$0xff]
  %v1384 = vld [vmem:[%s1 + $0x2950] sm:$0xff]
  %v1385 = vld [vmem:[%s1 + $0x2958] sm:$0xff]
  %v1386 = vld [vmem:[%s1 + $0x2960] sm:$0xff]
  %v1387 = vld [vmem:[%s1 + $0x2968] sm:$0xff]
  %v1388 = vld [vmem:[%s1 + $0x2970] sm:$0xff]
  %v1389 = vld [vmem:[%s1 + $0x2978] sm:$0xff]
  %v1390 = vld [vmem:[%s1 + $0x2980] sm:$0xff]
  %v1391 = vld [vmem:[%s1 + $0x2988] sm:$0xff]
  %v1392 = vld [vmem:[%s1 + $0x2990] sm:$0xff]
  %v1393 = vld [vmem:[%s1 + $0x2998] sm:$0xff]
  %v1394 = vld [vmem:[%s1 + $0x29a0] sm:$0xff]
  %v1395 = vld [vmem:[%s1 + $0x29a8] sm:$0xff]
  %v1396 = vld [vmem:[%s1 + $0x29b0] sm:$0xff]
  %v1397 = vld [vmem:[%s1 + $0x29b8] sm:$0xff]
  %v1398 = vld [vmem:[%s1 + $0x29c0] sm:$0xff]
  %v1399 = vld [vmem:[%s1 + $0x29c8] sm:$0xff]
  %v1400 = vld [vmem:[%s1 + $0x29d0] sm:$0xff]
  %v1401 = vld [vmem:[%s1 + $0x29d8] sm:$0xff]
  %v1402 = vld [vmem:[%s1 + $0x29e0] sm:$0xff]
  %v1403 = vld [vmem:[%s1 + $0x29e8] sm:$0xff]
  %v1404 = vld [vmem:[%s1 + $0x29f0] sm:$0xff]
  %v1405 = vld [vmem:[%s1 + $0x29f8] sm:$0xff]
  %v1406 = vld [vmem:[%s1 + $0x2a00] sm:$0xff]
  %v1407 = vld [vmem:[%s1 + $0x2a08] sm:$0xff]
  %v1408 = vld [vmem:[%s1 + $0x2a10] sm:$0xff]
  %v1409 = vld [vmem:[%s1 + $0x2a18] sm:$0xff]
  %v1410 = vld [vmem:[%s1 + $0x2a20] sm:$0xff]
  %v1411 = vld [vmem:[%s1 + $0x2a28] sm:$0xff]
  %v1412 = vld [vmem:[%s1 + $0x2a30] sm:$0xff]
  %v1413 = vld [vmem:[%s1 + $0x2a38] sm:$0xff]
  %v1414 = vld [vmem:[%s1 + $0x2a40] sm:$0xff]
  %v1415 = vld [vmem:[%s1 + $0x2a48] sm:$0xff]
  %v1416 = vld [vmem:[%s1 + $0x2a50] sm:$0xff]
  %v1417 = vld [vmem:[%s1 + $0x2a58] sm:$0xff]
  %v1418 = vld [vmem:[%s1 + $0x2a60] sm:$0xff]
  %v1419 = vld [vmem:[%s1 + $0x2a68] sm:$0xff]
  %v1420 = vld [vmem:[%s1 + $0x2a70] sm:$0xff]
  %v1421 = vld [vmem:[%s1 + $0x2a78] sm:$0xff]
  %v1422 = vld [vmem:[%s1 + $0x2a80] sm:$0xff]
  %v1423 = vld [vmem:[%s1 + $0x2a88] sm:$0xff]
  %v1424 = vld [vmem:[%s1 + $0x2a90] sm:$0xff]
  %v1425 = vld [vmem:[%s1 + $0x2a98] sm:$0xff]
  %v1426 = vld [vmem:[%s1 + $0x2aa0] sm:$0xff]
  %v1427 = vld [vmem:[%s1 + $0x2aa8] sm:$0xff]
  %v1428 = vld [vmem:[%s1 + $0x2ab0] sm:$0xff]
  %v1429 = vld [vmem:[%s1 + $0x2ab8] sm:$0xff]
  %v1430 = vld [vmem:[%s1 + $0x2ac0] sm:$0xff]
  %v1431 = vld [vmem:[%s1 + $0x2ac8] sm:$0xff]
  %v1432 = vld [vmem:[%s1 + $0x2ad0] sm:$0xff]
  %v1433 = vld [vmem:[%s1 + $0x2ad8] sm:$0xff]
  %v1434 = vld [vmem:[%s1 + $0x2ae0] sm:$0xff]
  %v1435 = vld [vmem:[%s1 + $0x2ae8] sm:$0xff]
  %v1436 = vld [vmem:[%s1 + $0x2af0] sm:$0xff]
  %v1437 = vld [vmem:[%s1 + $0x2af8] sm:$0xff]
  %v1438 = vld [vmem:[%s1 + $0x2b00] sm:$0xff]
  %v1439 = vld [vmem:[%s1 + $0x2b08] sm:$0xff]
  %v1440 = vld [vmem:[%s1 + $0x2b10] sm:$0xff]
  %v1441 = vld [vmem:[%s1 + $0x2b18] sm:$0xff]
  %v1442 = vld [vmem:[%s1 + $0x2b20] sm:$0xff]
  %v1443 = vld [vmem:[%s1 + $0x2b28] sm:$0xff]
  %v1444 = vld [vmem:[%s1 + $0x2b30] sm:$0xff]
  %v1445 = vld [vmem:[%s1 + $0x2b38] sm:$0xff]
  %v1446 = vld [vmem:[%s1 + $0x2b40] sm:$0xff]
  %v1447 = vld [vmem:[%s1 + $0x2b48] sm:$0xff]
  %v1448 = vld [vmem:[%s1 + $0x2b50] sm:$0xff]
  %v1449 = vld [vmem:[%s1 + $0x2b58] sm:$0xff]
  %v1450 = vld [vmem:[%s1 + $0x2b60] sm:$0xff]
  %v1451 = vld [vmem:[%s1 + $0x2b68] sm:$0xff]
  %v1452 = vld [vmem:[%s1 + $0x2b70] sm:$0xff]
  %v1453 = vld [vmem:[%s1 + $0x2b78] sm:$0xff]
  %v1454 = vld [vmem:[%s1 + $0x2b80] sm:$0xff]
  %v1455 = vld [vmem:[%s1 + $0x2b88] sm:$0xff]
  %v1456 = vld [vmem:[%s1 + $0x2b90] sm:$0xff]
  %v1457 = vld [vmem:[%s1 + $0x2b98] sm:$0xff]
  %v1458 = vld [vmem:[%s1 + $0x2ba0] sm:$0xff]
  %v1459 = vld [vmem:[%s1 + $0x2ba8] sm:$0xff]
  %v1460 = vld [vmem:[%s1 + $0x2bb0] sm:$0xff]
  %v1461 = vld [vmem:[%s1 + $0x2bb8] sm:$0xff]
  %v1462 = vld [vmem:[%s1 + $0x2bc0] sm:$0xff]
  %v1463 = vld [vmem:[%s1 + $0x2bc8] sm:$0xff]
  %v1464 = vld [vmem:[%s1 + $0x2bd0] sm:$0xff]
  %v1465 = vld [vmem:[%s1 + $0x2bd8] sm:$0xff]
  %v1466 = vld [vmem:[%s1 + $0x2be0] sm:$0xff]
  %v1467 = vld [vmem:[%s1 + $0x2be8] sm:$0xff]
  %v1468 = vld [vmem:[%s1 + $0x2bf0] sm:$0xff]
  %v1469 = vld [vmem:[%s1 + $0x2bf8] sm:$0xff]
  %v1470 = vld [vmem:[%s1 + $0x2c00] sm:$0xff]
  %v1471 = vld [vmem:[%s1 + $0x2c08] sm:$0xff]
  %v1472 = vld [vmem:[%s1 + $0x2c10] sm:$0xff]
  %v1473 = vld [vmem:[%s1 + $0x2c18] sm:$0xff]
  %v1474 = vld [vmem:[%s1 + $0x2c20] sm:$0xff]
  %v1475 = vld [vmem:[%s1 + $0x2c28] sm:$0xff]
  %v1476 = vld [vmem:[%s1 + $0x2c30] sm:$0xff]
  %v1477 = vld [vmem:[%s1 + $0x2c38] sm:$0xff]
  %v1478 = vld [vmem:[%s1 + $0x2c40] sm:$0xff]
  %v1479 = vld [vmem:[%s1 + $0x2c48] sm:$0xff]
  %v1480 = vld [vmem:[%s1 + $0x2c50] sm:$0xff]
  %v1481 = vld [vmem:[%s1 + $0x2c58] sm:$0xff]
  %v1482 = vld [vmem:[%s1 + $0x2c60] sm:$0xff]
  %v1483 = vld [vmem:[%s1 + $0x2c68] sm:$0xff]
  %v1484 = vld [vmem:[%s1 + $0x2c70] sm:$0xff]
  %v1485 = vld [vmem:[%s1 + $0x2c78] sm:$0xff]
  %v1486 = vld [vmem:[%s1 + $0x2c80] sm:$0xff]
  %v1487 = vld [vmem:[%s1 + $0x2c88] sm:$0xff]
  %v1488 = vld [vmem:[%s1 + $0x2c90] sm:$0xff]
  %v1489 = vld [vmem:[%s1 + $0x2c98] sm:$0xff]
  %v1490 = vld [vmem:[%s1 + $0x2ca0] sm:$0xff]
  %v1491 = vld [vmem:[%s1 + $0x2ca8] sm:$0xff]
  %v1492 = vld [vmem:[%s1 + $0x2cb0] sm:$0xff]
  %v1493 = vld [vmem:[%s1 + $0x2cb8] sm:$0xff]
  %v1494 = vld [vmem:[%s1 + $0x2cc0] sm:$0xff]
  %v1495 = vld [vmem:[%s1 + $0x2cc8] sm:$0xff]
  %v1496 = vld [vmem:[%s1 + $0x2cd0] sm:$0xff]
  %v1497 = vld [vmem:[%s1 + $0x2cd8] sm:$0xff]
  %v1498 = vld [vmem:[%s1 + $0x2ce0] sm:$0xff]
  %v1499 = vld [vmem:[%s1 + $0x2ce8] sm:$0xff]
  %v1500 = vld [vmem:[%s1 + $0x2cf0] sm:$0xff]
  %v1501 = vld [vmem:[%s1 + $0x2cf8] sm:$0xff]
  %v1502 = vld [vmem:[%s1 + $0x2d00] sm:$0xff]
  %v1503 = vld [vmem:[%s1 + $0x2d08] sm:$0xff]
  %v1504 = vld [vmem:[%s1 + $0x2d10] sm:$0xff]
  %v1505 = vld [vmem:[%s1 + $0x2d18] sm:$0xff]
  %v1506 = vld [vmem:[%s1 + $0x2d20] sm:$0xff]
  %v1507 = vld [vmem:[%s1 + $0x2d28] sm:$0xff]
  %v1508 = vld [vmem:[%s1 + $0x2d30] sm:$0xff]
  %v1509 = vld [vmem:[%s1 + $0x2d38] sm:$0xff]
  %v1510 = vld [vmem:[%s1 + $0x2d40] sm:$0xff]
  %v1511 = vld [vmem:[%s1 + $0x2d48] sm:$0xff]
  %v1512 = vld [vmem:[%s1 + $0x2d50] sm:$0xff]
  %v1513 = vld [vmem:[%s1 + $0x2d58] sm:$0xff]
  %v1514 = vld [vmem:[%s1 + $0x2d60] sm:$0xff]
  %v1515 = vld [vmem:[%s1 + $0x2d68] sm:$0xff]
  %v1516 = vld [vmem:[%s1 + $0x2d70] sm:$0xff]
  %v1517 = vld [vmem:[%s1 + $0x2d78] sm:$0xff]
  %v1518 = vld [vmem:[%s1 + $0x2d80] sm:$0xff]
  %v1519 = vld [vmem:[%s1 + $0x2d88] sm:$0xff]
  %v1520 = vld [vmem:[%s1 + $0x2d90] sm:$0xff]
  %v1521 = vld [vmem:[%s1 + $0x2d98] sm:$0xff]
  %v1522 = vld [vmem:[%s1 + $0x2da0] sm:$0xff]
  %v1523 = vld [vmem:[%s1 + $0x2da8] sm:$0xff]
  %v1524 = vld [vmem:[%s1 + $0x2db0] sm:$0xff]
  %v1525 = vld [vmem:[%s1 + $0x2db8] sm:$0xff]
  %v1526 = vld [vmem:[%s1 + $0x2dc0] sm:$0xff]
  %v1527 = vld [vmem:[%s1 + $0x2dc8] sm:$0xff]
  %v1528 = vld [vmem:[%s1 + $0x2dd0] sm:$0xff]
  %v1529 = vld [vmem:[%s1 + $0x2dd8] sm:$0xff]
  %v1530 = vld [vmem:[%s1 + $0x2de0] sm:$0xff]
  %v1531 = vld [vmem:[%s1 + $0x2de8] sm:$0xff]
  %v1532 = vld [vmem:[%s1 + $0x2df0] sm:$0xff]
  %v1533 = vld [vmem:[%s1 + $0x2df8] sm:$0xff]
  %v1534 = vld [vmem:[%s1 + $0x2e00] sm:$0xff]
  %v1535 = vld [vmem:[%s1 + $0x2e08] sm:$0xff]
  %v1536 = vld [vmem:[%s1 + $0x2e10] sm:$0xff]
  %v1537 = vld [vmem:[%s1 + $0x2e18] sm:$0xff]
  %v1538 = vld [vmem:[%s1 + $0x2e20] sm:$0xff]
  %v1539 = vld [vmem:[%s1 + $0x2e28] sm:$0xff]
  %v1540 = vld [vmem:[%s1 + $0x2e30] sm:$0xff]
  %v1541 = vld [vmem:[%s1 + $0x2e38] sm:$0xff]
  %v1542 = vld [vmem:[%s1 + $0x2e40] sm:$0xff]
  %v1543 = vld [vmem:[%s1 + $0x2e48] sm:$0xff]
  %v1544 = vld [vmem:[%s1 + $0x2e50] sm:$0xff]
  %v1545 = vld [vmem:[%s1 + $0x2e58] sm:$0xff]
  %v1546 = vld [vmem:[%s1 + $0x2e60] sm:$0xff]
  %v1547 = vld [vmem:[%s1 + $0x2e68] sm:$0xff]
  %v1548 = vld [vmem:[%s1 + $0x2e70] sm:$0xff]
  %v1549 = vld [vmem:[%s1 + $0x2e78] sm:$0xff]
  %v1550 = vld [vmem:[%s1 + $0x2e80] sm:$0xff]
  %v1551 = vld [vmem:[%s1 + $0x2e88] sm:$0xff]
  %v1552 = vld [vmem:[%s1 + $0x2e90] sm:$0xff]
  %v1553 = vld [vmem:[%s1 + $0x2e98] sm:$0xff]
  %v1554 = vld [vmem:[%s1 + $0x2ea0] sm:$0xff]
  %v1555 = vld [vmem:[%s1 + $0x2ea8] sm:$0xff]
  %v1556 = vld [vmem:[%s1 + $0x2eb0] sm:$0xff]
  %v1557 = vld [vmem:[%s1 + $0x2eb8] sm:$0xff]
  %v1558 = vld [vmem:[%s1 + $0x2ec0] sm:$0xff]
  %v1559 = vld [vmem:[%s1 + $0x2ec8] sm:$0xff]
  %v1560 = vld [vmem:[%s1 + $0x2ed0] sm:$0xff]
  %v1561 = vld [vmem:[%s1 + $0x2ed8] sm:$0xff]
  %v1562 = vld [vmem:[%s1 + $0x2ee0] sm:$0xff]
  %v1563 = vld [vmem:[%s1 + $0x2ee8] sm:$0xff]
  %v1564 = vld [vmem:[%s1 + $0x2ef0] sm:$0xff]
  %v1565 = vld [vmem:[%s1 + $0x2ef8] sm:$0xff]
  %v1566 = vld [vmem:[%s1 + $0x2f00] sm:$0xff]
  %v1567 = vld [vmem:[%s1 + $0x2f08] sm:$0xff]
  %v1568 = vld [vmem:[%s1 + $0x2f10] sm:$0xff]
  %v1569 = vld [vmem:[%s1 + $0x2f18] sm:$0xff]
  %v1570 = vld [vmem:[%s1 + $0x2f20] sm:$0xff]
  %v1571 = vld [vmem:[%s1 + $0x2f28] sm:$0xff]
  %v1572 = vld [vmem:[%s1 + $0x2f30] sm:$0xff]
  %v1573 = vld [vmem:[%s1 + $0x2f38] sm:$0xff]
  %v1574 = vld [vmem:[%s1 + $0x2f40] sm:$0xff]
  %v1575 = vld [vmem:[%s1 + $0x2f48] sm:$0xff]
  %v1576 = vld [vmem:[%s1 + $0x2f50] sm:$0xff]
  %v1577 = vld [vmem:[%s1 + $0x2f58] sm:$0xff]
  %v1578 = vld [vmem:[%s1 + $0x2f60] sm:$0xff]
  %v1579 = vld [vmem:[%s1 + $0x2f68] sm:$0xff]
  %v1580 = vld [vmem:[%s1 + $0x2f70] sm:$0xff]
  %v1581 = vld [vmem:[%s1 + $0x2f78] sm:$0xff]
  %v1582 = vld [vmem:[%s1 + $0x2f80] sm:$0xff]
  %v1583 = vld [vmem:[%s1 + $0x2f88] sm:$0xff]
  %v1584 = vld [vmem:[%s1 + $0x2f90] sm:$0xff]
  %v1585 = vld [vmem:[%s1 + $0x2f98] sm:$0xff]
  %v1586 = vld [vmem:[%s1 + $0x2fa0] sm:$0xff]
  %v1587 = vld [vmem:[%s1 + $0x2fa8] sm:$0xff]
  %v1588 = vld [vmem:[%s1 + $0x2fb0] sm:$0xff]
  %v1589 = vld [vmem:[%s1 + $0x2fb8] sm:$0xff]
  %v1590 = vld [vmem:[%s1 + $0x2fc0] sm:$0xff]
  %v1591 = vld [vmem:[%s1 + $0x2fc8] sm:$0xff]
  %v1592 = vld [vmem:[%s1 + $0x2fd0] sm:$0xff]
  %v1593 = vld [vmem:[%s1 + $0x2fd8] sm:$0xff]
  %v1594 = vld [vmem:[%s1 + $0x2fe0] sm:$0xff]
  %v1595 = vld [vmem:[%s1 + $0x2fe8] sm:$0xff]
  %v1596 = vld [vmem:[%s1 + $0x2ff0] sm:$0xff]
  %v1597 = vld [vmem:[%s1 + $0x2ff8] sm:$0xff]
  %v1598 = vld [vmem:[%s1 + $0x3000] sm:$0xff]
  %v1599 = vld [vmem:[%s1 + $0x3008] sm:$0xff]
  %v1600 = vld [vmem:[%s1 + $0x3010] sm:$0xff]
  %v1601 = vld [vmem:[%s1 + $0x3018] sm:$0xff]
  %v1602 = vld [vmem:[%s1 + $0x3020] sm:$0xff]
  %v1603 = vld [vmem:[%s1 + $0x3028] sm:$0xff]
  %v1604 = vld [vmem:[%s1 + $0x3030] sm:$0xff]
  %v1605 = vld [vmem:[%s1 + $0x3038] sm:$0xff]
  %v1606 = vld [vmem:[%s1 + $0x3040] sm:$0xff]
  %v1607 = vld [vmem:[%s1 + $0x3048] sm:$0xff]
  %v1608 = vld [vmem:[%s1 + $0x3050] sm:$0xff]
  %v1609 = vld [vmem:[%s1 + $0x3058] sm:$0xff]
  %v1610 = vld [vmem:[%s1 + $0x3060] sm:$0xff]
  %v1611 = vld [vmem:[%s1 + $0x3068] sm:$0xff]
  %v1612 = vld [vmem:[%s1 + $0x3070] sm:$0xff]
  %v1613 = vld [vmem:[%s1 + $0x3078] sm:$0xff]
  %v1614 = vld [vmem:[%s1 + $0x3080] sm:$0xff]
  %v1615 = vld [vmem:[%s1 + $0x3088] sm:$0xff]
  %v1616 = vld [vmem:[%s1 + $0x3090] sm:$0xff]
  %v1617 = vld [vmem:[%s1 + $0x3098] sm:$0xff]
  %v1618 = vld [vmem:[%s1 + $0x30a0] sm:$0xff]
  %v1619 = vld [vmem:[%s1 + $0x30a8] sm:$0xff]
  %v1620 = vld [vmem:[%s1 + $0x30b0] sm:$0xff]
  %v1621 = vld [vmem:[%s1 + $0x30b8] sm:$0xff]
  %v1622 = vld [vmem:[%s1 + $0x30c0] sm:$0xff]
  %v1623 = vld [vmem:[%s1 + $0x30c8] sm:$0xff]
  %v1624 = vld [vmem:[%s1 + $0x30d0] sm:$0xff]
  %v1625 = vld [vmem:[%s1 + $0x30d8] sm:$0xff]
  %v1626 = vld [vmem:[%s1 + $0x30e0] sm:$0xff]
  %v1627 = vld [vmem:[%s1 + $0x30e8] sm:$0xff]
  %v1628 = vld [vmem:[%s1 + $0x30f0] sm:$0xff]
  %v1629 = vld [vmem:[%s1 + $0x30f8] sm:$0xff]
  %v1630 = vld [vmem:[%s1 + $0x3100] sm:$0xff]
  %v1631 = vld [vmem:[%s1 + $0x3108] sm:$0xff]
  %v1632 = vld [vmem:[%s1 + $0x3110] sm:$0xff]
  %v1633 = vld [vmem:[%s1 + $0x3118] sm:$0xff]
  %v1634 = vld [vmem:[%s1 + $0x3120] sm:$0xff]
  %v1635 = vld [vmem:[%s1 + $0x3128] sm:$0xff]
  %v1636 = vld [vmem:[%s1 + $0x3130] sm:$0xff]
  %v1637 = vld [vmem:[%s1 + $0x3138] sm:$0xff]
  %v1638 = vld [vmem:[%s1 + $0x3140] sm:$0xff]
  %v1639 = vld [vmem:[%s1 + $0x3148] sm:$0xff]
  %v1640 = vld [vmem:[%s1 + $0x3150] sm:$0xff]
  %v1641 = vld [vmem:[%s1 + $0x3158] sm:$0xff]
  %v1642 = vld [vmem:[%s1 + $0x3160] sm:$0xff]
  %v1643 = vld [vmem:[%s1 + $0x3168] sm:$0xff]
  %v1644 = vld [vmem:[%s1 + $0x3170] sm:$0xff]
  %v1645 = vld [vmem:[%s1 + $0x3178] sm:$0xff]
  %v1646 = vld [vmem:[%s1 + $0x3180] sm:$0xff]
  %v1647 = vld [vmem:[%s1 + $0x3188] sm:$0xff]
  %v1648 = vld [vmem:[%s1 + $0x3190] sm:$0xff]
  %v1649 = vld [vmem:[%s1 + $0x3198] sm:$0xff]
  %v1650 = vld [vmem:[%s1 + $0x31a0] sm:$0xff]
  %v1651 = vld [vmem:[%s1 + $0x31a8] sm:$0xff]
  %v1652 = vld [vmem:[%s1 + $0x31b0] sm:$0xff]
  %v1653 = vld [vmem:[%s1 + $0x31b8] sm:$0xff]
  %v1654 = vld [vmem:[%s1 + $0x31c0] sm:$0xff]
  %v1655 = vld [vmem:[%s1 + $0x31c8] sm:$0xff]
  %v1656 = vld [vmem:[%s1 + $0x31d0] sm:$0xff]
  %v1657 = vld [vmem:[%s1 + $0x31d8] sm:$0xff]
  %v1658 = vld [vmem:[%s1 + $0x31e0] sm:$0xff]
  %v1659 = vld [vmem:[%s1 + $0x31e8] sm:$0xff]
  %v1660 = vld [vmem:[%s1 + $0x31f0] sm:$0xff]
  %v1661 = vld [vmem:[%s1 + $0x31f8] sm:$0xff]
  %v1662 = vld [vmem:[%s1 + $0x3200] sm:$0xff]
  %v1663 = vld [vmem:[%s1 + $0x3208] sm:$0xff]
  %v1664 = vld [vmem:[%s1 + $0x3210] sm:$0xff]
  %v1665 = vld [vmem:[%s1 + $0x3218] sm:$0xff]
  %v1666 = vld [vmem:[%s1 + $0x3220] sm:$0xff]
  %v1667 = vld [vmem:[%s1 + $0x3228] sm:$0xff]
  %v1668 = vld [vmem:[%s1 + $0x3230] sm:$0xff]
  %v1669 = vld [vmem:[%s1 + $0x3238] sm:$0xff]
  %v1670 = vld [vmem:[%s1 + $0x3240] sm:$0xff]
  %v1671 = vld [vmem:[%s1 + $0x3248] sm:$0xff]
  %v1672 = vld [vmem:[%s1 + $0x3250] sm:$0xff]
  %v1673 = vld [vmem:[%s1 + $0x3258] sm:$0xff]
  %v1674 = vld [vmem:[%s1 + $0x3260] sm:$0xff]
  %v1675 = vld [vmem:[%s1 + $0x3268] sm:$0xff]
  %v1676 = vld [vmem:[%s1 + $0x3270] sm:$0xff]
  %v1677 = vld [vmem:[%s1 + $0x3278] sm:$0xff]
  %v1678 = vld [vmem:[%s1 + $0x3280] sm:$0xff]
  %v1679 = vld [vmem:[%s1 + $0x3288] sm:$0xff]
  %v1680 = vld [vmem:[%s1 + $0x3290] sm:$0xff]
  %v1681 = vld [vmem:[%s1 + $0x3298] sm:$0xff]
  %v1682 = vld [vmem:[%s1 + $0x32a0] sm:$0xff]
  %v1683 = vld [vmem:[%s1 + $0x32a8] sm:$0xff]
  %v1684 = vld [vmem:[%s1 + $0x32b0] sm:$0xff]
  %v1685 = vld [vmem:[%s1 + $0x32b8] sm:$0xff]
  %v1686 = vld [vmem:[%s1 + $0x32c0] sm:$0xff]
  %v1687 = vld [vmem:[%s1 + $0x32c8] sm:$0xff]
  %v1688 = vld [vmem:[%s1 + $0x32d0] sm:$0xff]
  %v1689 = vld [vmem:[%s1 + $0x32d8] sm:$0xff]
  %v1690 = vld [vmem:[%s1 + $0x32e0] sm:$0xff]
  %v1691 = vld [vmem:[%s1 + $0x32e8] sm:$0xff]
  %v1692 = vld [vmem:[%s1 + $0x32f0] sm:$0xff]
  %v1693 = vld [vmem:[%s1 + $0x32f8] sm:$0xff]
  %v1694 = vld [vmem:[%s1 + $0x3300] sm:$0xff]
  %v1695 = vld [vmem:[%s1 + $0x3308] sm:$0xff]
  %v1696 = vld [vmem:[%s1 + $0x3310] sm:$0xff]
  %v1697 = vld [vmem:[%s1 + $0x3318] sm:$0xff]
  %v1698 = vld [vmem:[%s1 + $0x3320] sm:$0xff]
  %v1699 = vld [vmem:[%s1 + $0x3328] sm:$0xff]
  %v1700 = vld [vmem:[%s1 + $0x3330] sm:$0xff]
  %v1701 = vld [vmem:[%s1 + $0x3338] sm:$0xff]
  %v1702 = vld [vmem:[%s1 + $0x3340] sm:$0xff]
  %v1703 = vld [vmem:[%s1 + $0x3348] sm:$0xff]
  %v1704 = vld [vmem:[%s1 + $0x3350] sm:$0xff]
  %v1705 = vld [vmem:[%s1 + $0x3358] sm:$0xff]
  %v1706 = vld [vmem:[%s1 + $0x3360] sm:$0xff]
  %v1707 = vld [vmem:[%s1 + $0x3368] sm:$0xff]
  %v1708 = vld [vmem:[%s1 + $0x3370] sm:$0xff]
  %v1709 = vld [vmem:[%s1 + $0x3378] sm:$0xff]
  %v1710 = vld [vmem:[%s1 + $0x3380] sm:$0xff]
  %v1711 = vld [vmem:[%s1 + $0x3388] sm:$0xff]
  %v1712 = vld [vmem:[%s1 + $0x3390] sm:$0xff]
  %v1713 = vld [vmem:[%s1 + $0x3398] sm:$0xff]
  %v1714 = vld [vmem:[%s1 + $0x33a0] sm:$0xff]
  %v1715 = vld [vmem:[%s1 + $0x33a8] sm:$0xff]
  %v1716 = vld [vmem:[%s1 + $0x33b0] sm:$0xff]
  %v1717 = vld [vmem:[%s1 + $0x33b8] sm:$0xff]
  %v1718 = vld [vmem:[%s1 + $0x33c0] sm:$0xff]
  %v1719 = vld [vmem:[%s1 + $0x33c8] sm:$0xff]
  %v1720 = vld [vmem:[%s1 + $0x33d0] sm:$0xff]
  %v1721 = vld [vmem:[%s1 + $0x33d8] sm:$0xff]
  %v1722 = vld [vmem:[%s1 + $0x33e0] sm:$0xff]
  %v1723 = vld [vmem:[%s1 + $0x33e8] sm:$0xff]
  %v1724 = vld [vmem:[%s1 + $0x33f0] sm:$0xff]
  %v1725 = vld [vmem:[%s1 + $0x33f8] sm:$0xff]
  %v1726 = vld [vmem:[%s1 + $0x3400] sm:$0xff]
  %v1727 = vld [vmem:[%s1 + $0x3408] sm:$0xff]
  %v1728 = vld [vmem:[%s1 + $0x3410] sm:$0xff]
  %v1729 = vld [vmem:[%s1 + $0x3418] sm:$0xff]
  %v1730 = vld [vmem:[%s1 + $0x3420] sm:$0xff]
  %v1731 = vld [vmem:[%s1 + $0x3428] sm:$0xff]
  %v1732 = vld [vmem:[%s1 + $0x3430] sm:$0xff]
  %v1733 = vld [vmem:[%s1 + $0x3438] sm:$0xff]
  %v1734 = vld [vmem:[%s1 + $0x3440] sm:$0xff]
  %v1735 = vld [vmem:[%s1 + $0x3448] sm:$0xff]
  %v1736 = vld [vmem:[%s1 + $0x3450] sm:$0xff]
  %v1737 = vld [vmem:[%s1 + $0x3458] sm:$0xff]
  %v1738 = vld [vmem:[%s1 + $0x3460] sm:$0xff]
  %v1739 = vld [vmem:[%s1 + $0x3468] sm:$0xff]
  %v1740 = vld [vmem:[%s1 + $0x3470] sm:$0xff]
  %v1741 = vld [vmem:[%s1 + $0x3478] sm:$0xff]
  %v1742 = vld [vmem:[%s1 + $0x3480] sm:$0xff]
  %v1743 = vld [vmem:[%s1 + $0x3488] sm:$0xff]
  %v1744 = vld [vmem:[%s1 + $0x3490] sm:$0xff]
  %v1745 = vld [vmem:[%s1 + $0x3498] sm:$0xff]
  %v1746 = vld [vmem:[%s1 + $0x34a0] sm:$0xff]
  %v1747 = vld [vmem:[%s1 + $0x34a8] sm:$0xff]
  %v1748 = vld [vmem:[%s1 + $0x34b0] sm:$0xff]
  %v1749 = vld [vmem:[%s1 + $0x34b8] sm:$0xff]
  %v1750 = vld [vmem:[%s1 + $0x34c0] sm:$0xff]
  %v1751 = vld [vmem:[%s1 + $0x34c8] sm:$0xff]
  %v1752 = vld [vmem:[%s1 + $0x34d0] sm:$0xff]
  %v1753 = vld [vmem:[%s1 + $0x34d8] sm:$0xff]
  %v1754 = vld [vmem:[%s1 + $0x34e0] sm:$0xff]
  %v1755 = vld [vmem:[%s1 + $0x34e8] sm:$0xff]
  %v1756 = vld [vmem:[%s1 + $0x34f0] sm:$0xff]
  %v1757 = vld [vmem:[%s1 + $0x34f8] sm:$0xff]
  %v1758 = vld [vmem:[%s1 + $0x3500] sm:$0xff]
  %v1759 = vld [vmem:[%s1 + $0x3508] sm:$0xff]
  %v1760 = vld [vmem:[%s1 + $0x3510] sm:$0xff]
  %v1761 = vld [vmem:[%s1 + $0x3518] sm:$0xff]
  %v1762 = vld [vmem:[%s1 + $0x3520] sm:$0xff]
  %v1763 = vld [vmem:[%s1 + $0x3528] sm:$0xff]
  %v1764 = vld [vmem:[%s1 + $0x3530] sm:$0xff]
  %v1765 = vld [vmem:[%s1 + $0x3538] sm:$0xff]
  %v1766 = vld [vmem:[%s1 + $0x3540] sm:$0xff]
  %v1767 = vld [vmem:[%s1 + $0x3548] sm:$0xff]
  %v1768 = vld [vmem:[%s1 + $0x3550] sm:$0xff]
  %v1769 = vld [vmem:[%s1 + $0x3558] sm:$0xff]
  %v1770 = vld [vmem:[%s1 + $0x3560] sm:$0xff]
  %v1771 = vld [vmem:[%s1 + $0x3568] sm:$0xff]
  %v1772 = vld [vmem:[%s1 + $0x3570] sm:$0xff]
  %v1773 = vld [vmem:[%s1 + $0x3578] sm:$0xff]
  %v1774 = vld [vmem:[%s1 + $0x3580] sm:$0xff]
  %v1775 = vld [vmem:[%s1 + $0x3588] sm:$0xff]
  %v1776 = vld [vmem:[%s1 + $0x3590] sm:$0xff]
  %v1777 = vld [vmem:[%s1 + $0x3598] sm:$0xff]
  %v1778 = vld [vmem:[%s1 + $0x35a0] sm:$0xff]
  %v1779 = vld [vmem:[%s1 + $0x35a8] sm:$0xff]
  %v1780 = vld [vmem:[%s1 + $0x35b0] sm:$0xff]
  %v1781 = vld [vmem:[%s1 + $0x35b8] sm:$0xff]
  %v1782 = vld [vmem:[%s1 + $0x35c0] sm:$0xff]
  %v1783 = vld [vmem:[%s1 + $0x35c8] sm:$0xff]
  %v1784 = vld [vmem:[%s1 + $0x35d0] sm:$0xff]
  %v1785 = vld [vmem:[%s1 + $0x35d8] sm:$0xff]
  %v1786 = vld [vmem:[%s1 + $0x35e0] sm:$0xff]
  %v1787 = vld [vmem:[%s1 + $0x35e8] sm:$0xff]
  %v1788 = vld [vmem:[%s1 + $0x35f0] sm:$0xff]
  %v1789 = vld [vmem:[%s1 + $0x35f8] sm:$0xff]
  %v1790 = vld [vmem:[%s1 + $0x3600] sm:$0xff]
  %v1791 = vld [vmem:[%s1 + $0x3608] sm:$0xff]
  %v1792 = vld [vmem:[%s1 + $0x3610] sm:$0xff]
  %v1793 = vld [vmem:[%s1 + $0x3618] sm:$0xff]
  %v1794 = vld [vmem:[%s1 + $0x3620] sm:$0xff]
  %v1795 = vld [vmem:[%s1 + $0x3628] sm:$0xff]
  %v1796 = vld [vmem:[%s1 + $0x3630] sm:$0xff]
  %v1797 = vld [vmem:[%s1 + $0x3638] sm:$0xff]
  %v1798 = vld [vmem:[%s1 + $0x3640] sm:$0xff]
  %v1799 = vld [vmem:[%s1 + $0x3648] sm:$0xff]
  %v1800 = vld [vmem:[%s1 + $0x3650] sm:$0xff]
  %v1801 = vld [vmem:[%s1 + $0x3658] sm:$0xff]
  %v1802 = vld [vmem:[%s1 + $0x3660] sm:$0xff]
  %v1803 = vld [vmem:[%s1 + $0x3668] sm:$0xff]
  %v1804 = vld [vmem:[%s1 + $0x3670] sm:$0xff]
  %v1805 = vld [vmem:[%s1 + $0x3678] sm:$0xff]
  %v1806 = vld [vmem:[%s1 + $0x3680] sm:$0xff]
  %v1807 = vld [vmem:[%s1 + $0x3688] sm:$0xff]
  %v1808 = vld [vmem:[%s1 + $0x3690] sm:$0xff]
  %v1809 = vld [vmem:[%s1 + $0x3698] sm:$0xff]
  %v1810 = vld [vmem:[%s1 + $0x36a0] sm:$0xff]
  %v1811 = vld [vmem:[%s1 + $0x36a8] sm:$0xff]
  %v1812 = vld [vmem:[%s1 + $0x36b0] sm:$0xff]
  %v1813 = vld [vmem:[%s1 + $0x36b8] sm:$0xff]
  %v1814 = vld [vmem:[%s1 + $0x36c0] sm:$0xff]
  %v1815 = vld [vmem:[%s1 + $0x36c8] sm:$0xff]
  %v1816 = vld [vmem:[%s1 + $0x36d0] sm:$0xff]
  %v1817 = vld [vmem:[%s1 + $0x36d8] sm:$0xff]
  %v1818 = vld [vmem:[%s1 + $0x36e0] sm:$0xff]
  %v1819 = vld [vmem:[%s1 + $0x36e8] sm:$0xff]
  %v1820 = vld [vmem:[%s1 + $0x36f0] sm:$0xff]
  %v1821 = vld [vmem:[%s1 + $0x36f8] sm:$0xff]
  %v1822 = vld [vmem:[%s1 + $0x3700] sm:$0xff]
  %v1823 = vld [vmem:[%s1 + $0x3708] sm:$0xff]
  %v1824 = vld [vmem:[%s1 + $0x3710] sm:$0xff]
  %v1825 = vld [vmem:[%s1 + $0x3718] sm:$0xff]
  %v1826 = vld [vmem:[%s1 + $0x3720] sm:$0xff]
  %v1827 = vld [vmem:[%s1 + $0x3728] sm:$0xff]
  %v1828 = vld [vmem:[%s1 + $0x3730] sm:$0xff]
  %v1829 = vld [vmem:[%s1 + $0x3738] sm:$0xff]
  %v1830 = vld [vmem:[%s1 + $0x3740] sm:$0xff]
  %v1831 = vld [vmem:[%s1 + $0x3748] sm:$0xff]
  %v1832 = vld [vmem:[%s1 + $0x3750] sm:$0xff]
  %v1833 = vld [vmem:[%s1 + $0x3758] sm:$0xff]
  %v1834 = vld [vmem:[%s1 + $0x3760] sm:$0xff]
  %v1835 = vld [vmem:[%s1 + $0x3768] sm:$0xff]
  %v1836 = vld [vmem:[%s1 + $0x3770] sm:$0xff]
  %v1837 = vld [vmem:[%s1 + $0x3778] sm:$0xff]
  %v1838 = vld [vmem:[%s1 + $0x3780] sm:$0xff]
  %v1839 = vld [vmem:[%s1 + $0x3788] sm:$0xff]
  %v1840 = vld [vmem:[%s1 + $0x3790] sm:$0xff]
  %v1841 = vld [vmem:[%s1 + $0x3798] sm:$0xff]
  %v1842 = vld [vmem:[%s1 + $0x37a0] sm:$0xff]
  %v1843 = vld [vmem:[%s1 + $0x37a8] sm:$0xff]
  %v1844 = vld [vmem:[%s1 + $0x37b0] sm:$0xff]
  %v1845 = vld [vmem:[%s1 + $0x37b8] sm:$0xff]
  %v1846 = vld [vmem:[%s1 + $0x37c0] sm:$0xff]
  %v1847 = vld [vmem:[%s1 + $0x37c8] sm:$0xff]
  %v1848 = vld [vmem:[%s1 + $0x37d0] sm:$0xff]
  %v1849 = vld [vmem:[%s1 + $0x37d8] sm:$0xff]
  %v1850 = vld [vmem:[%s1 + $0x37e0] sm:$0xff]
  %v1851 = vld [vmem:[%s1 + $0x37e8] sm:$0xff]
  %v1852 = vld [vmem:[%s1 + $0x37f0] sm:$0xff]
  %v1853 = vld [vmem:[%s1 + $0x37f8] sm:$0xff]
  %v1854 = vld [vmem:[%s1 + $0x3800] sm:$0xff]
  %v1855 = vld [vmem:[%s1 + $0x3808] sm:$0xff]
  %v1856 = vld [vmem:[%s1 + $0x3810] sm:$0xff]
  %v1857 = vld [vmem:[%s1 + $0x3818] sm:$0xff]
  %v1858 = vld [vmem:[%s1 + $0x3820] sm:$0xff]
  %v1859 = vld [vmem:[%s1 + $0x3828] sm:$0xff]
  %v1860 = vld [vmem:[%s1 + $0x3830] sm:$0xff]
  %v1861 = vld [vmem:[%s1 + $0x3838] sm:$0xff]
  %v1862 = vld [vmem:[%s1 + $0x3840] sm:$0xff]
  %v1863 = vld [vmem:[%s1 + $0x3848] sm:$0xff]
  %v1864 = vld [vmem:[%s1 + $0x3850] sm:$0xff]
  %v1865 = vld [vmem:[%s1 + $0x3858] sm:$0xff]
  %v1866 = vld [vmem:[%s1 + $0x3860] sm:$0xff]
  %v1867 = vld [vmem:[%s1 + $0x3868] sm:$0xff]
  %v1868 = vld [vmem:[%s1 + $0x3870] sm:$0xff]
  %v1869 = vld [vmem:[%s1 + $0x3878] sm:$0xff]
  %v1870 = vld [vmem:[%s1 + $0x3880] sm:$0xff]
  %v1871 = vld [vmem:[%s1 + $0x3888] sm:$0xff]
  %v1872 = vld [vmem:[%s1 + $0x3890] sm:$0xff]
  %v1873 = vld [vmem:[%s1 + $0x3898] sm:$0xff]
  %v1874 = vld [vmem:[%s1 + $0x38a0] sm:$0xff]
  %v1875 = vld [vmem:[%s1 + $0x38a8] sm:$0xff]
  %v1876 = vld [vmem:[%s1 + $0x38b0] sm:$0xff]
  %v1877 = vld [vmem:[%s1 + $0x38b8] sm:$0xff]
  %v1878 = vld [vmem:[%s1 + $0x38c0] sm:$0xff]
  %v1879 = vld [vmem:[%s1 + $0x38c8] sm:$0xff]
  %v1880 = vld [vmem:[%s1 + $0x38d0] sm:$0xff]
  %v1881 = vld [vmem:[%s1 + $0x38d8] sm:$0xff]
  %v1882 = vld [vmem:[%s1 + $0x38e0] sm:$0xff]
  %v1883 = vld [vmem:[%s1 + $0x38e8] sm:$0xff]
  %v1884 = vld [vmem:[%s1 + $0x38f0] sm:$0xff]
  %v1885 = vld [vmem:[%s1 + $0x38f8] sm:$0xff]
  %v1886 = vld [vmem:[%s1 + $0x3900] sm:$0xff]
  %v1887 = vld [vmem:[%s1 + $0x3908] sm:$0xff]
  %v1888 = vld [vmem:[%s1 + $0x3910] sm:$0xff]
  %v1889 = vld [vmem:[%s1 + $0x3918] sm:$0xff]
  %v1890 = vld [vmem:[%s1 + $0x3920] sm:$0xff]
  %v1891 = vld [vmem:[%s1 + $0x3928] sm:$0xff]
  %v1892 = vld [vmem:[%s1 + $0x3930] sm:$0xff]
  %v1893 = vld [vmem:[%s1 + $0x3938] sm:$0xff]
  %v1894 = vld [vmem:[%s1 + $0x3940] sm:$0xff]
  %v1895 = vld [vmem:[%s1 + $0x3948] sm:$0xff]
  %v1896 = vld [vmem:[%s1 + $0x3950] sm:$0xff]
  %v1897 = vld [vmem:[%s1 + $0x3958] sm:$0xff]
  %v1898 = vld [vmem:[%s1 + $0x3960] sm:$0xff]
  %v1899 = vld [vmem:[%s1 + $0x3968] sm:$0xff]
  %v1900 = vld [vmem:[%s1 + $0x3970] sm:$0xff]
  %v1901 = vld [vmem:[%s1 + $0x3978] sm:$0xff]
  %v1902 = vld [vmem:[%s1 + $0x3980] sm:$0xff]
  %v1903 = vld [vmem:[%s1 + $0x3988] sm:$0xff]
  %v1904 = vld [vmem:[%s1 + $0x3990] sm:$0xff]
  %v1905 = vld [vmem:[%s1 + $0x3998] sm:$0xff]
  %v1906 = vld [vmem:[%s1 + $0x39a0] sm:$0xff]
  %v1907 = vld [vmem:[%s1 + $0x39a8] sm:$0xff]
  %v1908 = vld [vmem:[%s1 + $0x39b0] sm:$0xff]
  %v1909 = vld [vmem:[%s1 + $0x39b8] sm:$0xff]
  %v1910 = vld [vmem:[%s1 + $0x39c0] sm:$0xff]
  %v1911 = vld [vmem:[%s1 + $0x39c8] sm:$0xff]
  %v1912 = vld [vmem:[%s1 + $0x39d0] sm:$0xff]
  %v1913 = vld [vmem:[%s1 + $0x39d8] sm:$0xff]
  %v1914 = vld [vmem:[%s1 + $0x39e0] sm:$0xff]
  %v1915 = vld [vmem:[%s1 + $0x39e8] sm:$0xff]
  %v1916 = vld [vmem:[%s1 + $0x39f0] sm:$0xff]
  %v1917 = vld [vmem:[%s1 + $0x39f8] sm:$0xff]
  %v1918 = vld [vmem:[%s1 + $0x3a00] sm:$0xff]
  %v1919 = vld [vmem:[%s1 + $0x3a08] sm:$0xff]
  %v1920 = vld [vmem:[%s1 + $0x3a10] sm:$0xff]
  %v1921 = vld [vmem:[%s1 + $0x3a18] sm:$0xff]
  %v1922 = vld [vmem:[%s1 + $0x3a20] sm:$0xff]
  %v1923 = vld [vmem:[%s1 + $0x3a28] sm:$0xff]
  %v1924 = vld [vmem:[%s1 + $0x3a30] sm:$0xff]
  %v1925 = vld [vmem:[%s1 + $0x3a38] sm:$0xff]
  %v1926 = vld [vmem:[%s1 + $0x3a40] sm:$0xff]
  %v1927 = vld [vmem:[%s1 + $0x3a48] sm:$0xff]
  %v1928 = vld [vmem:[%s1 + $0x3a50] sm:$0xff]
  %v1929 = vld [vmem:[%s1 + $0x3a58] sm:$0xff]
  %v1930 = vld [vmem:[%s1 + $0x3a60] sm:$0xff]
  %v1931 = vld [vmem:[%s1 + $0x3a68] sm:$0xff]
  %v1932 = vld [vmem:[%s1 + $0x3a70] sm:$0xff]
  %v1933 = vld [vmem:[%s1 + $0x3a78] sm:$0xff]
  %v1934 = vld [vmem:[%s1 + $0x3a80] sm:$0xff]
  %v1935 = vld [vmem:[%s1 + $0x3a88] sm:$0xff]
  %v1936 = vld [vmem:[%s1 + $0x3a90] sm:$0xff]
  %v1937 = vld [vmem:[%s1 + $0x3a98] sm:$0xff]
  %v1938 = vld [vmem:[%s1 + $0x3aa0] sm:$0xff]
  %v1939 = vld [vmem:[%s1 + $0x3aa8] sm:$0xff]
  %v1940 = vld [vmem:[%s1 + $0x3ab0] sm:$0xff]
  %v1941 = vld [vmem:[%s1 + $0x3ab8] sm:$0xff]
  %v1942 = vld [vmem:[%s1 + $0x3ac0] sm:$0xff]
  %v1943 = vld [vmem:[%s1 + $0x3ac8] sm:$0xff]
  %v1944 = vld [vmem:[%s1 + $0x3ad0] sm:$0xff]
  %v1945 = vld [vmem:[%s1 + $0x3ad8] sm:$0xff]
  %v1946 = vld [vmem:[%s1 + $0x3ae0] sm:$0xff]
  %v1947 = vld [vmem:[%s1 + $0x3ae8] sm:$0xff]
  %v1948 = vld [vmem:[%s1 + $0x3af0] sm:$0xff]
  %v1949 = vld [vmem:[%s1 + $0x3af8] sm:$0xff]
  %v1950 = vld [vmem:[%s1 + $0x3b00] sm:$0xff]
  %v1951 = vld [vmem:[%s1 + $0x3b08] sm:$0xff]
  %v1952 = vld [vmem:[%s1 + $0x3b10] sm:$0xff]
  %v1953 = vld [vmem:[%s1 + $0x3b18] sm:$0xff]
  %v1954 = vld [vmem:[%s1 + $0x3b20] sm:$0xff]
  %v1955 = vld [vmem:[%s1 + $0x3b28] sm:$0xff]
  %v1956 = vld [vmem:[%s1 + $0x3b30] sm:$0xff]
  %v1957 = vld [vmem:[%s1 + $0x3b38] sm:$0xff]
  %v1958 = vld [vmem:[%s1 + $0x3b40] sm:$0xff]
  %v1959 = vld [vmem:[%s1 + $0x3b48] sm:$0xff]
  %v1960 = vld [vmem:[%s1 + $0x3b50] sm:$0xff]
  %v1961 = vld [vmem:[%s1 + $0x3b58] sm:$0xff]
  %v1962 = vld [vmem:[%s1 + $0x3b60] sm:$0xff]
  %v1963 = vld [vmem:[%s1 + $0x3b68] sm:$0xff]
  %v1964 = vld [vmem:[%s1 + $0x3b70] sm:$0xff]
  %v1965 = vld [vmem:[%s1 + $0x3b78] sm:$0xff]
  %v1966 = vld [vmem:[%s1 + $0x3b80] sm:$0xff]
  %v1967 = vld [vmem:[%s1 + $0x3b88] sm:$0xff]
  %v1968 = vld [vmem:[%s1 + $0x3b90] sm:$0xff]
  %v1969 = vld [vmem:[%s1 + $0x3b98] sm:$0xff]
  %v1970 = vld [vmem:[%s1 + $0x3ba0] sm:$0xff]
  %v1971 = vld [vmem:[%s1 + $0x3ba8] sm:$0xff]
  %v1972 = vld [vmem:[%s1 + $0x3bb0] sm:$0xff]
  %v1973 = vld [vmem:[%s1 + $0x3bb8] sm:$0xff]
  %v1974 = vld [vmem:[%s1 + $0x3bc0] sm:$0xff]
  %v1975 = vld [vmem:[%s1 + $0x3bc8] sm:$0xff]
  %v1976 = vld [vmem:[%s1 + $0x3bd0] sm:$0xff]
  %v1977 = vld [vmem:[%s1 + $0x3bd8] sm:$0xff]
  %v1978 = vld [vmem:[%s1 + $0x3be0] sm:$0xff]
  %v1979 = vld [vmem:[%s1 + $0x3be8] sm:$0xff]
  %v1980 = vld [vmem:[%s1 + $0x3bf0] sm:$0xff]
  %v1981 = vld [vmem:[%s1 + $0x3bf8] sm:$0xff]
  %v1982 = vld [vmem:[%s1 + $0x3c00] sm:$0xff]
  %v1983 = vld [vmem:[%s1 + $0x3c08] sm:$0xff]
  %v1984 = vld [vmem:[%s1 + $0x3c10] sm:$0xff]
  %v1985 = vld [vmem:[%s1 + $0x3c18] sm:$0xff]
  %v1986 = vld [vmem:[%s1 + $0x3c20] sm:$0xff]
  %v1987 = vld [vmem:[%s1 + $0x3c28] sm:$0xff]
  %v1988 = vld [vmem:[%s1 + $0x3c30] sm:$0xff]
  %v1989 = vld [vmem:[%s1 + $0x3c38] sm:$0xff]
  %v1990 = vld [vmem:[%s1 + $0x3c40] sm:$0xff]
  %v1991 = vld [vmem:[%s1 + $0x3c48] sm:$0xff]
  %v1992 = vld [vmem:[%s1 + $0x3c50] sm:$0xff]
  %v1993 = vld [vmem:[%s1 + $0x3c58] sm:$0xff]
  %v1994 = vld [vmem:[%s1 + $0x3c60] sm:$0xff]
  %v1995 = vld [vmem:[%s1 + $0x3c68] sm:$0xff]
  %v1996 = vld [vmem:[%s1 + $0x3c70] sm:$0xff]
  %v1997 = vld [vmem:[%s1 + $0x3c78] sm:$0xff]
  %v1998 = vld [vmem:[%s1 + $0x3c80] sm:$0xff]
  %v1999 = vld [vmem:[%s1 + $0x3c88] sm:$0xff]
  %v2000 = vld [vmem:[%s1 + $0x3c90] sm:$0xff]
  %v2001 = vld [vmem:[%s1 + $0x3c98] sm:$0xff]
  %v2002 = vld [vmem:[%s1 + $0x3ca0] sm:$0xff]
  %v2003 = vld [vmem:[%s1 + $0x3ca8] sm:$0xff]
  %v2004 = vld [vmem:[%s1 + $0x3cb0] sm:$0xff]
  %v2005 = vld [vmem:[%s1 + $0x3cb8] sm:$0xff]
  %v2006 = vld [vmem:[%s1 + $0x3cc0] sm:$0xff]
  %v2007 = vld [vmem:[%s1 + $0x3cc8] sm:$0xff]
  %v2008 = vld [vmem:[%s1 + $0x3cd0] sm:$0xff]
  %v2009 = vld [vmem:[%s1 + $0x3cd8] sm:$0xff]
  %v2010 = vld [vmem:[%s1 + $0x3ce0] sm:$0xff]
  %v2011 = vld [vmem:[%s1 + $0x3ce8] sm:$0xff]
  %v2012 = vld [vmem:[%s1 + $0x3cf0] sm:$0xff]
  %v2013 = vld [vmem:[%s1 + $0x3cf8] sm:$0xff]
  %v2014 = vld [vmem:[%s1 + $0x3d00] sm:$0xff]
  %v2015 = vld [vmem:[%s1 + $0x3d08] sm:$0xff]
  %v2016 = vld [vmem:[%s1 + $0x3d10] sm:$0xff]
  %v2017 = vld [vmem:[%s1 + $0x3d18] sm:$0xff]
  %v2018 = vld [vmem:[%s1 + $0x3d20] sm:$0xff]
  %v2019 = vld [vmem:[%s1 + $0x3d28] sm:$0xff]
  %v2020 = vld [vmem:[%s1 + $0x3d30] sm:$0xff]
  %v2021 = vld [vmem:[%s1 + $0x3d38] sm:$0xff]
  %v2022 = vld [vmem:[%s1 + $0x3d40] sm:$0xff]
  %v2023 = vld [vmem:[%s1 + $0x3d48] sm:$0xff]
  %v2024 = vld [vmem:[%s1 + $0x3d50] sm:$0xff]
  %v2025 = vld [vmem:[%s1 + $0x3d58] sm:$0xff]
  %v2026 = vld [vmem:[%s1 + $0x3d60] sm:$0xff]
  %v2027 = vld [vmem:[%s1 + $0x3d68] sm:$0xff]
  %v2028 = vld [vmem:[%s1 + $0x3d70] sm:$0xff]
  %v2029 = vld [vmem:[%s1 + $0x3d78] sm:$0xff]
  %v2030 = vld [vmem:[%s1 + $0x3d80] sm:$0xff]
  %v2031 = vld [vmem:[%s1 + $0x3d88] sm:$0xff]
  %v2032 = vld [vmem:[%s1 + $0x3d90] sm:$0xff]
  %v2033 = vld [vmem:[%s1 + $0x3d98] sm:$0xff]
  %v2034 = vld [vmem:[%s1 + $0x3da0] sm:$0xff]
  %v2035 = vld [vmem:[%s1 + $0x3da8] sm:$0xff]
  %v2036 = vld [vmem:[%s1 + $0x3db0] sm:$0xff]
  %v2037 = vld [vmem:[%s1 + $0x3db8] sm:$0xff]
  %v2038 = vld [vmem:[%s1 + $0x3dc0] sm:$0xff]
  %v2039 = vld [vmem:[%s1 + $0x3dc8] sm:$0xff]
  %v2040 = vld [vmem:[%s1 + $0x3dd0] sm:$0xff]
  %v2041 = vld [vmem:[%s1 + $0x3dd8] sm:$0xff]
  %v2042 = vld [vmem:[%s1 + $0x3de0] sm:$0xff]
  %v2043 = vld [vmem:[%s1 + $0x3de8] sm:$0xff]
  %v2044 = vld [vmem:[%s1 + $0x3df0] sm:$0xff]
  %v2045 = vld [vmem:[%s1 + $0x3df8] sm:$0xff]
  %v2046 = vld [vmem:[%s1 + $0x3e00] sm:$0xff]
  %v2047 = vld [vmem:[%s1 + $0x3e08] sm:$0xff]
  %v2048 = vld [vmem:[%s1 + $0x3e10] sm:$0xff]
  %v2049 = vld [vmem:[%s1 + $0x3e18] sm:$0xff]
  %v2050 = vld [vmem:[%s1 + $0x3e20] sm:$0xff]
  %v2051 = vld [vmem:[%s1 + $0x3e28] sm:$0xff]
  %v2052 = vld [vmem:[%s1 + $0x3e30] sm:$0xff]
  %v2053 = vld [vmem:[%s1 + $0x3e38] sm:$0xff]
  %v2054 = vld [vmem:[%s1 + $0x3e40] sm:$0xff]
  %v2055 = vld [vmem:[%s1 + $0x3e48] sm:$0xff]
  %v2056 = vld [vmem:[%s1 + $0x3e50] sm:$0xff]
  %v2057 = vld [vmem:[%s1 + $0x3e58] sm:$0xff]
  %v2058 = vld [vmem:[%s1 + $0x3e60] sm:$0xff]
  %v2059 = vld [vmem:[%s1 + $0x3e68] sm:$0xff]
  %v2060 = vld [vmem:[%s1 + $0x3e70] sm:$0xff]
  %v2061 = vld [vmem:[%s1 + $0x3e78] sm:$0xff]
  %v2062 = vld [vmem:[%s1 + $0x3e80] sm:$0xff]
  %v2063 = vld [vmem:[%s1 + $0x3e88] sm:$0xff]
  %v2064 = vld [vmem:[%s1 + $0x3e90] sm:$0xff]
  %v2065 = vld [vmem:[%s1 + $0x3e98] sm:$0xff]
  %v2066 = vld [vmem:[%s1 + $0x3ea0] sm:$0xff]
  %v2067 = vld [vmem:[%s1 + $0x3ea8] sm:$0xff]
  %v2068 = vld [vmem:[%s1 + $0x3eb0] sm:$0xff]
  %v2069 = vld [vmem:[%s1 + $0x3eb8] sm:$0xff]
  %v2070 = vld [vmem:[%s1 + $0x3ec0] sm:$0xff]
  %v2071 = vld [vmem:[%s1 + $0x3ec8] sm:$0xff]
  %v2072 = vld [vmem:[%s1 + $0x3ed0] sm:$0xff]
  %v2073 = vld [vmem:[%s1 + $0x3ed8] sm:$0xff]
  %v2074 = vld [vmem:[%s1 + $0x3ee0] sm:$0xff]
  %v2075 = vld [vmem:[%s1 + $0x3ee8] sm:$0xff]
  %v2076 = vld [vmem:[%s1 + $0x3ef0] sm:$0xff]
  %v2077 = vld [vmem:[%s1 + $0x3ef8] sm:$0xff]
  %v2078 = vld [vmem:[%s1 + $0x3f00] sm:$0xff]
  %v2079 = vld [vmem:[%s1 + $0x3f08] sm:$0xff]
  %v2080 = vld [vmem:[%s1 + $0x3f10] sm:$0xff]
  %v2081 = vld [vmem:[%s1 + $0x3f18] sm:$0xff]
  %v2082 = vld [vmem:[%s1 + $0x3f20] sm:$0xff]
  %v2083 = vld [vmem:[%s1 + $0x3f28] sm:$0xff]
  %v2084 = vld [vmem:[%s1 + $0x3f30] sm:$0xff]
  %v2085 = vld [vmem:[%s1 + $0x3f38] sm:$0xff]
  %v2086 = vld [vmem:[%s1 + $0x3f40] sm:$0xff]
  %v2087 = vld [vmem:[%s1 + $0x3f48] sm:$0xff]
  %v2088 = vld [vmem:[%s1 + $0x3f50] sm:$0xff]
  %v2089 = vld [vmem:[%s1 + $0x3f58] sm:$0xff]
  %v2090 = vld [vmem:[%s1 + $0x3f60] sm:$0xff]
  %v2091 = vld [vmem:[%s1 + $0x3f68] sm:$0xff]
  %v2092 = vld [vmem:[%s1 + $0x3f70] sm:$0xff]
  %v2093 = vld [vmem:[%s1 + $0x3f78] sm:$0xff]
  %v2094 = vld [vmem:[%s1 + $0x3f80] sm:$0xff]
  %v2095 = vld [vmem:[%s1 + $0x3f88] sm:$0xff]
  %v2096 = vld [vmem:[%s1 + $0x3f90] sm:$0xff]
  %v2097 = vld [vmem:[%s1 + $0x3f98] sm:$0xff]
  %v2098 = vld [vmem:[%s1 + $0x3fa0] sm:$0xff]
  %v2099 = vld [vmem:[%s1 + $0x3fa8] sm:$0xff]
  %v2100 = vld [vmem:[%s1 + $0x3fb0] sm:$0xff]
  %v2101 = vld [vmem:[%s1 + $0x3fb8] sm:$0xff]
  %v2102 = vld [vmem:[%s1 + $0x3fc0] sm:$0xff]
  %v2103 = vld [vmem:[%s1 + $0x3fc8] sm:$0xff]
  %v2104 = vld [vmem:[%s1 + $0x3fd0] sm:$0xff]
  %v2105 = vld [vmem:[%s1 + $0x3fd8] sm:$0xff]
  %v2106 = vld [vmem:[%s1 + $0x3fe0] sm:$0xff]
  %v2107 = vld [vmem:[%s1 + $0x3fe8] sm:$0xff]
  %v2108 = vld [vmem:[%s1 + $0x3ff0] sm:$0xff]
  %v2109 = vld [vmem:[%s1 + $0x3ff8] sm:$0xff]
  %v2110 = vld [vmem:[%s1 + $0x4000] sm:$0xff]
  %v2111 = vld [vmem:[%s1 + $0x4008] sm:$0xff]
  %v2112 = vld [vmem:[%s1 + $0x4010] sm:$0xff]
  %v2113 = vld [vmem:[%s1 + $0x4018] sm:$0xff]
  %v2114 = vld [vmem:[%s1 + $0x4020] sm:$0xff]
  %v2115 = vld [vmem:[%s1 + $0x4028] sm:$0xff]
  %v2116 = vld [vmem:[%s1 + $0x4030] sm:$0xff]
  %v2117 = vld [vmem:[%s1 + $0x4038] sm:$0xff]
  %v2118 = vld [vmem:[%s1 + $0x4040] sm:$0xff]
  %v2119 = vld [vmem:[%s1 + $0x4048] sm:$0xff]
  %v2120 = vld [vmem:[%s1 + $0x4050] sm:$0xff]
  %v2121 = vld [vmem:[%s1 + $0x4058] sm:$0xff]
  %v2122 = vld [vmem:[%s1 + $0x4060] sm:$0xff]
  %v2123 = vld [vmem:[%s1 + $0x4068] sm:$0xff]
  %v2124 = vld [vmem:[%s1 + $0x4070] sm:$0xff]
  %v2125 = vld [vmem:[%s1 + $0x4078] sm:$0xff]
  %v2126 = vld [vmem:[%s1 + $0x4080] sm:$0xff]
  %v2127 = vld [vmem:[%s1 + $0x4088] sm:$0xff]
  %v2128 = vld [vmem:[%s1 + $0x4090] sm:$0xff]
  %v2129 = vld [vmem:[%s1 + $0x4098] sm:$0xff]
  %v2130 = vld [vmem:[%s1 + $0x40a0] sm:$0xff]
  %v2131 = vld [vmem:[%s1 + $0x40a8] sm:$0xff]
  %v2132 = vld [vmem:[%s1 + $0x40b0] sm:$0xff]
  %v2133 = vld [vmem:[%s1 + $0x40b8] sm:$0xff]
  %v2134 = vld [vmem:[%s1 + $0x40c0] sm:$0xff]
  %v2135 = vld [vmem:[%s1 + $0x40c8] sm:$0xff]
  %v2136 = vld [vmem:[%s1 + $0x40d0] sm:$0xff]
  %v2137 = vld [vmem:[%s1 + $0x40d8] sm:$0xff]
  %v2138 = vld [vmem:[%s1 + $0x40e0] sm:$0xff]
  %v2139 = vld [vmem:[%s1 + $0x40e8] sm:$0xff]
  %v2140 = vld [vmem:[%s1 + $0x40f0] sm:$0xff]
  %v2141 = vld [vmem:[%s1 + $0x40f8] sm:$0xff]
  %v2142 = vld [vmem:[%s1 + $0x4100] sm:$0xff]
  %v2143 = vld [vmem:[%s1 + $0x4108] sm:$0xff]
  %v2144 = vld [vmem:[%s1 + $0x4110] sm:$0xff]
  %v2145 = vld [vmem:[%s1 + $0x4118] sm:$0xff]
  %v2146 = vld [vmem:[%s1 + $0x4120] sm:$0xff]
  %v2147 = vld [vmem:[%s1 + $0x4128] sm:$0xff]
  %v2148 = vld [vmem:[%s1 + $0x4130] sm:$0xff]
  %v2149 = vld [vmem:[%s1 + $0x4138] sm:$0xff]
  %v2150 = vld [vmem:[%s1 + $0x4140] sm:$0xff]
  %v2151 = vld [vmem:[%s1 + $0x4148] sm:$0xff]
  %v2152 = vld [vmem:[%s1 + $0x4150] sm:$0xff]
  %v2153 = vld [vmem:[%s1 + $0x4158] sm:$0xff]
  %v2154 = vld [vmem:[%s1 + $0x4160] sm:$0xff]
  %v2155 = vld [vmem:[%s1 + $0x4168] sm:$0xff]
  %v2156 = vld [vmem:[%s1 + $0x4170] sm:$0xff]
  %v2157 = vld [vmem:[%s1 + $0x4178] sm:$0xff]
  %v2158 = vld [vmem:[%s1 + $0x4180] sm:$0xff]
  %v2159 = vld [vmem:[%s1 + $0x4188] sm:$0xff]
  %v2160 = vld [vmem:[%s1 + $0x4190] sm:$0xff]
  %v2161 = vld [vmem:[%s1 + $0x4198] sm:$0xff]
  %v2162 = vld [vmem:[%s1 + $0x41a0] sm:$0xff]
  %v2163 = vld [vmem:[%s1 + $0x41a8] sm:$0xff]
  %v2164 = vld [vmem:[%s1 + $0x41b0] sm:$0xff]
  %v2165 = vld [vmem:[%s1 + $0x41b8] sm:$0xff]
  %v2166 = vld [vmem:[%s1 + $0x41c0] sm:$0xff]
  %v2167 = vld [vmem:[%s1 + $0x41c8] sm:$0xff]
  %v2168 = vld [vmem:[%s1 + $0x41d0] sm:$0xff]
  %v2169 = vld [vmem:[%s1 + $0x41d8] sm:$0xff]
  %v2170 = vld [vmem:[%s1 + $0x41e0] sm:$0xff]
  %v2171 = vld [vmem:[%s1 + $0x41e8] sm:$0xff]
  %v2172 = vld [vmem:[%s1 + $0x41f0] sm:$0xff]
  %v2173 = vld [vmem:[%s1 + $0x41f8] sm:$0xff]
  %v2174 = vld [vmem:[%s1 + $0x4200] sm:$0xff]
  %v2175 = vld [vmem:[%s1 + $0x4208] sm:$0xff]
  %v2176 = vld [vmem:[%s1 + $0x4210] sm:$0xff]
  %v2177 = vld [vmem:[%s1 + $0x4218] sm:$0xff]
  %v2178 = vld [vmem:[%s1 + $0x4220] sm:$0xff]
  %v2179 = vld [vmem:[%s1 + $0x4228] sm:$0xff]
  %v2180 = vld [vmem:[%s1 + $0x4230] sm:$0xff]
  %v2181 = vld [vmem:[%s1 + $0x4238] sm:$0xff]
  %v2182 = vld [vmem:[%s1 + $0x4240] sm:$0xff]
  %v2183 = vld [vmem:[%s1 + $0x4248] sm:$0xff]
  %v2184 = vld [vmem:[%s1 + $0x4250] sm:$0xff]
  %v2185 = vld [vmem:[%s1 + $0x4258] sm:$0xff]
  %v2186 = vld [vmem:[%s1 + $0x4260] sm:$0xff]
  %v2187 = vld [vmem:[%s1 + $0x4268] sm:$0xff]
  %v2188 = vld [vmem:[%s1 + $0x4270] sm:$0xff]
  %v2189 = vld [vmem:[%s1 + $0x4278] sm:$0xff]
  %v2190 = vld [vmem:[%s1 + $0x4280] sm:$0xff]
  %v2191 = vld [vmem:[%s1 + $0x4288] sm:$0xff]
  %v2192 = vld [vmem:[%s1 + $0x4290] sm:$0xff]
  %v2193 = vld [vmem:[%s1 + $0x4298] sm:$0xff]
  %v2194 = vld [vmem:[%s1 + $0x42a0] sm:$0xff]
  %v2195 = vld [vmem:[%s1 + $0x42a8] sm:$0xff]
  %v2196 = vld [vmem:[%s1 + $0x42b0] sm:$0xff]
  %v2197 = vld [vmem:[%s1 + $0x42b8] sm:$0xff]
  %v2198 = vld [vmem:[%s1 + $0x42c0] sm:$0xff]
  %v2199 = vld [vmem:[%s1 + $0x42c8] sm:$0xff]
  %v2200 = vld [vmem:[%s1 + $0x42d0] sm:$0xff]
  %v2201 = vld [vmem:[%s1 + $0x42d8] sm:$0xff]
  %v2202 = vld [vmem:[%s1 + $0x42e0] sm:$0xff]
  %v2203 = vld [vmem:[%s1 + $0x42e8] sm:$0xff]
  %v2204 = vld [vmem:[%s1 + $0x42f0] sm:$0xff]
  %v2205 = vld [vmem:[%s1 + $0x42f8] sm:$0xff]
  %v2206 = vld [vmem:[%s1 + $0x4300] sm:$0xff]
  %v2207 = vld [vmem:[%s1 + $0x4308] sm:$0xff]
  %v2208 = vld [vmem:[%s1 + $0x4310] sm:$0xff]
  %v2209 = vld [vmem:[%s1 + $0x4318] sm:$0xff]
  %v2210 = vld [vmem:[%s1 + $0x4320] sm:$0xff]
  %v2211 = vld [vmem:[%s1 + $0x4328] sm:$0xff]
  %v2212 = vld [vmem:[%s1 + $0x4330] sm:$0xff]
  %v2213 = vld [vmem:[%s1 + $0x4338] sm:$0xff]
  %v2214 = vld [vmem:[%s1 + $0x4340] sm:$0xff]
  %v2215 = vld [vmem:[%s1 + $0x4348] sm:$0xff]
  %v2216 = vld [vmem:[%s1 + $0x4350] sm:$0xff]
  %v2217 = vld [vmem:[%s1 + $0x4358] sm:$0xff]
  %v2218 = vld [vmem:[%s1 + $0x4360] sm:$0xff]
  %v2219 = vld [vmem:[%s1 + $0x4368] sm:$0xff]
  %v2220 = vld [vmem:[%s1 + $0x4370] sm:$0xff]
  %v2221 = vld [vmem:[%s1 + $0x4378] sm:$0xff]
  %v2222 = vld [vmem:[%s1 + $0x4380] sm:$0xff]
  %v2223 = vld [vmem:[%s1 + $0x4388] sm:$0xff]
  %v2224 = vld [vmem:[%s1 + $0x4390] sm:$0xff]
  %v2225 = vld [vmem:[%s1 + $0x4398] sm:$0xff]
  %v2226 = vld [vmem:[%s1 + $0x43a0] sm:$0xff]
  %v2227 = vld [vmem:[%s1 + $0x43a8] sm:$0xff]
  %v2228 = vld [vmem:[%s1 + $0x43b0] sm:$0xff]
  %v2229 = vld [vmem:[%s1 + $0x43b8] sm:$0xff]
  %v2230 = vld [vmem:[%s1 + $0x43c0] sm:$0xff]
  %v2231 = vld [vmem:[%s1 + $0x43c8] sm:$0xff]
  %v2232 = vld [vmem:[%s1 + $0x43d0] sm:$0xff]
  %v2233 = vld [vmem:[%s1 + $0x43d8] sm:$0xff]
  %v2234 = vld [vmem:[%s1 + $0x43e0] sm:$0xff]
  %v2235 = vld [vmem:[%s1 + $0x43e8] sm:$0xff]
  %v2236 = vld [vmem:[%s1 + $0x43f0] sm:$0xff]
  %v2237 = vld [vmem:[%s1 + $0x43f8] sm:$0xff]
  %v2238 = vld [vmem:[%s1 + $0x4400] sm:$0xff]
  %v2239 = vld [vmem:[%s1 + $0x4408] sm:$0xff]
  %v2240 = vld [vmem:[%s1 + $0x4410] sm:$0xff]
  %v2241 = vld [vmem:[%s1 + $0x4418] sm:$0xff]
  %v2242 = vld [vmem:[%s1 + $0x4420] sm:$0xff]
  %v2243 = vld [vmem:[%s1 + $0x4428] sm:$0xff]
  %v2244 = vld [vmem:[%s1 + $0x4430] sm:$0xff]
  %v2245 = vld [vmem:[%s1 + $0x4438] sm:$0xff]
  %v2246 = vld [vmem:[%s1 + $0x4440] sm:$0xff]
  %v2247 = vld [vmem:[%s1 + $0x4448] sm:$0xff]
  %v2248 = vld [vmem:[%s1 + $0x4450] sm:$0xff]
  %v2249 = vld [vmem:[%s1 + $0x4458] sm:$0xff]
  %v2250 = vld [vmem:[%s1 + $0x4460] sm:$0xff]
  %v2251 = vld [vmem:[%s1 + $0x4468] sm:$0xff]
  %v2252 = vld [vmem:[%s1 + $0x4470] sm:$0xff]
  %v2253 = vld [vmem:[%s1 + $0x4478] sm:$0xff]
  %v2254 = vld [vmem:[%s1 + $0x4480] sm:$0xff]
  %v2255 = vld [vmem:[%s1 + $0x4488] sm:$0xff]
  %v2256 = vld [vmem:[%s1 + $0x4490] sm:$0xff]
  %v2257 = vld [vmem:[%s1 + $0x4498] sm:$0xff]
  %v2258 = vld [vmem:[%s1 + $0x44a0] sm:$0xff]
  %v2259 = vld [vmem:[%s1 + $0x44a8] sm:$0xff]
  %v2260 = vld [vmem:[%s1 + $0x44b0] sm:$0xff]
  %v2261 = vld [vmem:[%s1 + $0x44b8] sm:$0xff]
  %v2262 = vld [vmem:[%s1 + $0x44c0] sm:$0xff]
  %v2263 = vld [vmem:[%s1 + $0x44c8] sm:$0xff]
  %v2264 = vld [vmem:[%s1 + $0x44d0] sm:$0xff]
  %v2265 = vld [vmem:[%s1 + $0x44d8] sm:$0xff]
  %v2266 = vld [vmem:[%s1 + $0x44e0] sm:$0xff]
  %v2267 = vld [vmem:[%s1 + $0x44e8] sm:$0xff]
  %v2268 = vld [vmem:[%s1 + $0x44f0] sm:$0xff]
  %v2269 = vld [vmem:[%s1 + $0x44f8] sm:$0xff]
  %v2270 = vld [vmem:[%s1 + $0x4500] sm:$0xff]
  %v2271 = vld [vmem:[%s1 + $0x4508] sm:$0xff]
  %v2272 = vld [vmem:[%s1 + $0x4510] sm:$0xff]
  %v2273 = vld [vmem:[%s1 + $0x4518] sm:$0xff]
  %v2274 = vld [vmem:[%s1 + $0x4520] sm:$0xff]
  %v2275 = vld [vmem:[%s1 + $0x4528] sm:$0xff]
  %v2276 = vld [vmem:[%s1 + $0x4530] sm:$0xff]
  %v2277 = vld [vmem:[%s1 + $0x4538] sm:$0xff]
  %v2278 = vld [vmem:[%s1 + $0x4540] sm:$0xff]
  %v2279 = vld [vmem:[%s1 + $0x4548] sm:$0xff]
  %v2280 = vld [vmem:[%s1 + $0x4550] sm:$0xff]
  %v2281 = vld [vmem:[%s1 + $0x4558] sm:$0xff]
  %v2282 = vld [vmem:[%s1 + $0x4560] sm:$0xff]
  %v2283 = vld [vmem:[%s1 + $0x4568] sm:$0xff]
  %v2284 = vld [vmem:[%s1 + $0x4570] sm:$0xff]
  %v2285 = vld [vmem:[%s1 + $0x4578] sm:$0xff]
  %v2286 = vld [vmem:[%s1 + $0x4580] sm:$0xff]
  %v2287 = vld [vmem:[%s1 + $0x4588] sm:$0xff]
  %v2288 = vld [vmem:[%s1 + $0x4590] sm:$0xff]
  %v2289 = vld [vmem:[%s1 + $0x4598] sm:$0xff]
  %v2290 = vld [vmem:[%s1 + $0x45a0] sm:$0xff]
  %v2291 = vld [vmem:[%s1 + $0x45a8] sm:$0xff]
  %v2292 = vld [vmem:[%s1 + $0x45b0] sm:$0xff]
  %v2293 = vld [vmem:[%s1 + $0x45b8] sm:$0xff]
  %v2294 = vld [vmem:[%s1 + $0x45c0] sm:$0xff]
  %v2295 = vld [vmem:[%s1 + $0x45c8] sm:$0xff]
  %v2296 = vld [vmem:[%s1 + $0x45d0] sm:$0xff]
  %v2297 = vld [vmem:[%s1 + $0x45d8] sm:$0xff]
  %v2298 = vld [vmem:[%s1 + $0x45e0] sm:$0xff]
  %v2299 = vld [vmem:[%s1 + $0x45e8] sm:$0xff]
  %v2300 = vld [vmem:[%s1 + $0x45f0] sm:$0xff]
  %v2301 = vld [vmem:[%s1 + $0x45f8] sm:$0xff]
  %v2302 = vld [vmem:[%s1 + $0x4600] sm:$0xff]
  %v2303 = vld [vmem:[%s1 + $0x4608] sm:$0xff]
  %v2304 = vld [vmem:[%s1 + $0x4610] sm:$0xff]
  %v2305 = vld [vmem:[%s1 + $0x4618] sm:$0xff]
  %v2306 = vld [vmem:[%s1 + $0x4620] sm:$0xff]
  %v2307 = vld [vmem:[%s1 + $0x4628] sm:$0xff]
  %v2308 = vld [vmem:[%s1 + $0x4630] sm:$0xff]
  %v2309 = vld [vmem:[%s1 + $0x4638] sm:$0xff]
  %v2310 = vld [vmem:[%s1 + $0x4640] sm:$0xff]
  %v2311 = vld [vmem:[%s1 + $0x4648] sm:$0xff]
  %v2312 = vld [vmem:[%s1 + $0x4650] sm:$0xff]
  %v2313 = vld [vmem:[%s1 + $0x4658] sm:$0xff]
  %v2314 = vld [vmem:[%s1 + $0x4660] sm:$0xff]
  %v2315 = vld [vmem:[%s1 + $0x4668] sm:$0xff]
  %v2316 = vld [vmem:[%s1 + $0x4670] sm:$0xff]
  %v2317 = vld [vmem:[%s1 + $0x4678] sm:$0xff]
  %v2318 = vld [vmem:[%s1 + $0x4680] sm:$0xff]
  %v2319 = vld [vmem:[%s1 + $0x4688] sm:$0xff]
  %v2320 = vld [vmem:[%s1 + $0x4690] sm:$0xff]
  %v2321 = vld [vmem:[%s1 + $0x4698] sm:$0xff]
  %v2322 = vld [vmem:[%s1 + $0x46a0] sm:$0xff]
  %v2323 = vld [vmem:[%s1 + $0x46a8] sm:$0xff]
  %v2324 = vld [vmem:[%s1 + $0x46b0] sm:$0xff]
  %v2325 = vld [vmem:[%s1 + $0x46b8] sm:$0xff]
  %v2326 = vld [vmem:[%s1 + $0x46c0] sm:$0xff]
  %v2327 = vld [vmem:[%s1 + $0x46c8] sm:$0xff]
  %v2328 = vld [vmem:[%s1 + $0x46d0] sm:$0xff]
  %v2329 = vld [vmem:[%s1 + $0x46d8] sm:$0xff]
  %v2330 = vld [vmem:[%s1 + $0x46e0] sm:$0xff]
  %v2331 = vld [vmem:[%s1 + $0x46e8] sm:$0xff]
  %v2332 = vld [vmem:[%s1 + $0x46f0] sm:$0xff]
  %v2333 = vld [vmem:[%s1 + $0x46f8] sm:$0xff]
  %v2334 = vld [vmem:[%s1 + $0x4700] sm:$0xff]
  %v2335 = vld [vmem:[%s1 + $0x4708] sm:$0xff]
  %v2336 = vld [vmem:[%s1 + $0x4710] sm:$0xff]
  %v2337 = vld [vmem:[%s1 + $0x4718] sm:$0xff]
  %v2338 = vld [vmem:[%s1 + $0x4720] sm:$0xff]
  %v2339 = vld [vmem:[%s1 + $0x4728] sm:$0xff]
  %v2340 = vld [vmem:[%s1 + $0x4730] sm:$0xff]
  %v2341 = vld [vmem:[%s1 + $0x4738] sm:$0xff]
  %v2342 = vld [vmem:[%s1 + $0x4740] sm:$0xff]
  %v2343 = vld [vmem:[%s1 + $0x4748] sm:$0xff]
  %v2344 = vld [vmem:[%s1 + $0x4750] sm:$0xff]
  %v2345 = vld [vmem:[%s1 + $0x4758] sm:$0xff]
  %v2346 = vld [vmem:[%s1 + $0x4760] sm:$0xff]
  %v2347 = vld [vmem:[%s1 + $0x4768] sm:$0xff]
  %v2348 = vld [vmem:[%s1 + $0x4770] sm:$0xff]
  %v2349 = vld [vmem:[%s1 + $0x4778] sm:$0xff]
  %v2350 = vld [vmem:[%s1 + $0x4780] sm:$0xff]
  %v2351 = vld [vmem:[%s1 + $0x4788] sm:$0xff]
  %v2352 = vld [vmem:[%s1 + $0x4790] sm:$0xff]
  %v2353 = vld [vmem:[%s1 + $0x4798] sm:$0xff]
  %v2354 = vld [vmem:[%s1 + $0x47a0] sm:$0xff]
  %v2355 = vld [vmem:[%s1 + $0x47a8] sm:$0xff]
  %v2356 = vld [vmem:[%s1 + $0x47b0] sm:$0xff]
  %v2357 = vld [vmem:[%s1 + $0x47b8] sm:$0xff]
  %v2358 = vld [vmem:[%s1 + $0x47c0] sm:$0xff]
  %v2359 = vld [vmem:[%s1 + $0x47c8] sm:$0xff]
  %v2360 = vld [vmem:[%s1 + $0x47d0] sm:$0xff]
  %v2361 = vld [vmem:[%s1 + $0x47d8] sm:$0xff]
  %v2362 = vld [vmem:[%s1 + $0x47e0] sm:$0xff]
  %v2363 = vld [vmem:[%s1 + $0x47e8] sm:$0xff]
  %v2364 = vld [vmem:[%s1 + $0x47f0] sm:$0xff]
  %v2365 = vld [vmem:[%s1 + $0x47f8] sm:$0xff]
  %v2366 = vld [vmem:[%s1 + $0x4800] sm:$0xff]
  %v2367 = vld [vmem:[%s1 + $0x4808] sm:$0xff]
  %v2368 = vld [vmem:[%s1 + $0x4810] sm:$0xff]
  %v2369 = vld [vmem:[%s1 + $0x4818] sm:$0xff]
  %v2370 = vld [vmem:[%s1 + $0x4820] sm:$0xff]
  %v2371 = vld [vmem:[%s1 + $0x4828] sm:$0xff]
  %v2372 = vld [vmem:[%s1 + $0x4830] sm:$0xff]
  %v2373 = vld [vmem:[%s1 + $0x4838] sm:$0xff]
  %v2374 = vld [vmem:[%s1 + $0x4840] sm:$0xff]
  %v2375 = vld [vmem:[%s1 + $0x4848] sm:$0xff]
  %v2376 = vld [vmem:[%s1 + $0x4850] sm:$0xff]
  %v2377 = vld [vmem:[%s1 + $0x4858] sm:$0xff]
  %v2378 = vld [vmem:[%s1 + $0x4860] sm:$0xff]
  %v2379 = vld [vmem:[%s1 + $0x4868] sm:$0xff]
  %v2380 = vld [vmem:[%s1 + $0x4870] sm:$0xff]
  %v2381 = vld [vmem:[%s1 + $0x4878] sm:$0xff]
  %v2382 = vld [vmem:[%s1 + $0x4880] sm:$0xff]
  %v2383 = vld [vmem:[%s1 + $0x4888] sm:$0xff]
  %v2384 = vld [vmem:[%s1 + $0x4890] sm:$0xff]
  %v2385 = vld [vmem:[%s1 + $0x4898] sm:$0xff]
  %v2386 = vld [vmem:[%s1 + $0x48a0] sm:$0xff]
  %v2387 = vld [vmem:[%s1 + $0x48a8] sm:$0xff]
  %v2388 = vld [vmem:[%s1 + $0x48b0] sm:$0xff]
  %v2389 = vld [vmem:[%s1 + $0x48b8] sm:$0xff]
  %v2390 = vld [vmem:[%s1 + $0x48c0] sm:$0xff]
  %v2391 = vld [vmem:[%s1 + $0x48c8] sm:$0xff]
  %v2392 = vld [vmem:[%s1 + $0x48d0] sm:$0xff]
  %v2393 = vld [vmem:[%s1 + $0x48d8] sm:$0xff]
  %v2394 = vld [vmem:[%s1 + $0x48e0] sm:$0xff]
  %v2395 = vld [vmem:[%s1 + $0x48e8] sm:$0xff]
  %v2396 = vld [vmem:[%s1 + $0x48f0] sm:$0xff]
  %v2397 = vld [vmem:[%s1 + $0x48f8] sm:$0xff]
  %v2398 = vld [vmem:[%s1 + $0x4900] sm:$0xff]
  %v2399 = vld [vmem:[%s1 + $0x4908] sm:$0xff]
  %v2400 = vld [vmem:[%s1 + $0x4910] sm:$0xff]
  %v2401 = vld [vmem:[%s1 + $0x4918] sm:$0xff]
  %v2402 = vld [vmem:[%s1 + $0x4920] sm:$0xff]
  %v2403 = vld [vmem:[%s1 + $0x4928] sm:$0xff]
  %v2404 = vld [vmem:[%s1 + $0x4930] sm:$0xff]
  %v2405 = vld [vmem:[%s1 + $0x4938] sm:$0xff]
  %v2406 = vld [vmem:[%s1 + $0x4940] sm:$0xff]
  %v2407 = vld [vmem:[%s1 + $0x4948] sm:$0xff]
  %v2408 = vld [vmem:[%s1 + $0x4950] sm:$0xff]
  %v2409 = vld [vmem:[%s1 + $0x4958] sm:$0xff]
  %v2410 = vld [vmem:[%s1 + $0x4960] sm:$0xff]
  %v2411 = vld [vmem:[%s1 + $0x4968] sm:$0xff]
  %v2412 = vld [vmem:[%s1 + $0x4970] sm:$0xff]
  %v2413 = vld [vmem:[%s1 + $0x4978] sm:$0xff]
  %v2414 = vld [vmem:[%s1 + $0x4980] sm:$0xff]
  %v2415 = vld [vmem:[%s1 + $0x4988] sm:$0xff]
  %v2416 = vld [vmem:[%s1 + $0x4990] sm:$0xff]
  %v2417 = vld [vmem:[%s1 + $0x4998] sm:$0xff]
  %v2418 = vld [vmem:[%s1 + $0x49a0] sm:$0xff]
  %v2419 = vld [vmem:[%s1 + $0x49a8] sm:$0xff]
  %v2420 = vld [vmem:[%s1 + $0x49b0] sm:$0xff]
  %v2421 = vld [vmem:[%s1 + $0x49b8] sm:$0xff]
  %v2422 = vld [vmem:[%s1 + $0x49c0] sm:$0xff]
  %v2423 = vld [vmem:[%s1 + $0x49c8] sm:$0xff]
  %v2424 = vld [vmem:[%s1 + $0x49d0] sm:$0xff]
  %v2425 = vld [vmem:[%s1 + $0x49d8] sm:$0xff]
  %v2426 = vld [vmem:[%s1 + $0x49e0] sm:$0xff]
  %v2427 = vld [vmem:[%s1 + $0x49e8] sm:$0xff]
  %v2428 = vld [vmem:[%s1 + $0x49f0] sm:$0xff]
  %v2429 = vld [vmem:[%s1 + $0x49f8] sm:$0xff]
  %v2430 = vld [vmem:[%s1 + $0x4a00] sm:$0xff]
  %v2431 = vld [vmem:[%s1 + $0x4a08] sm:$0xff]
  %v2432 = vld [vmem:[%s1 + $0x4a10] sm:$0xff]
  %v2433 = vld [vmem:[%s1 + $0x4a18] sm:$0xff]
  %v2434 = vld [vmem:[%s1 + $0x4a20] sm:$0xff]
  %v2435 = vld [vmem:[%s1 + $0x4a28] sm:$0xff]
  %v2436 = vld [vmem:[%s1 + $0x4a30] sm:$0xff]
  %v2437 = vld [vmem:[%s1 + $0x4a38] sm:$0xff]
  %v2438 = vld [vmem:[%s1 + $0x4a40] sm:$0xff]
  %v2439 = vld [vmem:[%s1 + $0x4a48] sm:$0xff]
  %v2440 = vld [vmem:[%s1 + $0x4a50] sm:$0xff]
  %v2441 = vld [vmem:[%s1 + $0x4a58] sm:$0xff]
  %v2442 = vld [vmem:[%s1 + $0x4a60] sm:$0xff]
  %v2443 = vld [vmem:[%s1 + $0x4a68] sm:$0xff]
  %v2444 = vld [vmem:[%s1 + $0x4a70] sm:$0xff]
  %v2445 = vld [vmem:[%s1 + $0x4a78] sm:$0xff]
  %v2446 = vld [vmem:[%s1 + $0x4a80] sm:$0xff]
  %v2447 = vld [vmem:[%s1 + $0x4a88] sm:$0xff]
  %v2448 = vld [vmem:[%s1 + $0x4a90] sm:$0xff]
  %v2449 = vld [vmem:[%s1 + $0x4a98] sm:$0xff]
  %v2450 = vld [vmem:[%s1 + $0x4aa0] sm:$0xff]
  %v2451 = vld [vmem:[%s1 + $0x4aa8] sm:$0xff]
  %v2452 = vld [vmem:[%s1 + $0x4ab0] sm:$0xff]
  %v2453 = vld [vmem:[%s1 + $0x4ab8] sm:$0xff]
  %v2454 = vld [vmem:[%s1 + $0x4ac0] sm:$0xff]
  %v2455 = vld [vmem:[%s1 + $0x4ac8] sm:$0xff]
  %v2456 = vld [vmem:[%s1 + $0x4ad0] sm:$0xff]
  %v2457 = vld [vmem:[%s1 + $0x4ad8] sm:$0xff]
  %v2458 = vld [vmem:[%s1 + $0x4ae0] sm:$0xff]
  %v2459 = vld [vmem:[%s1 + $0x4ae8] sm:$0xff]
  %v2460 = vld [vmem:[%s1 + $0x4af0] sm:$0xff]
  %v2461 = vld [vmem:[%s1 + $0x4af8] sm:$0xff]
  %v2462 = vld [vmem:[%s1 + $0x4b00] sm:$0xff]
  %v2463 = vld [vmem:[%s1 + $0x4b08] sm:$0xff]
  %v2464 = vld [vmem:[%s1 + $0x4b10] sm:$0xff]
  %v2465 = vld [vmem:[%s1 + $0x4b18] sm:$0xff]
  %v2466 = vld [vmem:[%s1 + $0x4b20] sm:$0xff]
  %v2467 = vld [vmem:[%s1 + $0x4b28] sm:$0xff]
  %v2468 = vld [vmem:[%s1 + $0x4b30] sm:$0xff]
  %v2469 = vld [vmem:[%s1 + $0x4b38] sm:$0xff]
  %v2470 = vld [vmem:[%s1 + $0x4b40] sm:$0xff]
  %v2471 = vld [vmem:[%s1 + $0x4b48] sm:$0xff]
  %v2472 = vld [vmem:[%s1 + $0x4b50] sm:$0xff]
  %v2473 = vld [vmem:[%s1 + $0x4b58] sm:$0xff]
  %v2474 = vld [vmem:[%s1 + $0x4b60] sm:$0xff]
  %v2475 = vld [vmem:[%s1 + $0x4b68] sm:$0xff]
  %v2476 = vld [vmem:[%s1 + $0x4b70] sm:$0xff]
  %v2477 = vld [vmem:[%s1 + $0x4b78] sm:$0xff]
  %v2478 = vld [vmem:[%s1 + $0x4b80] sm:$0xff]
  %v2479 = vld [vmem:[%s1 + $0x4b88] sm:$0xff]
  %v2480 = vld [vmem:[%s1 + $0x4b90] sm:$0xff]
  %v2481 = vld [vmem:[%s1 + $0x4b98] sm:$0xff]
  %v2482 = vld [vmem:[%s1 + $0x4ba0] sm:$0xff]
  %v2483 = vld [vmem:[%s1 + $0x4ba8] sm:$0xff]
  %v2484 = vld [vmem:[%s1 + $0x4bb0] sm:$0xff]
  %v2485 = vld [vmem:[%s1 + $0x4bb8] sm:$0xff]
  %v2486 = vld [vmem:[%s1 + $0x4bc0] sm:$0xff]
  %v2487 = vld [vmem:[%s1 + $0x4bc8] sm:$0xff]
  %v2488 = vld [vmem:[%s1 + $0x4bd0] sm:$0xff]
  %v2489 = vld [vmem:[%s1 + $0x4bd8] sm:$0xff]
  %v2490 = vld [vmem:[%s1 + $0x4be0] sm:$0xff]
  %v2491 = vld [vmem:[%s1 + $0x4be8] sm:$0xff]
  %v2492 = vld [vmem:[%s1 + $0x4bf0] sm:$0xff]
  %v2493 = vld [vmem:[%s1 + $0x4bf8] sm:$0xff]
  %v2494 = vld [vmem:[%s1 + $0x4c00] sm:$0xff]
  %v2495 = vld [vmem:[%s1 + $0x4c08] sm:$0xff]
  %v2496 = vld [vmem:[%s1 + $0x4c10] sm:$0xff]
  %v2497 = vld [vmem:[%s1 + $0x4c18] sm:$0xff]
  %v2498 = vld [vmem:[%s1 + $0x4c20] sm:$0xff]
  %v2499 = vld [vmem:[%s1 + $0x4c28] sm:$0xff]
  %v2500 = vld [vmem:[%s1 + $0x4c30] sm:$0xff]
  %v2501 = vld [vmem:[%s1 + $0x4c38] sm:$0xff]
  %v2502 = vld [vmem:[%s1 + $0x4c40] sm:$0xff]
  %v2503 = vld [vmem:[%s1 + $0x4c48] sm:$0xff]
  %v2504 = vld [vmem:[%s1 + $0x4c50] sm:$0xff]
  %v2505 = vld [vmem:[%s1 + $0x4c58] sm:$0xff]
  %v2506 = vld [vmem:[%s1 + $0x4c60] sm:$0xff]
  %v2507 = vld [vmem:[%s1 + $0x4c68] sm:$0xff]
  %v2508 = vld [vmem:[%s1 + $0x4c70] sm:$0xff]
  %v2509 = vld [vmem:[%s1 + $0x4c78] sm:$0xff]
  %v2510 = vld [vmem:[%s1 + $0x4c80] sm:$0xff]
  %v2511 = vld [vmem:[%s1 + $0x4c88] sm:$0xff]
  %v2512 = vld [vmem:[%s1 + $0x4c90] sm:$0xff]
  %v2513 = vld [vmem:[%s1 + $0x4c98] sm:$0xff]
  %v2514 = vld [vmem:[%s1 + $0x4ca0] sm:$0xff]
  %v2515 = vld [vmem:[%s1 + $0x4ca8] sm:$0xff]
  %v2516 = vld [vmem:[%s1 + $0x4cb0] sm:$0xff]
  %v2517 = vld [vmem:[%s1 + $0x4cb8] sm:$0xff]
  %v2518 = vld [vmem:[%s1 + $0x4cc0] sm:$0xff]
  %v2519 = vld [vmem:[%s1 + $0x4cc8] sm:$0xff]
  %v2520 = vld [vmem:[%s1 + $0x4cd0] sm:$0xff]
  %v2521 = vld [vmem:[%s1 + $0x4cd8] sm:$0xff]
  %v2522 = vld [vmem:[%s1 + $0x4ce0] sm:$0xff]
  %v2523 = vld [vmem:[%s1 + $0x4ce8] sm:$0xff]
  %v2524 = vld [vmem:[%s1 + $0x4cf0] sm:$0xff]
  %v2525 = vld [vmem:[%s1 + $0x4cf8] sm:$0xff]
  %v2526 = vld [vmem:[%s1 + $0x4d00] sm:$0xff]
  %v2527 = vld [vmem:[%s1 + $0x4d08] sm:$0xff]
  %v2528 = vld [vmem:[%s1 + $0x4d10] sm:$0xff]
  %v2529 = vld [vmem:[%s1 + $0x4d18] sm:$0xff]
  %v2530 = vld [vmem:[%s1 + $0x4d20] sm:$0xff]
  %v2531 = vld [vmem:[%s1 + $0x4d28] sm:$0xff]
  %v2532 = vld [vmem:[%s1 + $0x4d30] sm:$0xff]
  %v2533 = vld [vmem:[%s1 + $0x4d38] sm:$0xff]
  %v2534 = vld [vmem:[%s1 + $0x4d40] sm:$0xff]
  %v2535 = vld [vmem:[%s1 + $0x4d48] sm:$0xff]
  %v2536 = vld [vmem:[%s1 + $0x4d50] sm:$0xff]
  %v2537 = vld [vmem:[%s1 + $0x4d58] sm:$0xff]
  %v2538 = vld [vmem:[%s1 + $0x4d60] sm:$0xff]
  %v2539 = vld [vmem:[%s1 + $0x4d68] sm:$0xff]
  %v2540 = vld [vmem:[%s1 + $0x4d70] sm:$0xff]
  %v2541 = vld [vmem:[%s1 + $0x4d78] sm:$0xff]
  %v2542 = vld [vmem:[%s1 + $0x4d80] sm:$0xff]
  %v2543 = vld [vmem:[%s1 + $0x4d88] sm:$0xff]
  %v2544 = vld [vmem:[%s1 + $0x4d90] sm:$0xff]
  %v2545 = vld [vmem:[%s1 + $0x4d98] sm:$0xff]
  %v2546 = vld [vmem:[%s1 + $0x4da0] sm:$0xff]
  %v2547 = vld [vmem:[%s1 + $0x4da8] sm:$0xff]
  %v2548 = vld [vmem:[%s1 + $0x4db0] sm:$0xff]
  %v2549 = vld [vmem:[%s1 + $0x4db8] sm:$0xff]
  %v2550 = vld [vmem:[%s1 + $0x4dc0] sm:$0xff]
  %v2551 = vld [vmem:[%s1 + $0x4dc8] sm:$0xff]
  %v2552 = vld [vmem:[%s1 + $0x4dd0] sm:$0xff]
  %v2553 = vld [vmem:[%s1 + $0x4dd8] sm:$0xff]
  %v2554 = vld [vmem:[%s1 + $0x4de0] sm:$0xff]
  %v2555 = vld [vmem:[%s1 + $0x4de8] sm:$0xff]
  %v2556 = vld [vmem:[%s1 + $0x4df0] sm:$0xff]
  %v2557 = vld [vmem:[%s1 + $0x4df8] sm:$0xff]
  %v2558 = vld [vmem:[%s1 + $0x4e00] sm:$0xff]
  %v2559 = vld [vmem:[%s1 + $0x4e08] sm:$0xff]
  %v2560 = vld [vmem:[%s1 + $0x4e10] sm:$0xff]
  %v2561 = vld [vmem:[%s1 + $0x4e18] sm:$0xff]
  %v2562 = vld [vmem:[%s1 + $0x4e20] sm:$0xff]
  %v2563 = vld [vmem:[%s1 + $0x4e28] sm:$0xff]
  %v2564 = vld [vmem:[%s1 + $0x4e30] sm:$0xff]
  %v2565 = vld [vmem:[%s1 + $0x4e38] sm:$0xff]
  %v2566 = vld [vmem:[%s1 + $0x4e40] sm:$0xff]
  %v2567 = vld [vmem:[%s1 + $0x4e48] sm:$0xff]
  %v2568 = vld [vmem:[%s1 + $0x4e50] sm:$0xff]
  %v2569 = vld [vmem:[%s1 + $0x4e58] sm:$0xff]
  %v2570 = vld [vmem:[%s1 + $0x4e60] sm:$0xff]
  %v2571 = vld [vmem:[%s1 + $0x4e68] sm:$0xff]
  %v2572 = vld [vmem:[%s1 + $0x4e70] sm:$0xff]
  %v2573 = vld [vmem:[%s1 + $0x4e78] sm:$0xff]
  %v2574 = vld [vmem:[%s1 + $0x4e80] sm:$0xff]
  %v2575 = vld [vmem:[%s1 + $0x4e88] sm:$0xff]
  %v2576 = vld [vmem:[%s1 + $0x4e90] sm:$0xff]
  %v2577 = vld [vmem:[%s1 + $0x4e98] sm:$0xff]
  %v2578 = vld [vmem:[%s1 + $0x4ea0] sm:$0xff]
  %v2579 = vld [vmem:[%s1 + $0x4ea8] sm:$0xff]
  %v2580 = vld [vmem:[%s1 + $0x4eb0] sm:$0xff]
  %v2581 = vld [vmem:[%s1 + $0x4eb8] sm:$0xff]
  %v2582 = vld [vmem:[%s1 + $0x4ec0] sm:$0xff]
  %v2583 = vld [vmem:[%s1 + $0x4ec8] sm:$0xff]
  %v2584 = vld [vmem:[%s1 + $0x4ed0] sm:$0xff]
  %v2585 = vld [vmem:[%s1 + $0x4ed8] sm:$0xff]
  %v2586 = vld [vmem:[%s1 + $0x4ee0] sm:$0xff]
  %v2587 = vld [vmem:[%s1 + $0x4ee8] sm:$0xff]
  %v2588 = vld [vmem:[%s1 + $0x4ef0] sm:$0xff]
  %v2589 = vld [vmem:[%s1 + $0x4ef8] sm:$0xff]
  %v2590 = vld [vmem:[%s1 + $0x4f00] sm:$0xff]
  %v2591 = vld [vmem:[%s1 + $0x4f08] sm:$0xff]
  %v2592 = vld [vmem:[%s1 + $0x4f10] sm:$0xff]
  %v2593 = vld [vmem:[%s1 + $0x4f18] sm:$0xff]
  %v2594 = vld [vmem:[%s1 + $0x4f20] sm:$0xff]
  %v2595 = vld [vmem:[%s1 + $0x4f28] sm:$0xff]
  %v2596 = vld [vmem:[%s1 + $0x4f30] sm:$0xff]
  %v2597 = vld [vmem:[%s1 + $0x4f38] sm:$0xff]
  %v2598 = vld [vmem:[%s1 + $0x4f40] sm:$0xff]
  %v2599 = vld [vmem:[%s1 + $0x4f48] sm:$0xff]
  %v2600 = vld [vmem:[%s1 + $0x4f50] sm:$0xff]
  %v2601 = vld [vmem:[%s1 + $0x4f58] sm:$0xff]
  %v2602 = vld [vmem:[%s1 + $0x4f60] sm:$0xff]
  %v2603 = vld [vmem:[%s1 + $0x4f68] sm:$0xff]
  %v2604 = vld [vmem:[%s1 + $0x4f70] sm:$0xff]
  %v2605 = vld [vmem:[%s1 + $0x4f78] sm:$0xff]
  %v2606 = vld [vmem:[%s1 + $0x4f80] sm:$0xff]
  %v2607 = vld [vmem:[%s1 + $0x4f88] sm:$0xff]
  %v2608 = vld [vmem:[%s1 + $0x4f90] sm:$0xff]
  %v2609 = vld [vmem:[%s1 + $0x4f98] sm:$0xff]
  %v2610 = vld [vmem:[%s1 + $0x4fa0] sm:$0xff]
  %v2611 = vld [vmem:[%s1 + $0x4fa8] sm:$0xff]
  %v2612 = vld [vmem:[%s1 + $0x4fb0] sm:$0xff]
  %v2613 = vld [vmem:[%s1 + $0x4fb8] sm:$0xff]
  %v2614 = vld [vmem:[%s1 + $0x4fc0] sm:$0xff]
  %v2615 = vld [vmem:[%s1 + $0x4fc8] sm:$0xff]
  %v2616 = vld [vmem:[%s1 + $0x4fd0] sm:$0xff]
  %v2617 = vld [vmem:[%s1 + $0x4fd8] sm:$0xff]
  %v2618 = vld [vmem:[%s1 + $0x4fe0] sm:$0xff]
  %v2619 = vld [vmem:[%s1 + $0x4fe8] sm:$0xff]
  %v2620 = vld [vmem:[%s1 + $0x4ff0] sm:$0xff]
  %v2621 = vld [vmem:[%s1 + $0x4ff8] sm:$0xff]
  %v2622 = vld [vmem:[%s1 + $0x5000] sm:$0xff]
  %v2623 = vld [vmem:[%s1 + $0x5008] sm:$0xff]
  %v2624 = vld [vmem:[%s1 + $0x5010] sm:$0xff]
  %v2625 = vld [vmem:[%s1 + $0x5018] sm:$0xff]
  %v2626 = vld [vmem:[%s1 + $0x5020] sm:$0xff]
  %v2627 = vld [vmem:[%s1 + $0x5028] sm:$0xff]
  %v2628 = vld [vmem:[%s1 + $0x5030] sm:$0xff]
  %v2629 = vld [vmem:[%s1 + $0x5038] sm:$0xff]
  %v2630 = vld [vmem:[%s1 + $0x5040] sm:$0xff]
  %v2631 = vld [vmem:[%s1 + $0x5048] sm:$0xff]
  %v2632 = vld [vmem:[%s1 + $0x5050] sm:$0xff]
  %v2633 = vld [vmem:[%s1 + $0x5058] sm:$0xff]
  %v2634 = vld [vmem:[%s1 + $0x5060] sm:$0xff]
  %v2635 = vld [vmem:[%s1 + $0x5068] sm:$0xff]
  %v2636 = vld [vmem:[%s1 + $0x5070] sm:$0xff]
  %v2637 = vld [vmem:[%s1 + $0x5078] sm:$0xff]
  %v2638 = vld [vmem:[%s1 + $0x5080] sm:$0xff]
  %v2639 = vld [vmem:[%s1 + $0x5088] sm:$0xff]
  %v2640 = vld [vmem:[%s1 + $0x5090] sm:$0xff]
  %v2641 = vld [vmem:[%s1 + $0x5098] sm:$0xff]
  %v2642 = vld [vmem:[%s1 + $0x50a0] sm:$0xff]
  %v2643 = vld [vmem:[%s1 + $0x50a8] sm:$0xff]
  %v2644 = vld [vmem:[%s1 + $0x50b0] sm:$0xff]
  %v2645 = vld [vmem:[%s1 + $0x50b8] sm:$0xff]
  %v2646 = vld [vmem:[%s1 + $0x50c0] sm:$0xff]
  %v2647 = vld [vmem:[%s1 + $0x50c8] sm:$0xff]
  %v2648 = vld [vmem:[%s1 + $0x50d0] sm:$0xff]
  %v2649 = vld [vmem:[%s1 + $0x50d8] sm:$0xff]
  %v2650 = vld [vmem:[%s1 + $0x50e0] sm:$0xff]
  %v2651 = vld [vmem:[%s1 + $0x50e8] sm:$0xff]
  %v2652 = vld [vmem:[%s1 + $0x50f0] sm:$0xff]
  %v2653 = vld [vmem:[%s1 + $0x50f8] sm:$0xff]
  %v2654 = vld [vmem:[%s1 + $0x5100] sm:$0xff]
  %v2655 = vld [vmem:[%s1 + $0x5108] sm:$0xff]
  %v2656 = vld [vmem:[%s1 + $0x5110] sm:$0xff]
  %v2657 = vld [vmem:[%s1 + $0x5118] sm:$0xff]
  %v2658 = vld [vmem:[%s1 + $0x5120] sm:$0xff]
  %v2659 = vld [vmem:[%s1 + $0x5128] sm:$0xff]
  %v2660 = vld [vmem:[%s1 + $0x5130] sm:$0xff]
  %v2661 = vld [vmem:[%s1 + $0x5138] sm:$0xff]
  %v2662 = vld [vmem:[%s1 + $0x5140] sm:$0xff]
  %v2663 = vld [vmem:[%s1 + $0x5148] sm:$0xff]
  %v2664 = vld [vmem:[%s1 + $0x5150] sm:$0xff]
  %v2665 = vld [vmem:[%s1 + $0x5158] sm:$0xff]
  %v2666 = vld [vmem:[%s1 + $0x5160] sm:$0xff]
  %v2667 = vld [vmem:[%s1 + $0x5168] sm:$0xff]
  %v2668 = vld [vmem:[%s1 + $0x5170] sm:$0xff]
  %v2669 = vld [vmem:[%s1 + $0x5178] sm:$0xff]
  %v2670 = vld [vmem:[%s1 + $0x5180] sm:$0xff]
  %v2671 = vld [vmem:[%s1 + $0x5188] sm:$0xff]
  %v2672 = vld [vmem:[%s1 + $0x5190] sm:$0xff]
  %v2673 = vld [vmem:[%s1 + $0x5198] sm:$0xff]
  %v2674 = vld [vmem:[%s1 + $0x51a0] sm:$0xff]
  %v2675 = vld [vmem:[%s1 + $0x51a8] sm:$0xff]
  %v2676 = vld [vmem:[%s1 + $0x51b0] sm:$0xff]
  %v2677 = vld [vmem:[%s1 + $0x51b8] sm:$0xff]
  %v2678 = vld [vmem:[%s1 + $0x51c0] sm:$0xff]
  %v2679 = vld [vmem:[%s1 + $0x51c8] sm:$0xff]
  %v2680 = vld [vmem:[%s1 + $0x51d0] sm:$0xff]
  %v2681 = vld [vmem:[%s1 + $0x51d8] sm:$0xff]
  %v2682 = vld [vmem:[%s1 + $0x51e0] sm:$0xff]
  %v2683 = vld [vmem:[%s1 + $0x51e8] sm:$0xff]
  %v2684 = vld [vmem:[%s1 + $0x51f0] sm:$0xff]
  %v2685 = vld [vmem:[%s1 + $0x51f8] sm:$0xff]
  %v2686 = vld [vmem:[%s1 + $0x5200] sm:$0xff]
  %v2687 = vld [vmem:[%s1 + $0x5208] sm:$0xff]
  %v2688 = vld [vmem:[%s1 + $0x5210] sm:$0xff]
  %v2689 = vld [vmem:[%s1 + $0x5218] sm:$0xff]
  %v2690 = vld [vmem:[%s1 + $0x5220] sm:$0xff]
  %v2691 = vld [vmem:[%s1 + $0x5228] sm:$0xff]
  %v2692 = vld [vmem:[%s1 + $0x5230] sm:$0xff]
  %v2693 = vld [vmem:[%s1 + $0x5238] sm:$0xff]
  %v2694 = vld [vmem:[%s1 + $0x5240] sm:$0xff]
  %v2695 = vld [vmem:[%s1 + $0x5248] sm:$0xff]
  %v2696 = vld [vmem:[%s1 + $0x5250] sm:$0xff]
  %v2697 = vld [vmem:[%s1 + $0x5258] sm:$0xff]
  %v2698 = vld [vmem:[%s1 + $0x5260] sm:$0xff]
  %v2699 = vld [vmem:[%s1 + $0x5268] sm:$0xff]
  %v2700 = vld [vmem:[%s1 + $0x5270] sm:$0xff]
  %v2701 = vld [vmem:[%s1 + $0x5278] sm:$0xff]
  %v2702 = vld [vmem:[%s1 + $0x5280] sm:$0xff]
  %v2703 = vld [vmem:[%s1 + $0x5288] sm:$0xff]
  %v2704 = vld [vmem:[%s1 + $0x5290] sm:$0xff]
  %v2705 = vld [vmem:[%s1 + $0x5298] sm:$0xff]
  %v2706 = vld [vmem:[%s1 + $0x52a0] sm:$0xff]
  %v2707 = vld [vmem:[%s1 + $0x52a8] sm:$0xff]
  %v2708 = vld [vmem:[%s1 + $0x52b0] sm:$0xff]
  %v2709 = vld [vmem:[%s1 + $0x52b8] sm:$0xff]
  %v2710 = vld [vmem:[%s1 + $0x52c0] sm:$0xff]
  %v2711 = vld [vmem:[%s1 + $0x52c8] sm:$0xff]
  %v2712 = vld [vmem:[%s1 + $0x52d0] sm:$0xff]
  %v2713 = vld [vmem:[%s1 + $0x52d8] sm:$0xff]
  %v2714 = vld [vmem:[%s1 + $0x52e0] sm:$0xff]
  %v2715 = vld [vmem:[%s1 + $0x52e8] sm:$0xff]
  %v2716 = vld [vmem:[%s1 + $0x52f0] sm:$0xff]
  %v2717 = vld [vmem:[%s1 + $0x52f8] sm:$0xff]
  %v2718 = vld [vmem:[%s1 + $0x5300] sm:$0xff]
  %v2719 = vld [vmem:[%s1 + $0x5308] sm:$0xff]
  %v2720 = vld [vmem:[%s1 + $0x5310] sm:$0xff]
  %v2721 = vld [vmem:[%s1 + $0x5318] sm:$0xff]
  %v2722 = vld [vmem:[%s1 + $0x5320] sm:$0xff]
  %v2723 = vld [vmem:[%s1 + $0x5328] sm:$0xff]
  %v2724 = vld [vmem:[%s1 + $0x5330] sm:$0xff]
  %v2725 = vld [vmem:[%s1 + $0x5338] sm:$0xff]
  %v2726 = vld [vmem:[%s1 + $0x5340] sm:$0xff]
  %v2727 = vld [vmem:[%s1 + $0x5348] sm:$0xff]
  %v2728 = vld [vmem:[%s1 + $0x5350] sm:$0xff]
  %v2729 = vld [vmem:[%s1 + $0x5358] sm:$0xff]
  %v2730 = vld [vmem:[%s1 + $0x5360] sm:$0xff]
  %v2731 = vld [vmem:[%s1 + $0x5368] sm:$0xff]
  %v2732 = vld [vmem:[%s1 + $0x5370] sm:$0xff]
  %v2733 = vld [vmem:[%s1 + $0x5378] sm:$0xff]
  %v2734 = vld [vmem:[%s1 + $0x5380] sm:$0xff]
  %v2735 = vld [vmem:[%s1 + $0x5388] sm:$0xff]
  %v2736 = vld [vmem:[%s1 + $0x5390] sm:$0xff]
  %v2737 = vld [vmem:[%s1 + $0x5398] sm:$0xff]
  %v2738 = vld [vmem:[%s1 + $0x53a0] sm:$0xff]
  %v2739 = vld [vmem:[%s1 + $0x53a8] sm:$0xff]
  %v2740 = vld [vmem:[%s1 + $0x53b0] sm:$0xff]
  %v2741 = vld [vmem:[%s1 + $0x53b8] sm:$0xff]
  %v2742 = vld [vmem:[%s1 + $0x53c0] sm:$0xff]
  %v2743 = vld [vmem:[%s1 + $0x53c8] sm:$0xff]
  %v2744 = vld [vmem:[%s1 + $0x53d0] sm:$0xff]
  %v2745 = vld [vmem:[%s1 + $0x53d8] sm:$0xff]
  %v2746 = vld [vmem:[%s1 + $0x53e0] sm:$0xff]
  %v2747 = vld [vmem:[%s1 + $0x53e8] sm:$0xff]
  %v2748 = vld [vmem:[%s1 + $0x53f0] sm:$0xff]
  %v2749 = vld [vmem:[%s1 + $0x53f8] sm:$0xff]
  %v2750 = vld [vmem:[%s1 + $0x5400] sm:$0xff]
  %v2751 = vld [vmem:[%s1 + $0x5408] sm:$0xff]
  %v2752 = vld [vmem:[%s1 + $0x5410] sm:$0xff]
  %v2753 = vld [vmem:[%s1 + $0x5418] sm:$0xff]
  %v2754 = vld [vmem:[%s1 + $0x5420] sm:$0xff]
  %v2755 = vld [vmem:[%s1 + $0x5428] sm:$0xff]
  %v2756 = vld [vmem:[%s1 + $0x5430] sm:$0xff]
  %v2757 = vld [vmem:[%s1 + $0x5438] sm:$0xff]
  %v2758 = vld [vmem:[%s1 + $0x5440] sm:$0xff]
  %v2759 = vld [vmem:[%s1 + $0x5448] sm:$0xff]
  %v2760 = vld [vmem:[%s1 + $0x5450] sm:$0xff]
  %v2761 = vld [vmem:[%s1 + $0x5458] sm:$0xff]
  %v2762 = vld [vmem:[%s1 + $0x5460] sm:$0xff]
  %v2763 = vld [vmem:[%s1 + $0x5468] sm:$0xff]
  %v2764 = vld [vmem:[%s1 + $0x5470] sm:$0xff]
  %v2765 = vld [vmem:[%s1 + $0x5478] sm:$0xff]
  %v2766 = vld [vmem:[%s1 + $0x5480] sm:$0xff]
  %v2767 = vld [vmem:[%s1 + $0x5488] sm:$0xff]
  %v2768 = vld [vmem:[%s1 + $0x5490] sm:$0xff]
  %v2769 = vld [vmem:[%s1 + $0x5498] sm:$0xff]
  %v2770 = vld [vmem:[%s1 + $0x54a0] sm:$0xff]
  %v2771 = vld [vmem:[%s1 + $0x54a8] sm:$0xff]
  %v2772 = vld [vmem:[%s1 + $0x54b0] sm:$0xff]
  %v2773 = vld [vmem:[%s1 + $0x54b8] sm:$0xff]
  %v2774 = vld [vmem:[%s1 + $0x54c0] sm:$0xff]
  %v2775 = vld [vmem:[%s1 + $0x54c8] sm:$0xff]
  %v2776 = vld [vmem:[%s1 + $0x54d0] sm:$0xff]
  %v2777 = vld [vmem:[%s1 + $0x54d8] sm:$0xff]
  %v2778 = vld [vmem:[%s1 + $0x54e0] sm:$0xff]
  %v2779 = vld [vmem:[%s1 + $0x54e8] sm:$0xff]
  %v2780 = vld [vmem:[%s1 + $0x54f0] sm:$0xff]
  %v2781 = vld [vmem:[%s1 + $0x54f8] sm:$0xff]
  %v2782 = vld [vmem:[%s1 + $0x5500] sm:$0xff]
  %v2783 = vld [vmem:[%s1 + $0x5508] sm:$0xff]
  %v2784 = vld [vmem:[%s1 + $0x5510] sm:$0xff]
  %v2785 = vld [vmem:[%s1 + $0x5518] sm:$0xff]
  %v2786 = vld [vmem:[%s1 + $0x5520] sm:$0xff]
  %v2787 = vld [vmem:[%s1 + $0x5528] sm:$0xff]
  %v2788 = vld [vmem:[%s1 + $0x5530] sm:$0xff]
  %v2789 = vld [vmem:[%s1 + $0x5538] sm:$0xff]
  %v2790 = vld [vmem:[%s1 + $0x5540] sm:$0xff]
  %v2791 = vld [vmem:[%s1 + $0x5548] sm:$0xff]
  %v2792 = vld [vmem:[%s1 + $0x5550] sm:$0xff]
  %v2793 = vld [vmem:[%s1 + $0x5558] sm:$0xff]
  %v2794 = vld [vmem:[%s1 + $0x5560] sm:$0xff]
  %v2795 = vld [vmem:[%s1 + $0x5568] sm:$0xff]
  %v2796 = vld [vmem:[%s1 + $0x5570] sm:$0xff]
  %v2797 = vld [vmem:[%s1 + $0x5578] sm:$0xff]
  %v2798 = vld [vmem:[%s1 + $0x5580] sm:$0xff]
  %v2799 = vld [vmem:[%s1 + $0x5588] sm:$0xff]
  %v2800 = vld [vmem:[%s1 + $0x5590] sm:$0xff]
  %v2801 = vld [vmem:[%s1 + $0x5598] sm:$0xff]
  %v2802 = vld [vmem:[%s1 + $0x55a0] sm:$0xff]
  %v2803 = vld [vmem:[%s1 + $0x55a8] sm:$0xff]
  %v2804 = vld [vmem:[%s1 + $0x55b0] sm:$0xff]
  %v2805 = vld [vmem:[%s1 + $0x55b8] sm:$0xff]
  %v2806 = vld [vmem:[%s1 + $0x55c0] sm:$0xff]
  %v2807 = vld [vmem:[%s1 + $0x55c8] sm:$0xff]
  %v2808 = vld [vmem:[%s1 + $0x55d0] sm:$0xff]
  %v2809 = vld [vmem:[%s1 + $0x55d8] sm:$0xff]
  %v2810 = vld [vmem:[%s1 + $0x55e0] sm:$0xff]
  %v2811 = vld [vmem:[%s1 + $0x55e8] sm:$0xff]
  %v2812 = vld [vmem:[%s1 + $0x55f0] sm:$0xff]
  %v2813 = vld [vmem:[%s1 + $0x55f8] sm:$0xff]
  %v2814 = vld [vmem:[%s1 + $0x5600] sm:$0xff]
  %v2815 = vld [vmem:[%s1 + $0x5608] sm:$0xff]
  %v2816 = vld [vmem:[%s1 + $0x5610] sm:$0xff]
  %v2817 = vld [vmem:[%s1 + $0x5618] sm:$0xff]
  %v2818 = vld [vmem:[%s1 + $0x5620] sm:$0xff]
  %v2819 = vld [vmem:[%s1 + $0x5628] sm:$0xff]
  %v2820 = vld [vmem:[%s1 + $0x5630] sm:$0xff]
  %v2821 = vld [vmem:[%s1 + $0x5638] sm:$0xff]
  %v2822 = vld [vmem:[%s1 + $0x5640] sm:$0xff]
  %v2823 = vld [vmem:[%s1 + $0x5648] sm:$0xff]
  %v2824 = vld [vmem:[%s1 + $0x5650] sm:$0xff]
  %v2825 = vld [vmem:[%s1 + $0x5658] sm:$0xff]
  %v2826 = vld [vmem:[%s1 + $0x5660] sm:$0xff]
  %v2827 = vld [vmem:[%s1 + $0x5668] sm:$0xff]
  %v2828 = vld [vmem:[%s1 + $0x5670] sm:$0xff]
  %v2829 = vld [vmem:[%s1 + $0x5678] sm:$0xff]
  %v2830 = vld [vmem:[%s1 + $0x5680] sm:$0xff]
  %v2831 = vld [vmem:[%s1 + $0x5688] sm:$0xff]
  %v2832 = vld [vmem:[%s1 + $0x5690] sm:$0xff]
  %v2833 = vld [vmem:[%s1 + $0x5698] sm:$0xff]
  %v2834 = vld [vmem:[%s1 + $0x56a0] sm:$0xff]
  %v2835 = vld [vmem:[%s1 + $0x56a8] sm:$0xff]
  %v2836 = vld [vmem:[%s1 + $0x56b0] sm:$0xff]
  %v2837 = vld [vmem:[%s1 + $0x56b8] sm:$0xff]
  %v2838 = vld [vmem:[%s1 + $0x56c0] sm:$0xff]
  %v2839 = vld [vmem:[%s1 + $0x56c8] sm:$0xff]
  %v2840 = vld [vmem:[%s1 + $0x56d0] sm:$0xff]
  %v2841 = vld [vmem:[%s1 + $0x56d8] sm:$0xff]
  %v2842 = vld [vmem:[%s1 + $0x56e0] sm:$0xff]
  %v2843 = vld [vmem:[%s1 + $0x56e8] sm:$0xff]
  %v2844 = vld [vmem:[%s1 + $0x56f0] sm:$0xff]
  %v2845 = vld [vmem:[%s1 + $0x56f8] sm:$0xff]
  %v2846 = vld [vmem:[%s1 + $0x5700] sm:$0xff]
  %v2847 = vld [vmem:[%s1 + $0x5708] sm:$0xff]
  %v2848 = vld [vmem:[%s1 + $0x5710] sm:$0xff]
  %v2849 = vld [vmem:[%s1 + $0x5718] sm:$0xff]
  %v2850 = vld [vmem:[%s1 + $0x5720] sm:$0xff]
  %v2851 = vld [vmem:[%s1 + $0x5728] sm:$0xff]
  %v2852 = vld [vmem:[%s1 + $0x5730] sm:$0xff]
  %v2853 = vld [vmem:[%s1 + $0x5738] sm:$0xff]
  %v2854 = vld [vmem:[%s1 + $0x5740] sm:$0xff]
  %v2855 = vld [vmem:[%s1 + $0x5748] sm:$0xff]
  %v2856 = vld [vmem:[%s1 + $0x5750] sm:$0xff]
  %v2857 = vld [vmem:[%s1 + $0x5758] sm:$0xff]
  %v2858 = vld [vmem:[%s1 + $0x5760] sm:$0xff]
  %v2859 = vld [vmem:[%s1 + $0x5768] sm:$0xff]
  %v2860 = vld [vmem:[%s1 + $0x5770] sm:$0xff]
  %v2861 = vld [vmem:[%s1 + $0x5778] sm:$0xff]
  %v2862 = vld [vmem:[%s1 + $0x5780] sm:$0xff]
  %v2863 = vld [vmem:[%s1 + $0x5788] sm:$0xff]
  %v2864 = vld [vmem:[%s1 + $0x5790] sm:$0xff]
  %v2865 = vld [vmem:[%s1 + $0x5798] sm:$0xff]
  %v2866 = vld [vmem:[%s1 + $0x57a0] sm:$0xff]
  %v2867 = vld [vmem:[%s1 + $0x57a8] sm:$0xff]
  %v2868 = vld [vmem:[%s1 + $0x57b0] sm:$0xff]
  %v2869 = vld [vmem:[%s1 + $0x57b8] sm:$0xff]
  %v2870 = vld [vmem:[%s1 + $0x57c0] sm:$0xff]
  %v2871 = vld [vmem:[%s1 + $0x57c8] sm:$0xff]
  %v2872 = vld [vmem:[%s1 + $0x57d0] sm:$0xff]
  %v2873 = vld [vmem:[%s1 + $0x57d8] sm:$0xff]
  %v2874 = vld [vmem:[%s1 + $0x57e0] sm:$0xff]
  %v2875 = vld [vmem:[%s1 + $0x57e8] sm:$0xff]
  %v2876 = vld [vmem:[%s1 + $0x57f0] sm:$0xff]
  %v2877 = vld [vmem:[%s1 + $0x57f8] sm:$0xff]
  %v2878 = vld [vmem:[%s1 + $0x5800] sm:$0xff]
  %v2879 = vld [vmem:[%s1 + $0x5808] sm:$0xff]
  %v2880 = vld [vmem:[%s1 + $0x5810] sm:$0xff]
  %v2881 = vld [vmem:[%s1 + $0x5818] sm:$0xff]
  %v2882 = vld [vmem:[%s1 + $0x5820] sm:$0xff]
  %v2883 = vld [vmem:[%s1 + $0x5828] sm:$0xff]
  %v2884 = vld [vmem:[%s1 + $0x5830] sm:$0xff]
  %v2885 = vld [vmem:[%s1 + $0x5838] sm:$0xff]
  %v2886 = vld [vmem:[%s1 + $0x5840] sm:$0xff]
  %v2887 = vld [vmem:[%s1 + $0x5848] sm:$0xff]
  %v2888 = vld [vmem:[%s1 + $0x5850] sm:$0xff]
  %v2889 = vld [vmem:[%s1 + $0x5858] sm:$0xff]
  %v2890 = vld [vmem:[%s1 + $0x5860] sm:$0xff]
  %v2891 = vld [vmem:[%s1 + $0x5868] sm:$0xff]
  %v2892 = vld [vmem:[%s1 + $0x5870] sm:$0xff]
  %v2893 = vld [vmem:[%s1 + $0x5878] sm:$0xff]
  %v2894 = vld [vmem:[%s1 + $0x5880] sm:$0xff]
  %v2895 = vld [vmem:[%s1 + $0x5888] sm:$0xff]
  %v2896 = vld [vmem:[%s1 + $0x5890] sm:$0xff]
  %v2897 = vld [vmem:[%s1 + $0x5898] sm:$0xff]
  %v2898 = vld [vmem:[%s1 + $0x58a0] sm:$0xff]
  %v2899 = vld [vmem:[%s1 + $0x58a8] sm:$0xff]
  %v2900 = vld [vmem:[%s1 + $0x58b0] sm:$0xff]
  %v2901 = vld [vmem:[%s1 + $0x58b8] sm:$0xff]
  %v2902 = vld [vmem:[%s1 + $0x58c0] sm:$0xff]
  %v2903 = vld [vmem:[%s1 + $0x58c8] sm:$0xff]
  %v2904 = vld [vmem:[%s1 + $0x58d0] sm:$0xff]
  %v2905 = vld [vmem:[%s1 + $0x58d8] sm:$0xff]
  %v2906 = vld [vmem:[%s1 + $0x58e0] sm:$0xff]
  %v2907 = vld [vmem:[%s1 + $0x58e8] sm:$0xff]
  %v2908 = vld [vmem:[%s1 + $0x58f0] sm:$0xff]
  %v2909 = vld [vmem:[%s1 + $0x58f8] sm:$0xff]
  %v2910 = vld [vmem:[%s1 + $0x5900] sm:$0xff]
  %v2911 = vld [vmem:[%s1 + $0x5908] sm:$0xff]
  %v2912 = vld [vmem:[%s1 + $0x5910] sm:$0xff]
  %v2913 = vld [vmem:[%s1 + $0x5918] sm:$0xff]
  %v2914 = vld [vmem:[%s1 + $0x5920] sm:$0xff]
  %v2915 = vld [vmem:[%s1 + $0x5928] sm:$0xff]
  %v2916 = vld [vmem:[%s1 + $0x5930] sm:$0xff]
  %v2917 = vld [vmem:[%s1 + $0x5938] sm:$0xff]
  %v2918 = vld [vmem:[%s1 + $0x5940] sm:$0xff]
  %v2919 = vld [vmem:[%s1 + $0x5948] sm:$0xff]
  %v2920 = vld [vmem:[%s1 + $0x5950] sm:$0xff]
  %v2921 = vld [vmem:[%s1 + $0x5958] sm:$0xff]
  %v2922 = vld [vmem:[%s1 + $0x5960] sm:$0xff]
  %v2923 = vld [vmem:[%s1 + $0x5968] sm:$0xff]
  %v2924 = vld [vmem:[%s1 + $0x5970] sm:$0xff]
  %v2925 = vld [vmem:[%s1 + $0x5978] sm:$0xff]
  %v2926 = vld [vmem:[%s1 + $0x5980] sm:$0xff]
  %v2927 = vld [vmem:[%s1 + $0x5988] sm:$0xff]
  %v2928 = vld [vmem:[%s1 + $0x5990] sm:$0xff]
  %v2929 = vld [vmem:[%s1 + $0x5998] sm:$0xff]
  %v2930 = vld [vmem:[%s1 + $0x59a0] sm:$0xff]
  %v2931 = vld [vmem:[%s1 + $0x59a8] sm:$0xff]
  %v2932 = vld [vmem:[%s1 + $0x59b0] sm:$0xff]
  %v2933 = vld [vmem:[%s1 + $0x59b8] sm:$0xff]
  %v2934 = vld [vmem:[%s1 + $0x59c0] sm:$0xff]
  %v2935 = vld [vmem:[%s1 + $0x59c8] sm:$0xff]
  %v2936 = vld [vmem:[%s1 + $0x59d0] sm:$0xff]
  %v2937 = vld [vmem:[%s1 + $0x59d8] sm:$0xff]
  %v2938 = vld [vmem:[%s1 + $0x59e0] sm:$0xff]
  %v2939 = vld [vmem:[%s1 + $0x59e8] sm:$0xff]
  %v2940 = vld [vmem:[%s1 + $0x59f0] sm:$0xff]
  %v2941 = vld [vmem:[%s1 + $0x59f8] sm:$0xff]
  %v2942 = vld [vmem:[%s1 + $0x5a00] sm:$0xff]
  %v2943 = vld [vmem:[%s1 + $0x5a08] sm:$0xff]
  %v2944 = vld [vmem:[%s1 + $0x5a10] sm:$0xff]
  %v2945 = vld [vmem:[%s1 + $0x5a18] sm:$0xff]
  %v2946 = vld [vmem:[%s1 + $0x5a20] sm:$0xff]
  %v2947 = vld [vmem:[%s1 + $0x5a28] sm:$0xff]
  %v2948 = vld [vmem:[%s1 + $0x5a30] sm:$0xff]
  %v2949 = vld [vmem:[%s1 + $0x5a38] sm:$0xff]
  %v2950 = vld [vmem:[%s1 + $0x5a40] sm:$0xff]
  %v2951 = vld [vmem:[%s1 + $0x5a48] sm:$0xff]
  %v2952 = vld [vmem:[%s1 + $0x5a50] sm:$0xff]
  %v2953 = vld [vmem:[%s1 + $0x5a58] sm:$0xff]
  %v2954 = vld [vmem:[%s1 + $0x5a60] sm:$0xff]
  %v2955 = vld [vmem:[%s1 + $0x5a68] sm:$0xff]
  %v2956 = vld [vmem:[%s1 + $0x5a70] sm:$0xff]
  %v2957 = vld [vmem:[%s1 + $0x5a78] sm:$0xff]
  %v2958 = vld [vmem:[%s1 + $0x5a80] sm:$0xff]
  %v2959 = vld [vmem:[%s1 + $0x5a88] sm:$0xff]
  %v2960 = vld [vmem:[%s1 + $0x5a90] sm:$0xff]
  %v2961 = vld [vmem:[%s1 + $0x5a98] sm:$0xff]
  %v2962 = vld [vmem:[%s1 + $0x5aa0] sm:$0xff]
  %v2963 = vld [vmem:[%s1 + $0x5aa8] sm:$0xff]
  %v2964 = vld [vmem:[%s1 + $0x5ab0] sm:$0xff]
  %v2965 = vld [vmem:[%s1 + $0x5ab8] sm:$0xff]
  %v2966 = vld [vmem:[%s1 + $0x5ac0] sm:$0xff]
  %v2967 = vld [vmem:[%s1 + $0x5ac8] sm:$0xff]
  %v2968 = vld [vmem:[%s1 + $0x5ad0] sm:$0xff]
  %v2969 = vld [vmem:[%s1 + $0x5ad8] sm:$0xff]
  %v2970 = vld [vmem:[%s1 + $0x5ae0] sm:$0xff]
  %v2971 = vld [vmem:[%s1 + $0x5ae8] sm:$0xff]
  %v2972 = vld [vmem:[%s1 + $0x5af0] sm:$0xff]
  %v2973 = vld [vmem:[%s1 + $0x5af8] sm:$0xff]
  %v2974 = vld [vmem:[%s1 + $0x5b00] sm:$0xff]
  %v2975 = vld [vmem:[%s1 + $0x5b08] sm:$0xff]
  %v2976 = vld [vmem:[%s1 + $0x5b10] sm:$0xff]
  %v2977 = vld [vmem:[%s1 + $0x5b18] sm:$0xff]
  %v2978 = vld [vmem:[%s1 + $0x5b20] sm:$0xff]
  %v2979 = vld [vmem:[%s1 + $0x5b28] sm:$0xff]
  %v2980 = vld [vmem:[%s1 + $0x5b30] sm:$0xff]
  %v2981 = vld [vmem:[%s1 + $0x5b38] sm:$0xff]
  %v2982 = vld [vmem:[%s1 + $0x5b40] sm:$0xff]
  %v2983 = vld [vmem:[%s1 + $0x5b48] sm:$0xff]
  %v2984 = vld [vmem:[%s1 + $0x5b50] sm:$0xff]
  %v2985 = vld [vmem:[%s1 + $0x5b58] sm:$0xff]
  %v2986 = vld [vmem:[%s1 + $0x5b60] sm:$0xff]
  %v2987 = vld [vmem:[%s1 + $0x5b68] sm:$0xff]
  %v2988 = vld [vmem:[%s1 + $0x5b70] sm:$0xff]
  %v2989 = vld [vmem:[%s1 + $0x5b78] sm:$0xff]
  %v2990 = vld [vmem:[%s1 + $0x5b80] sm:$0xff]
  %v2991 = vld [vmem:[%s1 + $0x5b88] sm:$0xff]
  %v2992 = vld [vmem:[%s1 + $0x5b90] sm:$0xff]
  %v2993 = vld [vmem:[%s1 + $0x5b98] sm:$0xff]
  %v2994 = vld [vmem:[%s1 + $0x5ba0] sm:$0xff]
  %v2995 = vld [vmem:[%s1 + $0x5ba8] sm:$0xff]
  %v2996 = vld [vmem:[%s1 + $0x5bb0] sm:$0xff]
  %v2997 = vld [vmem:[%s1 + $0x5bb8] sm:$0xff]
  %v2998 = vld [vmem:[%s1 + $0x5bc0] sm:$0xff]
  %v2999 = vld [vmem:[%s1 + $0x5bc8] sm:$0xff]
  %v3000 = vld [vmem:[%s1 + $0x5bd0] sm:$0xff]
  %v3001 = vld [vmem:[%s1 + $0x5bd8] sm:$0xff]
  %v3002 = vld [vmem:[%s1 + $0x5be0] sm:$0xff]
  %v3003 = vld [vmem:[%s1 + $0x5be8] sm:$0xff]
  %v3004 = vld [vmem:[%s1 + $0x5bf0] sm:$0xff]
  %v3005 = vld [vmem:[%s1 + $0x5bf8] sm:$0xff]
  %v3006 = vld [vmem:[%s1 + $0x5c00] sm:$0xff]
  %v3007 = vld [vmem:[%s1 + $0x5c08] sm:$0xff]
  %v3008 = vld [vmem:[%s1 + $0x5c10] sm:$0xff]
  %v3009 = vld [vmem:[%s1 + $0x5c18] sm:$0xff]
  %v3010 = vld [vmem:[%s1 + $0x5c20] sm:$0xff]
  %v3011 = vld [vmem:[%s1 + $0x5c28] sm:$0xff]
  %v3012 = vld [vmem:[%s1 + $0x5c30] sm:$0xff]
  %v3013 = vld [vmem:[%s1 + $0x5c38] sm:$0xff]
  %v3014 = vld [vmem:[%s1 + $0x5c40] sm:$0xff]
  %v3015 = vld [vmem:[%s1 + $0x5c48] sm:$0xff]
  %v3016 = vld [vmem:[%s1 + $0x5c50] sm:$0xff]
  %v3017 = vld [vmem:[%s1 + $0x5c58] sm:$0xff]
  %v3018 = vld [vmem:[%s1 + $0x5c60] sm:$0xff]
  %v3019 = vld [vmem:[%s1 + $0x5c68] sm:$0xff]
  %v3020 = vld [vmem:[%s1 + $0x5c70] sm:$0xff]
  %v3021 = vld [vmem:[%s1 + $0x5c78] sm:$0xff]
  %v3022 = vld [vmem:[%s1 + $0x5c80] sm:$0xff]
  %v3023 = vld [vmem:[%s1 + $0x5c88] sm:$0xff]
  %v3024 = vld [vmem:[%s1 + $0x5c90] sm:$0xff]
  %v3025 = vld [vmem:[%s1 + $0x5c98] sm:$0xff]
  %v3026 = vld [vmem:[%s1 + $0x5ca0] sm:$0xff]
  %v3027 = vld [vmem:[%s1 + $0x5ca8] sm:$0xff]
  %v3028 = vld [vmem:[%s1 + $0x5cb0] sm:$0xff]
  %v3029 = vld [vmem:[%s1 + $0x5cb8] sm:$0xff]
  %v3030 = vld [vmem:[%s1 + $0x5cc0] sm:$0xff]
  %v3031 = vld [vmem:[%s1 + $0x5cc8] sm:$0xff]
  %v3032 = vld [vmem:[%s1 + $0x5cd0] sm:$0xff]
  %v3033 = vld [vmem:[%s1 + $0x5cd8] sm:$0xff]
  %v3034 = vld [vmem:[%s1 + $0x5ce0] sm:$0xff]
  %v3035 = vld [vmem:[%s1 + $0x5ce8] sm:$0xff]
  %v3036 = vld [vmem:[%s1 + $0x5cf0] sm:$0xff]
  %v3037 = vld [vmem:[%s1 + $0x5cf8] sm:$0xff]
  %v3038 = vld [vmem:[%s1 + $0x5d00] sm:$0xff]
  %v3039 = vld [vmem:[%s1 + $0x5d08] sm:$0xff]
  %v3040 = vld [vmem:[%s1 + $0x5d10] sm:$0xff]
  %v3041 = vld [vmem:[%s1 + $0x5d18] sm:$0xff]
  %v3042 = vld [vmem:[%s1 + $0x5d20] sm:$0xff]
  %v3043 = vld [vmem:[%s1 + $0x5d28] sm:$0xff]
  %v3044 = vld [vmem:[%s1 + $0x5d30] sm:$0xff]
  %v3045 = vld [vmem:[%s1 + $0x5d38] sm:$0xff]
  %v3046 = vld [vmem:[%s1 + $0x5d40] sm:$0xff]
  %v3047 = vld [vmem:[%s1 + $0x5d48] sm:$0xff]
  %v3048 = vld [vmem:[%s1 + $0x5d50] sm:$0xff]
  %v3049 = vld [vmem:[%s1 + $0x5d58] sm:$0xff]
  %v3050 = vld [vmem:[%s1 + $0x5d60] sm:$0xff]
  %v3051 = vld [vmem:[%s1 + $0x5d68] sm:$0xff]
  %v3052 = vld [vmem:[%s1 + $0x5d70] sm:$0xff]
  %v3053 = vld [vmem:[%s1 + $0x5d78] sm:$0xff]
  %v3054 = vld [vmem:[%s1 + $0x5d80] sm:$0xff]
  %v3055 = vld [vmem:[%s1 + $0x5d88] sm:$0xff]
  %v3056 = vld [vmem:[%s1 + $0x5d90] sm:$0xff]
  %v3057 = vld [vmem:[%s1 + $0x5d98] sm:$0xff]
  %v3058 = vld [vmem:[%s1 + $0x5da0] sm:$0xff]
  %v3059 = vld [vmem:[%s1 + $0x5da8] sm:$0xff]
  %v3060 = vld [vmem:[%s1 + $0x5db0] sm:$0xff]
  %v3061 = vld [vmem:[%s1 + $0x5db8] sm:$0xff]
  %v3062 = vld [vmem:[%s1 + $0x5dc0] sm:$0xff]
  %v3063 = vld [vmem:[%s1 + $0x5dc8] sm:$0xff]
  %v3064 = vld [vmem:[%s1 + $0x5dd0] sm:$0xff]
  %v3065 = vld [vmem:[%s1 + $0x5dd8] sm:$0xff]
  %v3066 = vld [vmem:[%s1 + $0x5de0] sm:$0xff]
  %v3067 = vld [vmem:[%s1 + $0x5de8] sm:$0xff]
  %v3068 = vld [vmem:[%s1 + $0x5df0] sm:$0xff]
  %v3069 = vld [vmem:[%s1 + $0x5df8] sm:$0xff]
  %v3070 = vld [vmem:[%s1 + $0x5e00] sm:$0xff]
  %v3071 = vld [vmem:[%s1 + $0x5e08] sm:$0xff]
  %v3072 = vld [vmem:[%s1 + $0x5e10] sm:$0xff]
  %v3073 = vld [vmem:[%s1 + $0x5e18] sm:$0xff]
  %v3074 = vld [vmem:[%s1 + $0x5e20] sm:$0xff]
  %v3075 = vld [vmem:[%s1 + $0x5e28] sm:$0xff]
  %v3076 = vld [vmem:[%s1 + $0x5e30] sm:$0xff]
  %v3077 = vld [vmem:[%s1 + $0x5e38] sm:$0xff]
  %v3078 = vld [vmem:[%s1 + $0x5e40] sm:$0xff]
  %v3079 = vld [vmem:[%s1 + $0x5e48] sm:$0xff]
  %v3080 = vld [vmem:[%s1 + $0x5e50] sm:$0xff]
  %v3081 = vld [vmem:[%s1 + $0x5e58] sm:$0xff]
  %v3082 = vld [vmem:[%s1 + $0x5e60] sm:$0xff]
  %v3083 = vld [vmem:[%s1 + $0x5e68] sm:$0xff]
  %v3084 = vld [vmem:[%s1 + $0x5e70] sm:$0xff]
  %v3085 = vld [vmem:[%s1 + $0x5e78] sm:$0xff]
  %v3086 = vld [vmem:[%s1 + $0x5e80] sm:$0xff]
  %v3087 = vld [vmem:[%s1 + $0x5e88] sm:$0xff]
  %v3088 = vld [vmem:[%s1 + $0x5e90] sm:$0xff]
  %v3089 = vld [vmem:[%s1 + $0x5e98] sm:$0xff]
  %v3090 = vld [vmem:[%s1 + $0x5ea0] sm:$0xff]
  %v3091 = vld [vmem:[%s1 + $0x5ea8] sm:$0xff]
  %v3092 = vld [vmem:[%s1 + $0x5eb0] sm:$0xff]
  %v3093 = vld [vmem:[%s1 + $0x5eb8] sm:$0xff]
  %v3094 = vld [vmem:[%s1 + $0x5ec0] sm:$0xff]
  %v3095 = vld [vmem:[%s1 + $0x5ec8] sm:$0xff]
  %v3096 = vld [vmem:[%s1 + $0x5ed0] sm:$0xff]
  %v3097 = vld [vmem:[%s1 + $0x5ed8] sm:$0xff]
  %v3098 = vld [vmem:[%s1 + $0x5ee0] sm:$0xff]
  %v3099 = vld [vmem:[%s1 + $0x5ee8] sm:$0xff]
  %v3100 = vld [vmem:[%s1 + $0x5ef0] sm:$0xff]
  %v3101 = vld [vmem:[%s1 + $0x5ef8] sm:$0xff]
  %v3102 = vld [vmem:[%s1 + $0x5f00] sm:$0xff]
  %v3103 = vld [vmem:[%s1 + $0x5f08] sm:$0xff]
  %v3104 = vld [vmem:[%s1 + $0x5f10] sm:$0xff]
  %v3105 = vld [vmem:[%s1 + $0x5f18] sm:$0xff]
  %v3106 = vld [vmem:[%s1 + $0x5f20] sm:$0xff]
  %v3107 = vld [vmem:[%s1 + $0x5f28] sm:$0xff]
  %v3108 = vld [vmem:[%s1 + $0x5f30] sm:$0xff]
  %v3109 = vld [vmem:[%s1 + $0x5f38] sm:$0xff]
  %v3110 = vld [vmem:[%s1 + $0x5f40] sm:$0xff]
  %v3111 = vld [vmem:[%s1 + $0x5f48] sm:$0xff]
  %v3112 = vld [vmem:[%s1 + $0x5f50] sm:$0xff]
  %v3113 = vld [vmem:[%s1 + $0x5f58] sm:$0xff]
  %v3114 = vld [vmem:[%s1 + $0x5f60] sm:$0xff]
  %v3115 = vld [vmem:[%s1 + $0x5f68] sm:$0xff]
  %v3116 = vld [vmem:[%s1 + $0x5f70] sm:$0xff]
  %v3117 = vld [vmem:[%s1 + $0x5f78] sm:$0xff]
  %v3118 = vld [vmem:[%s1 + $0x5f80] sm:$0xff]
  %v3119 = vld [vmem:[%s1 + $0x5f88] sm:$0xff]
  %v3120 = vld [vmem:[%s1 + $0x5f90] sm:$0xff]
  %v3121 = vld [vmem:[%s1 + $0x5f98] sm:$0xff]
  %v3122 = vld [vmem:[%s1 + $0x5fa0] sm:$0xff]
  %v3123 = vld [vmem:[%s1 + $0x5fa8] sm:$0xff]
  %v3124 = vld [vmem:[%s1 + $0x5fb0] sm:$0xff]
  %v3125 = vld [vmem:[%s1 + $0x5fb8] sm:$0xff]
  %v3126 = vld [vmem:[%s1 + $0x5fc0] sm:$0xff]
  %v3127 = vld [vmem:[%s1 + $0x5fc8] sm:$0xff]
  %v3128 = vld [vmem:[%s1 + $0x5fd0] sm:$0xff]
  %v3129 = vld [vmem:[%s1 + $0x5fd8] sm:$0xff]
  %v3130 = vld [vmem:[%s1 + $0x5fe0] sm:$0xff]
  %v3131 = vld [vmem:[%s1 + $0x5fe8] sm:$0xff]
  %v3132 = vld [vmem:[%s1 + $0x5ff0] sm:$0xff]
  %v3133 = vld [vmem:[%s1 + $0x5ff8] sm:$0xff]
  %v3134 = vld [vmem:[%s1 + $0x6000] sm:$0xff]
  %v3135 = vld [vmem:[%s1 + $0x6008] sm:$0xff]
  %v3136 = vld [vmem:[%s1 + $0x6010] sm:$0xff]
  %v3137 = vld [vmem:[%s1 + $0x6018] sm:$0xff]
  %v3138 = vld [vmem:[%s1 + $0x6020] sm:$0xff]
  %v3139 = vld [vmem:[%s1 + $0x6028] sm:$0xff]
  %v3140 = vld [vmem:[%s1 + $0x6030] sm:$0xff]
  %v3141 = vld [vmem:[%s1 + $0x6038] sm:$0xff]
  %v3142 = vld [vmem:[%s1 + $0x6040] sm:$0xff]
  %v3143 = vld [vmem:[%s1 + $0x6048] sm:$0xff]
  %v3144 = vld [vmem:[%s1 + $0x6050] sm:$0xff]
  %v3145 = vld [vmem:[%s1 + $0x6058] sm:$0xff]
  %v3146 = vld [vmem:[%s1 + $0x6060] sm:$0xff]
  %v3147 = vld [vmem:[%s1 + $0x6068] sm:$0xff]
  %v3148 = vld [vmem:[%s1 + $0x6070] sm:$0xff]
  %v3149 = vld [vmem:[%s1 + $0x6078] sm:$0xff]
  %v3150 = vld [vmem:[%s1 + $0x6080] sm:$0xff]
  %v3151 = vld [vmem:[%s1 + $0x6088] sm:$0xff]
  %v3152 = vld [vmem:[%s1 + $0x6090] sm:$0xff]
  %v3153 = vld [vmem:[%s1 + $0x6098] sm:$0xff]
  %v3154 = vld [vmem:[%s1 + $0x60a0] sm:$0xff]
  %v3155 = vld [vmem:[%s1 + $0x60a8] sm:$0xff]
  %v3156 = vld [vmem:[%s1 + $0x60b0] sm:$0xff]
  %v3157 = vld [vmem:[%s1 + $0x60b8] sm:$0xff]
  %v3158 = vld [vmem:[%s1 + $0x60c0] sm:$0xff]
  %v3159 = vld [vmem:[%s1 + $0x60c8] sm:$0xff]
  %v3160 = vld [vmem:[%s1 + $0x60d0] sm:$0xff]
  %v3161 = vld [vmem:[%s1 + $0x60d8] sm:$0xff]
  %v3162 = vld [vmem:[%s1 + $0x60e0] sm:$0xff]
  %v3163 = vld [vmem:[%s1 + $0x60e8] sm:$0xff]
  %v3164 = vld [vmem:[%s1 + $0x60f0] sm:$0xff]
  %v3165 = vld [vmem:[%s1 + $0x60f8] sm:$0xff]
  %v3166 = vld [vmem:[%s1 + $0x6100] sm:$0xff]
  %v3167 = vld [vmem:[%s1 + $0x6108] sm:$0xff]
  %v3168 = vld [vmem:[%s1 + $0x6110] sm:$0xff]
  %v3169 = vld [vmem:[%s1 + $0x6118] sm:$0xff]
  %v3170 = vld [vmem:[%s1 + $0x6120] sm:$0xff]
  %v3171 = vld [vmem:[%s1 + $0x6128] sm:$0xff]
  %v3172 = vld [vmem:[%s1 + $0x6130] sm:$0xff]
  %v3173 = vld [vmem:[%s1 + $0x6138] sm:$0xff]
  %v3174 = vld [vmem:[%s1 + $0x6140] sm:$0xff]
  %v3175 = vld [vmem:[%s1 + $0x6148] sm:$0xff]
  %v3176 = vld [vmem:[%s1 + $0x6150] sm:$0xff]
  %v3177 = vld [vmem:[%s1 + $0x6158] sm:$0xff]
  %v3178 = vld [vmem:[%s1 + $0x6160] sm:$0xff]
  %v3179 = vld [vmem:[%s1 + $0x6168] sm:$0xff]
  %v3180 = vld [vmem:[%s1 + $0x6170] sm:$0xff]
  %v3181 = vld [vmem:[%s1 + $0x6178] sm:$0xff]
  %v3182 = vld [vmem:[%s1 + $0x6180] sm:$0xff]
  %v3183 = vld [vmem:[%s1 + $0x6188] sm:$0xff]
  %v3184 = vld [vmem:[%s1 + $0x6190] sm:$0xff]
  %v3185 = vld [vmem:[%s1 + $0x6198] sm:$0xff]
  %v3186 = vld [vmem:[%s1 + $0x61a0] sm:$0xff]
  %v3187 = vld [vmem:[%s1 + $0x61a8] sm:$0xff]
  %v3188 = vld [vmem:[%s1 + $0x61b0] sm:$0xff]
  %v3189 = vld [vmem:[%s1 + $0x61b8] sm:$0xff]
  %v3190 = vld [vmem:[%s1 + $0x61c0] sm:$0xff]
  %v3191 = vld [vmem:[%s1 + $0x61c8] sm:$0xff]
  %v3192 = vld [vmem:[%s1 + $0x61d0] sm:$0xff]
  %v3193 = vld [vmem:[%s1 + $0x61d8] sm:$0xff]
  %v3194 = vld [vmem:[%s1 + $0x61e0] sm:$0xff]
  %v3195 = vld [vmem:[%s1 + $0x61e8] sm:$0xff]
  %v3196 = vld [vmem:[%s1 + $0x61f0] sm:$0xff]
  %v3197 = vld [vmem:[%s1 + $0x61f8] sm:$0xff]
  %v3198 = vld [vmem:[%s1 + $0x6200] sm:$0xff]
  %v3199 = vld [vmem:[%s1 + $0x6208] sm:$0xff]
  %v3200 = vld [vmem:[%s1 + $0x6210] sm:$0xff]
  %v3201 = vld [vmem:[%s1 + $0x6218] sm:$0xff]
  %v3202 = vld [vmem:[%s1 + $0x6220] sm:$0xff]
  %v3203 = vld [vmem:[%s1 + $0x6228] sm:$0xff]
  %v3204 = vld [vmem:[%s1 + $0x6230] sm:$0xff]
  %v3205 = vld [vmem:[%s1 + $0x6238] sm:$0xff]
  %v3206 = vld [vmem:[%s1 + $0x6240] sm:$0xff]
  %v3207 = vld [vmem:[%s1 + $0x6248] sm:$0xff]
  %v3208 = vld [vmem:[%s1 + $0x6250] sm:$0xff]
  %v3209 = vld [vmem:[%s1 + $0x6258] sm:$0xff]
  %v3210 = vld [vmem:[%s1 + $0x6260] sm:$0xff]
  %v3211 = vld [vmem:[%s1 + $0x6268] sm:$0xff]
  %v3212 = vld [vmem:[%s1 + $0x6270] sm:$0xff]
  %v3213 = vld [vmem:[%s1 + $0x6278] sm:$0xff]
  %v3214 = vld [vmem:[%s1 + $0x6280] sm:$0xff]
  %v3215 = vld [vmem:[%s1 + $0x6288] sm:$0xff]
  %v3216 = vld [vmem:[%s1 + $0x6290] sm:$0xff]
  %v3217 = vld [vmem:[%s1 + $0x6298] sm:$0xff]
  %v3218 = vld [vmem:[%s1 + $0x62a0] sm:$0xff]
  %v3219 = vld [vmem:[%s1 + $0x62a8] sm:$0xff]
  %v3220 = vld [vmem:[%s1 + $0x62b0] sm:$0xff]
  %v3221 = vld [vmem:[%s1 + $0x62b8] sm:$0xff]
  %v3222 = vld [vmem:[%s1 + $0x62c0] sm:$0xff]
  %v3223 = vld [vmem:[%s1 + $0x62c8] sm:$0xff]
  %v3224 = vld [vmem:[%s1 + $0x62d0] sm:$0xff]
  %v3225 = vld [vmem:[%s1 + $0x62d8] sm:$0xff]
  %v3226 = vld [vmem:[%s1 + $0x62e0] sm:$0xff]
  %v3227 = vld [vmem:[%s1 + $0x62e8] sm:$0xff]
  %v3228 = vld [vmem:[%s1 + $0x62f0] sm:$0xff]
  %v3229 = vld [vmem:[%s1 + $0x62f8] sm:$0xff]
  %v3230 = vld [vmem:[%s1 + $0x6300] sm:$0xff]
  %v3231 = vld [vmem:[%s1 + $0x6308] sm:$0xff]
  %v3232 = vld [vmem:[%s1 + $0x6310] sm:$0xff]
  %v3233 = vld [vmem:[%s1 + $0x6318] sm:$0xff]
  %v3234 = vld [vmem:[%s1 + $0x6320] sm:$0xff]
  %v3235 = vld [vmem:[%s1 + $0x6328] sm:$0xff]
  %v3236 = vld [vmem:[%s1 + $0x6330] sm:$0xff]
  %v3237 = vld [vmem:[%s1 + $0x6338] sm:$0xff]
  %v3238 = vld [vmem:[%s1 + $0x6340] sm:$0xff]
  %v3239 = vld [vmem:[%s1 + $0x6348] sm:$0xff]
  %v3240 = vld [vmem:[%s1 + $0x6350] sm:$0xff]
  %v3241 = vld [vmem:[%s1 + $0x6358] sm:$0xff]
  %v3242 = vld [vmem:[%s1 + $0x6360] sm:$0xff]
  %v3243 = vld [vmem:[%s1 + $0x6368] sm:$0xff]
  %v3244 = vld [vmem:[%s1 + $0x6370] sm:$0xff]
  %v3245 = vld [vmem:[%s1 + $0x6378] sm:$0xff]
  %v3246 = vld [vmem:[%s1 + $0x6380] sm:$0xff]
  %v3247 = vld [vmem:[%s1 + $0x6388] sm:$0xff]
  %v3248 = vld [vmem:[%s1 + $0x6390] sm:$0xff]
  %v3249 = vld [vmem:[%s1 + $0x6398] sm:$0xff]
  %v3250 = vld [vmem:[%s1 + $0x63a0] sm:$0xff]
  %v3251 = vld [vmem:[%s1 + $0x63a8] sm:$0xff]
  %v3252 = vld [vmem:[%s1 + $0x63b0] sm:$0xff]
  %v3253 = vld [vmem:[%s1 + $0x63b8] sm:$0xff]
  %v3254 = vld [vmem:[%s1 + $0x63c0] sm:$0xff]
  %v3255 = vld [vmem:[%s1 + $0x63c8] sm:$0xff]
  %v3256 = vld [vmem:[%s1 + $0x63d0] sm:$0xff]
  %v3257 = vld [vmem:[%s1 + $0x63d8] sm:$0xff]
  %v3258 = vld [vmem:[%s1 + $0x63e0] sm:$0xff]
  %v3259 = vld [vmem:[%s1 + $0x63e8] sm:$0xff]
  %v3260 = vld [vmem:[%s1 + $0x63f0] sm:$0xff]
  %v3261 = vld [vmem:[%s1 + $0x63f8] sm:$0xff]
  %v3262 = vld [vmem:[%s1 + $0x6400] sm:$0xff]
  %v3263 = vld [vmem:[%s1 + $0x6408] sm:$0xff]
  %v3264 = vld [vmem:[%s1 + $0x6410] sm:$0xff]
  %v3265 = vld [vmem:[%s1 + $0x6418] sm:$0xff]
  %v3266 = vld [vmem:[%s1 + $0x6420] sm:$0xff]
  %v3267 = vld [vmem:[%s1 + $0x6428] sm:$0xff]
  %v3268 = vld [vmem:[%s1 + $0x6430] sm:$0xff]
  %v3269 = vld [vmem:[%s1 + $0x6438] sm:$0xff]
  %v3270 = vld [vmem:[%s1 + $0x6440] sm:$0xff]
  %v3271 = vld [vmem:[%s1 + $0x6448] sm:$0xff]
  %v3272 = vld [vmem:[%s1 + $0x6450] sm:$0xff]
  %v3273 = vld [vmem:[%s1 + $0x6458] sm:$0xff]
  %v3274 = vld [vmem:[%s1 + $0x6460] sm:$0xff]
  %v3275 = vld [vmem:[%s1 + $0x6468] sm:$0xff]
  %v3276 = vld [vmem:[%s1 + $0x6470] sm:$0xff]
  %v3277 = vld [vmem:[%s1 + $0x6478] sm:$0xff]
  %v3278 = vld [vmem:[%s1 + $0x6480] sm:$0xff]
  %v3279 = vld [vmem:[%s1 + $0x6488] sm:$0xff]
  %v3280 = vld [vmem:[%s1 + $0x6490] sm:$0xff]
  %v3281 = vld [vmem:[%s1 + $0x6498] sm:$0xff]
  %v3282 = vld [vmem:[%s1 + $0x64a0] sm:$0xff]
  %v3283 = vld [vmem:[%s1 + $0x64a8] sm:$0xff]
  %v3284 = vld [vmem:[%s1 + $0x64b0] sm:$0xff]
  %v3285 = vld [vmem:[%s1 + $0x64b8] sm:$0xff]
  %v3286 = vld [vmem:[%s1 + $0x64c0] sm:$0xff]
  %v3287 = vld [vmem:[%s1 + $0x64c8] sm:$0xff]
  %v3288 = vld [vmem:[%s1 + $0x64d0] sm:$0xff]
  %v3289 = vld [vmem:[%s1 + $0x64d8] sm:$0xff]
  %v3290 = vld [vmem:[%s1 + $0x64e0] sm:$0xff]
  %v3291 = vld [vmem:[%s1 + $0x64e8] sm:$0xff]
  %v3292 = vld [vmem:[%s1 + $0x64f0] sm:$0xff]
  %v3293 = vld [vmem:[%s1 + $0x64f8] sm:$0xff]
  %v3294 = vld [vmem:[%s1 + $0x6500] sm:$0xff]
  %v3295 = vld [vmem:[%s1 + $0x6508] sm:$0xff]
  %v3296 = vld [vmem:[%s1 + $0x6510] sm:$0xff]
  %v3297 = vld [vmem:[%s1 + $0x6518] sm:$0xff]
  %v3298 = vld [vmem:[%s1 + $0x6520] sm:$0xff]
  %v3299 = vld [vmem:[%s1 + $0x6528] sm:$0xff]
  %v3300 = vld [vmem:[%s1 + $0x6530] sm:$0xff]
  %v3301 = vld [vmem:[%s1 + $0x6538] sm:$0xff]
  %v3302 = vld [vmem:[%s1 + $0x6540] sm:$0xff]
  %v3303 = vld [vmem:[%s1 + $0x6548] sm:$0xff]
  %v3304 = vld [vmem:[%s1 + $0x6550] sm:$0xff]
  %v3305 = vld [vmem:[%s1 + $0x6558] sm:$0xff]
  %v3306 = vld [vmem:[%s1 + $0x6560] sm:$0xff]
  %v3307 = vld [vmem:[%s1 + $0x6568] sm:$0xff]
  %v3308 = vld [vmem:[%s1 + $0x6570] sm:$0xff]
  %v3309 = vld [vmem:[%s1 + $0x6578] sm:$0xff]
  %v3310 = vld [vmem:[%s1 + $0x6580] sm:$0xff]
  %v3311 = vld [vmem:[%s1 + $0x6588] sm:$0xff]
  %v3312 = vld [vmem:[%s1 + $0x6590] sm:$0xff]
  %v3313 = vld [vmem:[%s1 + $0x6598] sm:$0xff]
  %v3314 = vld [vmem:[%s1 + $0x65a0] sm:$0xff]
  %v3315 = vld [vmem:[%s1 + $0x65a8] sm:$0xff]
  %v3316 = vld [vmem:[%s1 + $0x65b0] sm:$0xff]
  %v3317 = vld [vmem:[%s1 + $0x65b8] sm:$0xff]
  %v3318 = vld [vmem:[%s1 + $0x65c0] sm:$0xff]
  %v3319 = vld [vmem:[%s1 + $0x65c8] sm:$0xff]
  %v3320 = vld [vmem:[%s1 + $0x65d0] sm:$0xff]
  %v3321 = vld [vmem:[%s1 + $0x65d8] sm:$0xff]
  %v3322 = vld [vmem:[%s1 + $0x65e0] sm:$0xff]
  %v3323 = vld [vmem:[%s1 + $0x65e8] sm:$0xff]
  %v3324 = vld [vmem:[%s1 + $0x65f0] sm:$0xff]
  %v3325 = vld [vmem:[%s1 + $0x65f8] sm:$0xff]
  %v3326 = vld [vmem:[%s1 + $0x6600] sm:$0xff]
  %v3327 = vld [vmem:[%s1 + $0x6608] sm:$0xff]
  %v3328 = vld [vmem:[%s1 + $0x6610] sm:$0xff]
  %v3329 = vld [vmem:[%s1 + $0x6618] sm:$0xff]
  %v3330 = vld [vmem:[%s1 + $0x6620] sm:$0xff]
  %v3331 = vld [vmem:[%s1 + $0x6628] sm:$0xff]
  %v3332 = vld [vmem:[%s1 + $0x6630] sm:$0xff]
  %v3333 = vld [vmem:[%s1 + $0x6638] sm:$0xff]
  %v3334 = vld [vmem:[%s1 + $0x6640] sm:$0xff]
  %v3335 = vld [vmem:[%s1 + $0x6648] sm:$0xff]
  %v3336 = vld [vmem:[%s1 + $0x6650] sm:$0xff]
  %v3337 = vld [vmem:[%s1 + $0x6658] sm:$0xff]
  %v3338 = vld [vmem:[%s1 + $0x6660] sm:$0xff]
  %v3339 = vld [vmem:[%s1 + $0x6668] sm:$0xff]
  %v3340 = vld [vmem:[%s1 + $0x6670] sm:$0xff]
  %v3341 = vld [vmem:[%s1 + $0x6678] sm:$0xff]
  %v3342 = vld [vmem:[%s1 + $0x6680] sm:$0xff]
  %v3343 = vld [vmem:[%s1 + $0x6688] sm:$0xff]
  %v3344 = vld [vmem:[%s1 + $0x6690] sm:$0xff]
  %v3345 = vld [vmem:[%s1 + $0x6698] sm:$0xff]
  %v3346 = vld [vmem:[%s1 + $0x66a0] sm:$0xff]
  %v3347 = vld [vmem:[%s1 + $0x66a8] sm:$0xff]
  %v3348 = vld [vmem:[%s1 + $0x66b0] sm:$0xff]
  %v3349 = vld [vmem:[%s1 + $0x66b8] sm:$0xff]
  %v3350 = vld [vmem:[%s1 + $0x66c0] sm:$0xff]
  %v3351 = vld [vmem:[%s1 + $0x66c8] sm:$0xff]
  %v3352 = vld [vmem:[%s1 + $0x66d0] sm:$0xff]
  %v3353 = vld [vmem:[%s1 + $0x66d8] sm:$0xff]
  %v3354 = vld [vmem:[%s1 + $0x66e0] sm:$0xff]
  %v3355 = vld [vmem:[%s1 + $0x66e8] sm:$0xff]
  %v3356 = vld [vmem:[%s1 + $0x66f0] sm:$0xff]
  %v3357 = vld [vmem:[%s1 + $0x66f8] sm:$0xff]
  %v3358 = vld [vmem:[%s1 + $0x6700] sm:$0xff]
  %v3359 = vld [vmem:[%s1 + $0x6708] sm:$0xff]
  %v3360 = vld [vmem:[%s1 + $0x6710] sm:$0xff]
  %v3361 = vld [vmem:[%s1 + $0x6718] sm:$0xff]
  %v3362 = vld [vmem:[%s1 + $0x6720] sm:$0xff]
  %v3363 = vld [vmem:[%s1 + $0x6728] sm:$0xff]
  %v3364 = vld [vmem:[%s1 + $0x6730] sm:$0xff]
  %v3365 = vld [vmem:[%s1 + $0x6738] sm:$0xff]
  %v3366 = vld [vmem:[%s1 + $0x6740] sm:$0xff]
  %v3367 = vld [vmem:[%s1 + $0x6748] sm:$0xff]
  %v3368 = vld [vmem:[%s1 + $0x6750] sm:$0xff]
  %v3369 = vld [vmem:[%s1 + $0x6758] sm:$0xff]
  %v3370 = vld [vmem:[%s1 + $0x6760] sm:$0xff]
  %v3371 = vld [vmem:[%s1 + $0x6768] sm:$0xff]
  %v3372 = vld [vmem:[%s1 + $0x6770] sm:$0xff]
  %v3373 = vld [vmem:[%s1 + $0x6778] sm:$0xff]
  %v3374 = vld [vmem:[%s1 + $0x6780] sm:$0xff]
  %v3375 = vld [vmem:[%s1 + $0x6788] sm:$0xff]
  %v3376 = vld [vmem:[%s1 + $0x6790] sm:$0xff]
  %v3377 = vld [vmem:[%s1 + $0x6798] sm:$0xff]
  %v3378 = vld [vmem:[%s1 + $0x67a0] sm:$0xff]
  %v3379 = vld [vmem:[%s1 + $0x67a8] sm:$0xff]
  %v3380 = vld [vmem:[%s1 + $0x67b0] sm:$0xff]
  %v3381 = vld [vmem:[%s1 + $0x67b8] sm:$0xff]
  %v3382 = vld [vmem:[%s1 + $0x67c0] sm:$0xff]
  %v3383 = vld [vmem:[%s1 + $0x67c8] sm:$0xff]
  %v3384 = vld [vmem:[%s1 + $0x67d0] sm:$0xff]
  %v3385 = vld [vmem:[%s1 + $0x67d8] sm:$0xff]
  %v3386 = vld [vmem:[%s1 + $0x67e0] sm:$0xff]
  %v3387 = vld [vmem:[%s1 + $0x67e8] sm:$0xff]
  %v3388 = vld [vmem:[%s1 + $0x67f0] sm:$0xff]
  %v3389 = vld [vmem:[%s1 + $0x67f8] sm:$0xff]
  %v3390 = vld [vmem:[%s1 + $0x6800] sm:$0xff]
  %v3391 = vld [vmem:[%s1 + $0x6808] sm:$0xff]
  %v3392 = vld [vmem:[%s1 + $0x6810] sm:$0xff]
  %v3393 = vld [vmem:[%s1 + $0x6818] sm:$0xff]
  %v3394 = vld [vmem:[%s1 + $0x6820] sm:$0xff]
  %v3395 = vld [vmem:[%s1 + $0x6828] sm:$0xff]
  %v3396 = vld [vmem:[%s1 + $0x6830] sm:$0xff]
  %v3397 = vld [vmem:[%s1 + $0x6838] sm:$0xff]
  %v3398 = vld [vmem:[%s1 + $0x6840] sm:$0xff]
  %v3399 = vld [vmem:[%s1 + $0x6848] sm:$0xff]
  %v3400 = vld [vmem:[%s1 + $0x6850] sm:$0xff]
  %v3401 = vld [vmem:[%s1 + $0x6858] sm:$0xff]
  %v3402 = vld [vmem:[%s1 + $0x6860] sm:$0xff]
  %v3403 = vld [vmem:[%s1 + $0x6868] sm:$0xff]
  %v3404 = vld [vmem:[%s1 + $0x6870] sm:$0xff]
  %v3405 = vld [vmem:[%s1 + $0x6878] sm:$0xff]
  %v3406 = vld [vmem:[%s1 + $0x6880] sm:$0xff]
  %v3407 = vld [vmem:[%s1 + $0x6888] sm:$0xff]
  %v3408 = vld [vmem:[%s1 + $0x6890] sm:$0xff]
  %v3409 = vld [vmem:[%s1 + $0x6898] sm:$0xff]
  %v3410 = vld [vmem:[%s1 + $0x68a0] sm:$0xff]
  %v3411 = vld [vmem:[%s1 + $0x68a8] sm:$0xff]
  %v3412 = vld [vmem:[%s1 + $0x68b0] sm:$0xff]
  %v3413 = vld [vmem:[%s1 + $0x68b8] sm:$0xff]
  %v3414 = vld [vmem:[%s1 + $0x68c0] sm:$0xff]
  %v3415 = vld [vmem:[%s1 + $0x68c8] sm:$0xff]
  %v3416 = vld [vmem:[%s1 + $0x68d0] sm:$0xff]
  %v3417 = vld [vmem:[%s1 + $0x68d8] sm:$0xff]
  %v3418 = vld [vmem:[%s1 + $0x68e0] sm:$0xff]
  %v3419 = vld [vmem:[%s1 + $0x68e8] sm:$0xff]
  %v3420 = vld [vmem:[%s1 + $0x68f0] sm:$0xff]
  %v3421 = vld [vmem:[%s1 + $0x68f8] sm:$0xff]
  %v3422 = vld [vmem:[%s1 + $0x6900] sm:$0xff]
  %v3423 = vld [vmem:[%s1 + $0x6908] sm:$0xff]
  %v3424 = vld [vmem:[%s1 + $0x6910] sm:$0xff]
  %v3425 = vld [vmem:[%s1 + $0x6918] sm:$0xff]
  %v3426 = vld [vmem:[%s1 + $0x6920] sm:$0xff]
  %v3427 = vld [vmem:[%s1 + $0x6928] sm:$0xff]
  %v3428 = vld [vmem:[%s1 + $0x6930] sm:$0xff]
  %v3429 = vld [vmem:[%s1 + $0x6938] sm:$0xff]
  %v3430 = vld [vmem:[%s1 + $0x6940] sm:$0xff]
  %v3431 = vld [vmem:[%s1 + $0x6948] sm:$0xff]
  %v3432 = vld [vmem:[%s1 + $0x6950] sm:$0xff]
  %v3433 = vld [vmem:[%s1 + $0x6958] sm:$0xff]
  %v3434 = vld [vmem:[%s1 + $0x6960] sm:$0xff]
  %v3435 = vld [vmem:[%s1 + $0x6968] sm:$0xff]
  %v3436 = vld [vmem:[%s1 + $0x6970] sm:$0xff]
  %v3437 = vld [vmem:[%s1 + $0x6978] sm:$0xff]
  %v3438 = vld [vmem:[%s1 + $0x6980] sm:$0xff]
  %v3439 = vld [vmem:[%s1 + $0x6988] sm:$0xff]
  %v3440 = vld [vmem:[%s1 + $0x6990] sm:$0xff]
  %v3441 = vld [vmem:[%s1 + $0x6998] sm:$0xff]
  %v3442 = vld [vmem:[%s1 + $0x69a0] sm:$0xff]
  %v3443 = vld [vmem:[%s1 + $0x69a8] sm:$0xff]
  %v3444 = vld [vmem:[%s1 + $0x69b0] sm:$0xff]
  %v3445 = vld [vmem:[%s1 + $0x69b8] sm:$0xff]
  %v3446 = vld [vmem:[%s1 + $0x69c0] sm:$0xff]
  %v3447 = vld [vmem:[%s1 + $0x69c8] sm:$0xff]
  %v3448 = vld [vmem:[%s1 + $0x69d0] sm:$0xff]
  %v3449 = vld [vmem:[%s1 + $0x69d8] sm:$0xff]
  %v3450 = vld [vmem:[%s1 + $0x69e0] sm:$0xff]
  %v3451 = vld [vmem:[%s1 + $0x69e8] sm:$0xff]
  %v3452 = vld [vmem:[%s1 + $0x69f0] sm:$0xff]
  %v3453 = vld [vmem:[%s1 + $0x69f8] sm:$0xff]
  %v3454 = vld [vmem:[%s1 + $0x6a00] sm:$0xff]
  %v3455 = vld [vmem:[%s1 + $0x6a08] sm:$0xff]
  %v3456 = vld [vmem:[%s1 + $0x6a10] sm:$0xff]
  %v3457 = vld [vmem:[%s1 + $0x6a18] sm:$0xff]
  %v3458 = vld [vmem:[%s1 + $0x6a20] sm:$0xff]
  %v3459 = vld [vmem:[%s1 + $0x6a28] sm:$0xff]
  %v3460 = vld [vmem:[%s1 + $0x6a30] sm:$0xff]
  %v3461 = vld [vmem:[%s1 + $0x6a38] sm:$0xff]
  %v3462 = vld [vmem:[%s1 + $0x6a40] sm:$0xff]
  %v3463 = vld [vmem:[%s1 + $0x6a48] sm:$0xff]
  %v3464 = vld [vmem:[%s1 + $0x6a50] sm:$0xff]
  %v3465 = vld [vmem:[%s1 + $0x6a58] sm:$0xff]
  %v3466 = vld [vmem:[%s1 + $0x6a60] sm:$0xff]
  %v3467 = vld [vmem:[%s1 + $0x6a68] sm:$0xff]
  %v3468 = vld [vmem:[%s1 + $0x6a70] sm:$0xff]
  %v3469 = vld [vmem:[%s1 + $0x6a78] sm:$0xff]
  %v3470 = vld [vmem:[%s1 + $0x6a80] sm:$0xff]
  %v3471 = vld [vmem:[%s1 + $0x6a88] sm:$0xff]
  %v3472 = vld [vmem:[%s1 + $0x6a90] sm:$0xff]
  %v3473 = vld [vmem:[%s1 + $0x6a98] sm:$0xff]
  %v3474 = vld [vmem:[%s1 + $0x6aa0] sm:$0xff]
  %v3475 = vld [vmem:[%s1 + $0x6aa8] sm:$0xff]
  %v3476 = vld [vmem:[%s1 + $0x6ab0] sm:$0xff]
  %v3477 = vld [vmem:[%s1 + $0x6ab8] sm:$0xff]
  %v3478 = vld [vmem:[%s1 + $0x6ac0] sm:$0xff]
  %v3479 = vld [vmem:[%s1 + $0x6ac8] sm:$0xff]
  %v3480 = vld [vmem:[%s1 + $0x6ad0] sm:$0xff]
  %v3481 = vld [vmem:[%s1 + $0x6ad8] sm:$0xff]
  %v3482 = vld [vmem:[%s1 + $0x6ae0] sm:$0xff]
  %v3483 = vld [vmem:[%s1 + $0x6ae8] sm:$0xff]
  %v3484 = vld [vmem:[%s1 + $0x6af0] sm:$0xff]
  %v3485 = vld [vmem:[%s1 + $0x6af8] sm:$0xff]
  %v3486 = vld [vmem:[%s1 + $0x6b00] sm:$0xff]
  %v3487 = vld [vmem:[%s1 + $0x6b08] sm:$0xff]
  %v3488 = vld [vmem:[%s1 + $0x6b10] sm:$0xff]
  %v3489 = vld [vmem:[%s1 + $0x6b18] sm:$0xff]
  %v3490 = vld [vmem:[%s1 + $0x6b20] sm:$0xff]
  %v3491 = vld [vmem:[%s1 + $0x6b28] sm:$0xff]
  %v3492 = vld [vmem:[%s1 + $0x6b30] sm:$0xff]
  %v3493 = vld [vmem:[%s1 + $0x6b38] sm:$0xff]
  %v3494 = vld [vmem:[%s1 + $0x6b40] sm:$0xff]
  %v3495 = vld [vmem:[%s1 + $0x6b48] sm:$0xff]
  %v3496 = vld [vmem:[%s1 + $0x6b50] sm:$0xff]
  %v3497 = vld [vmem:[%s1 + $0x6b58] sm:$0xff]
  %v3498 = vld [vmem:[%s1 + $0x6b60] sm:$0xff]
  %v3499 = vld [vmem:[%s1 + $0x6b68] sm:$0xff]
  %v3500 = vld [vmem:[%s1 + $0x6b70] sm:$0xff]
  %v3501 = vld [vmem:[%s1 + $0x6b78] sm:$0xff]
  %v3502 = vld [vmem:[%s1 + $0x6b80] sm:$0xff]
  %v3503 = vld [vmem:[%s1 + $0x6b88] sm:$0xff]
  %v3504 = vld [vmem:[%s1 + $0x6b90] sm:$0xff]
  %v3505 = vld [vmem:[%s1 + $0x6b98] sm:$0xff]
  %v3506 = vld [vmem:[%s1 + $0x6ba0] sm:$0xff]
  %v3507 = vld [vmem:[%s1 + $0x6ba8] sm:$0xff]
  %v3508 = vld [vmem:[%s1 + $0x6bb0] sm:$0xff]
  %v3509 = vld [vmem:[%s1 + $0x6bb8] sm:$0xff]
  %v3510 = vld [vmem:[%s1 + $0x6bc0] sm:$0xff]
  %v3511 = vld [vmem:[%s1 + $0x6bc8] sm:$0xff]
  %v3512 = vld [vmem:[%s1 + $0x6bd0] sm:$0xff]
  %v3513 = vld [vmem:[%s1 + $0x6bd8] sm:$0xff]
  %v3514 = vld [vmem:[%s1 + $0x6be0] sm:$0xff]
  %v3515 = vld [vmem:[%s1 + $0x6be8] sm:$0xff]
  %v3516 = vld [vmem:[%s1 + $0x6bf0] sm:$0xff]
  %v3517 = vld [vmem:[%s1 + $0x6bf8] sm:$0xff]
  %v3518 = vld [vmem:[%s1 + $0x6c00] sm:$0xff]
  %v3519 = vld [vmem:[%s1 + $0x6c08] sm:$0xff]
  %v3520 = vld [vmem:[%s1 + $0x6c10] sm:$0xff]
  %v3521 = vld [vmem:[%s1 + $0x6c18] sm:$0xff]
  %v3522 = vld [vmem:[%s1 + $0x6c20] sm:$0xff]
  %v3523 = vld [vmem:[%s1 + $0x6c28] sm:$0xff]
  %v3524 = vld [vmem:[%s1 + $0x6c30] sm:$0xff]
  %v3525 = vld [vmem:[%s1 + $0x6c38] sm:$0xff]
  %v3526 = vld [vmem:[%s1 + $0x6c40] sm:$0xff]
  %v3527 = vld [vmem:[%s1 + $0x6c48] sm:$0xff]
  %v3528 = vld [vmem:[%s1 + $0x6c50] sm:$0xff]
  %v3529 = vld [vmem:[%s1 + $0x6c58] sm:$0xff]
  %v3530 = vld [vmem:[%s1 + $0x6c60] sm:$0xff]
  %v3531 = vld [vmem:[%s1 + $0x6c68] sm:$0xff]
  %v3532 = vld [vmem:[%s1 + $0x6c70] sm:$0xff]
  %v3533 = vld [vmem:[%s1 + $0x6c78] sm:$0xff]
  %v3534 = vld [vmem:[%s1 + $0x6c80] sm:$0xff]
  %v3535 = vld [vmem:[%s1 + $0x6c88] sm:$0xff]
  %v3536 = vld [vmem:[%s1 + $0x6c90] sm:$0xff]
  %v3537 = vld [vmem:[%s1 + $0x6c98] sm:$0xff]
  %v3538 = vld [vmem:[%s1 + $0x6ca0] sm:$0xff]
  %v3539 = vld [vmem:[%s1 + $0x6ca8] sm:$0xff]
  %v3540 = vld [vmem:[%s1 + $0x6cb0] sm:$0xff]
  %v3541 = vld [vmem:[%s1 + $0x6cb8] sm:$0xff]
  %v3542 = vld [vmem:[%s1 + $0x6cc0] sm:$0xff]
  %v3543 = vld [vmem:[%s1 + $0x6cc8] sm:$0xff]
  %v3544 = vld [vmem:[%s1 + $0x6cd0] sm:$0xff]
  %v3545 = vld [vmem:[%s1 + $0x6cd8] sm:$0xff]
  %v3546 = vld [vmem:[%s1 + $0x6ce0] sm:$0xff]
  %v3547 = vld [vmem:[%s1 + $0x6ce8] sm:$0xff]
  %v3548 = vld [vmem:[%s1 + $0x6cf0] sm:$0xff]
  %v3549 = vld [vmem:[%s1 + $0x6cf8] sm:$0xff]
  %v3550 = vld [vmem:[%s1 + $0x6d00] sm:$0xff]
  %v3551 = vld [vmem:[%s1 + $0x6d08] sm:$0xff]
  %v3552 = vld [vmem:[%s1 + $0x6d10] sm:$0xff]
  %v3553 = vld [vmem:[%s1 + $0x6d18] sm:$0xff]
  %v3554 = vld [vmem:[%s1 + $0x6d20] sm:$0xff]
  %v3555 = vld [vmem:[%s1 + $0x6d28] sm:$0xff]
  %v3556 = vld [vmem:[%s1 + $0x6d30] sm:$0xff]
  %v3557 = vld [vmem:[%s1 + $0x6d38] sm:$0xff]
  %v3558 = vld [vmem:[%s1 + $0x6d40] sm:$0xff]
  %v3559 = vld [vmem:[%s1 + $0x6d48] sm:$0xff]
  %v3560 = vld [vmem:[%s1 + $0x6d50] sm:$0xff]
  %v3561 = vld [vmem:[%s1 + $0x6d58] sm:$0xff]
  %v3562 = vld [vmem:[%s1 + $0x6d60] sm:$0xff]
  %v3563 = vld [vmem:[%s1 + $0x6d68] sm:$0xff]
  %v3564 = vld [vmem:[%s1 + $0x6d70] sm:$0xff]
  %v3565 = vld [vmem:[%s1 + $0x6d78] sm:$0xff]
  %v3566 = vld [vmem:[%s1 + $0x6d80] sm:$0xff]
  %v3567 = vld [vmem:[%s1 + $0x6d88] sm:$0xff]
  %v3568 = vld [vmem:[%s1 + $0x6d90] sm:$0xff]
  %v3569 = vld [vmem:[%s1 + $0x6d98] sm:$0xff]
  %v3570 = vld [vmem:[%s1 + $0x6da0] sm:$0xff]
  %v3571 = vld [vmem:[%s1 + $0x6da8] sm:$0xff]
  %v3572 = vld [vmem:[%s1 + $0x6db0] sm:$0xff]
  %v3573 = vld [vmem:[%s1 + $0x6db8] sm:$0xff]
  %v3574 = vld [vmem:[%s1 + $0x6dc0] sm:$0xff]
  %v3575 = vld [vmem:[%s1 + $0x6dc8] sm:$0xff]
  %v3576 = vld [vmem:[%s1 + $0x6dd0] sm:$0xff]
  %v3577 = vld [vmem:[%s1 + $0x6dd8] sm:$0xff]
  %v3578 = vld [vmem:[%s1 + $0x6de0] sm:$0xff]
  %v3579 = vld [vmem:[%s1 + $0x6de8] sm:$0xff]
  %v3580 = vld [vmem:[%s1 + $0x6df0] sm:$0xff]
  %v3581 = vld [vmem:[%s1 + $0x6df8] sm:$0xff]
  %v3582 = vld [vmem:[%s1 + $0x6e00] sm:$0xff]
  %v3583 = vld [vmem:[%s1 + $0x6e08] sm:$0xff]
  %v3584 = vld [vmem:[%s1 + $0x6e10] sm:$0xff]
  %v3585 = vld [vmem:[%s1 + $0x6e18] sm:$0xff]
  %v3586 = vld [vmem:[%s1 + $0x6e20] sm:$0xff]
  %v3587 = vld [vmem:[%s1 + $0x6e28] sm:$0xff]
  %v3588 = vld [vmem:[%s1 + $0x6e30] sm:$0xff]
  %v3589 = vld [vmem:[%s1 + $0x6e38] sm:$0xff]
  %v3590 = vld [vmem:[%s1 + $0x6e40] sm:$0xff]
  %v3591 = vld [vmem:[%s1 + $0x6e48] sm:$0xff]
  %v3592 = vld [vmem:[%s1 + $0x6e50] sm:$0xff]
  %v3593 = vld [vmem:[%s1 + $0x6e58] sm:$0xff]
  %v3594 = vld [vmem:[%s1 + $0x6e60] sm:$0xff]
  %v3595 = vld [vmem:[%s1 + $0x6e68] sm:$0xff]
  %v3596 = vld [vmem:[%s1 + $0x6e70] sm:$0xff]
  %v3597 = vld [vmem:[%s1 + $0x6e78] sm:$0xff]
  %v3598 = vld [vmem:[%s1 + $0x6e80] sm:$0xff]
  %v3599 = vld [vmem:[%s1 + $0x6e88] sm:$0xff]
  %v3600 = vld [vmem:[%s1 + $0x6e90] sm:$0xff]
  %v3601 = vld [vmem:[%s1 + $0x6e98] sm:$0xff]
  %v3602 = vld [vmem:[%s1 + $0x6ea0] sm:$0xff]
  %v3603 = vld [vmem:[%s1 + $0x6ea8] sm:$0xff]
  %v3604 = vld [vmem:[%s1 + $0x6eb0] sm:$0xff]
  %v3605 = vld [vmem:[%s1 + $0x6eb8] sm:$0xff]
  %v3606 = vld [vmem:[%s1 + $0x6ec0] sm:$0xff]
  %v3607 = vld [vmem:[%s1 + $0x6ec8] sm:$0xff]
  %v3608 = vld [vmem:[%s1 + $0x6ed0] sm:$0xff]
  %v3609 = vld [vmem:[%s1 + $0x6ed8] sm:$0xff]
  %v3610 = vld [vmem:[%s1 + $0x6ee0] sm:$0xff]
  %v3611 = vld [vmem:[%s1 + $0x6ee8] sm:$0xff]
  %v3612 = vld [vmem:[%s1 + $0x6ef0] sm:$0xff]
  %v3613 = vld [vmem:[%s1 + $0x6ef8] sm:$0xff]
  %v3614 = vld [vmem:[%s1 + $0x6f00] sm:$0xff]
  %v3615 = vld [vmem:[%s1 + $0x6f08] sm:$0xff]
  %v3616 = vld [vmem:[%s1 + $0x6f10] sm:$0xff]
  %v3617 = vld [vmem:[%s1 + $0x6f18] sm:$0xff]
  %v3618 = vld [vmem:[%s1 + $0x6f20] sm:$0xff]
  %v3619 = vld [vmem:[%s1 + $0x6f28] sm:$0xff]
  %v3620 = vld [vmem:[%s1 + $0x6f30] sm:$0xff]
  %v3621 = vld [vmem:[%s1 + $0x6f38] sm:$0xff]
  %v3622 = vld [vmem:[%s1 + $0x6f40] sm:$0xff]
  %v3623 = vld [vmem:[%s1 + $0x6f48] sm:$0xff]
  %v3624 = vld [vmem:[%s1 + $0x6f50] sm:$0xff]
  %v3625 = vld [vmem:[%s1 + $0x6f58] sm:$0xff]
  %v3626 = vld [vmem:[%s1 + $0x6f60] sm:$0xff]
  %v3627 = vld [vmem:[%s1 + $0x6f68] sm:$0xff]
  %v3628 = vld [vmem:[%s1 + $0x6f70] sm:$0xff]
  %v3629 = vld [vmem:[%s1 + $0x6f78] sm:$0xff]
  %v3630 = vld [vmem:[%s1 + $0x6f80] sm:$0xff]
  %v3631 = vld [vmem:[%s1 + $0x6f88] sm:$0xff]
  %v3632 = vld [vmem:[%s1 + $0x6f90] sm:$0xff]
  %v3633 = vld [vmem:[%s1 + $0x6f98] sm:$0xff]
  %v3634 = vld [vmem:[%s1 + $0x6fa0] sm:$0xff]
  %v3635 = vld [vmem:[%s1 + $0x6fa8] sm:$0xff]
  %v3636 = vld [vmem:[%s1 + $0x6fb0] sm:$0xff]
  %v3637 = vld [vmem:[%s1 + $0x6fb8] sm:$0xff]
  %v3638 = vld [vmem:[%s1 + $0x6fc0] sm:$0xff]
  %v3639 = vld [vmem:[%s1 + $0x6fc8] sm:$0xff]
  %v3640 = vld [vmem:[%s1 + $0x6fd0] sm:$0xff]
  %v3641 = vld [vmem:[%s1 + $0x6fd8] sm:$0xff]
  %v3642 = vld [vmem:[%s1 + $0x6fe0] sm:$0xff]
  %v3643 = vld [vmem:[%s1 + $0x6fe8] sm:$0xff]
  %v3644 = vld [vmem:[%s1 + $0x6ff0] sm:$0xff]
  %v3645 = vld [vmem:[%s1 + $0x6ff8] sm:$0xff]
  %v3646 = vld [vmem:[%s1 + $0x7000] sm:$0xff]
  %v3647 = vld [vmem:[%s1 + $0x7008] sm:$0xff]
  %v3648 = vld [vmem:[%s1 + $0x7010] sm:$0xff]
  %v3649 = vld [vmem:[%s1 + $0x7018] sm:$0xff]
  %v3650 = vld [vmem:[%s1 + $0x7020] sm:$0xff]
  %v3651 = vld [vmem:[%s1 + $0x7028] sm:$0xff]
  %v3652 = vld [vmem:[%s1 + $0x7030] sm:$0xff]
  %v3653 = vld [vmem:[%s1 + $0x7038] sm:$0xff]
  %v3654 = vld [vmem:[%s1 + $0x7040] sm:$0xff]
  %v3655 = vld [vmem:[%s1 + $0x7048] sm:$0xff]
  %v3656 = vld [vmem:[%s1 + $0x7050] sm:$0xff]
  %v3657 = vld [vmem:[%s1 + $0x7058] sm:$0xff]
  %v3658 = vld [vmem:[%s1 + $0x7060] sm:$0xff]
  %v3659 = vld [vmem:[%s1 + $0x7068] sm:$0xff]
  %v3660 = vld [vmem:[%s1 + $0x7070] sm:$0xff]
  %v3661 = vld [vmem:[%s1 + $0x7078] sm:$0xff]
  %v3662 = vld [vmem:[%s1 + $0x7080] sm:$0xff]
  %v3663 = vld [vmem:[%s1 + $0x7088] sm:$0xff]
  %v3664 = vld [vmem:[%s1 + $0x7090] sm:$0xff]
  %v3665 = vld [vmem:[%s1 + $0x7098] sm:$0xff]
  %v3666 = vld [vmem:[%s1 + $0x70a0] sm:$0xff]
  %v3667 = vld [vmem:[%s1 + $0x70a8] sm:$0xff]
  %v3668 = vld [vmem:[%s1 + $0x70b0] sm:$0xff]
  %v3669 = vld [vmem:[%s1 + $0x70b8] sm:$0xff]
  %v3670 = vld [vmem:[%s1 + $0x70c0] sm:$0xff]
  %v3671 = vld [vmem:[%s1 + $0x70c8] sm:$0xff]
  %v3672 = vld [vmem:[%s1 + $0x70d0] sm:$0xff]
  %v3673 = vld [vmem:[%s1 + $0x70d8] sm:$0xff]
  %v3674 = vld [vmem:[%s1 + $0x70e0] sm:$0xff]
  %v3675 = vld [vmem:[%s1 + $0x70e8] sm:$0xff]
  %v3676 = vld [vmem:[%s1 + $0x70f0] sm:$0xff]
  %v3677 = vld [vmem:[%s1 + $0x70f8] sm:$0xff]
  %v3678 = vld [vmem:[%s1 + $0x7100] sm:$0xff]
  %v3679 = vld [vmem:[%s1 + $0x7108] sm:$0xff]
  %v3680 = vld [vmem:[%s1 + $0x7110] sm:$0xff]
  %v3681 = vld [vmem:[%s1 + $0x7118] sm:$0xff]
  %v3682 = vld [vmem:[%s1 + $0x7120] sm:$0xff]
  %v3683 = vld [vmem:[%s1 + $0x7128] sm:$0xff]
  %v3684 = vld [vmem:[%s1 + $0x7130] sm:$0xff]
  %v3685 = vld [vmem:[%s1 + $0x7138] sm:$0xff]
  %v3686 = vld [vmem:[%s1 + $0x7140] sm:$0xff]
  %v3687 = vld [vmem:[%s1 + $0x7148] sm:$0xff]
  %v3688 = vld [vmem:[%s1 + $0x7150] sm:$0xff]
  %v3689 = vld [vmem:[%s1 + $0x7158] sm:$0xff]
  %v3690 = vld [vmem:[%s1 + $0x7160] sm:$0xff]
  %v3691 = vld [vmem:[%s1 + $0x7168] sm:$0xff]
  %v3692 = vld [vmem:[%s1 + $0x7170] sm:$0xff]
  %v3693 = vld [vmem:[%s1 + $0x7178] sm:$0xff]
  %v3694 = vld [vmem:[%s1 + $0x7180] sm:$0xff]
  %v3695 = vld [vmem:[%s1 + $0x7188] sm:$0xff]
  %v3696 = vld [vmem:[%s1 + $0x7190] sm:$0xff]
  %v3697 = vld [vmem:[%s1 + $0x7198] sm:$0xff]
  %v3698 = vld [vmem:[%s1 + $0x71a0] sm:$0xff]
  %v3699 = vld [vmem:[%s1 + $0x71a8] sm:$0xff]
  %v3700 = vld [vmem:[%s1 + $0x71b0] sm:$0xff]
  %v3701 = vld [vmem:[%s1 + $0x71b8] sm:$0xff]
  %v3702 = vld [vmem:[%s1 + $0x71c0] sm:$0xff]
  %v3703 = vld [vmem:[%s1 + $0x71c8] sm:$0xff]
  %v3704 = vld [vmem:[%s1 + $0x71d0] sm:$0xff]
  %v3705 = vld [vmem:[%s1 + $0x71d8] sm:$0xff]
  %v3706 = vld [vmem:[%s1 + $0x71e0] sm:$0xff]
  %v3707 = vld [vmem:[%s1 + $0x71e8] sm:$0xff]
  %v3708 = vld [vmem:[%s1 + $0x71f0] sm:$0xff]
  %v3709 = vld [vmem:[%s1 + $0x71f8] sm:$0xff]
  %v3710 = vld [vmem:[%s1 + $0x7200] sm:$0xff]
  %v3711 = vld [vmem:[%s1 + $0x7208] sm:$0xff]
  %v3712 = vld [vmem:[%s1 + $0x7210] sm:$0xff]
  %v3713 = vld [vmem:[%s1 + $0x7218] sm:$0xff]
  %v3714 = vld [vmem:[%s1 + $0x7220] sm:$0xff]
  %v3715 = vld [vmem:[%s1 + $0x7228] sm:$0xff]
  %v3716 = vld [vmem:[%s1 + $0x7230] sm:$0xff]
  %v3717 = vld [vmem:[%s1 + $0x7238] sm:$0xff]
  %v3718 = vld [vmem:[%s1 + $0x7240] sm:$0xff]
  %v3719 = vld [vmem:[%s1 + $0x7248] sm:$0xff]
  %v3720 = vld [vmem:[%s1 + $0x7250] sm:$0xff]
  %v3721 = vld [vmem:[%s1 + $0x7258] sm:$0xff]
  %v3722 = vld [vmem:[%s1 + $0x7260] sm:$0xff]
  %v3723 = vld [vmem:[%s1 + $0x7268] sm:$0xff]
  %v3724 = vld [vmem:[%s1 + $0x7270] sm:$0xff]
  %v3725 = vld [vmem:[%s1 + $0x7278] sm:$0xff]
  %v3726 = vld [vmem:[%s1 + $0x7280] sm:$0xff]
  %v3727 = vld [vmem:[%s1 + $0x7288] sm:$0xff]
  %v3728 = vld [vmem:[%s1 + $0x7290] sm:$0xff]
  %v3729 = vld [vmem:[%s1 + $0x7298] sm:$0xff]
  %v3730 = vld [vmem:[%s1 + $0x72a0] sm:$0xff]
  %v3731 = vld [vmem:[%s1 + $0x72a8] sm:$0xff]
  %v3732 = vld [vmem:[%s1 + $0x72b0] sm:$0xff]
  %v3733 = vld [vmem:[%s1 + $0x72b8] sm:$0xff]
  %v3734 = vld [vmem:[%s1 + $0x72c0] sm:$0xff]
  %v3735 = vld [vmem:[%s1 + $0x72c8] sm:$0xff]
  %v3736 = vld [vmem:[%s1 + $0x72d0] sm:$0xff]
  %v3737 = vld [vmem:[%s1 + $0x72d8] sm:$0xff]
  %v3738 = vld [vmem:[%s1 + $0x72e0] sm:$0xff]
  %v3739 = vld [vmem:[%s1 + $0x72e8] sm:$0xff]
  %v3740 = vld [vmem:[%s1 + $0x72f0] sm:$0xff]
  %v3741 = vld [vmem:[%s1 + $0x72f8] sm:$0xff]
  %v3742 = vld [vmem:[%s1 + $0x7300] sm:$0xff]
  %v3743 = vld [vmem:[%s1 + $0x7308] sm:$0xff]
  %v3744 = vld [vmem:[%s1 + $0x7310] sm:$0xff]
  %v3745 = vld [vmem:[%s1 + $0x7318] sm:$0xff]
  %v3746 = vld [vmem:[%s1 + $0x7320] sm:$0xff]
  %v3747 = vld [vmem:[%s1 + $0x7328] sm:$0xff]
  %v3748 = vld [vmem:[%s1 + $0x7330] sm:$0xff]
  %v3749 = vld [vmem:[%s1 + $0x7338] sm:$0xff]
  %v3750 = vld [vmem:[%s1 + $0x7340] sm:$0xff]
  %v3751 = vld [vmem:[%s1 + $0x7348] sm:$0xff]
  %v3752 = vld [vmem:[%s1 + $0x7350] sm:$0xff]
  %v3753 = vld [vmem:[%s1 + $0x7358] sm:$0xff]
  %v3754 = vld [vmem:[%s1 + $0x7360] sm:$0xff]
  %v3755 = vld [vmem:[%s1 + $0x7368] sm:$0xff]
  %v3756 = vld [vmem:[%s1 + $0x7370] sm:$0xff]
  %v3757 = vld [vmem:[%s1 + $0x7378] sm:$0xff]
  %v3758 = vld [vmem:[%s1 + $0x7380] sm:$0xff]
  %v3759 = vld [vmem:[%s1 + $0x7388] sm:$0xff]
  %v3760 = vld [vmem:[%s1 + $0x7390] sm:$0xff]
  %v3761 = vld [vmem:[%s1 + $0x7398] sm:$0xff]
  %v3762 = vld [vmem:[%s1 + $0x73a0] sm:$0xff]
  %v3763 = vld [vmem:[%s1 + $0x73a8] sm:$0xff]
  %v3764 = vld [vmem:[%s1 + $0x73b0] sm:$0xff]
  %v3765 = vld [vmem:[%s1 + $0x73b8] sm:$0xff]
  %v3766 = vld [vmem:[%s1 + $0x73c0] sm:$0xff]
  %v3767 = vld [vmem:[%s1 + $0x73c8] sm:$0xff]
  %v3768 = vld [vmem:[%s1 + $0x73d0] sm:$0xff]
  %v3769 = vld [vmem:[%s1 + $0x73d8] sm:$0xff]
  %v3770 = vld [vmem:[%s1 + $0x73e0] sm:$0xff]
  %v3771 = vld [vmem:[%s1 + $0x73e8] sm:$0xff]
  %v3772 = vld [vmem:[%s1 + $0x73f0] sm:$0xff]
  %v3773 = vld [vmem:[%s1 + $0x73f8] sm:$0xff]
  %v3774 = vld [vmem:[%s1 + $0x7400] sm:$0xff]
  %v3775 = vld [vmem:[%s1 + $0x7408] sm:$0xff]
  %v3776 = vld [vmem:[%s1 + $0x7410] sm:$0xff]
  %v3777 = vld [vmem:[%s1 + $0x7418] sm:$0xff]
  %v3778 = vld [vmem:[%s1 + $0x7420] sm:$0xff]
  %v3779 = vld [vmem:[%s1 + $0x7428] sm:$0xff]
  %v3780 = vld [vmem:[%s1 + $0x7430] sm:$0xff]
  %v3781 = vld [vmem:[%s1 + $0x7438] sm:$0xff]
  %v3782 = vld [vmem:[%s1 + $0x7440] sm:$0xff]
  %v3783 = vld [vmem:[%s1 + $0x7448] sm:$0xff]
  %v3784 = vld [vmem:[%s1 + $0x7450] sm:$0xff]
  %v3785 = vld [vmem:[%s1 + $0x7458] sm:$0xff]
  %v3786 = vld [vmem:[%s1 + $0x7460] sm:$0xff]
  %v3787 = vld [vmem:[%s1 + $0x7468] sm:$0xff]
  %v3788 = vld [vmem:[%s1 + $0x7470] sm:$0xff]
  %v3789 = vld [vmem:[%s1 + $0x7478] sm:$0xff]
  %v3790 = vld [vmem:[%s1 + $0x7480] sm:$0xff]
  %v3791 = vld [vmem:[%s1 + $0x7488] sm:$0xff]
  %v3792 = vld [vmem:[%s1 + $0x7490] sm:$0xff]
  %v3793 = vld [vmem:[%s1 + $0x7498] sm:$0xff]
  %v3794 = vld [vmem:[%s1 + $0x74a0] sm:$0xff]
  %v3795 = vld [vmem:[%s1 + $0x74a8] sm:$0xff]
  %v3796 = vld [vmem:[%s1 + $0x74b0] sm:$0xff]
  %v3797 = vld [vmem:[%s1 + $0x74b8] sm:$0xff]
  %v3798 = vld [vmem:[%s1 + $0x74c0] sm:$0xff]
  %v3799 = vld [vmem:[%s1 + $0x74c8] sm:$0xff]
  %v3800 = vld [vmem:[%s1 + $0x74d0] sm:$0x7]
  %v3801 = vld [vmem:[%s1 + $0x74d8] sm:$0x7]
  %v3802 = vld [vmem:[%s1 + $0x74e0] sm:$0x7]
  %v3803 = vld [vmem:[%s1 + $0x74e8] sm:$0x7]
  %v3804 = vld [vmem:[%s1 + $0x74f0] sm:$0x7]
  %v3805 = vld [vmem:[%s1 + $0x74f8] sm:$0x7]
  %v3806 = vld [vmem:[%s1 + $0x7500] sm:$0x7]
  %v3807 = vld [vmem:[%s2] sm:$0x7f]
  %v3809 = vlaneseq
  %v3810 = vshrl.u32 %v3809, 7
  %v3811 = vsub.s32 0, %v3810
  %v3812 = vrot.slane %v3807, %v3811
  %v3813 = vlaneseq
  %v3814 = vshrl.u32 %v3813, 7
  %v3815 = vsub.s32 1, %v3814
  %v3816 = vrot.slane %v3807, %v3815
  %v3817 = vlaneseq
  %v3818 = vshrl.u32 %v3817, 7
  %v3819 = vsub.s32 2, %v3818
  %v3820 = vrot.slane %v3807, %v3819
  %v3821 = vlaneseq
  %v3822 = vshrl.u32 %v3821, 7
  %v3823 = vsub.s32 3, %v3822
  %v3824 = vrot.slane %v3807, %v3823
  %v3825 = vlaneseq
  %v3826 = vshrl.u32 %v3825, 7
  %v3827 = vsub.s32 4, %v3826
  %v3828 = vrot.slane %v3807, %v3827
  %v3829 = vlaneseq
  %v3830 = vshrl.u32 %v3829, 7
  %v3831 = vsub.s32 5, %v3830
  %v3832 = vrot.slane %v3807, %v3831
  %v3833 = vlaneseq
  %v3834 = vshrl.u32 %v3833, 7
  %v3835 = vsub.s32 6, %v3834
  %v3836 = vrot.slane %v3807, %v3835
  %vm3844 = vcmask 416768
  %v3846 = vsel %vm3844, %v61, 0
  %vm3848 = vcmask 1042432
  %v3850 = vsel %vm3848, %v3800, 0
  %v3853 = vsel %vm3848, %v3801, 0
  %v3856 = vsel %vm3848, %v3802, 0
  %v3859 = vsel %vm3848, %v3803, 0
  %v3862 = vsel %vm3848, %v3804, 0
  %v3865 = vsel %vm3848, %v3805, 0
  %v3868 = vsel %vm3848, %v3806, 0
  %3870 = vmatprep.subr.mxu0 %v168
  %3871 = vmatpush1.msra.mxu0 %v167
  %3872 = vmatprep.subr.mxu0 %v161
  %3873 = vmatpush1.msra.mxu0 %v160
  %3874 = vmatprep.subr.mxu0 %v154
  %3875 = vmatpush1.msra.mxu0 %v153
  %3876 = vmatprep.subr.mxu0 %v147
  %3877 = vmatpush1.msra.mxu0 %v146
  %3878 = vmatprep.subr.mxu0 %v140
  %3879 = vmatpush1.msra.mxu0 %v139
  %3880 = vmatprep.subr.mxu0 %v133
  %3881 = vmatpush1.msra.mxu0 %v132
  %3882 = vmatprep.subr.mxu0 %v126
  %3883 = vmatpush1.msra.mxu0 %v125
  %3884 = vmatprep.subr.mxu0 %v119
  %3885 = vmatpush1.msra.mxu0 %v118
  %3886 = vmatprep.subr.mxu0 %v112
  %3887 = vmatpush1.msra.mxu0 %v111
  %3888 = vmatprep.subr.mxu0 %v105
  %3889 = vmatpush1.msra.mxu0 %v104
  %3890 = vmatprep.subr.mxu0 %v98
  %3891 = vmatpush1.msra.mxu0 %v97
  %3892 = vmatprep.subr.mxu0 %v91
  %3893 = vmatpush1.msra.mxu0 %v90
  %3894 = vmatprep.subr.mxu0 %v84
  %3895 = vmatpush1.msra.mxu0 %v83
  %3896 = vmatprep.subr.mxu0 %v77
  %3897 = vmatpush1.msra.mxu0 %v76
  %3898 = vmatprep.subr.mxu0 %v70
  %3899 = vmatpush1.msra.mxu0 %v69
  %3900 = vmatprep.subr.mxu0 %v63
  %3901 = vmatpush1.msra.mxu0 %v62
  %3902 = vmatprep.subr.mxu0 %v280
  %3903 = vmatpush2.msra.mxu0 %v279
  %3904 = vmatprep.subr.mxu0 %v273
  %3905 = vmatpush2.msra.mxu0 %v272
  %3906 = vmatprep.subr.mxu0 %v266
  %3907 = vmatpush2.msra.mxu0 %v265
  %3908 = vmatprep.subr.mxu0 %v259
  %3909 = vmatpush2.msra.mxu0 %v258
  %3910 = vmatprep.subr.mxu0 %v252
  %3911 = vmatpush2.msra.mxu0 %v251
  %3912 = vmatprep.subr.mxu0 %v245
  %3913 = vmatpush2.msra.mxu0 %v244
  %3914 = vmatprep.subr.mxu0 %v238
  %3915 = vmatpush2.msra.mxu0 %v237
  %3916 = vmatprep.subr.mxu0 %v231
  %3917 = vmatpush2.msra.mxu0 %v230
  %3918 = vmatprep.subr.mxu0 %v224
  %3919 = vmatpush2.msra.mxu0 %v223
  %3920 = vmatprep.subr.mxu0 %v217
  %3921 = vmatpush2.msra.mxu0 %v216
  %3922 = vmatprep.subr.mxu0 %v210
  %3923 = vmatpush2.msra.mxu0 %v209
  %3924 = vmatprep.subr.mxu0 %v203
  %3925 = vmatpush2.msra.mxu0 %v202
  %3926 = vmatprep.subr.mxu0 %v196
  %3927 = vmatpush2.msra.mxu0 %v195
  %3928 = vmatprep.subr.mxu0 %v189
  %3929 = vmatpush2.msra.mxu0 %v188
  %3930 = vmatprep.subr.mxu0 %v182
  %3931 = vmatpush2.msra.mxu0 %v181
  %3932 = vmatprep.subr.mxu0 %v175
  %3933 = vmatpush2.msra.mxu0 %v174
  %3934 = vmatprep.mubr.f32.mxu0 %v29
  %3935 = vmatmul.mubr.f32.gmra.mxu0 %v28
  %v3936 = vpop.f32.mrf.mxu0
  %v3937 = vadd.f32 %v3812, %v3936
  %v3938 = vpop.f32.mrf.mxu0
  %v3939 = vadd.f32 %v3816, %v3938
  %3940 = vdwg.mxu0
  %3941 = vmatprep.subr.mxu0 %v392
  %3942 = vmatpush1.msra.mxu0 %v391
  %3943 = vmatprep.subr.mxu0 %v385
  %3944 = vmatpush1.msra.mxu0 %v384
  %3945 = vmatprep.subr.mxu0 %v378
  %3946 = vmatpush1.msra.mxu0 %v377
  %3947 = vmatprep.subr.mxu0 %v371
  %3948 = vmatpush1.msra.mxu0 %v370
  %3949 = vmatprep.subr.mxu0 %v364
  %3950 = vmatpush1.msra.mxu0 %v363
  %3951 = vmatprep.subr.mxu0 %v357
  %3952 = vmatpush1.msra.mxu0 %v356
  %3953 = vmatprep.subr.mxu0 %v350
  %3954 = vmatpush1.msra.mxu0 %v349
  %3955 = vmatprep.subr.mxu0 %v343
  %3956 = vmatpush1.msra.mxu0 %v342
  %3957 = vmatprep.subr.mxu0 %v336
  %3958 = vmatpush1.msra.mxu0 %v335
  %3959 = vmatprep.subr.mxu0 %v329
  %3960 = vmatpush1.msra.mxu0 %v328
  %3961 = vmatprep.subr.mxu0 %v322
  %3962 = vmatpush1.msra.mxu0 %v321
  %3963 = vmatprep.subr.mxu0 %v315
  %3964 = vmatpush1.msra.mxu0 %v314
  %3965 = vmatprep.subr.mxu0 %v308
  %3966 = vmatpush1.msra.mxu0 %v307
  %3967 = vmatprep.subr.mxu0 %v301
  %3968 = vmatpush1.msra.mxu0 %v300
  %3969 = vmatprep.subr.mxu0 %v294
  %3970 = vmatpush1.msra.mxu0 %v293
  %3971 = vmatprep.subr.mxu0 %v287
  %3972 = vmatpush1.msra.mxu0 %v286
  %3973 = vmatprep.subr.mxu0 %v504
  %3974 = vmatpush2.msra.mxu0 %v503
  %3975 = vmatprep.subr.mxu0 %v497
  %3976 = vmatpush2.msra.mxu0 %v496
  %3977 = vmatprep.subr.mxu0 %v490
  %3978 = vmatpush2.msra.mxu0 %v489
  %3979 = vmatprep.subr.mxu0 %v483
  %3980 = vmatpush2.msra.mxu0 %v482
  %3981 = vmatprep.subr.mxu0 %v476
  %3982 = vmatpush2.msra.mxu0 %v475
  %3983 = vmatprep.subr.mxu0 %v469
  %3984 = vmatpush2.msra.mxu0 %v468
  %3985 = vmatprep.subr.mxu0 %v462
  %3986 = vmatpush2.msra.mxu0 %v461
  %3987 = vmatprep.subr.mxu0 %v455
  %3988 = vmatpush2.msra.mxu0 %v454
  %3989 = vmatprep.subr.mxu0 %v448
  %3990 = vmatpush2.msra.mxu0 %v447
  %3991 = vmatprep.subr.mxu0 %v441
  %3992 = vmatpush2.msra.mxu0 %v440
  %3993 = vmatprep.subr.mxu0 %v434
  %3994 = vmatpush2.msra.mxu0 %v433
  %3995 = vmatprep.subr.mxu0 %v427
  %3996 = vmatpush2.msra.mxu0 %v426
  %3997 = vmatprep.subr.mxu0 %v420
  %3998 = vmatpush2.msra.mxu0 %v419
  %3999 = vmatprep.subr.mxu0 %v413
  %4000 = vmatpush2.msra.mxu0 %v412
  %4001 = vmatprep.subr.mxu0 %v406
  %4002 = vmatpush2.msra.mxu0 %v405
  %4003 = vmatprep.subr.mxu0 %v399
  %4004 = vmatpush2.msra.mxu0 %v398
  %4005 = vmatprep.mubr.f32.mxu0 %v31
  %4006 = vmatmul.mubr.f32.gmra.mxu0 %v30
  %v4007 = vpop.f32.mrf.mxu0
  %v4008 = vadd.f32 %v3937, %v4007
  %v4009 = vpop.f32.mrf.mxu0
  %v4010 = vadd.f32 %v3939, %v4009
  %4011 = vdwg.mxu0
  %4012 = vmatprep.subr.mxu0 %v616
  %4013 = vmatpush1.msra.mxu0 %v615
  %4014 = vmatprep.subr.mxu0 %v609
  %4015 = vmatpush1.msra.mxu0 %v608
  %4016 = vmatprep.subr.mxu0 %v602
  %4017 = vmatpush1.msra.mxu0 %v601
  %4018 = vmatprep.subr.mxu0 %v595
  %4019 = vmatpush1.msra.mxu0 %v594
  %4020 = vmatprep.subr.mxu0 %v588
  %4021 = vmatpush1.msra.mxu0 %v587
  %4022 = vmatprep.subr.mxu0 %v581
  %4023 = vmatpush1.msra.mxu0 %v580
  %4024 = vmatprep.subr.mxu0 %v574
  %4025 = vmatpush1.msra.mxu0 %v573
  %4026 = vmatprep.subr.mxu0 %v567
  %4027 = vmatpush1.msra.mxu0 %v566
  %4028 = vmatprep.subr.mxu0 %v560
  %4029 = vmatpush1.msra.mxu0 %v559
  %4030 = vmatprep.subr.mxu0 %v553
  %4031 = vmatpush1.msra.mxu0 %v552
  %4032 = vmatprep.subr.mxu0 %v546
  %4033 = vmatpush1.msra.mxu0 %v545
  %4034 = vmatprep.subr.mxu0 %v539
  %4035 = vmatpush1.msra.mxu0 %v538
  %4036 = vmatprep.subr.mxu0 %v532
  %4037 = vmatpush1.msra.mxu0 %v531
  %4038 = vmatprep.subr.mxu0 %v525
  %4039 = vmatpush1.msra.mxu0 %v524
  %4040 = vmatprep.subr.mxu0 %v518
  %4041 = vmatpush1.msra.mxu0 %v517
  %4042 = vmatprep.subr.mxu0 %v511
  %4043 = vmatpush1.msra.mxu0 %v510
  %4044 = vmatprep.subr.mxu0 %v728
  %4045 = vmatpush2.msra.mxu0 %v727
  %4046 = vmatprep.subr.mxu0 %v721
  %4047 = vmatpush2.msra.mxu0 %v720
  %4048 = vmatprep.subr.mxu0 %v714
  %4049 = vmatpush2.msra.mxu0 %v713
  %4050 = vmatprep.subr.mxu0 %v707
  %4051 = vmatpush2.msra.mxu0 %v706
  %4052 = vmatprep.subr.mxu0 %v700
  %4053 = vmatpush2.msra.mxu0 %v699
  %4054 = vmatprep.subr.mxu0 %v693
  %4055 = vmatpush2.msra.mxu0 %v692
  %4056 = vmatprep.subr.mxu0 %v686
  %4057 = vmatpush2.msra.mxu0 %v685
  %4058 = vmatprep.subr.mxu0 %v679
  %4059 = vmatpush2.msra.mxu0 %v678
  %4060 = vmatprep.subr.mxu0 %v672
  %4061 = vmatpush2.msra.mxu0 %v671
  %4062 = vmatprep.subr.mxu0 %v665
  %4063 = vmatpush2.msra.mxu0 %v664
  %4064 = vmatprep.subr.mxu0 %v658
  %4065 = vmatpush2.msra.mxu0 %v657
  %4066 = vmatprep.subr.mxu0 %v651
  %4067 = vmatpush2.msra.mxu0 %v650
  %4068 = vmatprep.subr.mxu0 %v644
  %4069 = vmatpush2.msra.mxu0 %v643
  %4070 = vmatprep.subr.mxu0 %v637
  %4071 = vmatpush2.msra.mxu0 %v636
  %4072 = vmatprep.subr.mxu0 %v630
  %4073 = vmatpush2.msra.mxu0 %v629
  %4074 = vmatprep.subr.mxu0 %v623
  %4075 = vmatpush2.msra.mxu0 %v622
  %4076 = vmatprep.mubr.f32.mxu0 %v33
  %4077 = vmatmul.mubr.f32.gmra.mxu0 %v32
  %v4078 = vpop.f32.mrf.mxu0
  %v4079 = vadd.f32 %v4008, %v4078
  %v4080 = vpop.f32.mrf.mxu0
  %v4081 = vadd.f32 %v4010, %v4080
  %4082 = vdwg.mxu0
  %4083 = vmatprep.subr.mxu0 %v840
  %4084 = vmatpush1.msra.mxu0 %v839
  %4085 = vmatprep.subr.mxu0 %v833
  %4086 = vmatpush1.msra.mxu0 %v832
  %4087 = vmatprep.subr.mxu0 %v826
  %4088 = vmatpush1.msra.mxu0 %v825
  %4089 = vmatprep.subr.mxu0 %v819
  %4090 = vmatpush1.msra.mxu0 %v818
  %4091 = vmatprep.subr.mxu0 %v812
  %4092 = vmatpush1.msra.mxu0 %v811
  %4093 = vmatprep.subr.mxu0 %v805
  %4094 = vmatpush1.msra.mxu0 %v804
  %4095 = vmatprep.subr.mxu0 %v798
  %4096 = vmatpush1.msra.mxu0 %v797
  %4097 = vmatprep.subr.mxu0 %v791
  %4098 = vmatpush1.msra.mxu0 %v790
  %4099 = vmatprep.subr.mxu0 %v784
  %4100 = vmatpush1.msra.mxu0 %v783
  %4101 = vmatprep.subr.mxu0 %v777
  %4102 = vmatpush1.msra.mxu0 %v776
  %4103 = vmatprep.subr.mxu0 %v770
  %4104 = vmatpush1.msra.mxu0 %v769
  %4105 = vmatprep.subr.mxu0 %v763
  %4106 = vmatpush1.msra.mxu0 %v762
  %4107 = vmatprep.subr.mxu0 %v756
  %4108 = vmatpush1.msra.mxu0 %v755
  %4109 = vmatprep.subr.mxu0 %v749
  %4110 = vmatpush1.msra.mxu0 %v748
  %4111 = vmatprep.subr.mxu0 %v742
  %4112 = vmatpush1.msra.mxu0 %v741
  %4113 = vmatprep.subr.mxu0 %v735
  %4114 = vmatpush1.msra.mxu0 %v734
  %4115 = vmatprep.subr.mxu0 %v952
  %4116 = vmatpush2.msra.mxu0 %v951
  %4117 = vmatprep.subr.mxu0 %v945
  %4118 = vmatpush2.msra.mxu0 %v944
  %4119 = vmatprep.subr.mxu0 %v938
  %4120 = vmatpush2.msra.mxu0 %v937
  %4121 = vmatprep.subr.mxu0 %v931
  %4122 = vmatpush2.msra.mxu0 %v930
  %4123 = vmatprep.subr.mxu0 %v924
  %4124 = vmatpush2.msra.mxu0 %v923
  %4125 = vmatprep.subr.mxu0 %v917
  %4126 = vmatpush2.msra.mxu0 %v916
  %4127 = vmatprep.subr.mxu0 %v910
  %4128 = vmatpush2.msra.mxu0 %v909
  %4129 = vmatprep.subr.mxu0 %v903
  %4130 = vmatpush2.msra.mxu0 %v902
  %4131 = vmatprep.subr.mxu0 %v896
  %4132 = vmatpush2.msra.mxu0 %v895
  %4133 = vmatprep.subr.mxu0 %v889
  %4134 = vmatpush2.msra.mxu0 %v888
  %4135 = vmatprep.subr.mxu0 %v882
  %4136 = vmatpush2.msra.mxu0 %v881
  %4137 = vmatprep.subr.mxu0 %v875
  %4138 = vmatpush2.msra.mxu0 %v874
  %4139 = vmatprep.subr.mxu0 %v868
  %4140 = vmatpush2.msra.mxu0 %v867
  %4141 = vmatprep.subr.mxu0 %v861
  %4142 = vmatpush2.msra.mxu0 %v860
  %4143 = vmatprep.subr.mxu0 %v854
  %4144 = vmatpush2.msra.mxu0 %v853
  %4145 = vmatprep.subr.mxu0 %v847
  %4146 = vmatpush2.msra.mxu0 %v846
  %4147 = vmatprep.mubr.f32.mxu0 %v35
  %4148 = vmatmul.mubr.f32.gmra.mxu0 %v34
  %v4149 = vpop.f32.mrf.mxu0
  %v4150 = vadd.f32 %v4079, %v4149
  %v4151 = vpop.f32.mrf.mxu0
  %v4152 = vadd.f32 %v4081, %v4151
  %4153 = vdwg.mxu0
  %4154 = vmatprep.subr.mxu0 %v1064
  %4155 = vmatpush1.msra.mxu0 %v1063
  %4156 = vmatprep.subr.mxu0 %v1057
  %4157 = vmatpush1.msra.mxu0 %v1056
  %4158 = vmatprep.subr.mxu0 %v1050
  %4159 = vmatpush1.msra.mxu0 %v1049
  %4160 = vmatprep.subr.mxu0 %v1043
  %4161 = vmatpush1.msra.mxu0 %v1042
  %4162 = vmatprep.subr.mxu0 %v1036
  %4163 = vmatpush1.msra.mxu0 %v1035
  %4164 = vmatprep.subr.mxu0 %v1029
  %4165 = vmatpush1.msra.mxu0 %v1028
  %4166 = vmatprep.subr.mxu0 %v1022
  %4167 = vmatpush1.msra.mxu0 %v1021
  %4168 = vmatprep.subr.mxu0 %v1015
  %4169 = vmatpush1.msra.mxu0 %v1014
  %4170 = vmatprep.subr.mxu0 %v1008
  %4171 = vmatpush1.msra.mxu0 %v1007
  %4172 = vmatprep.subr.mxu0 %v1001
  %4173 = vmatpush1.msra.mxu0 %v1000
  %4174 = vmatprep.subr.mxu0 %v994
  %4175 = vmatpush1.msra.mxu0 %v993
  %4176 = vmatprep.subr.mxu0 %v987
  %4177 = vmatpush1.msra.mxu0 %v986
  %4178 = vmatprep.subr.mxu0 %v980
  %4179 = vmatpush1.msra.mxu0 %v979
  %4180 = vmatprep.subr.mxu0 %v973
  %4181 = vmatpush1.msra.mxu0 %v972
  %4182 = vmatprep.subr.mxu0 %v966
  %4183 = vmatpush1.msra.mxu0 %v965
  %4184 = vmatprep.subr.mxu0 %v959
  %4185 = vmatpush1.msra.mxu0 %v958
  %4186 = vmatprep.subr.mxu0 %v1176
  %4187 = vmatpush2.msra.mxu0 %v1175
  %4188 = vmatprep.subr.mxu0 %v1169
  %4189 = vmatpush2.msra.mxu0 %v1168
  %4190 = vmatprep.subr.mxu0 %v1162
  %4191 = vmatpush2.msra.mxu0 %v1161
  %4192 = vmatprep.subr.mxu0 %v1155
  %4193 = vmatpush2.msra.mxu0 %v1154
  %4194 = vmatprep.subr.mxu0 %v1148
  %4195 = vmatpush2.msra.mxu0 %v1147
  %4196 = vmatprep.subr.mxu0 %v1141
  %4197 = vmatpush2.msra.mxu0 %v1140
  %4198 = vmatprep.subr.mxu0 %v1134
  %4199 = vmatpush2.msra.mxu0 %v1133
  %4200 = vmatprep.subr.mxu0 %v1127
  %4201 = vmatpush2.msra.mxu0 %v1126
  %4202 = vmatprep.subr.mxu0 %v1120
  %4203 = vmatpush2.msra.mxu0 %v1119
  %4204 = vmatprep.subr.mxu0 %v1113
  %4205 = vmatpush2.msra.mxu0 %v1112
  %4206 = vmatprep.subr.mxu0 %v1106
  %4207 = vmatpush2.msra.mxu0 %v1105
  %4208 = vmatprep.subr.mxu0 %v1099
  %4209 = vmatpush2.msra.mxu0 %v1098
  %4210 = vmatprep.subr.mxu0 %v1092
  %4211 = vmatpush2.msra.mxu0 %v1091
  %4212 = vmatprep.subr.mxu0 %v1085
  %4213 = vmatpush2.msra.mxu0 %v1084
  %4214 = vmatprep.subr.mxu0 %v1078
  %4215 = vmatpush2.msra.mxu0 %v1077
  %4216 = vmatprep.subr.mxu0 %v1071
  %4217 = vmatpush2.msra.mxu0 %v1070
  %4218 = vmatprep.mubr.f32.mxu0 %v37
  %4219 = vmatmul.mubr.f32.gmra.mxu0 %v36
  %v4220 = vpop.f32.mrf.mxu0
  %v4221 = vadd.f32 %v4150, %v4220
  %v4222 = vpop.f32.mrf.mxu0
  %v4223 = vadd.f32 %v4152, %v4222
  %4224 = vdwg.mxu0
  %4225 = vmatprep.subr.mxu0 %v1288
  %4226 = vmatpush1.msra.mxu0 %v1287
  %4227 = vmatprep.subr.mxu0 %v1281
  %4228 = vmatpush1.msra.mxu0 %v1280
  %4229 = vmatprep.subr.mxu0 %v1274
  %4230 = vmatpush1.msra.mxu0 %v1273
  %4231 = vmatprep.subr.mxu0 %v1267
  %4232 = vmatpush1.msra.mxu0 %v1266
  %4233 = vmatprep.subr.mxu0 %v1260
  %4234 = vmatpush1.msra.mxu0 %v1259
  %4235 = vmatprep.subr.mxu0 %v1253
  %4236 = vmatpush1.msra.mxu0 %v1252
  %4237 = vmatprep.subr.mxu0 %v1246
  %4238 = vmatpush1.msra.mxu0 %v1245
  %4239 = vmatprep.subr.mxu0 %v1239
  %4240 = vmatpush1.msra.mxu0 %v1238
  %4241 = vmatprep.subr.mxu0 %v1232
  %4242 = vmatpush1.msra.mxu0 %v1231
  %4243 = vmatprep.subr.mxu0 %v1225
  %4244 = vmatpush1.msra.mxu0 %v1224
  %4245 = vmatprep.subr.mxu0 %v1218
  %4246 = vmatpush1.msra.mxu0 %v1217
  %4247 = vmatprep.subr.mxu0 %v1211
  %4248 = vmatpush1.msra.mxu0 %v1210
  %4249 = vmatprep.subr.mxu0 %v1204
  %4250 = vmatpush1.msra.mxu0 %v1203
  %4251 = vmatprep.subr.mxu0 %v1197
  %4252 = vmatpush1.msra.mxu0 %v1196
  %4253 = vmatprep.subr.mxu0 %v1190
  %4254 = vmatpush1.msra.mxu0 %v1189
  %4255 = vmatprep.subr.mxu0 %v1183
  %4256 = vmatpush1.msra.mxu0 %v1182
  %4257 = vmatprep.subr.mxu0 %v1400
  %4258 = vmatpush2.msra.mxu0 %v1399
  %4259 = vmatprep.subr.mxu0 %v1393
  %4260 = vmatpush2.msra.mxu0 %v1392
  %4261 = vmatprep.subr.mxu0 %v1386
  %4262 = vmatpush2.msra.mxu0 %v1385
  %4263 = vmatprep.subr.mxu0 %v1379
  %4264 = vmatpush2.msra.mxu0 %v1378
  %4265 = vmatprep.subr.mxu0 %v1372
  %4266 = vmatpush2.msra.mxu0 %v1371
  %4267 = vmatprep.subr.mxu0 %v1365
  %4268 = vmatpush2.msra.mxu0 %v1364
  %4269 = vmatprep.subr.mxu0 %v1358
  %4270 = vmatpush2.msra.mxu0 %v1357
  %4271 = vmatprep.subr.mxu0 %v1351
  %4272 = vmatpush2.msra.mxu0 %v1350
  %4273 = vmatprep.subr.mxu0 %v1344
  %4274 = vmatpush2.msra.mxu0 %v1343
  %4275 = vmatprep.subr.mxu0 %v1337
  %4276 = vmatpush2.msra.mxu0 %v1336
  %4277 = vmatprep.subr.mxu0 %v1330
  %4278 = vmatpush2.msra.mxu0 %v1329
  %4279 = vmatprep.subr.mxu0 %v1323
  %4280 = vmatpush2.msra.mxu0 %v1322
  %4281 = vmatprep.subr.mxu0 %v1316
  %4282 = vmatpush2.msra.mxu0 %v1315
  %4283 = vmatprep.subr.mxu0 %v1309
  %4284 = vmatpush2.msra.mxu0 %v1308
  %4285 = vmatprep.subr.mxu0 %v1302
  %4286 = vmatpush2.msra.mxu0 %v1301
  %4287 = vmatprep.subr.mxu0 %v1295
  %4288 = vmatpush2.msra.mxu0 %v1294
  %4289 = vmatprep.mubr.f32.mxu0 %v39
  %4290 = vmatmul.mubr.f32.gmra.mxu0 %v38
  %v4291 = vpop.f32.mrf.mxu0
  %v4292 = vadd.f32 %v4221, %v4291
  %v4293 = vpop.f32.mrf.mxu0
  %v4294 = vadd.f32 %v4223, %v4293
  %4295 = vdwg.mxu0
  %4296 = vmatprep.subr.mxu0 %v1512
  %4297 = vmatpush1.msra.mxu0 %v1511
  %4298 = vmatprep.subr.mxu0 %v1505
  %4299 = vmatpush1.msra.mxu0 %v1504
  %4300 = vmatprep.subr.mxu0 %v1498
  %4301 = vmatpush1.msra.mxu0 %v1497
  %4302 = vmatprep.subr.mxu0 %v1491
  %4303 = vmatpush1.msra.mxu0 %v1490
  %4304 = vmatprep.subr.mxu0 %v1484
  %4305 = vmatpush1.msra.mxu0 %v1483
  %4306 = vmatprep.subr.mxu0 %v1477
  %4307 = vmatpush1.msra.mxu0 %v1476
  %4308 = vmatprep.subr.mxu0 %v1470
  %4309 = vmatpush1.msra.mxu0 %v1469
  %4310 = vmatprep.subr.mxu0 %v1463
  %4311 = vmatpush1.msra.mxu0 %v1462
  %4312 = vmatprep.subr.mxu0 %v1456
  %4313 = vmatpush1.msra.mxu0 %v1455
  %4314 = vmatprep.subr.mxu0 %v1449
  %4315 = vmatpush1.msra.mxu0 %v1448
  %4316 = vmatprep.subr.mxu0 %v1442
  %4317 = vmatpush1.msra.mxu0 %v1441
  %4318 = vmatprep.subr.mxu0 %v1435
  %4319 = vmatpush1.msra.mxu0 %v1434
  %4320 = vmatprep.subr.mxu0 %v1428
  %4321 = vmatpush1.msra.mxu0 %v1427
  %4322 = vmatprep.subr.mxu0 %v1421
  %4323 = vmatpush1.msra.mxu0 %v1420
  %4324 = vmatprep.subr.mxu0 %v1414
  %4325 = vmatpush1.msra.mxu0 %v1413
  %4326 = vmatprep.subr.mxu0 %v1407
  %4327 = vmatpush1.msra.mxu0 %v1406
  %4328 = vmatprep.subr.mxu0 %v1624
  %4329 = vmatpush2.msra.mxu0 %v1623
  %4330 = vmatprep.subr.mxu0 %v1617
  %4331 = vmatpush2.msra.mxu0 %v1616
  %4332 = vmatprep.subr.mxu0 %v1610
  %4333 = vmatpush2.msra.mxu0 %v1609
  %4334 = vmatprep.subr.mxu0 %v1603
  %4335 = vmatpush2.msra.mxu0 %v1602
  %4336 = vmatprep.subr.mxu0 %v1596
  %4337 = vmatpush2.msra.mxu0 %v1595
  %4338 = vmatprep.subr.mxu0 %v1589
  %4339 = vmatpush2.msra.mxu0 %v1588
  %4340 = vmatprep.subr.mxu0 %v1582
  %4341 = vmatpush2.msra.mxu0 %v1581
  %4342 = vmatprep.subr.mxu0 %v1575
  %4343 = vmatpush2.msra.mxu0 %v1574
  %4344 = vmatprep.subr.mxu0 %v1568
  %4345 = vmatpush2.msra.mxu0 %v1567
  %4346 = vmatprep.subr.mxu0 %v1561
  %4347 = vmatpush2.msra.mxu0 %v1560
  %4348 = vmatprep.subr.mxu0 %v1554
  %4349 = vmatpush2.msra.mxu0 %v1553
  %4350 = vmatprep.subr.mxu0 %v1547
  %4351 = vmatpush2.msra.mxu0 %v1546
  %4352 = vmatprep.subr.mxu0 %v1540
  %4353 = vmatpush2.msra.mxu0 %v1539
  %4354 = vmatprep.subr.mxu0 %v1533
  %4355 = vmatpush2.msra.mxu0 %v1532
  %4356 = vmatprep.subr.mxu0 %v1526
  %4357 = vmatpush2.msra.mxu0 %v1525
  %4358 = vmatprep.subr.mxu0 %v1519
  %4359 = vmatpush2.msra.mxu0 %v1518
  %4360 = vmatprep.mubr.f32.mxu0 %v41
  %4361 = vmatmul.mubr.f32.gmra.mxu0 %v40
  %v4362 = vpop.f32.mrf.mxu0
  %v4363 = vadd.f32 %v4292, %v4362
  %v4364 = vpop.f32.mrf.mxu0
  %v4365 = vadd.f32 %v4294, %v4364
  %4366 = vdwg.mxu0
  %4367 = vmatprep.subr.mxu0 %v1736
  %4368 = vmatpush1.msra.mxu0 %v1735
  %4369 = vmatprep.subr.mxu0 %v1729
  %4370 = vmatpush1.msra.mxu0 %v1728
  %4371 = vmatprep.subr.mxu0 %v1722
  %4372 = vmatpush1.msra.mxu0 %v1721
  %4373 = vmatprep.subr.mxu0 %v1715
  %4374 = vmatpush1.msra.mxu0 %v1714
  %4375 = vmatprep.subr.mxu0 %v1708
  %4376 = vmatpush1.msra.mxu0 %v1707
  %4377 = vmatprep.subr.mxu0 %v1701
  %4378 = vmatpush1.msra.mxu0 %v1700
  %4379 = vmatprep.subr.mxu0 %v1694
  %4380 = vmatpush1.msra.mxu0 %v1693
  %4381 = vmatprep.subr.mxu0 %v1687
  %4382 = vmatpush1.msra.mxu0 %v1686
  %4383 = vmatprep.subr.mxu0 %v1680
  %4384 = vmatpush1.msra.mxu0 %v1679
  %4385 = vmatprep.subr.mxu0 %v1673
  %4386 = vmatpush1.msra.mxu0 %v1672
  %4387 = vmatprep.subr.mxu0 %v1666
  %4388 = vmatpush1.msra.mxu0 %v1665
  %4389 = vmatprep.subr.mxu0 %v1659
  %4390 = vmatpush1.msra.mxu0 %v1658
  %4391 = vmatprep.subr.mxu0 %v1652
  %4392 = vmatpush1.msra.mxu0 %v1651
  %4393 = vmatprep.subr.mxu0 %v1645
  %4394 = vmatpush1.msra.mxu0 %v1644
  %4395 = vmatprep.subr.mxu0 %v1638
  %4396 = vmatpush1.msra.mxu0 %v1637
  %4397 = vmatprep.subr.mxu0 %v1631
  %4398 = vmatpush1.msra.mxu0 %v1630
  %4399 = vmatprep.subr.mxu0 %v1848
  %4400 = vmatpush2.msra.mxu0 %v1847
  %4401 = vmatprep.subr.mxu0 %v1841
  %4402 = vmatpush2.msra.mxu0 %v1840
  %4403 = vmatprep.subr.mxu0 %v1834
  %4404 = vmatpush2.msra.mxu0 %v1833
  %4405 = vmatprep.subr.mxu0 %v1827
  %4406 = vmatpush2.msra.mxu0 %v1826
  %4407 = vmatprep.subr.mxu0 %v1820
  %4408 = vmatpush2.msra.mxu0 %v1819
  %4409 = vmatprep.subr.mxu0 %v1813
  %4410 = vmatpush2.msra.mxu0 %v1812
  %4411 = vmatprep.subr.mxu0 %v1806
  %4412 = vmatpush2.msra.mxu0 %v1805
  %4413 = vmatprep.subr.mxu0 %v1799
  %4414 = vmatpush2.msra.mxu0 %v1798
  %4415 = vmatprep.subr.mxu0 %v1792
  %4416 = vmatpush2.msra.mxu0 %v1791
  %4417 = vmatprep.subr.mxu0 %v1785
  %4418 = vmatpush2.msra.mxu0 %v1784
  %4419 = vmatprep.subr.mxu0 %v1778
  %4420 = vmatpush2.msra.mxu0 %v1777
  %4421 = vmatprep.subr.mxu0 %v1771
  %4422 = vmatpush2.msra.mxu0 %v1770
  %4423 = vmatprep.subr.mxu0 %v1764
  %4424 = vmatpush2.msra.mxu0 %v1763
  %4425 = vmatprep.subr.mxu0 %v1757
  %4426 = vmatpush2.msra.mxu0 %v1756
  %4427 = vmatprep.subr.mxu0 %v1750
  %4428 = vmatpush2.msra.mxu0 %v1749
  %4429 = vmatprep.subr.mxu0 %v1743
  %4430 = vmatpush2.msra.mxu0 %v1742
  %4431 = vmatprep.mubr.f32.mxu0 %v43
  %4432 = vmatmul.mubr.f32.gmra.mxu0 %v42
  %v4433 = vpop.f32.mrf.mxu0
  %v4434 = vadd.f32 %v4363, %v4433
  %v4435 = vpop.f32.mrf.mxu0
  %v4436 = vadd.f32 %v4365, %v4435
  %4437 = vdwg.mxu0
  %4438 = vmatprep.subr.mxu0 %v1960
  %4439 = vmatpush1.msra.mxu0 %v1959
  %4440 = vmatprep.subr.mxu0 %v1953
  %4441 = vmatpush1.msra.mxu0 %v1952
  %4442 = vmatprep.subr.mxu0 %v1946
  %4443 = vmatpush1.msra.mxu0 %v1945
  %4444 = vmatprep.subr.mxu0 %v1939
  %4445 = vmatpush1.msra.mxu0 %v1938
  %4446 = vmatprep.subr.mxu0 %v1932
  %4447 = vmatpush1.msra.mxu0 %v1931
  %4448 = vmatprep.subr.mxu0 %v1925
  %4449 = vmatpush1.msra.mxu0 %v1924
  %4450 = vmatprep.subr.mxu0 %v1918
  %4451 = vmatpush1.msra.mxu0 %v1917
  %4452 = vmatprep.subr.mxu0 %v1911
  %4453 = vmatpush1.msra.mxu0 %v1910
  %4454 = vmatprep.subr.mxu0 %v1904
  %4455 = vmatpush1.msra.mxu0 %v1903
  %4456 = vmatprep.subr.mxu0 %v1897
  %4457 = vmatpush1.msra.mxu0 %v1896
  %4458 = vmatprep.subr.mxu0 %v1890
  %4459 = vmatpush1.msra.mxu0 %v1889
  %4460 = vmatprep.subr.mxu0 %v1883
  %4461 = vmatpush1.msra.mxu0 %v1882
  %4462 = vmatprep.subr.mxu0 %v1876
  %4463 = vmatpush1.msra.mxu0 %v1875
  %4464 = vmatprep.subr.mxu0 %v1869
  %4465 = vmatpush1.msra.mxu0 %v1868
  %4466 = vmatprep.subr.mxu0 %v1862
  %4467 = vmatpush1.msra.mxu0 %v1861
  %4468 = vmatprep.subr.mxu0 %v1855
  %4469 = vmatpush1.msra.mxu0 %v1854
  %4470 = vmatprep.subr.mxu0 %v2072
  %4471 = vmatpush2.msra.mxu0 %v2071
  %4472 = vmatprep.subr.mxu0 %v2065
  %4473 = vmatpush2.msra.mxu0 %v2064
  %4474 = vmatprep.subr.mxu0 %v2058
  %4475 = vmatpush2.msra.mxu0 %v2057
  %4476 = vmatprep.subr.mxu0 %v2051
  %4477 = vmatpush2.msra.mxu0 %v2050
  %4478 = vmatprep.subr.mxu0 %v2044
  %4479 = vmatpush2.msra.mxu0 %v2043
  %4480 = vmatprep.subr.mxu0 %v2037
  %4481 = vmatpush2.msra.mxu0 %v2036
  %4482 = vmatprep.subr.mxu0 %v2030
  %4483 = vmatpush2.msra.mxu0 %v2029
  %4484 = vmatprep.subr.mxu0 %v2023
  %4485 = vmatpush2.msra.mxu0 %v2022
  %4486 = vmatprep.subr.mxu0 %v2016
  %4487 = vmatpush2.msra.mxu0 %v2015
  %4488 = vmatprep.subr.mxu0 %v2009
  %4489 = vmatpush2.msra.mxu0 %v2008
  %4490 = vmatprep.subr.mxu0 %v2002
  %4491 = vmatpush2.msra.mxu0 %v2001
  %4492 = vmatprep.subr.mxu0 %v1995
  %4493 = vmatpush2.msra.mxu0 %v1994
  %4494 = vmatprep.subr.mxu0 %v1988
  %4495 = vmatpush2.msra.mxu0 %v1987
  %4496 = vmatprep.subr.mxu0 %v1981
  %4497 = vmatpush2.msra.mxu0 %v1980
  %4498 = vmatprep.subr.mxu0 %v1974
  %4499 = vmatpush2.msra.mxu0 %v1973
  %4500 = vmatprep.subr.mxu0 %v1967
  %4501 = vmatpush2.msra.mxu0 %v1966
  %4502 = vmatprep.mubr.f32.mxu0 %v45
  %4503 = vmatmul.mubr.f32.gmra.mxu0 %v44
  %v4504 = vpop.f32.mrf.mxu0
  %v4505 = vadd.f32 %v4434, %v4504
  %v4506 = vpop.f32.mrf.mxu0
  %v4507 = vadd.f32 %v4436, %v4506
  %4508 = vdwg.mxu0
  %4509 = vmatprep.subr.mxu0 %v2184
  %4510 = vmatpush1.msra.mxu0 %v2183
  %4511 = vmatprep.subr.mxu0 %v2177
  %4512 = vmatpush1.msra.mxu0 %v2176
  %4513 = vmatprep.subr.mxu0 %v2170
  %4514 = vmatpush1.msra.mxu0 %v2169
  %4515 = vmatprep.subr.mxu0 %v2163
  %4516 = vmatpush1.msra.mxu0 %v2162
  %4517 = vmatprep.subr.mxu0 %v2156
  %4518 = vmatpush1.msra.mxu0 %v2155
  %4519 = vmatprep.subr.mxu0 %v2149
  %4520 = vmatpush1.msra.mxu0 %v2148
  %4521 = vmatprep.subr.mxu0 %v2142
  %4522 = vmatpush1.msra.mxu0 %v2141
  %4523 = vmatprep.subr.mxu0 %v2135
  %4524 = vmatpush1.msra.mxu0 %v2134
  %4525 = vmatprep.subr.mxu0 %v2128
  %4526 = vmatpush1.msra.mxu0 %v2127
  %4527 = vmatprep.subr.mxu0 %v2121
  %4528 = vmatpush1.msra.mxu0 %v2120
  %4529 = vmatprep.subr.mxu0 %v2114
  %4530 = vmatpush1.msra.mxu0 %v2113
  %4531 = vmatprep.subr.mxu0 %v2107
  %4532 = vmatpush1.msra.mxu0 %v2106
  %4533 = vmatprep.subr.mxu0 %v2100
  %4534 = vmatpush1.msra.mxu0 %v2099
  %4535 = vmatprep.subr.mxu0 %v2093
  %4536 = vmatpush1.msra.mxu0 %v2092
  %4537 = vmatprep.subr.mxu0 %v2086
  %4538 = vmatpush1.msra.mxu0 %v2085
  %4539 = vmatprep.subr.mxu0 %v2079
  %4540 = vmatpush1.msra.mxu0 %v2078
  %4541 = vmatprep.subr.mxu0 %v2296
  %4542 = vmatpush2.msra.mxu0 %v2295
  %4543 = vmatprep.subr.mxu0 %v2289
  %4544 = vmatpush2.msra.mxu0 %v2288
  %4545 = vmatprep.subr.mxu0 %v2282
  %4546 = vmatpush2.msra.mxu0 %v2281
  %4547 = vmatprep.subr.mxu0 %v2275
  %4548 = vmatpush2.msra.mxu0 %v2274
  %4549 = vmatprep.subr.mxu0 %v2268
  %4550 = vmatpush2.msra.mxu0 %v2267
  %4551 = vmatprep.subr.mxu0 %v2261
  %4552 = vmatpush2.msra.mxu0 %v2260
  %4553 = vmatprep.subr.mxu0 %v2254
  %4554 = vmatpush2.msra.mxu0 %v2253
  %4555 = vmatprep.subr.mxu0 %v2247
  %4556 = vmatpush2.msra.mxu0 %v2246
  %4557 = vmatprep.subr.mxu0 %v2240
  %4558 = vmatpush2.msra.mxu0 %v2239
  %4559 = vmatprep.subr.mxu0 %v2233
  %4560 = vmatpush2.msra.mxu0 %v2232
  %4561 = vmatprep.subr.mxu0 %v2226
  %4562 = vmatpush2.msra.mxu0 %v2225
  %4563 = vmatprep.subr.mxu0 %v2219
  %4564 = vmatpush2.msra.mxu0 %v2218
  %4565 = vmatprep.subr.mxu0 %v2212
  %4566 = vmatpush2.msra.mxu0 %v2211
  %4567 = vmatprep.subr.mxu0 %v2205
  %4568 = vmatpush2.msra.mxu0 %v2204
  %4569 = vmatprep.subr.mxu0 %v2198
  %4570 = vmatpush2.msra.mxu0 %v2197
  %4571 = vmatprep.subr.mxu0 %v2191
  %4572 = vmatpush2.msra.mxu0 %v2190
  %4573 = vmatprep.mubr.f32.mxu0 %v47
  %4574 = vmatmul.mubr.f32.gmra.mxu0 %v46
  %v4575 = vpop.f32.mrf.mxu0
  %v4576 = vadd.f32 %v4505, %v4575
  %v4577 = vpop.f32.mrf.mxu0
  %v4578 = vadd.f32 %v4507, %v4577
  %4579 = vdwg.mxu0
  %4580 = vmatprep.subr.mxu0 %v2408
  %4581 = vmatpush1.msra.mxu0 %v2407
  %4582 = vmatprep.subr.mxu0 %v2401
  %4583 = vmatpush1.msra.mxu0 %v2400
  %4584 = vmatprep.subr.mxu0 %v2394
  %4585 = vmatpush1.msra.mxu0 %v2393
  %4586 = vmatprep.subr.mxu0 %v2387
  %4587 = vmatpush1.msra.mxu0 %v2386
  %4588 = vmatprep.subr.mxu0 %v2380
  %4589 = vmatpush1.msra.mxu0 %v2379
  %4590 = vmatprep.subr.mxu0 %v2373
  %4591 = vmatpush1.msra.mxu0 %v2372
  %4592 = vmatprep.subr.mxu0 %v2366
  %4593 = vmatpush1.msra.mxu0 %v2365
  %4594 = vmatprep.subr.mxu0 %v2359
  %4595 = vmatpush1.msra.mxu0 %v2358
  %4596 = vmatprep.subr.mxu0 %v2352
  %4597 = vmatpush1.msra.mxu0 %v2351
  %4598 = vmatprep.subr.mxu0 %v2345
  %4599 = vmatpush1.msra.mxu0 %v2344
  %4600 = vmatprep.subr.mxu0 %v2338
  %4601 = vmatpush1.msra.mxu0 %v2337
  %4602 = vmatprep.subr.mxu0 %v2331
  %4603 = vmatpush1.msra.mxu0 %v2330
  %4604 = vmatprep.subr.mxu0 %v2324
  %4605 = vmatpush1.msra.mxu0 %v2323
  %4606 = vmatprep.subr.mxu0 %v2317
  %4607 = vmatpush1.msra.mxu0 %v2316
  %4608 = vmatprep.subr.mxu0 %v2310
  %4609 = vmatpush1.msra.mxu0 %v2309
  %4610 = vmatprep.subr.mxu0 %v2303
  %4611 = vmatpush1.msra.mxu0 %v2302
  %4612 = vmatprep.subr.mxu0 %v2520
  %4613 = vmatpush2.msra.mxu0 %v2519
  %4614 = vmatprep.subr.mxu0 %v2513
  %4615 = vmatpush2.msra.mxu0 %v2512
  %4616 = vmatprep.subr.mxu0 %v2506
  %4617 = vmatpush2.msra.mxu0 %v2505
  %4618 = vmatprep.subr.mxu0 %v2499
  %4619 = vmatpush2.msra.mxu0 %v2498
  %4620 = vmatprep.subr.mxu0 %v2492
  %4621 = vmatpush2.msra.mxu0 %v2491
  %4622 = vmatprep.subr.mxu0 %v2485
  %4623 = vmatpush2.msra.mxu0 %v2484
  %4624 = vmatprep.subr.mxu0 %v2478
  %4625 = vmatpush2.msra.mxu0 %v2477
  %4626 = vmatprep.subr.mxu0 %v2471
  %4627 = vmatpush2.msra.mxu0 %v2470
  %4628 = vmatprep.subr.mxu0 %v2464
  %4629 = vmatpush2.msra.mxu0 %v2463
  %4630 = vmatprep.subr.mxu0 %v2457
  %4631 = vmatpush2.msra.mxu0 %v2456
  %4632 = vmatprep.subr.mxu0 %v2450
  %4633 = vmatpush2.msra.mxu0 %v2449
  %4634 = vmatprep.subr.mxu0 %v2443
  %4635 = vmatpush2.msra.mxu0 %v2442
  %4636 = vmatprep.subr.mxu0 %v2436
  %4637 = vmatpush2.msra.mxu0 %v2435
  %4638 = vmatprep.subr.mxu0 %v2429
  %4639 = vmatpush2.msra.mxu0 %v2428
  %4640 = vmatprep.subr.mxu0 %v2422
  %4641 = vmatpush2.msra.mxu0 %v2421
  %4642 = vmatprep.subr.mxu0 %v2415
  %4643 = vmatpush2.msra.mxu0 %v2414
  %4644 = vmatprep.mubr.f32.mxu0 %v49
  %4645 = vmatmul.mubr.f32.gmra.mxu0 %v48
  %v4646 = vpop.f32.mrf.mxu0
  %v4647 = vadd.f32 %v4576, %v4646
  %v4648 = vpop.f32.mrf.mxu0
  %v4649 = vadd.f32 %v4578, %v4648
  %4650 = vdwg.mxu0
  %4651 = vmatprep.subr.mxu0 %v2632
  %4652 = vmatpush1.msra.mxu0 %v2631
  %4653 = vmatprep.subr.mxu0 %v2625
  %4654 = vmatpush1.msra.mxu0 %v2624
  %4655 = vmatprep.subr.mxu0 %v2618
  %4656 = vmatpush1.msra.mxu0 %v2617
  %4657 = vmatprep.subr.mxu0 %v2611
  %4658 = vmatpush1.msra.mxu0 %v2610
  %4659 = vmatprep.subr.mxu0 %v2604
  %4660 = vmatpush1.msra.mxu0 %v2603
  %4661 = vmatprep.subr.mxu0 %v2597
  %4662 = vmatpush1.msra.mxu0 %v2596
  %4663 = vmatprep.subr.mxu0 %v2590
  %4664 = vmatpush1.msra.mxu0 %v2589
  %4665 = vmatprep.subr.mxu0 %v2583
  %4666 = vmatpush1.msra.mxu0 %v2582
  %4667 = vmatprep.subr.mxu0 %v2576
  %4668 = vmatpush1.msra.mxu0 %v2575
  %4669 = vmatprep.subr.mxu0 %v2569
  %4670 = vmatpush1.msra.mxu0 %v2568
  %4671 = vmatprep.subr.mxu0 %v2562
  %4672 = vmatpush1.msra.mxu0 %v2561
  %4673 = vmatprep.subr.mxu0 %v2555
  %4674 = vmatpush1.msra.mxu0 %v2554
  %4675 = vmatprep.subr.mxu0 %v2548
  %4676 = vmatpush1.msra.mxu0 %v2547
  %4677 = vmatprep.subr.mxu0 %v2541
  %4678 = vmatpush1.msra.mxu0 %v2540
  %4679 = vmatprep.subr.mxu0 %v2534
  %4680 = vmatpush1.msra.mxu0 %v2533
  %4681 = vmatprep.subr.mxu0 %v2527
  %4682 = vmatpush1.msra.mxu0 %v2526
  %4683 = vmatprep.subr.mxu0 %v2744
  %4684 = vmatpush2.msra.mxu0 %v2743
  %4685 = vmatprep.subr.mxu0 %v2737
  %4686 = vmatpush2.msra.mxu0 %v2736
  %4687 = vmatprep.subr.mxu0 %v2730
  %4688 = vmatpush2.msra.mxu0 %v2729
  %4689 = vmatprep.subr.mxu0 %v2723
  %4690 = vmatpush2.msra.mxu0 %v2722
  %4691 = vmatprep.subr.mxu0 %v2716
  %4692 = vmatpush2.msra.mxu0 %v2715
  %4693 = vmatprep.subr.mxu0 %v2709
  %4694 = vmatpush2.msra.mxu0 %v2708
  %4695 = vmatprep.subr.mxu0 %v2702
  %4696 = vmatpush2.msra.mxu0 %v2701
  %4697 = vmatprep.subr.mxu0 %v2695
  %4698 = vmatpush2.msra.mxu0 %v2694
  %4699 = vmatprep.subr.mxu0 %v2688
  %4700 = vmatpush2.msra.mxu0 %v2687
  %4701 = vmatprep.subr.mxu0 %v2681
  %4702 = vmatpush2.msra.mxu0 %v2680
  %4703 = vmatprep.subr.mxu0 %v2674
  %4704 = vmatpush2.msra.mxu0 %v2673
  %4705 = vmatprep.subr.mxu0 %v2667
  %4706 = vmatpush2.msra.mxu0 %v2666
  %4707 = vmatprep.subr.mxu0 %v2660
  %4708 = vmatpush2.msra.mxu0 %v2659
  %4709 = vmatprep.subr.mxu0 %v2653
  %4710 = vmatpush2.msra.mxu0 %v2652
  %4711 = vmatprep.subr.mxu0 %v2646
  %4712 = vmatpush2.msra.mxu0 %v2645
  %4713 = vmatprep.subr.mxu0 %v2639
  %4714 = vmatpush2.msra.mxu0 %v2638
  %4715 = vmatprep.mubr.f32.mxu0 %v51
  %4716 = vmatmul.mubr.f32.gmra.mxu0 %v50
  %v4717 = vpop.f32.mrf.mxu0
  %v4718 = vadd.f32 %v4647, %v4717
  %v4719 = vpop.f32.mrf.mxu0
  %v4720 = vadd.f32 %v4649, %v4719
  %4721 = vdwg.mxu0
  %4722 = vmatprep.subr.mxu0 %v2856
  %4723 = vmatpush1.msra.mxu0 %v2855
  %4724 = vmatprep.subr.mxu0 %v2849
  %4725 = vmatpush1.msra.mxu0 %v2848
  %4726 = vmatprep.subr.mxu0 %v2842
  %4727 = vmatpush1.msra.mxu0 %v2841
  %4728 = vmatprep.subr.mxu0 %v2835
  %4729 = vmatpush1.msra.mxu0 %v2834
  %4730 = vmatprep.subr.mxu0 %v2828
  %4731 = vmatpush1.msra.mxu0 %v2827
  %4732 = vmatprep.subr.mxu0 %v2821
  %4733 = vmatpush1.msra.mxu0 %v2820
  %4734 = vmatprep.subr.mxu0 %v2814
  %4735 = vmatpush1.msra.mxu0 %v2813
  %4736 = vmatprep.subr.mxu0 %v2807
  %4737 = vmatpush1.msra.mxu0 %v2806
  %4738 = vmatprep.subr.mxu0 %v2800
  %4739 = vmatpush1.msra.mxu0 %v2799
  %4740 = vmatprep.subr.mxu0 %v2793
  %4741 = vmatpush1.msra.mxu0 %v2792
  %4742 = vmatprep.subr.mxu0 %v2786
  %4743 = vmatpush1.msra.mxu0 %v2785
  %4744 = vmatprep.subr.mxu0 %v2779
  %4745 = vmatpush1.msra.mxu0 %v2778
  %4746 = vmatprep.subr.mxu0 %v2772
  %4747 = vmatpush1.msra.mxu0 %v2771
  %4748 = vmatprep.subr.mxu0 %v2765
  %4749 = vmatpush1.msra.mxu0 %v2764
  %4750 = vmatprep.subr.mxu0 %v2758
  %4751 = vmatpush1.msra.mxu0 %v2757
  %4752 = vmatprep.subr.mxu0 %v2751
  %4753 = vmatpush1.msra.mxu0 %v2750
  %4754 = vmatprep.subr.mxu0 %v2968
  %4755 = vmatpush2.msra.mxu0 %v2967
  %4756 = vmatprep.subr.mxu0 %v2961
  %4757 = vmatpush2.msra.mxu0 %v2960
  %4758 = vmatprep.subr.mxu0 %v2954
  %4759 = vmatpush2.msra.mxu0 %v2953
  %4760 = vmatprep.subr.mxu0 %v2947
  %4761 = vmatpush2.msra.mxu0 %v2946
  %4762 = vmatprep.subr.mxu0 %v2940
  %4763 = vmatpush2.msra.mxu0 %v2939
  %4764 = vmatprep.subr.mxu0 %v2933
  %4765 = vmatpush2.msra.mxu0 %v2932
  %4766 = vmatprep.subr.mxu0 %v2926
  %4767 = vmatpush2.msra.mxu0 %v2925
  %4768 = vmatprep.subr.mxu0 %v2919
  %4769 = vmatpush2.msra.mxu0 %v2918
  %4770 = vmatprep.subr.mxu0 %v2912
  %4771 = vmatpush2.msra.mxu0 %v2911
  %4772 = vmatprep.subr.mxu0 %v2905
  %4773 = vmatpush2.msra.mxu0 %v2904
  %4774 = vmatprep.subr.mxu0 %v2898
  %4775 = vmatpush2.msra.mxu0 %v2897
  %4776 = vmatprep.subr.mxu0 %v2891
  %4777 = vmatpush2.msra.mxu0 %v2890
  %4778 = vmatprep.subr.mxu0 %v2884
  %4779 = vmatpush2.msra.mxu0 %v2883
  %4780 = vmatprep.subr.mxu0 %v2877
  %4781 = vmatpush2.msra.mxu0 %v2876
  %4782 = vmatprep.subr.mxu0 %v2870
  %4783 = vmatpush2.msra.mxu0 %v2869
  %4784 = vmatprep.subr.mxu0 %v2863
  %4785 = vmatpush2.msra.mxu0 %v2862
  %4786 = vmatprep.mubr.f32.mxu0 %v53
  %4787 = vmatmul.mubr.f32.gmra.mxu0 %v52
  %v4788 = vpop.f32.mrf.mxu0
  %v4789 = vadd.f32 %v4718, %v4788
  %v4790 = vpop.f32.mrf.mxu0
  %v4791 = vadd.f32 %v4720, %v4790
  %4792 = vdwg.mxu0
  %4793 = vmatprep.subr.mxu0 %v3080
  %4794 = vmatpush1.msra.mxu0 %v3079
  %4795 = vmatprep.subr.mxu0 %v3073
  %4796 = vmatpush1.msra.mxu0 %v3072
  %4797 = vmatprep.subr.mxu0 %v3066
  %4798 = vmatpush1.msra.mxu0 %v3065
  %4799 = vmatprep.subr.mxu0 %v3059
  %4800 = vmatpush1.msra.mxu0 %v3058
  %4801 = vmatprep.subr.mxu0 %v3052
  %4802 = vmatpush1.msra.mxu0 %v3051
  %4803 = vmatprep.subr.mxu0 %v3045
  %4804 = vmatpush1.msra.mxu0 %v3044
  %4805 = vmatprep.subr.mxu0 %v3038
  %4806 = vmatpush1.msra.mxu0 %v3037
  %4807 = vmatprep.subr.mxu0 %v3031
  %4808 = vmatpush1.msra.mxu0 %v3030
  %4809 = vmatprep.subr.mxu0 %v3024
  %4810 = vmatpush1.msra.mxu0 %v3023
  %4811 = vmatprep.subr.mxu0 %v3017
  %4812 = vmatpush1.msra.mxu0 %v3016
  %4813 = vmatprep.subr.mxu0 %v3010
  %4814 = vmatpush1.msra.mxu0 %v3009
  %4815 = vmatprep.subr.mxu0 %v3003
  %4816 = vmatpush1.msra.mxu0 %v3002
  %4817 = vmatprep.subr.mxu0 %v2996
  %4818 = vmatpush1.msra.mxu0 %v2995
  %4819 = vmatprep.subr.mxu0 %v2989
  %4820 = vmatpush1.msra.mxu0 %v2988
  %4821 = vmatprep.subr.mxu0 %v2982
  %4822 = vmatpush1.msra.mxu0 %v2981
  %4823 = vmatprep.subr.mxu0 %v2975
  %4824 = vmatpush1.msra.mxu0 %v2974
  %4825 = vmatprep.subr.mxu0 %v3192
  %4826 = vmatpush2.msra.mxu0 %v3191
  %4827 = vmatprep.subr.mxu0 %v3185
  %4828 = vmatpush2.msra.mxu0 %v3184
  %4829 = vmatprep.subr.mxu0 %v3178
  %4830 = vmatpush2.msra.mxu0 %v3177
  %4831 = vmatprep.subr.mxu0 %v3171
  %4832 = vmatpush2.msra.mxu0 %v3170
  %4833 = vmatprep.subr.mxu0 %v3164
  %4834 = vmatpush2.msra.mxu0 %v3163
  %4835 = vmatprep.subr.mxu0 %v3157
  %4836 = vmatpush2.msra.mxu0 %v3156
  %4837 = vmatprep.subr.mxu0 %v3150
  %4838 = vmatpush2.msra.mxu0 %v3149
  %4839 = vmatprep.subr.mxu0 %v3143
  %4840 = vmatpush2.msra.mxu0 %v3142
  %4841 = vmatprep.subr.mxu0 %v3136
  %4842 = vmatpush2.msra.mxu0 %v3135
  %4843 = vmatprep.subr.mxu0 %v3129
  %4844 = vmatpush2.msra.mxu0 %v3128
  %4845 = vmatprep.subr.mxu0 %v3122
  %4846 = vmatpush2.msra.mxu0 %v3121
  %4847 = vmatprep.subr.mxu0 %v3115
  %4848 = vmatpush2.msra.mxu0 %v3114
  %4849 = vmatprep.subr.mxu0 %v3108
  %4850 = vmatpush2.msra.mxu0 %v3107
  %4851 = vmatprep.subr.mxu0 %v3101
  %4852 = vmatpush2.msra.mxu0 %v3100
  %4853 = vmatprep.subr.mxu0 %v3094
  %4854 = vmatpush2.msra.mxu0 %v3093
  %4855 = vmatprep.subr.mxu0 %v3087
  %4856 = vmatpush2.msra.mxu0 %v3086
  %4857 = vmatprep.mubr.f32.mxu0 %v55
  %4858 = vmatmul.mubr.f32.gmra.mxu0 %v54
  %v4859 = vpop.f32.mrf.mxu0
  %v4860 = vadd.f32 %v4789, %v4859
  %v4861 = vpop.f32.mrf.mxu0
  %v4862 = vadd.f32 %v4791, %v4861
  %4863 = vdwg.mxu0
  %4864 = vmatprep.subr.mxu0 %v3304
  %4865 = vmatpush1.msra.mxu0 %v3303
  %4866 = vmatprep.subr.mxu0 %v3297
  %4867 = vmatpush1.msra.mxu0 %v3296
  %4868 = vmatprep.subr.mxu0 %v3290
  %4869 = vmatpush1.msra.mxu0 %v3289
  %4870 = vmatprep.subr.mxu0 %v3283
  %4871 = vmatpush1.msra.mxu0 %v3282
  %4872 = vmatprep.subr.mxu0 %v3276
  %4873 = vmatpush1.msra.mxu0 %v3275
  %4874 = vmatprep.subr.mxu0 %v3269
  %4875 = vmatpush1.msra.mxu0 %v3268
  %4876 = vmatprep.subr.mxu0 %v3262
  %4877 = vmatpush1.msra.mxu0 %v3261
  %4878 = vmatprep.subr.mxu0 %v3255
  %4879 = vmatpush1.msra.mxu0 %v3254
  %4880 = vmatprep.subr.mxu0 %v3248
  %4881 = vmatpush1.msra.mxu0 %v3247
  %4882 = vmatprep.subr.mxu0 %v3241
  %4883 = vmatpush1.msra.mxu0 %v3240
  %4884 = vmatprep.subr.mxu0 %v3234
  %4885 = vmatpush1.msra.mxu0 %v3233
  %4886 = vmatprep.subr.mxu0 %v3227
  %4887 = vmatpush1.msra.mxu0 %v3226
  %4888 = vmatprep.subr.mxu0 %v3220
  %4889 = vmatpush1.msra.mxu0 %v3219
  %4890 = vmatprep.subr.mxu0 %v3213
  %4891 = vmatpush1.msra.mxu0 %v3212
  %4892 = vmatprep.subr.mxu0 %v3206
  %4893 = vmatpush1.msra.mxu0 %v3205
  %4894 = vmatprep.subr.mxu0 %v3199
  %4895 = vmatpush1.msra.mxu0 %v3198
  %4896 = vmatprep.subr.mxu0 %v3416
  %4897 = vmatpush2.msra.mxu0 %v3415
  %4898 = vmatprep.subr.mxu0 %v3409
  %4899 = vmatpush2.msra.mxu0 %v3408
  %4900 = vmatprep.subr.mxu0 %v3402
  %4901 = vmatpush2.msra.mxu0 %v3401
  %4902 = vmatprep.subr.mxu0 %v3395
  %4903 = vmatpush2.msra.mxu0 %v3394
  %4904 = vmatprep.subr.mxu0 %v3388
  %4905 = vmatpush2.msra.mxu0 %v3387
  %4906 = vmatprep.subr.mxu0 %v3381
  %4907 = vmatpush2.msra.mxu0 %v3380
  %4908 = vmatprep.subr.mxu0 %v3374
  %4909 = vmatpush2.msra.mxu0 %v3373
  %4910 = vmatprep.subr.mxu0 %v3367
  %4911 = vmatpush2.msra.mxu0 %v3366
  %4912 = vmatprep.subr.mxu0 %v3360
  %4913 = vmatpush2.msra.mxu0 %v3359
  %4914 = vmatprep.subr.mxu0 %v3353
  %4915 = vmatpush2.msra.mxu0 %v3352
  %4916 = vmatprep.subr.mxu0 %v3346
  %4917 = vmatpush2.msra.mxu0 %v3345
  %4918 = vmatprep.subr.mxu0 %v3339
  %4919 = vmatpush2.msra.mxu0 %v3338
  %4920 = vmatprep.subr.mxu0 %v3332
  %4921 = vmatpush2.msra.mxu0 %v3331
  %4922 = vmatprep.subr.mxu0 %v3325
  %4923 = vmatpush2.msra.mxu0 %v3324
  %4924 = vmatprep.subr.mxu0 %v3318
  %4925 = vmatpush2.msra.mxu0 %v3317
  %4926 = vmatprep.subr.mxu0 %v3311
  %4927 = vmatpush2.msra.mxu0 %v3310
  %4928 = vmatprep.mubr.f32.mxu0 %v57
  %4929 = vmatmul.mubr.f32.gmra.mxu0 %v56
  %v4930 = vpop.f32.mrf.mxu0
  %v4931 = vadd.f32 %v4860, %v4930
  %v4932 = vpop.f32.mrf.mxu0
  %v4933 = vadd.f32 %v4862, %v4932
  %4934 = vdwg.mxu0
  %4935 = vmatprep.subr.mxu0 %v3528
  %4936 = vmatpush1.msra.mxu0 %v3527
  %4937 = vmatprep.subr.mxu0 %v3521
  %4938 = vmatpush1.msra.mxu0 %v3520
  %4939 = vmatprep.subr.mxu0 %v3514
  %4940 = vmatpush1.msra.mxu0 %v3513
  %4941 = vmatprep.subr.mxu0 %v3507
  %4942 = vmatpush1.msra.mxu0 %v3506
  %4943 = vmatprep.subr.mxu0 %v3500
  %4944 = vmatpush1.msra.mxu0 %v3499
  %4945 = vmatprep.subr.mxu0 %v3493
  %4946 = vmatpush1.msra.mxu0 %v3492
  %4947 = vmatprep.subr.mxu0 %v3486
  %4948 = vmatpush1.msra.mxu0 %v3485
  %4949 = vmatprep.subr.mxu0 %v3479
  %4950 = vmatpush1.msra.mxu0 %v3478
  %4951 = vmatprep.subr.mxu0 %v3472
  %4952 = vmatpush1.msra.mxu0 %v3471
  %4953 = vmatprep.subr.mxu0 %v3465
  %4954 = vmatpush1.msra.mxu0 %v3464
  %4955 = vmatprep.subr.mxu0 %v3458
  %4956 = vmatpush1.msra.mxu0 %v3457
  %4957 = vmatprep.subr.mxu0 %v3451
  %4958 = vmatpush1.msra.mxu0 %v3450
  %4959 = vmatprep.subr.mxu0 %v3444
  %4960 = vmatpush1.msra.mxu0 %v3443
  %4961 = vmatprep.subr.mxu0 %v3437
  %4962 = vmatpush1.msra.mxu0 %v3436
  %4963 = vmatprep.subr.mxu0 %v3430
  %4964 = vmatpush1.msra.mxu0 %v3429
  %4965 = vmatprep.subr.mxu0 %v3423
  %4966 = vmatpush1.msra.mxu0 %v3422
  %4967 = vmatprep.subr.mxu0 %v3640
  %4968 = vmatpush2.msra.mxu0 %v3639
  %4969 = vmatprep.subr.mxu0 %v3633
  %4970 = vmatpush2.msra.mxu0 %v3632
  %4971 = vmatprep.subr.mxu0 %v3626
  %4972 = vmatpush2.msra.mxu0 %v3625
  %4973 = vmatprep.subr.mxu0 %v3619
  %4974 = vmatpush2.msra.mxu0 %v3618
  %4975 = vmatprep.subr.mxu0 %v3612
  %4976 = vmatpush2.msra.mxu0 %v3611
  %4977 = vmatprep.subr.mxu0 %v3605
  %4978 = vmatpush2.msra.mxu0 %v3604
  %4979 = vmatprep.subr.mxu0 %v3598
  %4980 = vmatpush2.msra.mxu0 %v3597
  %4981 = vmatprep.subr.mxu0 %v3591
  %4982 = vmatpush2.msra.mxu0 %v3590
  %4983 = vmatprep.subr.mxu0 %v3584
  %4984 = vmatpush2.msra.mxu0 %v3583
  %4985 = vmatprep.subr.mxu0 %v3577
  %4986 = vmatpush2.msra.mxu0 %v3576
  %4987 = vmatprep.subr.mxu0 %v3570
  %4988 = vmatpush2.msra.mxu0 %v3569
  %4989 = vmatprep.subr.mxu0 %v3563
  %4990 = vmatpush2.msra.mxu0 %v3562
  %4991 = vmatprep.subr.mxu0 %v3556
  %4992 = vmatpush2.msra.mxu0 %v3555
  %4993 = vmatprep.subr.mxu0 %v3549
  %4994 = vmatpush2.msra.mxu0 %v3548
  %4995 = vmatprep.subr.mxu0 %v3542
  %4996 = vmatpush2.msra.mxu0 %v3541
  %4997 = vmatprep.subr.mxu0 %v3535
  %4998 = vmatpush2.msra.mxu0 %v3534
  %4999 = vmatprep.mubr.f32.mxu0 %v59
  %5000 = vmatmul.mubr.f32.gmra.mxu0 %v58
  %v5001 = vpop.f32.mrf.mxu0
  %v5002 = vadd.f32 %v4931, %v5001
  %v5003 = vpop.f32.mrf.mxu0
  %v5004 = vadd.f32 %v4933, %v5003
  %5005 = vdwg.mxu0
  %5006 = vmatprep.subr.mxu0 %v3752
  %5007 = vmatpush1.msra.mxu0 %v3751
  %5008 = vmatprep.subr.mxu0 %v3745
  %5009 = vmatpush1.msra.mxu0 %v3744
  %5010 = vmatprep.subr.mxu0 %v3738
  %5011 = vmatpush1.msra.mxu0 %v3737
  %5012 = vmatprep.subr.mxu0 %v3731
  %5013 = vmatpush1.msra.mxu0 %v3730
  %5014 = vmatprep.subr.mxu0 %v3724
  %5015 = vmatpush1.msra.mxu0 %v3723
  %5016 = vmatprep.subr.mxu0 %v3717
  %5017 = vmatpush1.msra.mxu0 %v3716
  %5018 = vmatprep.subr.mxu0 %v3710
  %5019 = vmatpush1.msra.mxu0 %v3709
  %5020 = vmatprep.subr.mxu0 %v3703
  %5021 = vmatpush1.msra.mxu0 %v3702
  %5022 = vmatprep.subr.mxu0 %v3696
  %5023 = vmatpush1.msra.mxu0 %v3695
  %5024 = vmatprep.subr.mxu0 %v3689
  %5025 = vmatpush1.msra.mxu0 %v3688
  %5026 = vmatprep.subr.mxu0 %v3682
  %5027 = vmatpush1.msra.mxu0 %v3681
  %5028 = vmatprep.subr.mxu0 %v3675
  %5029 = vmatpush1.msra.mxu0 %v3674
  %5030 = vmatprep.subr.mxu0 %v3668
  %5031 = vmatpush1.msra.mxu0 %v3667
  %5032 = vmatprep.subr.mxu0 %v3661
  %5033 = vmatpush1.msra.mxu0 %v3660
  %5034 = vmatprep.subr.mxu0 %v3654
  %5035 = vmatpush1.msra.mxu0 %v3653
  %5036 = vmatprep.subr.mxu0 %v3647
  %5037 = vmatpush1.msra.mxu0 %v3646
  %5038 = vmatprep.subr.mxu0 0.0
  %5039 = vmatpush2.msra.mxu0 0.0
  %5040 = vmatprep.subr.mxu0 0.0
  %5041 = vmatpush2.msra.mxu0 0.0
  %5042 = vmatprep.subr.mxu0 0.0
  %5043 = vmatpush2.msra.mxu0 0.0
  %5044 = vmatprep.subr.mxu0 0.0
  %5045 = vmatpush2.msra.mxu0 0.0
  %5046 = vmatprep.subr.mxu0 0.0
  %5047 = vmatpush2.msra.mxu0 0.0
  %5048 = vmatprep.subr.mxu0 0.0
  %5049 = vmatpush2.msra.mxu0 0.0
  %5050 = vmatprep.subr.mxu0 0.0
  %5051 = vmatpush2.msra.mxu0 0.0
  %5052 = vmatprep.subr.mxu0 0.0
  %5053 = vmatpush2.msra.mxu0 0.0
  %5054 = vmatprep.subr.mxu0 0.0
  %5055 = vmatpush2.msra.mxu0 0.0
  %5056 = vmatprep.subr.mxu0 %v3853
  %5057 = vmatpush2.msra.mxu0 %v3850
  %5058 = vmatprep.subr.mxu0 %v3794
  %5059 = vmatpush2.msra.mxu0 %v3793
  %5060 = vmatprep.subr.mxu0 %v3787
  %5061 = vmatpush2.msra.mxu0 %v3786
  %5062 = vmatprep.subr.mxu0 %v3780
  %5063 = vmatpush2.msra.mxu0 %v3779
  %5064 = vmatprep.subr.mxu0 %v3773
  %5065 = vmatpush2.msra.mxu0 %v3772
  %5066 = vmatprep.subr.mxu0 %v3766
  %5067 = vmatpush2.msra.mxu0 %v3765
  %5068 = vmatprep.subr.mxu0 %v3759
  %5069 = vmatpush2.msra.mxu0 %v3758
  %5070 = vmatprep.mubr.f32.mxu0 %v3846
  %5071 = vmatmul.mubr.f32.gmra.mxu0 %v60
  %v5072 = vpop.f32.mrf.mxu0
  %v5073 = vadd.f32 %v5002, %v5072
  %v5074 = vpop.f32.mrf.mxu0
  %v5075 = vadd.f32 %v5004, %v5074
  %5076 = vdwg.mxu0
  %5077 = vmatprep.subr.mxu0 %v170
  %5078 = vmatpush1.msra.mxu0 %v169
  %5079 = vmatprep.subr.mxu0 %v163
  %5080 = vmatpush1.msra.mxu0 %v162
  %5081 = vmatprep.subr.mxu0 %v156
  %5082 = vmatpush1.msra.mxu0 %v155
  %5083 = vmatprep.subr.mxu0 %v149
  %5084 = vmatpush1.msra.mxu0 %v148
  %5085 = vmatprep.subr.mxu0 %v142
  %5086 = vmatpush1.msra.mxu0 %v141
  %5087 = vmatprep.subr.mxu0 %v135
  %5088 = vmatpush1.msra.mxu0 %v134
  %5089 = vmatprep.subr.mxu0 %v128
  %5090 = vmatpush1.msra.mxu0 %v127
  %5091 = vmatprep.subr.mxu0 %v121
  %5092 = vmatpush1.msra.mxu0 %v120
  %5093 = vmatprep.subr.mxu0 %v114
  %5094 = vmatpush1.msra.mxu0 %v113
  %5095 = vmatprep.subr.mxu0 %v107
  %5096 = vmatpush1.msra.mxu0 %v106
  %5097 = vmatprep.subr.mxu0 %v100
  %5098 = vmatpush1.msra.mxu0 %v99
  %5099 = vmatprep.subr.mxu0 %v93
  %5100 = vmatpush1.msra.mxu0 %v92
  %5101 = vmatprep.subr.mxu0 %v86
  %5102 = vmatpush1.msra.mxu0 %v85
  %5103 = vmatprep.subr.mxu0 %v79
  %5104 = vmatpush1.msra.mxu0 %v78
  %5105 = vmatprep.subr.mxu0 %v72
  %5106 = vmatpush1.msra.mxu0 %v71
  %5107 = vmatprep.subr.mxu0 %v65
  %5108 = vmatpush1.msra.mxu0 %v64
  %5109 = vmatprep.subr.mxu0 %v282
  %5110 = vmatpush2.msra.mxu0 %v281
  %5111 = vmatprep.subr.mxu0 %v275
  %5112 = vmatpush2.msra.mxu0 %v274
  %5113 = vmatprep.subr.mxu0 %v268
  %5114 = vmatpush2.msra.mxu0 %v267
  %5115 = vmatprep.subr.mxu0 %v261
  %5116 = vmatpush2.msra.mxu0 %v260
  %5117 = vmatprep.subr.mxu0 %v254
  %5118 = vmatpush2.msra.mxu0 %v253
  %5119 = vmatprep.subr.mxu0 %v247
  %5120 = vmatpush2.msra.mxu0 %v246
  %5121 = vmatprep.subr.mxu0 %v240
  %5122 = vmatpush2.msra.mxu0 %v239
  %5123 = vmatprep.subr.mxu0 %v233
  %5124 = vmatpush2.msra.mxu0 %v232
  %5125 = vmatprep.subr.mxu0 %v226
  %5126 = vmatpush2.msra.mxu0 %v225
  %5127 = vmatprep.subr.mxu0 %v219
  %5128 = vmatpush2.msra.mxu0 %v218
  %5129 = vmatprep.subr.mxu0 %v212
  %5130 = vmatpush2.msra.mxu0 %v211
  %5131 = vmatprep.subr.mxu0 %v205
  %5132 = vmatpush2.msra.mxu0 %v204
  %5133 = vmatprep.subr.mxu0 %v198
  %5134 = vmatpush2.msra.mxu0 %v197
  %5135 = vmatprep.subr.mxu0 %v191
  %5136 = vmatpush2.msra.mxu0 %v190
  %5137 = vmatprep.subr.mxu0 %v184
  %5138 = vmatpush2.msra.mxu0 %v183
  %5139 = vmatprep.subr.mxu0 %v177
  %5140 = vmatpush2.msra.mxu0 %v176
  %5141 = vmatprep.mubr.f32.mxu0 %v29
  %5142 = vmatmul.mubr.f32.gmra.mxu0 %v28
  %v5143 = vpop.f32.mrf.mxu0
  %v5144 = vadd.f32 %v3820, %v5143
  %v5145 = vpop.f32.mrf.mxu0
  %v5146 = vadd.f32 %v3824, %v5145
  %5147 = vdwg.mxu0
  %5148 = vmatprep.subr.mxu0 %v394
  %5149 = vmatpush1.msra.mxu0 %v393
  %5150 = vmatprep.subr.mxu0 %v387
  %5151 = vmatpush1.msra.mxu0 %v386
  %5152 = vmatprep.subr.mxu0 %v380
  %5153 = vmatpush1.msra.mxu0 %v379
  %5154 = vmatprep.subr.mxu0 %v373
  %5155 = vmatpush1.msra.mxu0 %v372
  %5156 = vmatprep.subr.mxu0 %v366
  %5157 = vmatpush1.msra.mxu0 %v365
  %5158 = vmatprep.subr.mxu0 %v359
  %5159 = vmatpush1.msra.mxu0 %v358
  %5160 = vmatprep.subr.mxu0 %v352
  %5161 = vmatpush1.msra.mxu0 %v351
  %5162 = vmatprep.subr.mxu0 %v345
  %5163 = vmatpush1.msra.mxu0 %v344
  %5164 = vmatprep.subr.mxu0 %v338
  %5165 = vmatpush1.msra.mxu0 %v337
  %5166 = vmatprep.subr.mxu0 %v331
  %5167 = vmatpush1.msra.mxu0 %v330
  %5168 = vmatprep.subr.mxu0 %v324
  %5169 = vmatpush1.msra.mxu0 %v323
  %5170 = vmatprep.subr.mxu0 %v317
  %5171 = vmatpush1.msra.mxu0 %v316
  %5172 = vmatprep.subr.mxu0 %v310
  %5173 = vmatpush1.msra.mxu0 %v309
  %5174 = vmatprep.subr.mxu0 %v303
  %5175 = vmatpush1.msra.mxu0 %v302
  %5176 = vmatprep.subr.mxu0 %v296
  %5177 = vmatpush1.msra.mxu0 %v295
  %5178 = vmatprep.subr.mxu0 %v289
  %5179 = vmatpush1.msra.mxu0 %v288
  %5180 = vmatprep.subr.mxu0 %v506
  %5181 = vmatpush2.msra.mxu0 %v505
  %5182 = vmatprep.subr.mxu0 %v499
  %5183 = vmatpush2.msra.mxu0 %v498
  %5184 = vmatprep.subr.mxu0 %v492
  %5185 = vmatpush2.msra.mxu0 %v491
  %5186 = vmatprep.subr.mxu0 %v485
  %5187 = vmatpush2.msra.mxu0 %v484
  %5188 = vmatprep.subr.mxu0 %v478
  %5189 = vmatpush2.msra.mxu0 %v477
  %5190 = vmatprep.subr.mxu0 %v471
  %5191 = vmatpush2.msra.mxu0 %v470
  %5192 = vmatprep.subr.mxu0 %v464
  %5193 = vmatpush2.msra.mxu0 %v463
  %5194 = vmatprep.subr.mxu0 %v457
  %5195 = vmatpush2.msra.mxu0 %v456
  %5196 = vmatprep.subr.mxu0 %v450
  %5197 = vmatpush2.msra.mxu0 %v449
  %5198 = vmatprep.subr.mxu0 %v443
  %5199 = vmatpush2.msra.mxu0 %v442
  %5200 = vmatprep.subr.mxu0 %v436
  %5201 = vmatpush2.msra.mxu0 %v435
  %5202 = vmatprep.subr.mxu0 %v429
  %5203 = vmatpush2.msra.mxu0 %v428
  %5204 = vmatprep.subr.mxu0 %v422
  %5205 = vmatpush2.msra.mxu0 %v421
  %5206 = vmatprep.subr.mxu0 %v415
  %5207 = vmatpush2.msra.mxu0 %v414
  %5208 = vmatprep.subr.mxu0 %v408
  %5209 = vmatpush2.msra.mxu0 %v407
  %5210 = vmatprep.subr.mxu0 %v401
  %5211 = vmatpush2.msra.mxu0 %v400
  %5212 = vmatprep.mubr.f32.mxu0 %v31
  %5213 = vmatmul.mubr.f32.gmra.mxu0 %v30
  %v5214 = vpop.f32.mrf.mxu0
  %v5215 = vadd.f32 %v5144, %v5214
  %v5216 = vpop.f32.mrf.mxu0
  %v5217 = vadd.f32 %v5146, %v5216
  %5218 = vdwg.mxu0
  %5219 = vmatprep.subr.mxu0 %v618
  %5220 = vmatpush1.msra.mxu0 %v617
  %5221 = vmatprep.subr.mxu0 %v611
  %5222 = vmatpush1.msra.mxu0 %v610
  %5223 = vmatprep.subr.mxu0 %v604
  %5224 = vmatpush1.msra.mxu0 %v603
  %5225 = vmatprep.subr.mxu0 %v597
  %5226 = vmatpush1.msra.mxu0 %v596
  %5227 = vmatprep.subr.mxu0 %v590
  %5228 = vmatpush1.msra.mxu0 %v589
  %5229 = vmatprep.subr.mxu0 %v583
  %5230 = vmatpush1.msra.mxu0 %v582
  %5231 = vmatprep.subr.mxu0 %v576
  %5232 = vmatpush1.msra.mxu0 %v575
  %5233 = vmatprep.subr.mxu0 %v569
  %5234 = vmatpush1.msra.mxu0 %v568
  %5235 = vmatprep.subr.mxu0 %v562
  %5236 = vmatpush1.msra.mxu0 %v561
  %5237 = vmatprep.subr.mxu0 %v555
  %5238 = vmatpush1.msra.mxu0 %v554
  %5239 = vmatprep.subr.mxu0 %v548
  %5240 = vmatpush1.msra.mxu0 %v547
  %5241 = vmatprep.subr.mxu0 %v541
  %5242 = vmatpush1.msra.mxu0 %v540
  %5243 = vmatprep.subr.mxu0 %v534
  %5244 = vmatpush1.msra.mxu0 %v533
  %5245 = vmatprep.subr.mxu0 %v527
  %5246 = vmatpush1.msra.mxu0 %v526
  %5247 = vmatprep.subr.mxu0 %v520
  %5248 = vmatpush1.msra.mxu0 %v519
  %5249 = vmatprep.subr.mxu0 %v513
  %5250 = vmatpush1.msra.mxu0 %v512
  %5251 = vmatprep.subr.mxu0 %v730
  %5252 = vmatpush2.msra.mxu0 %v729
  %5253 = vmatprep.subr.mxu0 %v723
  %5254 = vmatpush2.msra.mxu0 %v722
  %5255 = vmatprep.subr.mxu0 %v716
  %5256 = vmatpush2.msra.mxu0 %v715
  %5257 = vmatprep.subr.mxu0 %v709
  %5258 = vmatpush2.msra.mxu0 %v708
  %5259 = vmatprep.subr.mxu0 %v702
  %5260 = vmatpush2.msra.mxu0 %v701
  %5261 = vmatprep.subr.mxu0 %v695
  %5262 = vmatpush2.msra.mxu0 %v694
  %5263 = vmatprep.subr.mxu0 %v688
  %5264 = vmatpush2.msra.mxu0 %v687
  %5265 = vmatprep.subr.mxu0 %v681
  %5266 = vmatpush2.msra.mxu0 %v680
  %5267 = vmatprep.subr.mxu0 %v674
  %5268 = vmatpush2.msra.mxu0 %v673
  %5269 = vmatprep.subr.mxu0 %v667
  %5270 = vmatpush2.msra.mxu0 %v666
  %5271 = vmatprep.subr.mxu0 %v660
  %5272 = vmatpush2.msra.mxu0 %v659
  %5273 = vmatprep.subr.mxu0 %v653
  %5274 = vmatpush2.msra.mxu0 %v652
  %5275 = vmatprep.subr.mxu0 %v646
  %5276 = vmatpush2.msra.mxu0 %v645
  %5277 = vmatprep.subr.mxu0 %v639
  %5278 = vmatpush2.msra.mxu0 %v638
  %5279 = vmatprep.subr.mxu0 %v632
  %5280 = vmatpush2.msra.mxu0 %v631
  %5281 = vmatprep.subr.mxu0 %v625
  %5282 = vmatpush2.msra.mxu0 %v624
  %5283 = vmatprep.mubr.f32.mxu0 %v33
  %5284 = vmatmul.mubr.f32.gmra.mxu0 %v32
  %v5285 = vpop.f32.mrf.mxu0
  %v5286 = vadd.f32 %v5215, %v5285
  %v5287 = vpop.f32.mrf.mxu0
  %v5288 = vadd.f32 %v5217, %v5287
  %5289 = vdwg.mxu0
  %5290 = vmatprep.subr.mxu0 %v842
  %5291 = vmatpush1.msra.mxu0 %v841
  %5292 = vmatprep.subr.mxu0 %v835
  %5293 = vmatpush1.msra.mxu0 %v834
  %5294 = vmatprep.subr.mxu0 %v828
  %5295 = vmatpush1.msra.mxu0 %v827
  %5296 = vmatprep.subr.mxu0 %v821
  %5297 = vmatpush1.msra.mxu0 %v820
  %5298 = vmatprep.subr.mxu0 %v814
  %5299 = vmatpush1.msra.mxu0 %v813
  %5300 = vmatprep.subr.mxu0 %v807
  %5301 = vmatpush1.msra.mxu0 %v806
  %5302 = vmatprep.subr.mxu0 %v800
  %5303 = vmatpush1.msra.mxu0 %v799
  %5304 = vmatprep.subr.mxu0 %v793
  %5305 = vmatpush1.msra.mxu0 %v792
  %5306 = vmatprep.subr.mxu0 %v786
  %5307 = vmatpush1.msra.mxu0 %v785
  %5308 = vmatprep.subr.mxu0 %v779
  %5309 = vmatpush1.msra.mxu0 %v778
  %5310 = vmatprep.subr.mxu0 %v772
  %5311 = vmatpush1.msra.mxu0 %v771
  %5312 = vmatprep.subr.mxu0 %v765
  %5313 = vmatpush1.msra.mxu0 %v764
  %5314 = vmatprep.subr.mxu0 %v758
  %5315 = vmatpush1.msra.mxu0 %v757
  %5316 = vmatprep.subr.mxu0 %v751
  %5317 = vmatpush1.msra.mxu0 %v750
  %5318 = vmatprep.subr.mxu0 %v744
  %5319 = vmatpush1.msra.mxu0 %v743
  %5320 = vmatprep.subr.mxu0 %v737
  %5321 = vmatpush1.msra.mxu0 %v736
  %5322 = vmatprep.subr.mxu0 %v954
  %5323 = vmatpush2.msra.mxu0 %v953
  %5324 = vmatprep.subr.mxu0 %v947
  %5325 = vmatpush2.msra.mxu0 %v946
  %5326 = vmatprep.subr.mxu0 %v940
  %5327 = vmatpush2.msra.mxu0 %v939
  %5328 = vmatprep.subr.mxu0 %v933
  %5329 = vmatpush2.msra.mxu0 %v932
  %5330 = vmatprep.subr.mxu0 %v926
  %5331 = vmatpush2.msra.mxu0 %v925
  %5332 = vmatprep.subr.mxu0 %v919
  %5333 = vmatpush2.msra.mxu0 %v918
  %5334 = vmatprep.subr.mxu0 %v912
  %5335 = vmatpush2.msra.mxu0 %v911
  %5336 = vmatprep.subr.mxu0 %v905
  %5337 = vmatpush2.msra.mxu0 %v904
  %5338 = vmatprep.subr.mxu0 %v898
  %5339 = vmatpush2.msra.mxu0 %v897
  %5340 = vmatprep.subr.mxu0 %v891
  %5341 = vmatpush2.msra.mxu0 %v890
  %5342 = vmatprep.subr.mxu0 %v884
  %5343 = vmatpush2.msra.mxu0 %v883
  %5344 = vmatprep.subr.mxu0 %v877
  %5345 = vmatpush2.msra.mxu0 %v876
  %5346 = vmatprep.subr.mxu0 %v870
  %5347 = vmatpush2.msra.mxu0 %v869
  %5348 = vmatprep.subr.mxu0 %v863
  %5349 = vmatpush2.msra.mxu0 %v862
  %5350 = vmatprep.subr.mxu0 %v856
  %5351 = vmatpush2.msra.mxu0 %v855
  %5352 = vmatprep.subr.mxu0 %v849
  %5353 = vmatpush2.msra.mxu0 %v848
  %5354 = vmatprep.mubr.f32.mxu0 %v35
  %5355 = vmatmul.mubr.f32.gmra.mxu0 %v34
  %v5356 = vpop.f32.mrf.mxu0
  %v5357 = vadd.f32 %v5286, %v5356
  %v5358 = vpop.f32.mrf.mxu0
  %v5359 = vadd.f32 %v5288, %v5358
  %5360 = vdwg.mxu0
  %5361 = vmatprep.subr.mxu0 %v1066
  %5362 = vmatpush1.msra.mxu0 %v1065
  %5363 = vmatprep.subr.mxu0 %v1059
  %5364 = vmatpush1.msra.mxu0 %v1058
  %5365 = vmatprep.subr.mxu0 %v1052
  %5366 = vmatpush1.msra.mxu0 %v1051
  %5367 = vmatprep.subr.mxu0 %v1045
  %5368 = vmatpush1.msra.mxu0 %v1044
  %5369 = vmatprep.subr.mxu0 %v1038
  %5370 = vmatpush1.msra.mxu0 %v1037
  %5371 = vmatprep.subr.mxu0 %v1031
  %5372 = vmatpush1.msra.mxu0 %v1030
  %5373 = vmatprep.subr.mxu0 %v1024
  %5374 = vmatpush1.msra.mxu0 %v1023
  %5375 = vmatprep.subr.mxu0 %v1017
  %5376 = vmatpush1.msra.mxu0 %v1016
  %5377 = vmatprep.subr.mxu0 %v1010
  %5378 = vmatpush1.msra.mxu0 %v1009
  %5379 = vmatprep.subr.mxu0 %v1003
  %5380 = vmatpush1.msra.mxu0 %v1002
  %5381 = vmatprep.subr.mxu0 %v996
  %5382 = vmatpush1.msra.mxu0 %v995
  %5383 = vmatprep.subr.mxu0 %v989
  %5384 = vmatpush1.msra.mxu0 %v988
  %5385 = vmatprep.subr.mxu0 %v982
  %5386 = vmatpush1.msra.mxu0 %v981
  %5387 = vmatprep.subr.mxu0 %v975
  %5388 = vmatpush1.msra.mxu0 %v974
  %5389 = vmatprep.subr.mxu0 %v968
  %5390 = vmatpush1.msra.mxu0 %v967
  %5391 = vmatprep.subr.mxu0 %v961
  %5392 = vmatpush1.msra.mxu0 %v960
  %5393 = vmatprep.subr.mxu0 %v1178
  %5394 = vmatpush2.msra.mxu0 %v1177
  %5395 = vmatprep.subr.mxu0 %v1171
  %5396 = vmatpush2.msra.mxu0 %v1170
  %5397 = vmatprep.subr.mxu0 %v1164
  %5398 = vmatpush2.msra.mxu0 %v1163
  %5399 = vmatprep.subr.mxu0 %v1157
  %5400 = vmatpush2.msra.mxu0 %v1156
  %5401 = vmatprep.subr.mxu0 %v1150
  %5402 = vmatpush2.msra.mxu0 %v1149
  %5403 = vmatprep.subr.mxu0 %v1143
  %5404 = vmatpush2.msra.mxu0 %v1142
  %5405 = vmatprep.subr.mxu0 %v1136
  %5406 = vmatpush2.msra.mxu0 %v1135
  %5407 = vmatprep.subr.mxu0 %v1129
  %5408 = vmatpush2.msra.mxu0 %v1128
  %5409 = vmatprep.subr.mxu0 %v1122
  %5410 = vmatpush2.msra.mxu0 %v1121
  %5411 = vmatprep.subr.mxu0 %v1115
  %5412 = vmatpush2.msra.mxu0 %v1114
  %5413 = vmatprep.subr.mxu0 %v1108
  %5414 = vmatpush2.msra.mxu0 %v1107
  %5415 = vmatprep.subr.mxu0 %v1101
  %5416 = vmatpush2.msra.mxu0 %v1100
  %5417 = vmatprep.subr.mxu0 %v1094
  %5418 = vmatpush2.msra.mxu0 %v1093
  %5419 = vmatprep.subr.mxu0 %v1087
  %5420 = vmatpush2.msra.mxu0 %v1086
  %5421 = vmatprep.subr.mxu0 %v1080
  %5422 = vmatpush2.msra.mxu0 %v1079
  %5423 = vmatprep.subr.mxu0 %v1073
  %5424 = vmatpush2.msra.mxu0 %v1072
  %5425 = vmatprep.mubr.f32.mxu0 %v37
  %5426 = vmatmul.mubr.f32.gmra.mxu0 %v36
  %v5427 = vpop.f32.mrf.mxu0
  %v5428 = vadd.f32 %v5357, %v5427
  %v5429 = vpop.f32.mrf.mxu0
  %v5430 = vadd.f32 %v5359, %v5429
  %5431 = vdwg.mxu0
  %5432 = vmatprep.subr.mxu0 %v1290
  %5433 = vmatpush1.msra.mxu0 %v1289
  %5434 = vmatprep.subr.mxu0 %v1283
  %5435 = vmatpush1.msra.mxu0 %v1282
  %5436 = vmatprep.subr.mxu0 %v1276
  %5437 = vmatpush1.msra.mxu0 %v1275
  %5438 = vmatprep.subr.mxu0 %v1269
  %5439 = vmatpush1.msra.mxu0 %v1268
  %5440 = vmatprep.subr.mxu0 %v1262
  %5441 = vmatpush1.msra.mxu0 %v1261
  %5442 = vmatprep.subr.mxu0 %v1255
  %5443 = vmatpush1.msra.mxu0 %v1254
  %5444 = vmatprep.subr.mxu0 %v1248
  %5445 = vmatpush1.msra.mxu0 %v1247
  %5446 = vmatprep.subr.mxu0 %v1241
  %5447 = vmatpush1.msra.mxu0 %v1240
  %5448 = vmatprep.subr.mxu0 %v1234
  %5449 = vmatpush1.msra.mxu0 %v1233
  %5450 = vmatprep.subr.mxu0 %v1227
  %5451 = vmatpush1.msra.mxu0 %v1226
  %5452 = vmatprep.subr.mxu0 %v1220
  %5453 = vmatpush1.msra.mxu0 %v1219
  %5454 = vmatprep.subr.mxu0 %v1213
  %5455 = vmatpush1.msra.mxu0 %v1212
  %5456 = vmatprep.subr.mxu0 %v1206
  %5457 = vmatpush1.msra.mxu0 %v1205
  %5458 = vmatprep.subr.mxu0 %v1199
  %5459 = vmatpush1.msra.mxu0 %v1198
  %5460 = vmatprep.subr.mxu0 %v1192
  %5461 = vmatpush1.msra.mxu0 %v1191
  %5462 = vmatprep.subr.mxu0 %v1185
  %5463 = vmatpush1.msra.mxu0 %v1184
  %5464 = vmatprep.subr.mxu0 %v1402
  %5465 = vmatpush2.msra.mxu0 %v1401
  %5466 = vmatprep.subr.mxu0 %v1395
  %5467 = vmatpush2.msra.mxu0 %v1394
  %5468 = vmatprep.subr.mxu0 %v1388
  %5469 = vmatpush2.msra.mxu0 %v1387
  %5470 = vmatprep.subr.mxu0 %v1381
  %5471 = vmatpush2.msra.mxu0 %v1380
  %5472 = vmatprep.subr.mxu0 %v1374
  %5473 = vmatpush2.msra.mxu0 %v1373
  %5474 = vmatprep.subr.mxu0 %v1367
  %5475 = vmatpush2.msra.mxu0 %v1366
  %5476 = vmatprep.subr.mxu0 %v1360
  %5477 = vmatpush2.msra.mxu0 %v1359
  %5478 = vmatprep.subr.mxu0 %v1353
  %5479 = vmatpush2.msra.mxu0 %v1352
  %5480 = vmatprep.subr.mxu0 %v1346
  %5481 = vmatpush2.msra.mxu0 %v1345
  %5482 = vmatprep.subr.mxu0 %v1339
  %5483 = vmatpush2.msra.mxu0 %v1338
  %5484 = vmatprep.subr.mxu0 %v1332
  %5485 = vmatpush2.msra.mxu0 %v1331
  %5486 = vmatprep.subr.mxu0 %v1325
  %5487 = vmatpush2.msra.mxu0 %v1324
  %5488 = vmatprep.subr.mxu0 %v1318
  %5489 = vmatpush2.msra.mxu0 %v1317
  %5490 = vmatprep.subr.mxu0 %v1311
  %5491 = vmatpush2.msra.mxu0 %v1310
  %5492 = vmatprep.subr.mxu0 %v1304
  %5493 = vmatpush2.msra.mxu0 %v1303
  %5494 = vmatprep.subr.mxu0 %v1297
  %5495 = vmatpush2.msra.mxu0 %v1296
  %5496 = vmatprep.mubr.f32.mxu0 %v39
  %5497 = vmatmul.mubr.f32.gmra.mxu0 %v38
  %v5498 = vpop.f32.mrf.mxu0
  %v5499 = vadd.f32 %v5428, %v5498
  %v5500 = vpop.f32.mrf.mxu0
  %v5501 = vadd.f32 %v5430, %v5500
  %5502 = vdwg.mxu0
  %5503 = vmatprep.subr.mxu0 %v1514
  %5504 = vmatpush1.msra.mxu0 %v1513
  %5505 = vmatprep.subr.mxu0 %v1507
  %5506 = vmatpush1.msra.mxu0 %v1506
  %5507 = vmatprep.subr.mxu0 %v1500
  %5508 = vmatpush1.msra.mxu0 %v1499
  %5509 = vmatprep.subr.mxu0 %v1493
  %5510 = vmatpush1.msra.mxu0 %v1492
  %5511 = vmatprep.subr.mxu0 %v1486
  %5512 = vmatpush1.msra.mxu0 %v1485
  %5513 = vmatprep.subr.mxu0 %v1479
  %5514 = vmatpush1.msra.mxu0 %v1478
  %5515 = vmatprep.subr.mxu0 %v1472
  %5516 = vmatpush1.msra.mxu0 %v1471
  %5517 = vmatprep.subr.mxu0 %v1465
  %5518 = vmatpush1.msra.mxu0 %v1464
  %5519 = vmatprep.subr.mxu0 %v1458
  %5520 = vmatpush1.msra.mxu0 %v1457
  %5521 = vmatprep.subr.mxu0 %v1451
  %5522 = vmatpush1.msra.mxu0 %v1450
  %5523 = vmatprep.subr.mxu0 %v1444
  %5524 = vmatpush1.msra.mxu0 %v1443
  %5525 = vmatprep.subr.mxu0 %v1437
  %5526 = vmatpush1.msra.mxu0 %v1436
  %5527 = vmatprep.subr.mxu0 %v1430
  %5528 = vmatpush1.msra.mxu0 %v1429
  %5529 = vmatprep.subr.mxu0 %v1423
  %5530 = vmatpush1.msra.mxu0 %v1422
  %5531 = vmatprep.subr.mxu0 %v1416
  %5532 = vmatpush1.msra.mxu0 %v1415
  %5533 = vmatprep.subr.mxu0 %v1409
  %5534 = vmatpush1.msra.mxu0 %v1408
  %5535 = vmatprep.subr.mxu0 %v1626
  %5536 = vmatpush2.msra.mxu0 %v1625
  %5537 = vmatprep.subr.mxu0 %v1619
  %5538 = vmatpush2.msra.mxu0 %v1618
  %5539 = vmatprep.subr.mxu0 %v1612
  %5540 = vmatpush2.msra.mxu0 %v1611
  %5541 = vmatprep.subr.mxu0 %v1605
  %5542 = vmatpush2.msra.mxu0 %v1604
  %5543 = vmatprep.subr.mxu0 %v1598
  %5544 = vmatpush2.msra.mxu0 %v1597
  %5545 = vmatprep.subr.mxu0 %v1591
  %5546 = vmatpush2.msra.mxu0 %v1590
  %5547 = vmatprep.subr.mxu0 %v1584
  %5548 = vmatpush2.msra.mxu0 %v1583
  %5549 = vmatprep.subr.mxu0 %v1577
  %5550 = vmatpush2.msra.mxu0 %v1576
  %5551 = vmatprep.subr.mxu0 %v1570
  %5552 = vmatpush2.msra.mxu0 %v1569
  %5553 = vmatprep.subr.mxu0 %v1563
  %5554 = vmatpush2.msra.mxu0 %v1562
  %5555 = vmatprep.subr.mxu0 %v1556
  %5556 = vmatpush2.msra.mxu0 %v1555
  %5557 = vmatprep.subr.mxu0 %v1549
  %5558 = vmatpush2.msra.mxu0 %v1548
  %5559 = vmatprep.subr.mxu0 %v1542
  %5560 = vmatpush2.msra.mxu0 %v1541
  %5561 = vmatprep.subr.mxu0 %v1535
  %5562 = vmatpush2.msra.mxu0 %v1534
  %5563 = vmatprep.subr.mxu0 %v1528
  %5564 = vmatpush2.msra.mxu0 %v1527
  %5565 = vmatprep.subr.mxu0 %v1521
  %5566 = vmatpush2.msra.mxu0 %v1520
  %5567 = vmatprep.mubr.f32.mxu0 %v41
  %5568 = vmatmul.mubr.f32.gmra.mxu0 %v40
  %v5569 = vpop.f32.mrf.mxu0
  %v5570 = vadd.f32 %v5499, %v5569
  %v5571 = vpop.f32.mrf.mxu0
  %v5572 = vadd.f32 %v5501, %v5571
  %5573 = vdwg.mxu0
  %5574 = vmatprep.subr.mxu0 %v1738
  %5575 = vmatpush1.msra.mxu0 %v1737
  %5576 = vmatprep.subr.mxu0 %v1731
  %5577 = vmatpush1.msra.mxu0 %v1730
  %5578 = vmatprep.subr.mxu0 %v1724
  %5579 = vmatpush1.msra.mxu0 %v1723
  %5580 = vmatprep.subr.mxu0 %v1717
  %5581 = vmatpush1.msra.mxu0 %v1716
  %5582 = vmatprep.subr.mxu0 %v1710
  %5583 = vmatpush1.msra.mxu0 %v1709
  %5584 = vmatprep.subr.mxu0 %v1703
  %5585 = vmatpush1.msra.mxu0 %v1702
  %5586 = vmatprep.subr.mxu0 %v1696
  %5587 = vmatpush1.msra.mxu0 %v1695
  %5588 = vmatprep.subr.mxu0 %v1689
  %5589 = vmatpush1.msra.mxu0 %v1688
  %5590 = vmatprep.subr.mxu0 %v1682
  %5591 = vmatpush1.msra.mxu0 %v1681
  %5592 = vmatprep.subr.mxu0 %v1675
  %5593 = vmatpush1.msra.mxu0 %v1674
  %5594 = vmatprep.subr.mxu0 %v1668
  %5595 = vmatpush1.msra.mxu0 %v1667
  %5596 = vmatprep.subr.mxu0 %v1661
  %5597 = vmatpush1.msra.mxu0 %v1660
  %5598 = vmatprep.subr.mxu0 %v1654
  %5599 = vmatpush1.msra.mxu0 %v1653
  %5600 = vmatprep.subr.mxu0 %v1647
  %5601 = vmatpush1.msra.mxu0 %v1646
  %5602 = vmatprep.subr.mxu0 %v1640
  %5603 = vmatpush1.msra.mxu0 %v1639
  %5604 = vmatprep.subr.mxu0 %v1633
  %5605 = vmatpush1.msra.mxu0 %v1632
  %5606 = vmatprep.subr.mxu0 %v1850
  %5607 = vmatpush2.msra.mxu0 %v1849
  %5608 = vmatprep.subr.mxu0 %v1843
  %5609 = vmatpush2.msra.mxu0 %v1842
  %5610 = vmatprep.subr.mxu0 %v1836
  %5611 = vmatpush2.msra.mxu0 %v1835
  %5612 = vmatprep.subr.mxu0 %v1829
  %5613 = vmatpush2.msra.mxu0 %v1828
  %5614 = vmatprep.subr.mxu0 %v1822
  %5615 = vmatpush2.msra.mxu0 %v1821
  %5616 = vmatprep.subr.mxu0 %v1815
  %5617 = vmatpush2.msra.mxu0 %v1814
  %5618 = vmatprep.subr.mxu0 %v1808
  %5619 = vmatpush2.msra.mxu0 %v1807
  %5620 = vmatprep.subr.mxu0 %v1801
  %5621 = vmatpush2.msra.mxu0 %v1800
  %5622 = vmatprep.subr.mxu0 %v1794
  %5623 = vmatpush2.msra.mxu0 %v1793
  %5624 = vmatprep.subr.mxu0 %v1787
  %5625 = vmatpush2.msra.mxu0 %v1786
  %5626 = vmatprep.subr.mxu0 %v1780
  %5627 = vmatpush2.msra.mxu0 %v1779
  %5628 = vmatprep.subr.mxu0 %v1773
  %5629 = vmatpush2.msra.mxu0 %v1772
  %5630 = vmatprep.subr.mxu0 %v1766
  %5631 = vmatpush2.msra.mxu0 %v1765
  %5632 = vmatprep.subr.mxu0 %v1759
  %5633 = vmatpush2.msra.mxu0 %v1758
  %5634 = vmatprep.subr.mxu0 %v1752
  %5635 = vmatpush2.msra.mxu0 %v1751
  %5636 = vmatprep.subr.mxu0 %v1745
  %5637 = vmatpush2.msra.mxu0 %v1744
  %5638 = vmatprep.mubr.f32.mxu0 %v43
  %5639 = vmatmul.mubr.f32.gmra.mxu0 %v42
  %v5640 = vpop.f32.mrf.mxu0
  %v5641 = vadd.f32 %v5570, %v5640
  %v5642 = vpop.f32.mrf.mxu0
  %v5643 = vadd.f32 %v5572, %v5642
  %5644 = vdwg.mxu0
  %5645 = vmatprep.subr.mxu0 %v1962
  %5646 = vmatpush1.msra.mxu0 %v1961
  %5647 = vmatprep.subr.mxu0 %v1955
  %5648 = vmatpush1.msra.mxu0 %v1954
  %5649 = vmatprep.subr.mxu0 %v1948
  %5650 = vmatpush1.msra.mxu0 %v1947
  %5651 = vmatprep.subr.mxu0 %v1941
  %5652 = vmatpush1.msra.mxu0 %v1940
  %5653 = vmatprep.subr.mxu0 %v1934
  %5654 = vmatpush1.msra.mxu0 %v1933
  %5655 = vmatprep.subr.mxu0 %v1927
  %5656 = vmatpush1.msra.mxu0 %v1926
  %5657 = vmatprep.subr.mxu0 %v1920
  %5658 = vmatpush1.msra.mxu0 %v1919
  %5659 = vmatprep.subr.mxu0 %v1913
  %5660 = vmatpush1.msra.mxu0 %v1912
  %5661 = vmatprep.subr.mxu0 %v1906
  %5662 = vmatpush1.msra.mxu0 %v1905
  %5663 = vmatprep.subr.mxu0 %v1899
  %5664 = vmatpush1.msra.mxu0 %v1898
  %5665 = vmatprep.subr.mxu0 %v1892
  %5666 = vmatpush1.msra.mxu0 %v1891
  %5667 = vmatprep.subr.mxu0 %v1885
  %5668 = vmatpush1.msra.mxu0 %v1884
  %5669 = vmatprep.subr.mxu0 %v1878
  %5670 = vmatpush1.msra.mxu0 %v1877
  %5671 = vmatprep.subr.mxu0 %v1871
  %5672 = vmatpush1.msra.mxu0 %v1870
  %5673 = vmatprep.subr.mxu0 %v1864
  %5674 = vmatpush1.msra.mxu0 %v1863
  %5675 = vmatprep.subr.mxu0 %v1857
  %5676 = vmatpush1.msra.mxu0 %v1856
  %5677 = vmatprep.subr.mxu0 %v2074
  %5678 = vmatpush2.msra.mxu0 %v2073
  %5679 = vmatprep.subr.mxu0 %v2067
  %5680 = vmatpush2.msra.mxu0 %v2066
  %5681 = vmatprep.subr.mxu0 %v2060
  %5682 = vmatpush2.msra.mxu0 %v2059
  %5683 = vmatprep.subr.mxu0 %v2053
  %5684 = vmatpush2.msra.mxu0 %v2052
  %5685 = vmatprep.subr.mxu0 %v2046
  %5686 = vmatpush2.msra.mxu0 %v2045
  %5687 = vmatprep.subr.mxu0 %v2039
  %5688 = vmatpush2.msra.mxu0 %v2038
  %5689 = vmatprep.subr.mxu0 %v2032
  %5690 = vmatpush2.msra.mxu0 %v2031
  %5691 = vmatprep.subr.mxu0 %v2025
  %5692 = vmatpush2.msra.mxu0 %v2024
  %5693 = vmatprep.subr.mxu0 %v2018
  %5694 = vmatpush2.msra.mxu0 %v2017
  %5695 = vmatprep.subr.mxu0 %v2011
  %5696 = vmatpush2.msra.mxu0 %v2010
  %5697 = vmatprep.subr.mxu0 %v2004
  %5698 = vmatpush2.msra.mxu0 %v2003
  %5699 = vmatprep.subr.mxu0 %v1997
  %5700 = vmatpush2.msra.mxu0 %v1996
  %5701 = vmatprep.subr.mxu0 %v1990
  %5702 = vmatpush2.msra.mxu0 %v1989
  %5703 = vmatprep.subr.mxu0 %v1983
  %5704 = vmatpush2.msra.mxu0 %v1982
  %5705 = vmatprep.subr.mxu0 %v1976
  %5706 = vmatpush2.msra.mxu0 %v1975
  %5707 = vmatprep.subr.mxu0 %v1969
  %5708 = vmatpush2.msra.mxu0 %v1968
  %5709 = vmatprep.mubr.f32.mxu0 %v45
  %5710 = vmatmul.mubr.f32.gmra.mxu0 %v44
  %v5711 = vpop.f32.mrf.mxu0
  %v5712 = vadd.f32 %v5641, %v5711
  %v5713 = vpop.f32.mrf.mxu0
  %v5714 = vadd.f32 %v5643, %v5713
  %5715 = vdwg.mxu0
  %5716 = vmatprep.subr.mxu0 %v2186
  %5717 = vmatpush1.msra.mxu0 %v2185
  %5718 = vmatprep.subr.mxu0 %v2179
  %5719 = vmatpush1.msra.mxu0 %v2178
  %5720 = vmatprep.subr.mxu0 %v2172
  %5721 = vmatpush1.msra.mxu0 %v2171
  %5722 = vmatprep.subr.mxu0 %v2165
  %5723 = vmatpush1.msra.mxu0 %v2164
  %5724 = vmatprep.subr.mxu0 %v2158
  %5725 = vmatpush1.msra.mxu0 %v2157
  %5726 = vmatprep.subr.mxu0 %v2151
  %5727 = vmatpush1.msra.mxu0 %v2150
  %5728 = vmatprep.subr.mxu0 %v2144
  %5729 = vmatpush1.msra.mxu0 %v2143
  %5730 = vmatprep.subr.mxu0 %v2137
  %5731 = vmatpush1.msra.mxu0 %v2136
  %5732 = vmatprep.subr.mxu0 %v2130
  %5733 = vmatpush1.msra.mxu0 %v2129
  %5734 = vmatprep.subr.mxu0 %v2123
  %5735 = vmatpush1.msra.mxu0 %v2122
  %5736 = vmatprep.subr.mxu0 %v2116
  %5737 = vmatpush1.msra.mxu0 %v2115
  %5738 = vmatprep.subr.mxu0 %v2109
  %5739 = vmatpush1.msra.mxu0 %v2108
  %5740 = vmatprep.subr.mxu0 %v2102
  %5741 = vmatpush1.msra.mxu0 %v2101
  %5742 = vmatprep.subr.mxu0 %v2095
  %5743 = vmatpush1.msra.mxu0 %v2094
  %5744 = vmatprep.subr.mxu0 %v2088
  %5745 = vmatpush1.msra.mxu0 %v2087
  %5746 = vmatprep.subr.mxu0 %v2081
  %5747 = vmatpush1.msra.mxu0 %v2080
  %5748 = vmatprep.subr.mxu0 %v2298
  %5749 = vmatpush2.msra.mxu0 %v2297
  %5750 = vmatprep.subr.mxu0 %v2291
  %5751 = vmatpush2.msra.mxu0 %v2290
  %5752 = vmatprep.subr.mxu0 %v2284
  %5753 = vmatpush2.msra.mxu0 %v2283
  %5754 = vmatprep.subr.mxu0 %v2277
  %5755 = vmatpush2.msra.mxu0 %v2276
  %5756 = vmatprep.subr.mxu0 %v2270
  %5757 = vmatpush2.msra.mxu0 %v2269
  %5758 = vmatprep.subr.mxu0 %v2263
  %5759 = vmatpush2.msra.mxu0 %v2262
  %5760 = vmatprep.subr.mxu0 %v2256
  %5761 = vmatpush2.msra.mxu0 %v2255
  %5762 = vmatprep.subr.mxu0 %v2249
  %5763 = vmatpush2.msra.mxu0 %v2248
  %5764 = vmatprep.subr.mxu0 %v2242
  %5765 = vmatpush2.msra.mxu0 %v2241
  %5766 = vmatprep.subr.mxu0 %v2235
  %5767 = vmatpush2.msra.mxu0 %v2234
  %5768 = vmatprep.subr.mxu0 %v2228
  %5769 = vmatpush2.msra.mxu0 %v2227
  %5770 = vmatprep.subr.mxu0 %v2221
  %5771 = vmatpush2.msra.mxu0 %v2220
  %5772 = vmatprep.subr.mxu0 %v2214
  %5773 = vmatpush2.msra.mxu0 %v2213
  %5774 = vmatprep.subr.mxu0 %v2207
  %5775 = vmatpush2.msra.mxu0 %v2206
  %5776 = vmatprep.subr.mxu0 %v2200
  %5777 = vmatpush2.msra.mxu0 %v2199
  %5778 = vmatprep.subr.mxu0 %v2193
  %5779 = vmatpush2.msra.mxu0 %v2192
  %5780 = vmatprep.mubr.f32.mxu0 %v47
  %5781 = vmatmul.mubr.f32.gmra.mxu0 %v46
  %v5782 = vpop.f32.mrf.mxu0
  %v5783 = vadd.f32 %v5712, %v5782
  %v5784 = vpop.f32.mrf.mxu0
  %v5785 = vadd.f32 %v5714, %v5784
  %5786 = vdwg.mxu0
  %5787 = vmatprep.subr.mxu0 %v2410
  %5788 = vmatpush1.msra.mxu0 %v2409
  %5789 = vmatprep.subr.mxu0 %v2403
  %5790 = vmatpush1.msra.mxu0 %v2402
  %5791 = vmatprep.subr.mxu0 %v2396
  %5792 = vmatpush1.msra.mxu0 %v2395
  %5793 = vmatprep.subr.mxu0 %v2389
  %5794 = vmatpush1.msra.mxu0 %v2388
  %5795 = vmatprep.subr.mxu0 %v2382
  %5796 = vmatpush1.msra.mxu0 %v2381
  %5797 = vmatprep.subr.mxu0 %v2375
  %5798 = vmatpush1.msra.mxu0 %v2374
  %5799 = vmatprep.subr.mxu0 %v2368
  %5800 = vmatpush1.msra.mxu0 %v2367
  %5801 = vmatprep.subr.mxu0 %v2361
  %5802 = vmatpush1.msra.mxu0 %v2360
  %5803 = vmatprep.subr.mxu0 %v2354
  %5804 = vmatpush1.msra.mxu0 %v2353
  %5805 = vmatprep.subr.mxu0 %v2347
  %5806 = vmatpush1.msra.mxu0 %v2346
  %5807 = vmatprep.subr.mxu0 %v2340
  %5808 = vmatpush1.msra.mxu0 %v2339
  %5809 = vmatprep.subr.mxu0 %v2333
  %5810 = vmatpush1.msra.mxu0 %v2332
  %5811 = vmatprep.subr.mxu0 %v2326
  %5812 = vmatpush1.msra.mxu0 %v2325
  %5813 = vmatprep.subr.mxu0 %v2319
  %5814 = vmatpush1.msra.mxu0 %v2318
  %5815 = vmatprep.subr.mxu0 %v2312
  %5816 = vmatpush1.msra.mxu0 %v2311
  %5817 = vmatprep.subr.mxu0 %v2305
  %5818 = vmatpush1.msra.mxu0 %v2304
  %5819 = vmatprep.subr.mxu0 %v2522
  %5820 = vmatpush2.msra.mxu0 %v2521
  %5821 = vmatprep.subr.mxu0 %v2515
  %5822 = vmatpush2.msra.mxu0 %v2514
  %5823 = vmatprep.subr.mxu0 %v2508
  %5824 = vmatpush2.msra.mxu0 %v2507
  %5825 = vmatprep.subr.mxu0 %v2501
  %5826 = vmatpush2.msra.mxu0 %v2500
  %5827 = vmatprep.subr.mxu0 %v2494
  %5828 = vmatpush2.msra.mxu0 %v2493
  %5829 = vmatprep.subr.mxu0 %v2487
  %5830 = vmatpush2.msra.mxu0 %v2486
  %5831 = vmatprep.subr.mxu0 %v2480
  %5832 = vmatpush2.msra.mxu0 %v2479
  %5833 = vmatprep.subr.mxu0 %v2473
  %5834 = vmatpush2.msra.mxu0 %v2472
  %5835 = vmatprep.subr.mxu0 %v2466
  %5836 = vmatpush2.msra.mxu0 %v2465
  %5837 = vmatprep.subr.mxu0 %v2459
  %5838 = vmatpush2.msra.mxu0 %v2458
  %5839 = vmatprep.subr.mxu0 %v2452
  %5840 = vmatpush2.msra.mxu0 %v2451
  %5841 = vmatprep.subr.mxu0 %v2445
  %5842 = vmatpush2.msra.mxu0 %v2444
  %5843 = vmatprep.subr.mxu0 %v2438
  %5844 = vmatpush2.msra.mxu0 %v2437
  %5845 = vmatprep.subr.mxu0 %v2431
  %5846 = vmatpush2.msra.mxu0 %v2430
  %5847 = vmatprep.subr.mxu0 %v2424
  %5848 = vmatpush2.msra.mxu0 %v2423
  %5849 = vmatprep.subr.mxu0 %v2417
  %5850 = vmatpush2.msra.mxu0 %v2416
  %5851 = vmatprep.mubr.f32.mxu0 %v49
  %5852 = vmatmul.mubr.f32.gmra.mxu0 %v48
  %v5853 = vpop.f32.mrf.mxu0
  %v5854 = vadd.f32 %v5783, %v5853
  %v5855 = vpop.f32.mrf.mxu0
  %v5856 = vadd.f32 %v5785, %v5855
  %5857 = vdwg.mxu0
  %5858 = vmatprep.subr.mxu0 %v2634
  %5859 = vmatpush1.msra.mxu0 %v2633
  %5860 = vmatprep.subr.mxu0 %v2627
  %5861 = vmatpush1.msra.mxu0 %v2626
  %5862 = vmatprep.subr.mxu0 %v2620
  %5863 = vmatpush1.msra.mxu0 %v2619
  %5864 = vmatprep.subr.mxu0 %v2613
  %5865 = vmatpush1.msra.mxu0 %v2612
  %5866 = vmatprep.subr.mxu0 %v2606
  %5867 = vmatpush1.msra.mxu0 %v2605
  %5868 = vmatprep.subr.mxu0 %v2599
  %5869 = vmatpush1.msra.mxu0 %v2598
  %5870 = vmatprep.subr.mxu0 %v2592
  %5871 = vmatpush1.msra.mxu0 %v2591
  %5872 = vmatprep.subr.mxu0 %v2585
  %5873 = vmatpush1.msra.mxu0 %v2584
  %5874 = vmatprep.subr.mxu0 %v2578
  %5875 = vmatpush1.msra.mxu0 %v2577
  %5876 = vmatprep.subr.mxu0 %v2571
  %5877 = vmatpush1.msra.mxu0 %v2570
  %5878 = vmatprep.subr.mxu0 %v2564
  %5879 = vmatpush1.msra.mxu0 %v2563
  %5880 = vmatprep.subr.mxu0 %v2557
  %5881 = vmatpush1.msra.mxu0 %v2556
  %5882 = vmatprep.subr.mxu0 %v2550
  %5883 = vmatpush1.msra.mxu0 %v2549
  %5884 = vmatprep.subr.mxu0 %v2543
  %5885 = vmatpush1.msra.mxu0 %v2542
  %5886 = vmatprep.subr.mxu0 %v2536
  %5887 = vmatpush1.msra.mxu0 %v2535
  %5888 = vmatprep.subr.mxu0 %v2529
  %5889 = vmatpush1.msra.mxu0 %v2528
  %5890 = vmatprep.subr.mxu0 %v2746
  %5891 = vmatpush2.msra.mxu0 %v2745
  %5892 = vmatprep.subr.mxu0 %v2739
  %5893 = vmatpush2.msra.mxu0 %v2738
  %5894 = vmatprep.subr.mxu0 %v2732
  %5895 = vmatpush2.msra.mxu0 %v2731
  %5896 = vmatprep.subr.mxu0 %v2725
  %5897 = vmatpush2.msra.mxu0 %v2724
  %5898 = vmatprep.subr.mxu0 %v2718
  %5899 = vmatpush2.msra.mxu0 %v2717
  %5900 = vmatprep.subr.mxu0 %v2711
  %5901 = vmatpush2.msra.mxu0 %v2710
  %5902 = vmatprep.subr.mxu0 %v2704
  %5903 = vmatpush2.msra.mxu0 %v2703
  %5904 = vmatprep.subr.mxu0 %v2697
  %5905 = vmatpush2.msra.mxu0 %v2696
  %5906 = vmatprep.subr.mxu0 %v2690
  %5907 = vmatpush2.msra.mxu0 %v2689
  %5908 = vmatprep.subr.mxu0 %v2683
  %5909 = vmatpush2.msra.mxu0 %v2682
  %5910 = vmatprep.subr.mxu0 %v2676
  %5911 = vmatpush2.msra.mxu0 %v2675
  %5912 = vmatprep.subr.mxu0 %v2669
  %5913 = vmatpush2.msra.mxu0 %v2668
  %5914 = vmatprep.subr.mxu0 %v2662
  %5915 = vmatpush2.msra.mxu0 %v2661
  %5916 = vmatprep.subr.mxu0 %v2655
  %5917 = vmatpush2.msra.mxu0 %v2654
  %5918 = vmatprep.subr.mxu0 %v2648
  %5919 = vmatpush2.msra.mxu0 %v2647
  %5920 = vmatprep.subr.mxu0 %v2641
  %5921 = vmatpush2.msra.mxu0 %v2640
  %5922 = vmatprep.mubr.f32.mxu0 %v51
  %5923 = vmatmul.mubr.f32.gmra.mxu0 %v50
  %v5924 = vpop.f32.mrf.mxu0
  %v5925 = vadd.f32 %v5854, %v5924
  %v5926 = vpop.f32.mrf.mxu0
  %v5927 = vadd.f32 %v5856, %v5926
  %5928 = vdwg.mxu0
  %5929 = vmatprep.subr.mxu0 %v2858
  %5930 = vmatpush1.msra.mxu0 %v2857
  %5931 = vmatprep.subr.mxu0 %v2851
  %5932 = vmatpush1.msra.mxu0 %v2850
  %5933 = vmatprep.subr.mxu0 %v2844
  %5934 = vmatpush1.msra.mxu0 %v2843
  %5935 = vmatprep.subr.mxu0 %v2837
  %5936 = vmatpush1.msra.mxu0 %v2836
  %5937 = vmatprep.subr.mxu0 %v2830
  %5938 = vmatpush1.msra.mxu0 %v2829
  %5939 = vmatprep.subr.mxu0 %v2823
  %5940 = vmatpush1.msra.mxu0 %v2822
  %5941 = vmatprep.subr.mxu0 %v2816
  %5942 = vmatpush1.msra.mxu0 %v2815
  %5943 = vmatprep.subr.mxu0 %v2809
  %5944 = vmatpush1.msra.mxu0 %v2808
  %5945 = vmatprep.subr.mxu0 %v2802
  %5946 = vmatpush1.msra.mxu0 %v2801
  %5947 = vmatprep.subr.mxu0 %v2795
  %5948 = vmatpush1.msra.mxu0 %v2794
  %5949 = vmatprep.subr.mxu0 %v2788
  %5950 = vmatpush1.msra.mxu0 %v2787
  %5951 = vmatprep.subr.mxu0 %v2781
  %5952 = vmatpush1.msra.mxu0 %v2780
  %5953 = vmatprep.subr.mxu0 %v2774
  %5954 = vmatpush1.msra.mxu0 %v2773
  %5955 = vmatprep.subr.mxu0 %v2767
  %5956 = vmatpush1.msra.mxu0 %v2766
  %5957 = vmatprep.subr.mxu0 %v2760
  %5958 = vmatpush1.msra.mxu0 %v2759
  %5959 = vmatprep.subr.mxu0 %v2753
  %5960 = vmatpush1.msra.mxu0 %v2752
  %5961 = vmatprep.subr.mxu0 %v2970
  %5962 = vmatpush2.msra.mxu0 %v2969
  %5963 = vmatprep.subr.mxu0 %v2963
  %5964 = vmatpush2.msra.mxu0 %v2962
  %5965 = vmatprep.subr.mxu0 %v2956
  %5966 = vmatpush2.msra.mxu0 %v2955
  %5967 = vmatprep.subr.mxu0 %v2949
  %5968 = vmatpush2.msra.mxu0 %v2948
  %5969 = vmatprep.subr.mxu0 %v2942
  %5970 = vmatpush2.msra.mxu0 %v2941
  %5971 = vmatprep.subr.mxu0 %v2935
  %5972 = vmatpush2.msra.mxu0 %v2934
  %5973 = vmatprep.subr.mxu0 %v2928
  %5974 = vmatpush2.msra.mxu0 %v2927
  %5975 = vmatprep.subr.mxu0 %v2921
  %5976 = vmatpush2.msra.mxu0 %v2920
  %5977 = vmatprep.subr.mxu0 %v2914
  %5978 = vmatpush2.msra.mxu0 %v2913
  %5979 = vmatprep.subr.mxu0 %v2907
  %5980 = vmatpush2.msra.mxu0 %v2906
  %5981 = vmatprep.subr.mxu0 %v2900
  %5982 = vmatpush2.msra.mxu0 %v2899
  %5983 = vmatprep.subr.mxu0 %v2893
  %5984 = vmatpush2.msra.mxu0 %v2892
  %5985 = vmatprep.subr.mxu0 %v2886
  %5986 = vmatpush2.msra.mxu0 %v2885
  %5987 = vmatprep.subr.mxu0 %v2879
  %5988 = vmatpush2.msra.mxu0 %v2878
  %5989 = vmatprep.subr.mxu0 %v2872
  %5990 = vmatpush2.msra.mxu0 %v2871
  %5991 = vmatprep.subr.mxu0 %v2865
  %5992 = vmatpush2.msra.mxu0 %v2864
  %5993 = vmatprep.mubr.f32.mxu0 %v53
  %5994 = vmatmul.mubr.f32.gmra.mxu0 %v52
  %v5995 = vpop.f32.mrf.mxu0
  %v5996 = vadd.f32 %v5925, %v5995
  %v5997 = vpop.f32.mrf.mxu0
  %v5998 = vadd.f32 %v5927, %v5997
  %5999 = vdwg.mxu0
  %6000 = vmatprep.subr.mxu0 %v3082
  %6001 = vmatpush1.msra.mxu0 %v3081
  %6002 = vmatprep.subr.mxu0 %v3075
  %6003 = vmatpush1.msra.mxu0 %v3074
  %6004 = vmatprep.subr.mxu0 %v3068
  %6005 = vmatpush1.msra.mxu0 %v3067
  %6006 = vmatprep.subr.mxu0 %v3061
  %6007 = vmatpush1.msra.mxu0 %v3060
  %6008 = vmatprep.subr.mxu0 %v3054
  %6009 = vmatpush1.msra.mxu0 %v3053
  %6010 = vmatprep.subr.mxu0 %v3047
  %6011 = vmatpush1.msra.mxu0 %v3046
  %6012 = vmatprep.subr.mxu0 %v3040
  %6013 = vmatpush1.msra.mxu0 %v3039
  %6014 = vmatprep.subr.mxu0 %v3033
  %6015 = vmatpush1.msra.mxu0 %v3032
  %6016 = vmatprep.subr.mxu0 %v3026
  %6017 = vmatpush1.msra.mxu0 %v3025
  %6018 = vmatprep.subr.mxu0 %v3019
  %6019 = vmatpush1.msra.mxu0 %v3018
  %6020 = vmatprep.subr.mxu0 %v3012
  %6021 = vmatpush1.msra.mxu0 %v3011
  %6022 = vmatprep.subr.mxu0 %v3005
  %6023 = vmatpush1.msra.mxu0 %v3004
  %6024 = vmatprep.subr.mxu0 %v2998
  %6025 = vmatpush1.msra.mxu0 %v2997
  %6026 = vmatprep.subr.mxu0 %v2991
  %6027 = vmatpush1.msra.mxu0 %v2990
  %6028 = vmatprep.subr.mxu0 %v2984
  %6029 = vmatpush1.msra.mxu0 %v2983
  %6030 = vmatprep.subr.mxu0 %v2977
  %6031 = vmatpush1.msra.mxu0 %v2976
  %6032 = vmatprep.subr.mxu0 %v3194
  %6033 = vmatpush2.msra.mxu0 %v3193
  %6034 = vmatprep.subr.mxu0 %v3187
  %6035 = vmatpush2.msra.mxu0 %v3186
  %6036 = vmatprep.subr.mxu0 %v3180
  %6037 = vmatpush2.msra.mxu0 %v3179
  %6038 = vmatprep.subr.mxu0 %v3173
  %6039 = vmatpush2.msra.mxu0 %v3172
  %6040 = vmatprep.subr.mxu0 %v3166
  %6041 = vmatpush2.msra.mxu0 %v3165
  %6042 = vmatprep.subr.mxu0 %v3159
  %6043 = vmatpush2.msra.mxu0 %v3158
  %6044 = vmatprep.subr.mxu0 %v3152
  %6045 = vmatpush2.msra.mxu0 %v3151
  %6046 = vmatprep.subr.mxu0 %v3145
  %6047 = vmatpush2.msra.mxu0 %v3144
  %6048 = vmatprep.subr.mxu0 %v3138
  %6049 = vmatpush2.msra.mxu0 %v3137
  %6050 = vmatprep.subr.mxu0 %v3131
  %6051 = vmatpush2.msra.mxu0 %v3130
  %6052 = vmatprep.subr.mxu0 %v3124
  %6053 = vmatpush2.msra.mxu0 %v3123
  %6054 = vmatprep.subr.mxu0 %v3117
  %6055 = vmatpush2.msra.mxu0 %v3116
  %6056 = vmatprep.subr.mxu0 %v3110
  %6057 = vmatpush2.msra.mxu0 %v3109
  %6058 = vmatprep.subr.mxu0 %v3103
  %6059 = vmatpush2.msra.mxu0 %v3102
  %6060 = vmatprep.subr.mxu0 %v3096
  %6061 = vmatpush2.msra.mxu0 %v3095
  %6062 = vmatprep.subr.mxu0 %v3089
  %6063 = vmatpush2.msra.mxu0 %v3088
  %6064 = vmatprep.mubr.f32.mxu0 %v55
  %6065 = vmatmul.mubr.f32.gmra.mxu0 %v54
  %v6066 = vpop.f32.mrf.mxu0
  %v6067 = vadd.f32 %v5996, %v6066
  %v6068 = vpop.f32.mrf.mxu0
  %v6069 = vadd.f32 %v5998, %v6068
  %6070 = vdwg.mxu0
  %6071 = vmatprep.subr.mxu0 %v3306
  %6072 = vmatpush1.msra.mxu0 %v3305
  %6073 = vmatprep.subr.mxu0 %v3299
  %6074 = vmatpush1.msra.mxu0 %v3298
  %6075 = vmatprep.subr.mxu0 %v3292
  %6076 = vmatpush1.msra.mxu0 %v3291
  %6077 = vmatprep.subr.mxu0 %v3285
  %6078 = vmatpush1.msra.mxu0 %v3284
  %6079 = vmatprep.subr.mxu0 %v3278
  %6080 = vmatpush1.msra.mxu0 %v3277
  %6081 = vmatprep.subr.mxu0 %v3271
  %6082 = vmatpush1.msra.mxu0 %v3270
  %6083 = vmatprep.subr.mxu0 %v3264
  %6084 = vmatpush1.msra.mxu0 %v3263
  %6085 = vmatprep.subr.mxu0 %v3257
  %6086 = vmatpush1.msra.mxu0 %v3256
  %6087 = vmatprep.subr.mxu0 %v3250
  %6088 = vmatpush1.msra.mxu0 %v3249
  %6089 = vmatprep.subr.mxu0 %v3243
  %6090 = vmatpush1.msra.mxu0 %v3242
  %6091 = vmatprep.subr.mxu0 %v3236
  %6092 = vmatpush1.msra.mxu0 %v3235
  %6093 = vmatprep.subr.mxu0 %v3229
  %6094 = vmatpush1.msra.mxu0 %v3228
  %6095 = vmatprep.subr.mxu0 %v3222
  %6096 = vmatpush1.msra.mxu0 %v3221
  %6097 = vmatprep.subr.mxu0 %v3215
  %6098 = vmatpush1.msra.mxu0 %v3214
  %6099 = vmatprep.subr.mxu0 %v3208
  %6100 = vmatpush1.msra.mxu0 %v3207
  %6101 = vmatprep.subr.mxu0 %v3201
  %6102 = vmatpush1.msra.mxu0 %v3200
  %6103 = vmatprep.subr.mxu0 %v3418
  %6104 = vmatpush2.msra.mxu0 %v3417
  %6105 = vmatprep.subr.mxu0 %v3411
  %6106 = vmatpush2.msra.mxu0 %v3410
  %6107 = vmatprep.subr.mxu0 %v3404
  %6108 = vmatpush2.msra.mxu0 %v3403
  %6109 = vmatprep.subr.mxu0 %v3397
  %6110 = vmatpush2.msra.mxu0 %v3396
  %6111 = vmatprep.subr.mxu0 %v3390
  %6112 = vmatpush2.msra.mxu0 %v3389
  %6113 = vmatprep.subr.mxu0 %v3383
  %6114 = vmatpush2.msra.mxu0 %v3382
  %6115 = vmatprep.subr.mxu0 %v3376
  %6116 = vmatpush2.msra.mxu0 %v3375
  %6117 = vmatprep.subr.mxu0 %v3369
  %6118 = vmatpush2.msra.mxu0 %v3368
  %6119 = vmatprep.subr.mxu0 %v3362
  %6120 = vmatpush2.msra.mxu0 %v3361
  %6121 = vmatprep.subr.mxu0 %v3355
  %6122 = vmatpush2.msra.mxu0 %v3354
  %6123 = vmatprep.subr.mxu0 %v3348
  %6124 = vmatpush2.msra.mxu0 %v3347
  %6125 = vmatprep.subr.mxu0 %v3341
  %6126 = vmatpush2.msra.mxu0 %v3340
  %6127 = vmatprep.subr.mxu0 %v3334
  %6128 = vmatpush2.msra.mxu0 %v3333
  %6129 = vmatprep.subr.mxu0 %v3327
  %6130 = vmatpush2.msra.mxu0 %v3326
  %6131 = vmatprep.subr.mxu0 %v3320
  %6132 = vmatpush2.msra.mxu0 %v3319
  %6133 = vmatprep.subr.mxu0 %v3313
  %6134 = vmatpush2.msra.mxu0 %v3312
  %6135 = vmatprep.mubr.f32.mxu0 %v57
  %6136 = vmatmul.mubr.f32.gmra.mxu0 %v56
  %v6137 = vpop.f32.mrf.mxu0
  %v6138 = vadd.f32 %v6067, %v6137
  %v6139 = vpop.f32.mrf.mxu0
  %v6140 = vadd.f32 %v6069, %v6139
  %6141 = vdwg.mxu0
  %6142 = vmatprep.subr.mxu0 %v3530
  %6143 = vmatpush1.msra.mxu0 %v3529
  %6144 = vmatprep.subr.mxu0 %v3523
  %6145 = vmatpush1.msra.mxu0 %v3522
  %6146 = vmatprep.subr.mxu0 %v3516
  %6147 = vmatpush1.msra.mxu0 %v3515
  %6148 = vmatprep.subr.mxu0 %v3509
  %6149 = vmatpush1.msra.mxu0 %v3508
  %6150 = vmatprep.subr.mxu0 %v3502
  %6151 = vmatpush1.msra.mxu0 %v3501
  %6152 = vmatprep.subr.mxu0 %v3495
  %6153 = vmatpush1.msra.mxu0 %v3494
  %6154 = vmatprep.subr.mxu0 %v3488
  %6155 = vmatpush1.msra.mxu0 %v3487
  %6156 = vmatprep.subr.mxu0 %v3481
  %6157 = vmatpush1.msra.mxu0 %v3480
  %6158 = vmatprep.subr.mxu0 %v3474
  %6159 = vmatpush1.msra.mxu0 %v3473
  %6160 = vmatprep.subr.mxu0 %v3467
  %6161 = vmatpush1.msra.mxu0 %v3466
  %6162 = vmatprep.subr.mxu0 %v3460
  %6163 = vmatpush1.msra.mxu0 %v3459
  %6164 = vmatprep.subr.mxu0 %v3453
  %6165 = vmatpush1.msra.mxu0 %v3452
  %6166 = vmatprep.subr.mxu0 %v3446
  %6167 = vmatpush1.msra.mxu0 %v3445
  %6168 = vmatprep.subr.mxu0 %v3439
  %6169 = vmatpush1.msra.mxu0 %v3438
  %6170 = vmatprep.subr.mxu0 %v3432
  %6171 = vmatpush1.msra.mxu0 %v3431
  %6172 = vmatprep.subr.mxu0 %v3425
  %6173 = vmatpush1.msra.mxu0 %v3424
  %6174 = vmatprep.subr.mxu0 %v3642
  %6175 = vmatpush2.msra.mxu0 %v3641
  %6176 = vmatprep.subr.mxu0 %v3635
  %6177 = vmatpush2.msra.mxu0 %v3634
  %6178 = vmatprep.subr.mxu0 %v3628
  %6179 = vmatpush2.msra.mxu0 %v3627
  %6180 = vmatprep.subr.mxu0 %v3621
  %6181 = vmatpush2.msra.mxu0 %v3620
  %6182 = vmatprep.subr.mxu0 %v3614
  %6183 = vmatpush2.msra.mxu0 %v3613
  %6184 = vmatprep.subr.mxu0 %v3607
  %6185 = vmatpush2.msra.mxu0 %v3606
  %6186 = vmatprep.subr.mxu0 %v3600
  %6187 = vmatpush2.msra.mxu0 %v3599
  %6188 = vmatprep.subr.mxu0 %v3593
  %6189 = vmatpush2.msra.mxu0 %v3592
  %6190 = vmatprep.subr.mxu0 %v3586
  %6191 = vmatpush2.msra.mxu0 %v3585
  %6192 = vmatprep.subr.mxu0 %v3579
  %6193 = vmatpush2.msra.mxu0 %v3578
  %6194 = vmatprep.subr.mxu0 %v3572
  %6195 = vmatpush2.msra.mxu0 %v3571
  %6196 = vmatprep.subr.mxu0 %v3565
  %6197 = vmatpush2.msra.mxu0 %v3564
  %6198 = vmatprep.subr.mxu0 %v3558
  %6199 = vmatpush2.msra.mxu0 %v3557
  %6200 = vmatprep.subr.mxu0 %v3551
  %6201 = vmatpush2.msra.mxu0 %v3550
  %6202 = vmatprep.subr.mxu0 %v3544
  %6203 = vmatpush2.msra.mxu0 %v3543
  %6204 = vmatprep.subr.mxu0 %v3537
  %6205 = vmatpush2.msra.mxu0 %v3536
  %6206 = vmatprep.mubr.f32.mxu0 %v59
  %6207 = vmatmul.mubr.f32.gmra.mxu0 %v58
  %v6208 = vpop.f32.mrf.mxu0
  %v6209 = vadd.f32 %v6138, %v6208
  %v6210 = vpop.f32.mrf.mxu0
  %v6211 = vadd.f32 %v6140, %v6210
  %6212 = vdwg.mxu0
  %6213 = vmatprep.subr.mxu0 %v3754
  %6214 = vmatpush1.msra.mxu0 %v3753
  %6215 = vmatprep.subr.mxu0 %v3747
  %6216 = vmatpush1.msra.mxu0 %v3746
  %6217 = vmatprep.subr.mxu0 %v3740
  %6218 = vmatpush1.msra.mxu0 %v3739
  %6219 = vmatprep.subr.mxu0 %v3733
  %6220 = vmatpush1.msra.mxu0 %v3732
  %6221 = vmatprep.subr.mxu0 %v3726
  %6222 = vmatpush1.msra.mxu0 %v3725
  %6223 = vmatprep.subr.mxu0 %v3719
  %6224 = vmatpush1.msra.mxu0 %v3718
  %6225 = vmatprep.subr.mxu0 %v3712
  %6226 = vmatpush1.msra.mxu0 %v3711
  %6227 = vmatprep.subr.mxu0 %v3705
  %6228 = vmatpush1.msra.mxu0 %v3704
  %6229 = vmatprep.subr.mxu0 %v3698
  %6230 = vmatpush1.msra.mxu0 %v3697
  %6231 = vmatprep.subr.mxu0 %v3691
  %6232 = vmatpush1.msra.mxu0 %v3690
  %6233 = vmatprep.subr.mxu0 %v3684
  %6234 = vmatpush1.msra.mxu0 %v3683
  %6235 = vmatprep.subr.mxu0 %v3677
  %6236 = vmatpush1.msra.mxu0 %v3676
  %6237 = vmatprep.subr.mxu0 %v3670
  %6238 = vmatpush1.msra.mxu0 %v3669
  %6239 = vmatprep.subr.mxu0 %v3663
  %6240 = vmatpush1.msra.mxu0 %v3662
  %6241 = vmatprep.subr.mxu0 %v3656
  %6242 = vmatpush1.msra.mxu0 %v3655
  %6243 = vmatprep.subr.mxu0 %v3649
  %6244 = vmatpush1.msra.mxu0 %v3648
  %6245 = vmatprep.subr.mxu0 0.0
  %6246 = vmatpush2.msra.mxu0 0.0
  %6247 = vmatprep.subr.mxu0 0.0
  %6248 = vmatpush2.msra.mxu0 0.0
  %6249 = vmatprep.subr.mxu0 0.0
  %6250 = vmatpush2.msra.mxu0 0.0
  %6251 = vmatprep.subr.mxu0 0.0
  %6252 = vmatpush2.msra.mxu0 0.0
  %6253 = vmatprep.subr.mxu0 0.0
  %6254 = vmatpush2.msra.mxu0 0.0
  %6255 = vmatprep.subr.mxu0 0.0
  %6256 = vmatpush2.msra.mxu0 0.0
  %6257 = vmatprep.subr.mxu0 0.0
  %6258 = vmatpush2.msra.mxu0 0.0
  %6259 = vmatprep.subr.mxu0 0.0
  %6260 = vmatpush2.msra.mxu0 0.0
  %6261 = vmatprep.subr.mxu0 0.0
  %6262 = vmatpush2.msra.mxu0 0.0
  %6263 = vmatprep.subr.mxu0 %v3859
  %6264 = vmatpush2.msra.mxu0 %v3856
  %6265 = vmatprep.subr.mxu0 %v3796
  %6266 = vmatpush2.msra.mxu0 %v3795
  %6267 = vmatprep.subr.mxu0 %v3789
  %6268 = vmatpush2.msra.mxu0 %v3788
  %6269 = vmatprep.subr.mxu0 %v3782
  %6270 = vmatpush2.msra.mxu0 %v3781
  %6271 = vmatprep.subr.mxu0 %v3775
  %6272 = vmatpush2.msra.mxu0 %v3774
  %6273 = vmatprep.subr.mxu0 %v3768
  %6274 = vmatpush2.msra.mxu0 %v3767
  %6275 = vmatprep.subr.mxu0 %v3761
  %6276 = vmatpush2.msra.mxu0 %v3760
  %6277 = vmatprep.mubr.f32.mxu0 %v3846
  %6278 = vmatmul.mubr.f32.gmra.mxu0 %v60
  %v6279 = vpop.f32.mrf.mxu0
  %v6280 = vadd.f32 %v6209, %v6279
  %v6281 = vpop.f32.mrf.mxu0
  %v6282 = vadd.f32 %v6211, %v6281
  %6283 = vdwg.mxu0
  %6284 = vmatprep.subr.mxu0 %v172
  %6285 = vmatpush1.msra.mxu0 %v171
  %6286 = vmatprep.subr.mxu0 %v165
  %6287 = vmatpush1.msra.mxu0 %v164
  %6288 = vmatprep.subr.mxu0 %v158
  %6289 = vmatpush1.msra.mxu0 %v157
  %6290 = vmatprep.subr.mxu0 %v151
  %6291 = vmatpush1.msra.mxu0 %v150
  %6292 = vmatprep.subr.mxu0 %v144
  %6293 = vmatpush1.msra.mxu0 %v143
  %6294 = vmatprep.subr.mxu0 %v137
  %6295 = vmatpush1.msra.mxu0 %v136
  %6296 = vmatprep.subr.mxu0 %v130
  %6297 = vmatpush1.msra.mxu0 %v129
  %6298 = vmatprep.subr.mxu0 %v123
  %6299 = vmatpush1.msra.mxu0 %v122
  %6300 = vmatprep.subr.mxu0 %v116
  %6301 = vmatpush1.msra.mxu0 %v115
  %6302 = vmatprep.subr.mxu0 %v109
  %6303 = vmatpush1.msra.mxu0 %v108
  %6304 = vmatprep.subr.mxu0 %v102
  %6305 = vmatpush1.msra.mxu0 %v101
  %6306 = vmatprep.subr.mxu0 %v95
  %6307 = vmatpush1.msra.mxu0 %v94
  %6308 = vmatprep.subr.mxu0 %v88
  %6309 = vmatpush1.msra.mxu0 %v87
  %6310 = vmatprep.subr.mxu0 %v81
  %6311 = vmatpush1.msra.mxu0 %v80
  %6312 = vmatprep.subr.mxu0 %v74
  %6313 = vmatpush1.msra.mxu0 %v73
  %6314 = vmatprep.subr.mxu0 %v67
  %6315 = vmatpush1.msra.mxu0 %v66
  %6316 = vmatprep.subr.mxu0 %v284
  %6317 = vmatpush2.msra.mxu0 %v283
  %6318 = vmatprep.subr.mxu0 %v277
  %6319 = vmatpush2.msra.mxu0 %v276
  %6320 = vmatprep.subr.mxu0 %v270
  %6321 = vmatpush2.msra.mxu0 %v269
  %6322 = vmatprep.subr.mxu0 %v263
  %6323 = vmatpush2.msra.mxu0 %v262
  %6324 = vmatprep.subr.mxu0 %v256
  %6325 = vmatpush2.msra.mxu0 %v255
  %6326 = vmatprep.subr.mxu0 %v249
  %6327 = vmatpush2.msra.mxu0 %v248
  %6328 = vmatprep.subr.mxu0 %v242
  %6329 = vmatpush2.msra.mxu0 %v241
  %6330 = vmatprep.subr.mxu0 %v235
  %6331 = vmatpush2.msra.mxu0 %v234
  %6332 = vmatprep.subr.mxu0 %v228
  %6333 = vmatpush2.msra.mxu0 %v227
  %6334 = vmatprep.subr.mxu0 %v221
  %6335 = vmatpush2.msra.mxu0 %v220
  %6336 = vmatprep.subr.mxu0 %v214
  %6337 = vmatpush2.msra.mxu0 %v213
  %6338 = vmatprep.subr.mxu0 %v207
  %6339 = vmatpush2.msra.mxu0 %v206
  %6340 = vmatprep.subr.mxu0 %v200
  %6341 = vmatpush2.msra.mxu0 %v199
  %6342 = vmatprep.subr.mxu0 %v193
  %6343 = vmatpush2.msra.mxu0 %v192
  %6344 = vmatprep.subr.mxu0 %v186
  %6345 = vmatpush2.msra.mxu0 %v185
  %6346 = vmatprep.subr.mxu0 %v179
  %6347 = vmatpush2.msra.mxu0 %v178
  %6348 = vmatprep.mubr.f32.mxu0 %v29
  %6349 = vmatmul.mubr.f32.gmra.mxu0 %v28
  %v6350 = vpop.f32.mrf.mxu0
  %v6351 = vadd.f32 %v3828, %v6350
  %v6352 = vpop.f32.mrf.mxu0
  %v6353 = vadd.f32 %v3832, %v6352
  %6354 = vdwg.mxu0
  %6355 = vmatprep.subr.mxu0 %v396
  %6356 = vmatpush1.msra.mxu0 %v395
  %6357 = vmatprep.subr.mxu0 %v389
  %6358 = vmatpush1.msra.mxu0 %v388
  %6359 = vmatprep.subr.mxu0 %v382
  %6360 = vmatpush1.msra.mxu0 %v381
  %6361 = vmatprep.subr.mxu0 %v375
  %6362 = vmatpush1.msra.mxu0 %v374
  %6363 = vmatprep.subr.mxu0 %v368
  %6364 = vmatpush1.msra.mxu0 %v367
  %6365 = vmatprep.subr.mxu0 %v361
  %6366 = vmatpush1.msra.mxu0 %v360
  %6367 = vmatprep.subr.mxu0 %v354
  %6368 = vmatpush1.msra.mxu0 %v353
  %6369 = vmatprep.subr.mxu0 %v347
  %6370 = vmatpush1.msra.mxu0 %v346
  %6371 = vmatprep.subr.mxu0 %v340
  %6372 = vmatpush1.msra.mxu0 %v339
  %6373 = vmatprep.subr.mxu0 %v333
  %6374 = vmatpush1.msra.mxu0 %v332
  %6375 = vmatprep.subr.mxu0 %v326
  %6376 = vmatpush1.msra.mxu0 %v325
  %6377 = vmatprep.subr.mxu0 %v319
  %6378 = vmatpush1.msra.mxu0 %v318
  %6379 = vmatprep.subr.mxu0 %v312
  %6380 = vmatpush1.msra.mxu0 %v311
  %6381 = vmatprep.subr.mxu0 %v305
  %6382 = vmatpush1.msra.mxu0 %v304
  %6383 = vmatprep.subr.mxu0 %v298
  %6384 = vmatpush1.msra.mxu0 %v297
  %6385 = vmatprep.subr.mxu0 %v291
  %6386 = vmatpush1.msra.mxu0 %v290
  %6387 = vmatprep.subr.mxu0 %v508
  %6388 = vmatpush2.msra.mxu0 %v507
  %6389 = vmatprep.subr.mxu0 %v501
  %6390 = vmatpush2.msra.mxu0 %v500
  %6391 = vmatprep.subr.mxu0 %v494
  %6392 = vmatpush2.msra.mxu0 %v493
  %6393 = vmatprep.subr.mxu0 %v487
  %6394 = vmatpush2.msra.mxu0 %v486
  %6395 = vmatprep.subr.mxu0 %v480
  %6396 = vmatpush2.msra.mxu0 %v479
  %6397 = vmatprep.subr.mxu0 %v473
  %6398 = vmatpush2.msra.mxu0 %v472
  %6399 = vmatprep.subr.mxu0 %v466
  %6400 = vmatpush2.msra.mxu0 %v465
  %6401 = vmatprep.subr.mxu0 %v459
  %6402 = vmatpush2.msra.mxu0 %v458
  %6403 = vmatprep.subr.mxu0 %v452
  %6404 = vmatpush2.msra.mxu0 %v451
  %6405 = vmatprep.subr.mxu0 %v445
  %6406 = vmatpush2.msra.mxu0 %v444
  %6407 = vmatprep.subr.mxu0 %v438
  %6408 = vmatpush2.msra.mxu0 %v437
  %6409 = vmatprep.subr.mxu0 %v431
  %6410 = vmatpush2.msra.mxu0 %v430
  %6411 = vmatprep.subr.mxu0 %v424
  %6412 = vmatpush2.msra.mxu0 %v423
  %6413 = vmatprep.subr.mxu0 %v417
  %6414 = vmatpush2.msra.mxu0 %v416
  %6415 = vmatprep.subr.mxu0 %v410
  %6416 = vmatpush2.msra.mxu0 %v409
  %6417 = vmatprep.subr.mxu0 %v403
  %6418 = vmatpush2.msra.mxu0 %v402
  %6419 = vmatprep.mubr.f32.mxu0 %v31
  %6420 = vmatmul.mubr.f32.gmra.mxu0 %v30
  %v6421 = vpop.f32.mrf.mxu0
  %v6422 = vadd.f32 %v6351, %v6421
  %v6423 = vpop.f32.mrf.mxu0
  %v6424 = vadd.f32 %v6353, %v6423
  %6425 = vdwg.mxu0
  %6426 = vmatprep.subr.mxu0 %v620
  %6427 = vmatpush1.msra.mxu0 %v619
  %6428 = vmatprep.subr.mxu0 %v613
  %6429 = vmatpush1.msra.mxu0 %v612
  %6430 = vmatprep.subr.mxu0 %v606
  %6431 = vmatpush1.msra.mxu0 %v605
  %6432 = vmatprep.subr.mxu0 %v599
  %6433 = vmatpush1.msra.mxu0 %v598
  %6434 = vmatprep.subr.mxu0 %v592
  %6435 = vmatpush1.msra.mxu0 %v591
  %6436 = vmatprep.subr.mxu0 %v585
  %6437 = vmatpush1.msra.mxu0 %v584
  %6438 = vmatprep.subr.mxu0 %v578
  %6439 = vmatpush1.msra.mxu0 %v577
  %6440 = vmatprep.subr.mxu0 %v571
  %6441 = vmatpush1.msra.mxu0 %v570
  %6442 = vmatprep.subr.mxu0 %v564
  %6443 = vmatpush1.msra.mxu0 %v563
  %6444 = vmatprep.subr.mxu0 %v557
  %6445 = vmatpush1.msra.mxu0 %v556
  %6446 = vmatprep.subr.mxu0 %v550
  %6447 = vmatpush1.msra.mxu0 %v549
  %6448 = vmatprep.subr.mxu0 %v543
  %6449 = vmatpush1.msra.mxu0 %v542
  %6450 = vmatprep.subr.mxu0 %v536
  %6451 = vmatpush1.msra.mxu0 %v535
  %6452 = vmatprep.subr.mxu0 %v529
  %6453 = vmatpush1.msra.mxu0 %v528
  %6454 = vmatprep.subr.mxu0 %v522
  %6455 = vmatpush1.msra.mxu0 %v521
  %6456 = vmatprep.subr.mxu0 %v515
  %6457 = vmatpush1.msra.mxu0 %v514
  %6458 = vmatprep.subr.mxu0 %v732
  %6459 = vmatpush2.msra.mxu0 %v731
  %6460 = vmatprep.subr.mxu0 %v725
  %6461 = vmatpush2.msra.mxu0 %v724
  %6462 = vmatprep.subr.mxu0 %v718
  %6463 = vmatpush2.msra.mxu0 %v717
  %6464 = vmatprep.subr.mxu0 %v711
  %6465 = vmatpush2.msra.mxu0 %v710
  %6466 = vmatprep.subr.mxu0 %v704
  %6467 = vmatpush2.msra.mxu0 %v703
  %6468 = vmatprep.subr.mxu0 %v697
  %6469 = vmatpush2.msra.mxu0 %v696
  %6470 = vmatprep.subr.mxu0 %v690
  %6471 = vmatpush2.msra.mxu0 %v689
  %6472 = vmatprep.subr.mxu0 %v683
  %6473 = vmatpush2.msra.mxu0 %v682
  %6474 = vmatprep.subr.mxu0 %v676
  %6475 = vmatpush2.msra.mxu0 %v675
  %6476 = vmatprep.subr.mxu0 %v669
  %6477 = vmatpush2.msra.mxu0 %v668
  %6478 = vmatprep.subr.mxu0 %v662
  %6479 = vmatpush2.msra.mxu0 %v661
  %6480 = vmatprep.subr.mxu0 %v655
  %6481 = vmatpush2.msra.mxu0 %v654
  %6482 = vmatprep.subr.mxu0 %v648
  %6483 = vmatpush2.msra.mxu0 %v647
  %6484 = vmatprep.subr.mxu0 %v641
  %6485 = vmatpush2.msra.mxu0 %v640
  %6486 = vmatprep.subr.mxu0 %v634
  %6487 = vmatpush2.msra.mxu0 %v633
  %6488 = vmatprep.subr.mxu0 %v627
  %6489 = vmatpush2.msra.mxu0 %v626
  %6490 = vmatprep.mubr.f32.mxu0 %v33
  %6491 = vmatmul.mubr.f32.gmra.mxu0 %v32
  %v6492 = vpop.f32.mrf.mxu0
  %v6493 = vadd.f32 %v6422, %v6492
  %v6494 = vpop.f32.mrf.mxu0
  %v6495 = vadd.f32 %v6424, %v6494
  %6496 = vdwg.mxu0
  %6497 = vmatprep.subr.mxu0 %v844
  %6498 = vmatpush1.msra.mxu0 %v843
  %6499 = vmatprep.subr.mxu0 %v837
  %6500 = vmatpush1.msra.mxu0 %v836
  %6501 = vmatprep.subr.mxu0 %v830
  %6502 = vmatpush1.msra.mxu0 %v829
  %6503 = vmatprep.subr.mxu0 %v823
  %6504 = vmatpush1.msra.mxu0 %v822
  %6505 = vmatprep.subr.mxu0 %v816
  %6506 = vmatpush1.msra.mxu0 %v815
  %6507 = vmatprep.subr.mxu0 %v809
  %6508 = vmatpush1.msra.mxu0 %v808
  %6509 = vmatprep.subr.mxu0 %v802
  %6510 = vmatpush1.msra.mxu0 %v801
  %6511 = vmatprep.subr.mxu0 %v795
  %6512 = vmatpush1.msra.mxu0 %v794
  %6513 = vmatprep.subr.mxu0 %v788
  %6514 = vmatpush1.msra.mxu0 %v787
  %6515 = vmatprep.subr.mxu0 %v781
  %6516 = vmatpush1.msra.mxu0 %v780
  %6517 = vmatprep.subr.mxu0 %v774
  %6518 = vmatpush1.msra.mxu0 %v773
  %6519 = vmatprep.subr.mxu0 %v767
  %6520 = vmatpush1.msra.mxu0 %v766
  %6521 = vmatprep.subr.mxu0 %v760
  %6522 = vmatpush1.msra.mxu0 %v759
  %6523 = vmatprep.subr.mxu0 %v753
  %6524 = vmatpush1.msra.mxu0 %v752
  %6525 = vmatprep.subr.mxu0 %v746
  %6526 = vmatpush1.msra.mxu0 %v745
  %6527 = vmatprep.subr.mxu0 %v739
  %6528 = vmatpush1.msra.mxu0 %v738
  %6529 = vmatprep.subr.mxu0 %v956
  %6530 = vmatpush2.msra.mxu0 %v955
  %6531 = vmatprep.subr.mxu0 %v949
  %6532 = vmatpush2.msra.mxu0 %v948
  %6533 = vmatprep.subr.mxu0 %v942
  %6534 = vmatpush2.msra.mxu0 %v941
  %6535 = vmatprep.subr.mxu0 %v935
  %6536 = vmatpush2.msra.mxu0 %v934
  %6537 = vmatprep.subr.mxu0 %v928
  %6538 = vmatpush2.msra.mxu0 %v927
  %6539 = vmatprep.subr.mxu0 %v921
  %6540 = vmatpush2.msra.mxu0 %v920
  %6541 = vmatprep.subr.mxu0 %v914
  %6542 = vmatpush2.msra.mxu0 %v913
  %6543 = vmatprep.subr.mxu0 %v907
  %6544 = vmatpush2.msra.mxu0 %v906
  %6545 = vmatprep.subr.mxu0 %v900
  %6546 = vmatpush2.msra.mxu0 %v899
  %6547 = vmatprep.subr.mxu0 %v893
  %6548 = vmatpush2.msra.mxu0 %v892
  %6549 = vmatprep.subr.mxu0 %v886
  %6550 = vmatpush2.msra.mxu0 %v885
  %6551 = vmatprep.subr.mxu0 %v879
  %6552 = vmatpush2.msra.mxu0 %v878
  %6553 = vmatprep.subr.mxu0 %v872
  %6554 = vmatpush2.msra.mxu0 %v871
  %6555 = vmatprep.subr.mxu0 %v865
  %6556 = vmatpush2.msra.mxu0 %v864
  %6557 = vmatprep.subr.mxu0 %v858
  %6558 = vmatpush2.msra.mxu0 %v857
  %6559 = vmatprep.subr.mxu0 %v851
  %6560 = vmatpush2.msra.mxu0 %v850
  %6561 = vmatprep.mubr.f32.mxu0 %v35
  %6562 = vmatmul.mubr.f32.gmra.mxu0 %v34
  %v6563 = vpop.f32.mrf.mxu0
  %v6564 = vadd.f32 %v6493, %v6563
  %v6565 = vpop.f32.mrf.mxu0
  %v6566 = vadd.f32 %v6495, %v6565
  %6567 = vdwg.mxu0
  %6568 = vmatprep.subr.mxu0 %v1068
  %6569 = vmatpush1.msra.mxu0 %v1067
  %6570 = vmatprep.subr.mxu0 %v1061
  %6571 = vmatpush1.msra.mxu0 %v1060
  %6572 = vmatprep.subr.mxu0 %v1054
  %6573 = vmatpush1.msra.mxu0 %v1053
  %6574 = vmatprep.subr.mxu0 %v1047
  %6575 = vmatpush1.msra.mxu0 %v1046
  %6576 = vmatprep.subr.mxu0 %v1040
  %6577 = vmatpush1.msra.mxu0 %v1039
  %6578 = vmatprep.subr.mxu0 %v1033
  %6579 = vmatpush1.msra.mxu0 %v1032
  %6580 = vmatprep.subr.mxu0 %v1026
  %6581 = vmatpush1.msra.mxu0 %v1025
  %6582 = vmatprep.subr.mxu0 %v1019
  %6583 = vmatpush1.msra.mxu0 %v1018
  %6584 = vmatprep.subr.mxu0 %v1012
  %6585 = vmatpush1.msra.mxu0 %v1011
  %6586 = vmatprep.subr.mxu0 %v1005
  %6587 = vmatpush1.msra.mxu0 %v1004
  %6588 = vmatprep.subr.mxu0 %v998
  %6589 = vmatpush1.msra.mxu0 %v997
  %6590 = vmatprep.subr.mxu0 %v991
  %6591 = vmatpush1.msra.mxu0 %v990
  %6592 = vmatprep.subr.mxu0 %v984
  %6593 = vmatpush1.msra.mxu0 %v983
  %6594 = vmatprep.subr.mxu0 %v977
  %6595 = vmatpush1.msra.mxu0 %v976
  %6596 = vmatprep.subr.mxu0 %v970
  %6597 = vmatpush1.msra.mxu0 %v969
  %6598 = vmatprep.subr.mxu0 %v963
  %6599 = vmatpush1.msra.mxu0 %v962
  %6600 = vmatprep.subr.mxu0 %v1180
  %6601 = vmatpush2.msra.mxu0 %v1179
  %6602 = vmatprep.subr.mxu0 %v1173
  %6603 = vmatpush2.msra.mxu0 %v1172
  %6604 = vmatprep.subr.mxu0 %v1166
  %6605 = vmatpush2.msra.mxu0 %v1165
  %6606 = vmatprep.subr.mxu0 %v1159
  %6607 = vmatpush2.msra.mxu0 %v1158
  %6608 = vmatprep.subr.mxu0 %v1152
  %6609 = vmatpush2.msra.mxu0 %v1151
  %6610 = vmatprep.subr.mxu0 %v1145
  %6611 = vmatpush2.msra.mxu0 %v1144
  %6612 = vmatprep.subr.mxu0 %v1138
  %6613 = vmatpush2.msra.mxu0 %v1137
  %6614 = vmatprep.subr.mxu0 %v1131
  %6615 = vmatpush2.msra.mxu0 %v1130
  %6616 = vmatprep.subr.mxu0 %v1124
  %6617 = vmatpush2.msra.mxu0 %v1123
  %6618 = vmatprep.subr.mxu0 %v1117
  %6619 = vmatpush2.msra.mxu0 %v1116
  %6620 = vmatprep.subr.mxu0 %v1110
  %6621 = vmatpush2.msra.mxu0 %v1109
  %6622 = vmatprep.subr.mxu0 %v1103
  %6623 = vmatpush2.msra.mxu0 %v1102
  %6624 = vmatprep.subr.mxu0 %v1096
  %6625 = vmatpush2.msra.mxu0 %v1095
  %6626 = vmatprep.subr.mxu0 %v1089
  %6627 = vmatpush2.msra.mxu0 %v1088
  %6628 = vmatprep.subr.mxu0 %v1082
  %6629 = vmatpush2.msra.mxu0 %v1081
  %6630 = vmatprep.subr.mxu0 %v1075
  %6631 = vmatpush2.msra.mxu0 %v1074
  %6632 = vmatprep.mubr.f32.mxu0 %v37
  %6633 = vmatmul.mubr.f32.gmra.mxu0 %v36
  %v6634 = vpop.f32.mrf.mxu0
  %v6635 = vadd.f32 %v6564, %v6634
  %v6636 = vpop.f32.mrf.mxu0
  %v6637 = vadd.f32 %v6566, %v6636
  %6638 = vdwg.mxu0
  %6639 = vmatprep.subr.mxu0 %v1292
  %6640 = vmatpush1.msra.mxu0 %v1291
  %6641 = vmatprep.subr.mxu0 %v1285
  %6642 = vmatpush1.msra.mxu0 %v1284
  %6643 = vmatprep.subr.mxu0 %v1278
  %6644 = vmatpush1.msra.mxu0 %v1277
  %6645 = vmatprep.subr.mxu0 %v1271
  %6646 = vmatpush1.msra.mxu0 %v1270
  %6647 = vmatprep.subr.mxu0 %v1264
  %6648 = vmatpush1.msra.mxu0 %v1263
  %6649 = vmatprep.subr.mxu0 %v1257
  %6650 = vmatpush1.msra.mxu0 %v1256
  %6651 = vmatprep.subr.mxu0 %v1250
  %6652 = vmatpush1.msra.mxu0 %v1249
  %6653 = vmatprep.subr.mxu0 %v1243
  %6654 = vmatpush1.msra.mxu0 %v1242
  %6655 = vmatprep.subr.mxu0 %v1236
  %6656 = vmatpush1.msra.mxu0 %v1235
  %6657 = vmatprep.subr.mxu0 %v1229
  %6658 = vmatpush1.msra.mxu0 %v1228
  %6659 = vmatprep.subr.mxu0 %v1222
  %6660 = vmatpush1.msra.mxu0 %v1221
  %6661 = vmatprep.subr.mxu0 %v1215
  %6662 = vmatpush1.msra.mxu0 %v1214
  %6663 = vmatprep.subr.mxu0 %v1208
  %6664 = vmatpush1.msra.mxu0 %v1207
  %6665 = vmatprep.subr.mxu0 %v1201
  %6666 = vmatpush1.msra.mxu0 %v1200
  %6667 = vmatprep.subr.mxu0 %v1194
  %6668 = vmatpush1.msra.mxu0 %v1193
  %6669 = vmatprep.subr.mxu0 %v1187
  %6670 = vmatpush1.msra.mxu0 %v1186
  %6671 = vmatprep.subr.mxu0 %v1404
  %6672 = vmatpush2.msra.mxu0 %v1403
  %6673 = vmatprep.subr.mxu0 %v1397
  %6674 = vmatpush2.msra.mxu0 %v1396
  %6675 = vmatprep.subr.mxu0 %v1390
  %6676 = vmatpush2.msra.mxu0 %v1389
  %6677 = vmatprep.subr.mxu0 %v1383
  %6678 = vmatpush2.msra.mxu0 %v1382
  %6679 = vmatprep.subr.mxu0 %v1376
  %6680 = vmatpush2.msra.mxu0 %v1375
  %6681 = vmatprep.subr.mxu0 %v1369
  %6682 = vmatpush2.msra.mxu0 %v1368
  %6683 = vmatprep.subr.mxu0 %v1362
  %6684 = vmatpush2.msra.mxu0 %v1361
  %6685 = vmatprep.subr.mxu0 %v1355
  %6686 = vmatpush2.msra.mxu0 %v1354
  %6687 = vmatprep.subr.mxu0 %v1348
  %6688 = vmatpush2.msra.mxu0 %v1347
  %6689 = vmatprep.subr.mxu0 %v1341
  %6690 = vmatpush2.msra.mxu0 %v1340
  %6691 = vmatprep.subr.mxu0 %v1334
  %6692 = vmatpush2.msra.mxu0 %v1333
  %6693 = vmatprep.subr.mxu0 %v1327
  %6694 = vmatpush2.msra.mxu0 %v1326
  %6695 = vmatprep.subr.mxu0 %v1320
  %6696 = vmatpush2.msra.mxu0 %v1319
  %6697 = vmatprep.subr.mxu0 %v1313
  %6698 = vmatpush2.msra.mxu0 %v1312
  %6699 = vmatprep.subr.mxu0 %v1306
  %6700 = vmatpush2.msra.mxu0 %v1305
  %6701 = vmatprep.subr.mxu0 %v1299
  %6702 = vmatpush2.msra.mxu0 %v1298
  %6703 = vmatprep.mubr.f32.mxu0 %v39
  %6704 = vmatmul.mubr.f32.gmra.mxu0 %v38
  %v6705 = vpop.f32.mrf.mxu0
  %v6706 = vadd.f32 %v6635, %v6705
  %v6707 = vpop.f32.mrf.mxu0
  %v6708 = vadd.f32 %v6637, %v6707
  %6709 = vdwg.mxu0
  %6710 = vmatprep.subr.mxu0 %v1516
  %6711 = vmatpush1.msra.mxu0 %v1515
  %6712 = vmatprep.subr.mxu0 %v1509
  %6713 = vmatpush1.msra.mxu0 %v1508
  %6714 = vmatprep.subr.mxu0 %v1502
  %6715 = vmatpush1.msra.mxu0 %v1501
  %6716 = vmatprep.subr.mxu0 %v1495
  %6717 = vmatpush1.msra.mxu0 %v1494
  %6718 = vmatprep.subr.mxu0 %v1488
  %6719 = vmatpush1.msra.mxu0 %v1487
  %6720 = vmatprep.subr.mxu0 %v1481
  %6721 = vmatpush1.msra.mxu0 %v1480
  %6722 = vmatprep.subr.mxu0 %v1474
  %6723 = vmatpush1.msra.mxu0 %v1473
  %6724 = vmatprep.subr.mxu0 %v1467
  %6725 = vmatpush1.msra.mxu0 %v1466
  %6726 = vmatprep.subr.mxu0 %v1460
  %6727 = vmatpush1.msra.mxu0 %v1459
  %6728 = vmatprep.subr.mxu0 %v1453
  %6729 = vmatpush1.msra.mxu0 %v1452
  %6730 = vmatprep.subr.mxu0 %v1446
  %6731 = vmatpush1.msra.mxu0 %v1445
  %6732 = vmatprep.subr.mxu0 %v1439
  %6733 = vmatpush1.msra.mxu0 %v1438
  %6734 = vmatprep.subr.mxu0 %v1432
  %6735 = vmatpush1.msra.mxu0 %v1431
  %6736 = vmatprep.subr.mxu0 %v1425
  %6737 = vmatpush1.msra.mxu0 %v1424
  %6738 = vmatprep.subr.mxu0 %v1418
  %6739 = vmatpush1.msra.mxu0 %v1417
  %6740 = vmatprep.subr.mxu0 %v1411
  %6741 = vmatpush1.msra.mxu0 %v1410
  %6742 = vmatprep.subr.mxu0 %v1628
  %6743 = vmatpush2.msra.mxu0 %v1627
  %6744 = vmatprep.subr.mxu0 %v1621
  %6745 = vmatpush2.msra.mxu0 %v1620
  %6746 = vmatprep.subr.mxu0 %v1614
  %6747 = vmatpush2.msra.mxu0 %v1613
  %6748 = vmatprep.subr.mxu0 %v1607
  %6749 = vmatpush2.msra.mxu0 %v1606
  %6750 = vmatprep.subr.mxu0 %v1600
  %6751 = vmatpush2.msra.mxu0 %v1599
  %6752 = vmatprep.subr.mxu0 %v1593
  %6753 = vmatpush2.msra.mxu0 %v1592
  %6754 = vmatprep.subr.mxu0 %v1586
  %6755 = vmatpush2.msra.mxu0 %v1585
  %6756 = vmatprep.subr.mxu0 %v1579
  %6757 = vmatpush2.msra.mxu0 %v1578
  %6758 = vmatprep.subr.mxu0 %v1572
  %6759 = vmatpush2.msra.mxu0 %v1571
  %6760 = vmatprep.subr.mxu0 %v1565
  %6761 = vmatpush2.msra.mxu0 %v1564
  %6762 = vmatprep.subr.mxu0 %v1558
  %6763 = vmatpush2.msra.mxu0 %v1557
  %6764 = vmatprep.subr.mxu0 %v1551
  %6765 = vmatpush2.msra.mxu0 %v1550
  %6766 = vmatprep.subr.mxu0 %v1544
  %6767 = vmatpush2.msra.mxu0 %v1543
  %6768 = vmatprep.subr.mxu0 %v1537
  %6769 = vmatpush2.msra.mxu0 %v1536
  %6770 = vmatprep.subr.mxu0 %v1530
  %6771 = vmatpush2.msra.mxu0 %v1529
  %6772 = vmatprep.subr.mxu0 %v1523
  %6773 = vmatpush2.msra.mxu0 %v1522
  %6774 = vmatprep.mubr.f32.mxu0 %v41
  %6775 = vmatmul.mubr.f32.gmra.mxu0 %v40
  %v6776 = vpop.f32.mrf.mxu0
  %v6777 = vadd.f32 %v6706, %v6776
  %v6778 = vpop.f32.mrf.mxu0
  %v6779 = vadd.f32 %v6708, %v6778
  %6780 = vdwg.mxu0
  %6781 = vmatprep.subr.mxu0 %v1740
  %6782 = vmatpush1.msra.mxu0 %v1739
  %6783 = vmatprep.subr.mxu0 %v1733
  %6784 = vmatpush1.msra.mxu0 %v1732
  %6785 = vmatprep.subr.mxu0 %v1726
  %6786 = vmatpush1.msra.mxu0 %v1725
  %6787 = vmatprep.subr.mxu0 %v1719
  %6788 = vmatpush1.msra.mxu0 %v1718
  %6789 = vmatprep.subr.mxu0 %v1712
  %6790 = vmatpush1.msra.mxu0 %v1711
  %6791 = vmatprep.subr.mxu0 %v1705
  %6792 = vmatpush1.msra.mxu0 %v1704
  %6793 = vmatprep.subr.mxu0 %v1698
  %6794 = vmatpush1.msra.mxu0 %v1697
  %6795 = vmatprep.subr.mxu0 %v1691
  %6796 = vmatpush1.msra.mxu0 %v1690
  %6797 = vmatprep.subr.mxu0 %v1684
  %6798 = vmatpush1.msra.mxu0 %v1683
  %6799 = vmatprep.subr.mxu0 %v1677
  %6800 = vmatpush1.msra.mxu0 %v1676
  %6801 = vmatprep.subr.mxu0 %v1670
  %6802 = vmatpush1.msra.mxu0 %v1669
  %6803 = vmatprep.subr.mxu0 %v1663
  %6804 = vmatpush1.msra.mxu0 %v1662
  %6805 = vmatprep.subr.mxu0 %v1656
  %6806 = vmatpush1.msra.mxu0 %v1655
  %6807 = vmatprep.subr.mxu0 %v1649
  %6808 = vmatpush1.msra.mxu0 %v1648
  %6809 = vmatprep.subr.mxu0 %v1642
  %6810 = vmatpush1.msra.mxu0 %v1641
  %6811 = vmatprep.subr.mxu0 %v1635
  %6812 = vmatpush1.msra.mxu0 %v1634
  %6813 = vmatprep.subr.mxu0 %v1852
  %6814 = vmatpush2.msra.mxu0 %v1851
  %6815 = vmatprep.subr.mxu0 %v1845
  %6816 = vmatpush2.msra.mxu0 %v1844
  %6817 = vmatprep.subr.mxu0 %v1838
  %6818 = vmatpush2.msra.mxu0 %v1837
  %6819 = vmatprep.subr.mxu0 %v1831
  %6820 = vmatpush2.msra.mxu0 %v1830
  %6821 = vmatprep.subr.mxu0 %v1824
  %6822 = vmatpush2.msra.mxu0 %v1823
  %6823 = vmatprep.subr.mxu0 %v1817
  %6824 = vmatpush2.msra.mxu0 %v1816
  %6825 = vmatprep.subr.mxu0 %v1810
  %6826 = vmatpush2.msra.mxu0 %v1809
  %6827 = vmatprep.subr.mxu0 %v1803
  %6828 = vmatpush2.msra.mxu0 %v1802
  %6829 = vmatprep.subr.mxu0 %v1796
  %6830 = vmatpush2.msra.mxu0 %v1795
  %6831 = vmatprep.subr.mxu0 %v1789
  %6832 = vmatpush2.msra.mxu0 %v1788
  %6833 = vmatprep.subr.mxu0 %v1782
  %6834 = vmatpush2.msra.mxu0 %v1781
  %6835 = vmatprep.subr.mxu0 %v1775
  %6836 = vmatpush2.msra.mxu0 %v1774
  %6837 = vmatprep.subr.mxu0 %v1768
  %6838 = vmatpush2.msra.mxu0 %v1767
  %6839 = vmatprep.subr.mxu0 %v1761
  %6840 = vmatpush2.msra.mxu0 %v1760
  %6841 = vmatprep.subr.mxu0 %v1754
  %6842 = vmatpush2.msra.mxu0 %v1753
  %6843 = vmatprep.subr.mxu0 %v1747
  %6844 = vmatpush2.msra.mxu0 %v1746
  %6845 = vmatprep.mubr.f32.mxu0 %v43
  %6846 = vmatmul.mubr.f32.gmra.mxu0 %v42
  %v6847 = vpop.f32.mrf.mxu0
  %v6848 = vadd.f32 %v6777, %v6847
  %v6849 = vpop.f32.mrf.mxu0
  %v6850 = vadd.f32 %v6779, %v6849
  %6851 = vdwg.mxu0
  %6852 = vmatprep.subr.mxu0 %v1964
  %6853 = vmatpush1.msra.mxu0 %v1963
  %6854 = vmatprep.subr.mxu0 %v1957
  %6855 = vmatpush1.msra.mxu0 %v1956
  %6856 = vmatprep.subr.mxu0 %v1950
  %6857 = vmatpush1.msra.mxu0 %v1949
  %6858 = vmatprep.subr.mxu0 %v1943
  %6859 = vmatpush1.msra.mxu0 %v1942
  %6860 = vmatprep.subr.mxu0 %v1936
  %6861 = vmatpush1.msra.mxu0 %v1935
  %6862 = vmatprep.subr.mxu0 %v1929
  %6863 = vmatpush1.msra.mxu0 %v1928
  %6864 = vmatprep.subr.mxu0 %v1922
  %6865 = vmatpush1.msra.mxu0 %v1921
  %6866 = vmatprep.subr.mxu0 %v1915
  %6867 = vmatpush1.msra.mxu0 %v1914
  %6868 = vmatprep.subr.mxu0 %v1908
  %6869 = vmatpush1.msra.mxu0 %v1907
  %6870 = vmatprep.subr.mxu0 %v1901
  %6871 = vmatpush1.msra.mxu0 %v1900
  %6872 = vmatprep.subr.mxu0 %v1894
  %6873 = vmatpush1.msra.mxu0 %v1893
  %6874 = vmatprep.subr.mxu0 %v1887
  %6875 = vmatpush1.msra.mxu0 %v1886
  %6876 = vmatprep.subr.mxu0 %v1880
  %6877 = vmatpush1.msra.mxu0 %v1879
  %6878 = vmatprep.subr.mxu0 %v1873
  %6879 = vmatpush1.msra.mxu0 %v1872
  %6880 = vmatprep.subr.mxu0 %v1866
  %6881 = vmatpush1.msra.mxu0 %v1865
  %6882 = vmatprep.subr.mxu0 %v1859
  %6883 = vmatpush1.msra.mxu0 %v1858
  %6884 = vmatprep.subr.mxu0 %v2076
  %6885 = vmatpush2.msra.mxu0 %v2075
  %6886 = vmatprep.subr.mxu0 %v2069
  %6887 = vmatpush2.msra.mxu0 %v2068
  %6888 = vmatprep.subr.mxu0 %v2062
  %6889 = vmatpush2.msra.mxu0 %v2061
  %6890 = vmatprep.subr.mxu0 %v2055
  %6891 = vmatpush2.msra.mxu0 %v2054
  %6892 = vmatprep.subr.mxu0 %v2048
  %6893 = vmatpush2.msra.mxu0 %v2047
  %6894 = vmatprep.subr.mxu0 %v2041
  %6895 = vmatpush2.msra.mxu0 %v2040
  %6896 = vmatprep.subr.mxu0 %v2034
  %6897 = vmatpush2.msra.mxu0 %v2033
  %6898 = vmatprep.subr.mxu0 %v2027
  %6899 = vmatpush2.msra.mxu0 %v2026
  %6900 = vmatprep.subr.mxu0 %v2020
  %6901 = vmatpush2.msra.mxu0 %v2019
  %6902 = vmatprep.subr.mxu0 %v2013
  %6903 = vmatpush2.msra.mxu0 %v2012
  %6904 = vmatprep.subr.mxu0 %v2006
  %6905 = vmatpush2.msra.mxu0 %v2005
  %6906 = vmatprep.subr.mxu0 %v1999
  %6907 = vmatpush2.msra.mxu0 %v1998
  %6908 = vmatprep.subr.mxu0 %v1992
  %6909 = vmatpush2.msra.mxu0 %v1991
  %6910 = vmatprep.subr.mxu0 %v1985
  %6911 = vmatpush2.msra.mxu0 %v1984
  %6912 = vmatprep.subr.mxu0 %v1978
  %6913 = vmatpush2.msra.mxu0 %v1977
  %6914 = vmatprep.subr.mxu0 %v1971
  %6915 = vmatpush2.msra.mxu0 %v1970
  %6916 = vmatprep.mubr.f32.mxu0 %v45
  %6917 = vmatmul.mubr.f32.gmra.mxu0 %v44
  %v6918 = vpop.f32.mrf.mxu0
  %v6919 = vadd.f32 %v6848, %v6918
  %v6920 = vpop.f32.mrf.mxu0
  %v6921 = vadd.f32 %v6850, %v6920
  %6922 = vdwg.mxu0
  %6923 = vmatprep.subr.mxu0 %v2188
  %6924 = vmatpush1.msra.mxu0 %v2187
  %6925 = vmatprep.subr.mxu0 %v2181
  %6926 = vmatpush1.msra.mxu0 %v2180
  %6927 = vmatprep.subr.mxu0 %v2174
  %6928 = vmatpush1.msra.mxu0 %v2173
  %6929 = vmatprep.subr.mxu0 %v2167
  %6930 = vmatpush1.msra.mxu0 %v2166
  %6931 = vmatprep.subr.mxu0 %v2160
  %6932 = vmatpush1.msra.mxu0 %v2159
  %6933 = vmatprep.subr.mxu0 %v2153
  %6934 = vmatpush1.msra.mxu0 %v2152
  %6935 = vmatprep.subr.mxu0 %v2146
  %6936 = vmatpush1.msra.mxu0 %v2145
  %6937 = vmatprep.subr.mxu0 %v2139
  %6938 = vmatpush1.msra.mxu0 %v2138
  %6939 = vmatprep.subr.mxu0 %v2132
  %6940 = vmatpush1.msra.mxu0 %v2131
  %6941 = vmatprep.subr.mxu0 %v2125
  %6942 = vmatpush1.msra.mxu0 %v2124
  %6943 = vmatprep.subr.mxu0 %v2118
  %6944 = vmatpush1.msra.mxu0 %v2117
  %6945 = vmatprep.subr.mxu0 %v2111
  %6946 = vmatpush1.msra.mxu0 %v2110
  %6947 = vmatprep.subr.mxu0 %v2104
  %6948 = vmatpush1.msra.mxu0 %v2103
  %6949 = vmatprep.subr.mxu0 %v2097
  %6950 = vmatpush1.msra.mxu0 %v2096
  %6951 = vmatprep.subr.mxu0 %v2090
  %6952 = vmatpush1.msra.mxu0 %v2089
  %6953 = vmatprep.subr.mxu0 %v2083
  %6954 = vmatpush1.msra.mxu0 %v2082
  %6955 = vmatprep.subr.mxu0 %v2300
  %6956 = vmatpush2.msra.mxu0 %v2299
  %6957 = vmatprep.subr.mxu0 %v2293
  %6958 = vmatpush2.msra.mxu0 %v2292
  %6959 = vmatprep.subr.mxu0 %v2286
  %6960 = vmatpush2.msra.mxu0 %v2285
  %6961 = vmatprep.subr.mxu0 %v2279
  %6962 = vmatpush2.msra.mxu0 %v2278
  %6963 = vmatprep.subr.mxu0 %v2272
  %6964 = vmatpush2.msra.mxu0 %v2271
  %6965 = vmatprep.subr.mxu0 %v2265
  %6966 = vmatpush2.msra.mxu0 %v2264
  %6967 = vmatprep.subr.mxu0 %v2258
  %6968 = vmatpush2.msra.mxu0 %v2257
  %6969 = vmatprep.subr.mxu0 %v2251
  %6970 = vmatpush2.msra.mxu0 %v2250
  %6971 = vmatprep.subr.mxu0 %v2244
  %6972 = vmatpush2.msra.mxu0 %v2243
  %6973 = vmatprep.subr.mxu0 %v2237
  %6974 = vmatpush2.msra.mxu0 %v2236
  %6975 = vmatprep.subr.mxu0 %v2230
  %6976 = vmatpush2.msra.mxu0 %v2229
  %6977 = vmatprep.subr.mxu0 %v2223
  %6978 = vmatpush2.msra.mxu0 %v2222
  %6979 = vmatprep.subr.mxu0 %v2216
  %6980 = vmatpush2.msra.mxu0 %v2215
  %6981 = vmatprep.subr.mxu0 %v2209
  %6982 = vmatpush2.msra.mxu0 %v2208
  %6983 = vmatprep.subr.mxu0 %v2202
  %6984 = vmatpush2.msra.mxu0 %v2201
  %6985 = vmatprep.subr.mxu0 %v2195
  %6986 = vmatpush2.msra.mxu0 %v2194
  %6987 = vmatprep.mubr.f32.mxu0 %v47
  %6988 = vmatmul.mubr.f32.gmra.mxu0 %v46
  %v6989 = vpop.f32.mrf.mxu0
  %v6990 = vadd.f32 %v6919, %v6989
  %v6991 = vpop.f32.mrf.mxu0
  %v6992 = vadd.f32 %v6921, %v6991
  %6993 = vdwg.mxu0
  %6994 = vmatprep.subr.mxu0 %v2412
  %6995 = vmatpush1.msra.mxu0 %v2411
  %6996 = vmatprep.subr.mxu0 %v2405
  %6997 = vmatpush1.msra.mxu0 %v2404
  %6998 = vmatprep.subr.mxu0 %v2398
  %6999 = vmatpush1.msra.mxu0 %v2397
  %7000 = vmatprep.subr.mxu0 %v2391
  %7001 = vmatpush1.msra.mxu0 %v2390
  %7002 = vmatprep.subr.mxu0 %v2384
  %7003 = vmatpush1.msra.mxu0 %v2383
  %7004 = vmatprep.subr.mxu0 %v2377
  %7005 = vmatpush1.msra.mxu0 %v2376
  %7006 = vmatprep.subr.mxu0 %v2370
  %7007 = vmatpush1.msra.mxu0 %v2369
  %7008 = vmatprep.subr.mxu0 %v2363
  %7009 = vmatpush1.msra.mxu0 %v2362
  %7010 = vmatprep.subr.mxu0 %v2356
  %7011 = vmatpush1.msra.mxu0 %v2355
  %7012 = vmatprep.subr.mxu0 %v2349
  %7013 = vmatpush1.msra.mxu0 %v2348
  %7014 = vmatprep.subr.mxu0 %v2342
  %7015 = vmatpush1.msra.mxu0 %v2341
  %7016 = vmatprep.subr.mxu0 %v2335
  %7017 = vmatpush1.msra.mxu0 %v2334
  %7018 = vmatprep.subr.mxu0 %v2328
  %7019 = vmatpush1.msra.mxu0 %v2327
  %7020 = vmatprep.subr.mxu0 %v2321
  %7021 = vmatpush1.msra.mxu0 %v2320
  %7022 = vmatprep.subr.mxu0 %v2314
  %7023 = vmatpush1.msra.mxu0 %v2313
  %7024 = vmatprep.subr.mxu0 %v2307
  %7025 = vmatpush1.msra.mxu0 %v2306
  %7026 = vmatprep.subr.mxu0 %v2524
  %7027 = vmatpush2.msra.mxu0 %v2523
  %7028 = vmatprep.subr.mxu0 %v2517
  %7029 = vmatpush2.msra.mxu0 %v2516
  %7030 = vmatprep.subr.mxu0 %v2510
  %7031 = vmatpush2.msra.mxu0 %v2509
  %7032 = vmatprep.subr.mxu0 %v2503
  %7033 = vmatpush2.msra.mxu0 %v2502
  %7034 = vmatprep.subr.mxu0 %v2496
  %7035 = vmatpush2.msra.mxu0 %v2495
  %7036 = vmatprep.subr.mxu0 %v2489
  %7037 = vmatpush2.msra.mxu0 %v2488
  %7038 = vmatprep.subr.mxu0 %v2482
  %7039 = vmatpush2.msra.mxu0 %v2481
  %7040 = vmatprep.subr.mxu0 %v2475
  %7041 = vmatpush2.msra.mxu0 %v2474
  %7042 = vmatprep.subr.mxu0 %v2468
  %7043 = vmatpush2.msra.mxu0 %v2467
  %7044 = vmatprep.subr.mxu0 %v2461
  %7045 = vmatpush2.msra.mxu0 %v2460
  %7046 = vmatprep.subr.mxu0 %v2454
  %7047 = vmatpush2.msra.mxu0 %v2453
  %7048 = vmatprep.subr.mxu0 %v2447
  %7049 = vmatpush2.msra.mxu0 %v2446
  %7050 = vmatprep.subr.mxu0 %v2440
  %7051 = vmatpush2.msra.mxu0 %v2439
  %7052 = vmatprep.subr.mxu0 %v2433
  %7053 = vmatpush2.msra.mxu0 %v2432
  %7054 = vmatprep.subr.mxu0 %v2426
  %7055 = vmatpush2.msra.mxu0 %v2425
  %7056 = vmatprep.subr.mxu0 %v2419
  %7057 = vmatpush2.msra.mxu0 %v2418
  %7058 = vmatprep.mubr.f32.mxu0 %v49
  %7059 = vmatmul.mubr.f32.gmra.mxu0 %v48
  %v7060 = vpop.f32.mrf.mxu0
  %v7061 = vadd.f32 %v6990, %v7060
  %v7062 = vpop.f32.mrf.mxu0
  %v7063 = vadd.f32 %v6992, %v7062
  %7064 = vdwg.mxu0
  %7065 = vmatprep.subr.mxu0 %v2636
  %7066 = vmatpush1.msra.mxu0 %v2635
  %7067 = vmatprep.subr.mxu0 %v2629
  %7068 = vmatpush1.msra.mxu0 %v2628
  %7069 = vmatprep.subr.mxu0 %v2622
  %7070 = vmatpush1.msra.mxu0 %v2621
  %7071 = vmatprep.subr.mxu0 %v2615
  %7072 = vmatpush1.msra.mxu0 %v2614
  %7073 = vmatprep.subr.mxu0 %v2608
  %7074 = vmatpush1.msra.mxu0 %v2607
  %7075 = vmatprep.subr.mxu0 %v2601
  %7076 = vmatpush1.msra.mxu0 %v2600
  %7077 = vmatprep.subr.mxu0 %v2594
  %7078 = vmatpush1.msra.mxu0 %v2593
  %7079 = vmatprep.subr.mxu0 %v2587
  %7080 = vmatpush1.msra.mxu0 %v2586
  %7081 = vmatprep.subr.mxu0 %v2580
  %7082 = vmatpush1.msra.mxu0 %v2579
  %7083 = vmatprep.subr.mxu0 %v2573
  %7084 = vmatpush1.msra.mxu0 %v2572
  %7085 = vmatprep.subr.mxu0 %v2566
  %7086 = vmatpush1.msra.mxu0 %v2565
  %7087 = vmatprep.subr.mxu0 %v2559
  %7088 = vmatpush1.msra.mxu0 %v2558
  %7089 = vmatprep.subr.mxu0 %v2552
  %7090 = vmatpush1.msra.mxu0 %v2551
  %7091 = vmatprep.subr.mxu0 %v2545
  %7092 = vmatpush1.msra.mxu0 %v2544
  %7093 = vmatprep.subr.mxu0 %v2538
  %7094 = vmatpush1.msra.mxu0 %v2537
  %7095 = vmatprep.subr.mxu0 %v2531
  %7096 = vmatpush1.msra.mxu0 %v2530
  %7097 = vmatprep.subr.mxu0 %v2748
  %7098 = vmatpush2.msra.mxu0 %v2747
  %7099 = vmatprep.subr.mxu0 %v2741
  %7100 = vmatpush2.msra.mxu0 %v2740
  %7101 = vmatprep.subr.mxu0 %v2734
  %7102 = vmatpush2.msra.mxu0 %v2733
  %7103 = vmatprep.subr.mxu0 %v2727
  %7104 = vmatpush2.msra.mxu0 %v2726
  %7105 = vmatprep.subr.mxu0 %v2720
  %7106 = vmatpush2.msra.mxu0 %v2719
  %7107 = vmatprep.subr.mxu0 %v2713
  %7108 = vmatpush2.msra.mxu0 %v2712
  %7109 = vmatprep.subr.mxu0 %v2706
  %7110 = vmatpush2.msra.mxu0 %v2705
  %7111 = vmatprep.subr.mxu0 %v2699
  %7112 = vmatpush2.msra.mxu0 %v2698
  %7113 = vmatprep.subr.mxu0 %v2692
  %7114 = vmatpush2.msra.mxu0 %v2691
  %7115 = vmatprep.subr.mxu0 %v2685
  %7116 = vmatpush2.msra.mxu0 %v2684
  %7117 = vmatprep.subr.mxu0 %v2678
  %7118 = vmatpush2.msra.mxu0 %v2677
  %7119 = vmatprep.subr.mxu0 %v2671
  %7120 = vmatpush2.msra.mxu0 %v2670
  %7121 = vmatprep.subr.mxu0 %v2664
  %7122 = vmatpush2.msra.mxu0 %v2663
  %7123 = vmatprep.subr.mxu0 %v2657
  %7124 = vmatpush2.msra.mxu0 %v2656
  %7125 = vmatprep.subr.mxu0 %v2650
  %7126 = vmatpush2.msra.mxu0 %v2649
  %7127 = vmatprep.subr.mxu0 %v2643
  %7128 = vmatpush2.msra.mxu0 %v2642
  %7129 = vmatprep.mubr.f32.mxu0 %v51
  %7130 = vmatmul.mubr.f32.gmra.mxu0 %v50
  %v7131 = vpop.f32.mrf.mxu0
  %v7132 = vadd.f32 %v7061, %v7131
  %v7133 = vpop.f32.mrf.mxu0
  %v7134 = vadd.f32 %v7063, %v7133
  %7135 = vdwg.mxu0
  %7136 = vmatprep.subr.mxu0 %v2860
  %7137 = vmatpush1.msra.mxu0 %v2859
  %7138 = vmatprep.subr.mxu0 %v2853
  %7139 = vmatpush1.msra.mxu0 %v2852
  %7140 = vmatprep.subr.mxu0 %v2846
  %7141 = vmatpush1.msra.mxu0 %v2845
  %7142 = vmatprep.subr.mxu0 %v2839
  %7143 = vmatpush1.msra.mxu0 %v2838
  %7144 = vmatprep.subr.mxu0 %v2832
  %7145 = vmatpush1.msra.mxu0 %v2831
  %7146 = vmatprep.subr.mxu0 %v2825
  %7147 = vmatpush1.msra.mxu0 %v2824
  %7148 = vmatprep.subr.mxu0 %v2818
  %7149 = vmatpush1.msra.mxu0 %v2817
  %7150 = vmatprep.subr.mxu0 %v2811
  %7151 = vmatpush1.msra.mxu0 %v2810
  %7152 = vmatprep.subr.mxu0 %v2804
  %7153 = vmatpush1.msra.mxu0 %v2803
  %7154 = vmatprep.subr.mxu0 %v2797
  %7155 = vmatpush1.msra.mxu0 %v2796
  %7156 = vmatprep.subr.mxu0 %v2790
  %7157 = vmatpush1.msra.mxu0 %v2789
  %7158 = vmatprep.subr.mxu0 %v2783
  %7159 = vmatpush1.msra.mxu0 %v2782
  %7160 = vmatprep.subr.mxu0 %v2776
  %7161 = vmatpush1.msra.mxu0 %v2775
  %7162 = vmatprep.subr.mxu0 %v2769
  %7163 = vmatpush1.msra.mxu0 %v2768
  %7164 = vmatprep.subr.mxu0 %v2762
  %7165 = vmatpush1.msra.mxu0 %v2761
  %7166 = vmatprep.subr.mxu0 %v2755
  %7167 = vmatpush1.msra.mxu0 %v2754
  %7168 = vmatprep.subr.mxu0 %v2972
  %7169 = vmatpush2.msra.mxu0 %v2971
  %7170 = vmatprep.subr.mxu0 %v2965
  %7171 = vmatpush2.msra.mxu0 %v2964
  %7172 = vmatprep.subr.mxu0 %v2958
  %7173 = vmatpush2.msra.mxu0 %v2957
  %7174 = vmatprep.subr.mxu0 %v2951
  %7175 = vmatpush2.msra.mxu0 %v2950
  %7176 = vmatprep.subr.mxu0 %v2944
  %7177 = vmatpush2.msra.mxu0 %v2943
  %7178 = vmatprep.subr.mxu0 %v2937
  %7179 = vmatpush2.msra.mxu0 %v2936
  %7180 = vmatprep.subr.mxu0 %v2930
  %7181 = vmatpush2.msra.mxu0 %v2929
  %7182 = vmatprep.subr.mxu0 %v2923
  %7183 = vmatpush2.msra.mxu0 %v2922
  %7184 = vmatprep.subr.mxu0 %v2916
  %7185 = vmatpush2.msra.mxu0 %v2915
  %7186 = vmatprep.subr.mxu0 %v2909
  %7187 = vmatpush2.msra.mxu0 %v2908
  %7188 = vmatprep.subr.mxu0 %v2902
  %7189 = vmatpush2.msra.mxu0 %v2901
  %7190 = vmatprep.subr.mxu0 %v2895
  %7191 = vmatpush2.msra.mxu0 %v2894
  %7192 = vmatprep.subr.mxu0 %v2888
  %7193 = vmatpush2.msra.mxu0 %v2887
  %7194 = vmatprep.subr.mxu0 %v2881
  %7195 = vmatpush2.msra.mxu0 %v2880
  %7196 = vmatprep.subr.mxu0 %v2874
  %7197 = vmatpush2.msra.mxu0 %v2873
  %7198 = vmatprep.subr.mxu0 %v2867
  %7199 = vmatpush2.msra.mxu0 %v2866
  %7200 = vmatprep.mubr.f32.mxu0 %v53
  %7201 = vmatmul.mubr.f32.gmra.mxu0 %v52
  %v7202 = vpop.f32.mrf.mxu0
  %v7203 = vadd.f32 %v7132, %v7202
  %v7204 = vpop.f32.mrf.mxu0
  %v7205 = vadd.f32 %v7134, %v7204
  %7206 = vdwg.mxu0
  %7207 = vmatprep.subr.mxu0 %v3084
  %7208 = vmatpush1.msra.mxu0 %v3083
  %7209 = vmatprep.subr.mxu0 %v3077
  %7210 = vmatpush1.msra.mxu0 %v3076
  %7211 = vmatprep.subr.mxu0 %v3070
  %7212 = vmatpush1.msra.mxu0 %v3069
  %7213 = vmatprep.subr.mxu0 %v3063
  %7214 = vmatpush1.msra.mxu0 %v3062
  %7215 = vmatprep.subr.mxu0 %v3056
  %7216 = vmatpush1.msra.mxu0 %v3055
  %7217 = vmatprep.subr.mxu0 %v3049
  %7218 = vmatpush1.msra.mxu0 %v3048
  %7219 = vmatprep.subr.mxu0 %v3042
  %7220 = vmatpush1.msra.mxu0 %v3041
  %7221 = vmatprep.subr.mxu0 %v3035
  %7222 = vmatpush1.msra.mxu0 %v3034
  %7223 = vmatprep.subr.mxu0 %v3028
  %7224 = vmatpush1.msra.mxu0 %v3027
  %7225 = vmatprep.subr.mxu0 %v3021
  %7226 = vmatpush1.msra.mxu0 %v3020
  %7227 = vmatprep.subr.mxu0 %v3014
  %7228 = vmatpush1.msra.mxu0 %v3013
  %7229 = vmatprep.subr.mxu0 %v3007
  %7230 = vmatpush1.msra.mxu0 %v3006
  %7231 = vmatprep.subr.mxu0 %v3000
  %7232 = vmatpush1.msra.mxu0 %v2999
  %7233 = vmatprep.subr.mxu0 %v2993
  %7234 = vmatpush1.msra.mxu0 %v2992
  %7235 = vmatprep.subr.mxu0 %v2986
  %7236 = vmatpush1.msra.mxu0 %v2985
  %7237 = vmatprep.subr.mxu0 %v2979
  %7238 = vmatpush1.msra.mxu0 %v2978
  %7239 = vmatprep.subr.mxu0 %v3196
  %7240 = vmatpush2.msra.mxu0 %v3195
  %7241 = vmatprep.subr.mxu0 %v3189
  %7242 = vmatpush2.msra.mxu0 %v3188
  %7243 = vmatprep.subr.mxu0 %v3182
  %7244 = vmatpush2.msra.mxu0 %v3181
  %7245 = vmatprep.subr.mxu0 %v3175
  %7246 = vmatpush2.msra.mxu0 %v3174
  %7247 = vmatprep.subr.mxu0 %v3168
  %7248 = vmatpush2.msra.mxu0 %v3167
  %7249 = vmatprep.subr.mxu0 %v3161
  %7250 = vmatpush2.msra.mxu0 %v3160
  %7251 = vmatprep.subr.mxu0 %v3154
  %7252 = vmatpush2.msra.mxu0 %v3153
  %7253 = vmatprep.subr.mxu0 %v3147
  %7254 = vmatpush2.msra.mxu0 %v3146
  %7255 = vmatprep.subr.mxu0 %v3140
  %7256 = vmatpush2.msra.mxu0 %v3139
  %7257 = vmatprep.subr.mxu0 %v3133
  %7258 = vmatpush2.msra.mxu0 %v3132
  %7259 = vmatprep.subr.mxu0 %v3126
  %7260 = vmatpush2.msra.mxu0 %v3125
  %7261 = vmatprep.subr.mxu0 %v3119
  %7262 = vmatpush2.msra.mxu0 %v3118
  %7263 = vmatprep.subr.mxu0 %v3112
  %7264 = vmatpush2.msra.mxu0 %v3111
  %7265 = vmatprep.subr.mxu0 %v3105
  %7266 = vmatpush2.msra.mxu0 %v3104
  %7267 = vmatprep.subr.mxu0 %v3098
  %7268 = vmatpush2.msra.mxu0 %v3097
  %7269 = vmatprep.subr.mxu0 %v3091
  %7270 = vmatpush2.msra.mxu0 %v3090
  %7271 = vmatprep.mubr.f32.mxu0 %v55
  %7272 = vmatmul.mubr.f32.gmra.mxu0 %v54
  %v7273 = vpop.f32.mrf.mxu0
  %v7274 = vadd.f32 %v7203, %v7273
  %v7275 = vpop.f32.mrf.mxu0
  %v7276 = vadd.f32 %v7205, %v7275
  %7277 = vdwg.mxu0
  %7278 = vmatprep.subr.mxu0 %v3308
  %7279 = vmatpush1.msra.mxu0 %v3307
  %7280 = vmatprep.subr.mxu0 %v3301
  %7281 = vmatpush1.msra.mxu0 %v3300
  %7282 = vmatprep.subr.mxu0 %v3294
  %7283 = vmatpush1.msra.mxu0 %v3293
  %7284 = vmatprep.subr.mxu0 %v3287
  %7285 = vmatpush1.msra.mxu0 %v3286
  %7286 = vmatprep.subr.mxu0 %v3280
  %7287 = vmatpush1.msra.mxu0 %v3279
  %7288 = vmatprep.subr.mxu0 %v3273
  %7289 = vmatpush1.msra.mxu0 %v3272
  %7290 = vmatprep.subr.mxu0 %v3266
  %7291 = vmatpush1.msra.mxu0 %v3265
  %7292 = vmatprep.subr.mxu0 %v3259
  %7293 = vmatpush1.msra.mxu0 %v3258
  %7294 = vmatprep.subr.mxu0 %v3252
  %7295 = vmatpush1.msra.mxu0 %v3251
  %7296 = vmatprep.subr.mxu0 %v3245
  %7297 = vmatpush1.msra.mxu0 %v3244
  %7298 = vmatprep.subr.mxu0 %v3238
  %7299 = vmatpush1.msra.mxu0 %v3237
  %7300 = vmatprep.subr.mxu0 %v3231
  %7301 = vmatpush1.msra.mxu0 %v3230
  %7302 = vmatprep.subr.mxu0 %v3224
  %7303 = vmatpush1.msra.mxu0 %v3223
  %7304 = vmatprep.subr.mxu0 %v3217
  %7305 = vmatpush1.msra.mxu0 %v3216
  %7306 = vmatprep.subr.mxu0 %v3210
  %7307 = vmatpush1.msra.mxu0 %v3209
  %7308 = vmatprep.subr.mxu0 %v3203
  %7309 = vmatpush1.msra.mxu0 %v3202
  %7310 = vmatprep.subr.mxu0 %v3420
  %7311 = vmatpush2.msra.mxu0 %v3419
  %7312 = vmatprep.subr.mxu0 %v3413
  %7313 = vmatpush2.msra.mxu0 %v3412
  %7314 = vmatprep.subr.mxu0 %v3406
  %7315 = vmatpush2.msra.mxu0 %v3405
  %7316 = vmatprep.subr.mxu0 %v3399
  %7317 = vmatpush2.msra.mxu0 %v3398
  %7318 = vmatprep.subr.mxu0 %v3392
  %7319 = vmatpush2.msra.mxu0 %v3391
  %7320 = vmatprep.subr.mxu0 %v3385
  %7321 = vmatpush2.msra.mxu0 %v3384
  %7322 = vmatprep.subr.mxu0 %v3378
  %7323 = vmatpush2.msra.mxu0 %v3377
  %7324 = vmatprep.subr.mxu0 %v3371
  %7325 = vmatpush2.msra.mxu0 %v3370
  %7326 = vmatprep.subr.mxu0 %v3364
  %7327 = vmatpush2.msra.mxu0 %v3363
  %7328 = vmatprep.subr.mxu0 %v3357
  %7329 = vmatpush2.msra.mxu0 %v3356
  %7330 = vmatprep.subr.mxu0 %v3350
  %7331 = vmatpush2.msra.mxu0 %v3349
  %7332 = vmatprep.subr.mxu0 %v3343
  %7333 = vmatpush2.msra.mxu0 %v3342
  %7334 = vmatprep.subr.mxu0 %v3336
  %7335 = vmatpush2.msra.mxu0 %v3335
  %7336 = vmatprep.subr.mxu0 %v3329
  %7337 = vmatpush2.msra.mxu0 %v3328
  %7338 = vmatprep.subr.mxu0 %v3322
  %7339 = vmatpush2.msra.mxu0 %v3321
  %7340 = vmatprep.subr.mxu0 %v3315
  %7341 = vmatpush2.msra.mxu0 %v3314
  %7342 = vmatprep.mubr.f32.mxu0 %v57
  %7343 = vmatmul.mubr.f32.gmra.mxu0 %v56
  %v7344 = vpop.f32.mrf.mxu0
  %v7345 = vadd.f32 %v7274, %v7344
  %v7346 = vpop.f32.mrf.mxu0
  %v7347 = vadd.f32 %v7276, %v7346
  %7348 = vdwg.mxu0
  %7349 = vmatprep.subr.mxu0 %v3532
  %7350 = vmatpush1.msra.mxu0 %v3531
  %7351 = vmatprep.subr.mxu0 %v3525
  %7352 = vmatpush1.msra.mxu0 %v3524
  %7353 = vmatprep.subr.mxu0 %v3518
  %7354 = vmatpush1.msra.mxu0 %v3517
  %7355 = vmatprep.subr.mxu0 %v3511
  %7356 = vmatpush1.msra.mxu0 %v3510
  %7357 = vmatprep.subr.mxu0 %v3504
  %7358 = vmatpush1.msra.mxu0 %v3503
  %7359 = vmatprep.subr.mxu0 %v3497
  %7360 = vmatpush1.msra.mxu0 %v3496
  %7361 = vmatprep.subr.mxu0 %v3490
  %7362 = vmatpush1.msra.mxu0 %v3489
  %7363 = vmatprep.subr.mxu0 %v3483
  %7364 = vmatpush1.msra.mxu0 %v3482
  %7365 = vmatprep.subr.mxu0 %v3476
  %7366 = vmatpush1.msra.mxu0 %v3475
  %7367 = vmatprep.subr.mxu0 %v3469
  %7368 = vmatpush1.msra.mxu0 %v3468
  %7369 = vmatprep.subr.mxu0 %v3462
  %7370 = vmatpush1.msra.mxu0 %v3461
  %7371 = vmatprep.subr.mxu0 %v3455
  %7372 = vmatpush1.msra.mxu0 %v3454
  %7373 = vmatprep.subr.mxu0 %v3448
  %7374 = vmatpush1.msra.mxu0 %v3447
  %7375 = vmatprep.subr.mxu0 %v3441
  %7376 = vmatpush1.msra.mxu0 %v3440
  %7377 = vmatprep.subr.mxu0 %v3434
  %7378 = vmatpush1.msra.mxu0 %v3433
  %7379 = vmatprep.subr.mxu0 %v3427
  %7380 = vmatpush1.msra.mxu0 %v3426
  %7381 = vmatprep.subr.mxu0 %v3644
  %7382 = vmatpush2.msra.mxu0 %v3643
  %7383 = vmatprep.subr.mxu0 %v3637
  %7384 = vmatpush2.msra.mxu0 %v3636
  %7385 = vmatprep.subr.mxu0 %v3630
  %7386 = vmatpush2.msra.mxu0 %v3629
  %7387 = vmatprep.subr.mxu0 %v3623
  %7388 = vmatpush2.msra.mxu0 %v3622
  %7389 = vmatprep.subr.mxu0 %v3616
  %7390 = vmatpush2.msra.mxu0 %v3615
  %7391 = vmatprep.subr.mxu0 %v3609
  %7392 = vmatpush2.msra.mxu0 %v3608
  %7393 = vmatprep.subr.mxu0 %v3602
  %7394 = vmatpush2.msra.mxu0 %v3601
  %7395 = vmatprep.subr.mxu0 %v3595
  %7396 = vmatpush2.msra.mxu0 %v3594
  %7397 = vmatprep.subr.mxu0 %v3588
  %7398 = vmatpush2.msra.mxu0 %v3587
  %7399 = vmatprep.subr.mxu0 %v3581
  %7400 = vmatpush2.msra.mxu0 %v3580
  %7401 = vmatprep.subr.mxu0 %v3574
  %7402 = vmatpush2.msra.mxu0 %v3573
  %7403 = vmatprep.subr.mxu0 %v3567
  %7404 = vmatpush2.msra.mxu0 %v3566
  %7405 = vmatprep.subr.mxu0 %v3560
  %7406 = vmatpush2.msra.mxu0 %v3559
  %7407 = vmatprep.subr.mxu0 %v3553
  %7408 = vmatpush2.msra.mxu0 %v3552
  %7409 = vmatprep.subr.mxu0 %v3546
  %7410 = vmatpush2.msra.mxu0 %v3545
  %7411 = vmatprep.subr.mxu0 %v3539
  %7412 = vmatpush2.msra.mxu0 %v3538
  %7413 = vmatprep.mubr.f32.mxu0 %v59
  %7414 = vmatmul.mubr.f32.gmra.mxu0 %v58
  %v7415 = vpop.f32.mrf.mxu0
  %v7416 = vadd.f32 %v7345, %v7415
  %v7417 = vpop.f32.mrf.mxu0
  %v7418 = vadd.f32 %v7347, %v7417
  %7419 = vdwg.mxu0
  %7420 = vmatprep.subr.mxu0 %v3756
  %7421 = vmatpush1.msra.mxu0 %v3755
  %7422 = vmatprep.subr.mxu0 %v3749
  %7423 = vmatpush1.msra.mxu0 %v3748
  %7424 = vmatprep.subr.mxu0 %v3742
  %7425 = vmatpush1.msra.mxu0 %v3741
  %7426 = vmatprep.subr.mxu0 %v3735
  %7427 = vmatpush1.msra.mxu0 %v3734
  %7428 = vmatprep.subr.mxu0 %v3728
  %7429 = vmatpush1.msra.mxu0 %v3727
  %7430 = vmatprep.subr.mxu0 %v3721
  %7431 = vmatpush1.msra.mxu0 %v3720
  %7432 = vmatprep.subr.mxu0 %v3714
  %7433 = vmatpush1.msra.mxu0 %v3713
  %7434 = vmatprep.subr.mxu0 %v3707
  %7435 = vmatpush1.msra.mxu0 %v3706
  %7436 = vmatprep.subr.mxu0 %v3700
  %7437 = vmatpush1.msra.mxu0 %v3699
  %7438 = vmatprep.subr.mxu0 %v3693
  %7439 = vmatpush1.msra.mxu0 %v3692
  %7440 = vmatprep.subr.mxu0 %v3686
  %7441 = vmatpush1.msra.mxu0 %v3685
  %7442 = vmatprep.subr.mxu0 %v3679
  %7443 = vmatpush1.msra.mxu0 %v3678
  %7444 = vmatprep.subr.mxu0 %v3672
  %7445 = vmatpush1.msra.mxu0 %v3671
  %7446 = vmatprep.subr.mxu0 %v3665
  %7447 = vmatpush1.msra.mxu0 %v3664
  %7448 = vmatprep.subr.mxu0 %v3658
  %7449 = vmatpush1.msra.mxu0 %v3657
  %7450 = vmatprep.subr.mxu0 %v3651
  %7451 = vmatpush1.msra.mxu0 %v3650
  %7452 = vmatprep.subr.mxu0 0.0
  %7453 = vmatpush2.msra.mxu0 0.0
  %7454 = vmatprep.subr.mxu0 0.0
  %7455 = vmatpush2.msra.mxu0 0.0
  %7456 = vmatprep.subr.mxu0 0.0
  %7457 = vmatpush2.msra.mxu0 0.0
  %7458 = vmatprep.subr.mxu0 0.0
  %7459 = vmatpush2.msra.mxu0 0.0
  %7460 = vmatprep.subr.mxu0 0.0
  %7461 = vmatpush2.msra.mxu0 0.0
  %7462 = vmatprep.subr.mxu0 0.0
  %7463 = vmatpush2.msra.mxu0 0.0
  %7464 = vmatprep.subr.mxu0 0.0
  %7465 = vmatpush2.msra.mxu0 0.0
  %7466 = vmatprep.subr.mxu0 0.0
  %7467 = vmatpush2.msra.mxu0 0.0
  %7468 = vmatprep.subr.mxu0 0.0
  %7469 = vmatpush2.msra.mxu0 0.0
  %7470 = vmatprep.subr.mxu0 %v3865
  %7471 = vmatpush2.msra.mxu0 %v3862
  %7472 = vmatprep.subr.mxu0 %v3798
  %7473 = vmatpush2.msra.mxu0 %v3797
  %7474 = vmatprep.subr.mxu0 %v3791
  %7475 = vmatpush2.msra.mxu0 %v3790
  %7476 = vmatprep.subr.mxu0 %v3784
  %7477 = vmatpush2.msra.mxu0 %v3783
  %7478 = vmatprep.subr.mxu0 %v3777
  %7479 = vmatpush2.msra.mxu0 %v3776
  %7480 = vmatprep.subr.mxu0 %v3770
  %7481 = vmatpush2.msra.mxu0 %v3769
  %7482 = vmatprep.subr.mxu0 %v3763
  %7483 = vmatpush2.msra.mxu0 %v3762
  %7484 = vmatprep.mubr.f32.mxu0 %v3846
  %7485 = vmatmul.mubr.f32.gmra.mxu0 %v60
  %v7486 = vpop.f32.mrf.mxu0
  %v7487 = vadd.f32 %v7416, %v7486
  %v7488 = vpop.f32.mrf.mxu0
  %v7489 = vadd.f32 %v7418, %v7488
  %7490 = vdwg.mxu0
  %7491 = vmatprep.subr.mxu0 0.0
  %7492 = vmatpush1.msra.mxu0 %v173
  %7493 = vmatprep.subr.mxu0 0.0
  %7494 = vmatpush1.msra.mxu0 %v166
  %7495 = vmatprep.subr.mxu0 0.0
  %7496 = vmatpush1.msra.mxu0 %v159
  %7497 = vmatprep.subr.mxu0 0.0
  %7498 = vmatpush1.msra.mxu0 %v152
  %7499 = vmatprep.subr.mxu0 0.0
  %7500 = vmatpush1.msra.mxu0 %v145
  %7501 = vmatprep.subr.mxu0 0.0
  %7502 = vmatpush1.msra.mxu0 %v138
  %7503 = vmatprep.subr.mxu0 0.0
  %7504 = vmatpush1.msra.mxu0 %v131
  %7505 = vmatprep.subr.mxu0 0.0
  %7506 = vmatpush1.msra.mxu0 %v124
  %7507 = vmatprep.subr.mxu0 0.0
  %7508 = vmatpush1.msra.mxu0 %v117
  %7509 = vmatprep.subr.mxu0 0.0
  %7510 = vmatpush1.msra.mxu0 %v110
  %7511 = vmatprep.subr.mxu0 0.0
  %7512 = vmatpush1.msra.mxu0 %v103
  %7513 = vmatprep.subr.mxu0 0.0
  %7514 = vmatpush1.msra.mxu0 %v96
  %7515 = vmatprep.subr.mxu0 0.0
  %7516 = vmatpush1.msra.mxu0 %v89
  %7517 = vmatprep.subr.mxu0 0.0
  %7518 = vmatpush1.msra.mxu0 %v82
  %7519 = vmatprep.subr.mxu0 0.0
  %7520 = vmatpush1.msra.mxu0 %v75
  %7521 = vmatprep.subr.mxu0 0.0
  %7522 = vmatpush1.msra.mxu0 %v68
  %7523 = vmatprep.subr.mxu0 0.0
  %7524 = vmatpush2.msra.mxu0 %v285
  %7525 = vmatprep.subr.mxu0 0.0
  %7526 = vmatpush2.msra.mxu0 %v278
  %7527 = vmatprep.subr.mxu0 0.0
  %7528 = vmatpush2.msra.mxu0 %v271
  %7529 = vmatprep.subr.mxu0 0.0
  %7530 = vmatpush2.msra.mxu0 %v264
  %7531 = vmatprep.subr.mxu0 0.0
  %7532 = vmatpush2.msra.mxu0 %v257
  %7533 = vmatprep.subr.mxu0 0.0
  %7534 = vmatpush2.msra.mxu0 %v250
  %7535 = vmatprep.subr.mxu0 0.0
  %7536 = vmatpush2.msra.mxu0 %v243
  %7537 = vmatprep.subr.mxu0 0.0
  %7538 = vmatpush2.msra.mxu0 %v236
  %7539 = vmatprep.subr.mxu0 0.0
  %7540 = vmatpush2.msra.mxu0 %v229
  %7541 = vmatprep.subr.mxu0 0.0
  %7542 = vmatpush2.msra.mxu0 %v222
  %7543 = vmatprep.subr.mxu0 0.0
  %7544 = vmatpush2.msra.mxu0 %v215
  %7545 = vmatprep.subr.mxu0 0.0
  %7546 = vmatpush2.msra.mxu0 %v208
  %7547 = vmatprep.subr.mxu0 0.0
  %7548 = vmatpush2.msra.mxu0 %v201
  %7549 = vmatprep.subr.mxu0 0.0
  %7550 = vmatpush2.msra.mxu0 %v194
  %7551 = vmatprep.subr.mxu0 0.0
  %7552 = vmatpush2.msra.mxu0 %v187
  %7553 = vmatprep.subr.mxu0 0.0
  %7554 = vmatpush2.msra.mxu0 %v180
  %7555 = vmatprep.mubr.f32.mxu0 %v29
  %7556 = vmatmul.mubr.f32.gmra.mxu0 %v28
  %v7557 = vpop.f32.mrf.mxu0
  %v7558 = vadd.f32 %v3836, %v7557
  %v7559 = vpop.f32.mrf.mxu0
  %7560 = vdwg.mxu0
  %7561 = vmatprep.subr.mxu0 0.0
  %7562 = vmatpush1.msra.mxu0 %v397
  %7563 = vmatprep.subr.mxu0 0.0
  %7564 = vmatpush1.msra.mxu0 %v390
  %7565 = vmatprep.subr.mxu0 0.0
  %7566 = vmatpush1.msra.mxu0 %v383
  %7567 = vmatprep.subr.mxu0 0.0
  %7568 = vmatpush1.msra.mxu0 %v376
  %7569 = vmatprep.subr.mxu0 0.0
  %7570 = vmatpush1.msra.mxu0 %v369
  %7571 = vmatprep.subr.mxu0 0.0
  %7572 = vmatpush1.msra.mxu0 %v362
  %7573 = vmatprep.subr.mxu0 0.0
  %7574 = vmatpush1.msra.mxu0 %v355
  %7575 = vmatprep.subr.mxu0 0.0
  %7576 = vmatpush1.msra.mxu0 %v348
  %7577 = vmatprep.subr.mxu0 0.0
  %7578 = vmatpush1.msra.mxu0 %v341
  %7579 = vmatprep.subr.mxu0 0.0
  %7580 = vmatpush1.msra.mxu0 %v334
  %7581 = vmatprep.subr.mxu0 0.0
  %7582 = vmatpush1.msra.mxu0 %v327
  %7583 = vmatprep.subr.mxu0 0.0
  %7584 = vmatpush1.msra.mxu0 %v320
  %7585 = vmatprep.subr.mxu0 0.0
  %7586 = vmatpush1.msra.mxu0 %v313
  %7587 = vmatprep.subr.mxu0 0.0
  %7588 = vmatpush1.msra.mxu0 %v306
  %7589 = vmatprep.subr.mxu0 0.0
  %7590 = vmatpush1.msra.mxu0 %v299
  %7591 = vmatprep.subr.mxu0 0.0
  %7592 = vmatpush1.msra.mxu0 %v292
  %7593 = vmatprep.subr.mxu0 0.0
  %7594 = vmatpush2.msra.mxu0 %v509
  %7595 = vmatprep.subr.mxu0 0.0
  %7596 = vmatpush2.msra.mxu0 %v502
  %7597 = vmatprep.subr.mxu0 0.0
  %7598 = vmatpush2.msra.mxu0 %v495
  %7599 = vmatprep.subr.mxu0 0.0
  %7600 = vmatpush2.msra.mxu0 %v488
  %7601 = vmatprep.subr.mxu0 0.0
  %7602 = vmatpush2.msra.mxu0 %v481
  %7603 = vmatprep.subr.mxu0 0.0
  %7604 = vmatpush2.msra.mxu0 %v474
  %7605 = vmatprep.subr.mxu0 0.0
  %7606 = vmatpush2.msra.mxu0 %v467
  %7607 = vmatprep.subr.mxu0 0.0
  %7608 = vmatpush2.msra.mxu0 %v460
  %7609 = vmatprep.subr.mxu0 0.0
  %7610 = vmatpush2.msra.mxu0 %v453
  %7611 = vmatprep.subr.mxu0 0.0
  %7612 = vmatpush2.msra.mxu0 %v446
  %7613 = vmatprep.subr.mxu0 0.0
  %7614 = vmatpush2.msra.mxu0 %v439
  %7615 = vmatprep.subr.mxu0 0.0
  %7616 = vmatpush2.msra.mxu0 %v432
  %7617 = vmatprep.subr.mxu0 0.0
  %7618 = vmatpush2.msra.mxu0 %v425
  %7619 = vmatprep.subr.mxu0 0.0
  %7620 = vmatpush2.msra.mxu0 %v418
  %7621 = vmatprep.subr.mxu0 0.0
  %7622 = vmatpush2.msra.mxu0 %v411
  %7623 = vmatprep.subr.mxu0 0.0
  %7624 = vmatpush2.msra.mxu0 %v404
  %7625 = vmatprep.mubr.f32.mxu0 %v31
  %7626 = vmatmul.mubr.f32.gmra.mxu0 %v30
  %v7627 = vpop.f32.mrf.mxu0
  %v7628 = vadd.f32 %v7558, %v7627
  %v7629 = vpop.f32.mrf.mxu0
  %7630 = vdwg.mxu0
  %7631 = vmatprep.subr.mxu0 0.0
  %7632 = vmatpush1.msra.mxu0 %v621
  %7633 = vmatprep.subr.mxu0 0.0
  %7634 = vmatpush1.msra.mxu0 %v614
  %7635 = vmatprep.subr.mxu0 0.0
  %7636 = vmatpush1.msra.mxu0 %v607
  %7637 = vmatprep.subr.mxu0 0.0
  %7638 = vmatpush1.msra.mxu0 %v600
  %7639 = vmatprep.subr.mxu0 0.0
  %7640 = vmatpush1.msra.mxu0 %v593
  %7641 = vmatprep.subr.mxu0 0.0
  %7642 = vmatpush1.msra.mxu0 %v586
  %7643 = vmatprep.subr.mxu0 0.0
  %7644 = vmatpush1.msra.mxu0 %v579
  %7645 = vmatprep.subr.mxu0 0.0
  %7646 = vmatpush1.msra.mxu0 %v572
  %7647 = vmatprep.subr.mxu0 0.0
  %7648 = vmatpush1.msra.mxu0 %v565
  %7649 = vmatprep.subr.mxu0 0.0
  %7650 = vmatpush1.msra.mxu0 %v558
  %7651 = vmatprep.subr.mxu0 0.0
  %7652 = vmatpush1.msra.mxu0 %v551
  %7653 = vmatprep.subr.mxu0 0.0
  %7654 = vmatpush1.msra.mxu0 %v544
  %7655 = vmatprep.subr.mxu0 0.0
  %7656 = vmatpush1.msra.mxu0 %v537
  %7657 = vmatprep.subr.mxu0 0.0
  %7658 = vmatpush1.msra.mxu0 %v530
  %7659 = vmatprep.subr.mxu0 0.0
  %7660 = vmatpush1.msra.mxu0 %v523
  %7661 = vmatprep.subr.mxu0 0.0
  %7662 = vmatpush1.msra.mxu0 %v516
  %7663 = vmatprep.subr.mxu0 0.0
  %7664 = vmatpush2.msra.mxu0 %v733
  %7665 = vmatprep.subr.mxu0 0.0
  %7666 = vmatpush2.msra.mxu0 %v726
  %7667 = vmatprep.subr.mxu0 0.0
  %7668 = vmatpush2.msra.mxu0 %v719
  %7669 = vmatprep.subr.mxu0 0.0
  %7670 = vmatpush2.msra.mxu0 %v712
  %7671 = vmatprep.subr.mxu0 0.0
  %7672 = vmatpush2.msra.mxu0 %v705
  %7673 = vmatprep.subr.mxu0 0.0
  %7674 = vmatpush2.msra.mxu0 %v698
  %7675 = vmatprep.subr.mxu0 0.0
  %7676 = vmatpush2.msra.mxu0 %v691
  %7677 = vmatprep.subr.mxu0 0.0
  %7678 = vmatpush2.msra.mxu0 %v684
  %7679 = vmatprep.subr.mxu0 0.0
  %7680 = vmatpush2.msra.mxu0 %v677
  %7681 = vmatprep.subr.mxu0 0.0
  %7682 = vmatpush2.msra.mxu0 %v670
  %7683 = vmatprep.subr.mxu0 0.0
  %7684 = vmatpush2.msra.mxu0 %v663
  %7685 = vmatprep.subr.mxu0 0.0
  %7686 = vmatpush2.msra.mxu0 %v656
  %7687 = vmatprep.subr.mxu0 0.0
  %7688 = vmatpush2.msra.mxu0 %v649
  %7689 = vmatprep.subr.mxu0 0.0
  %7690 = vmatpush2.msra.mxu0 %v642
  %7691 = vmatprep.subr.mxu0 0.0
  %7692 = vmatpush2.msra.mxu0 %v635
  %7693 = vmatprep.subr.mxu0 0.0
  %7694 = vmatpush2.msra.mxu0 %v628
  %7695 = vmatprep.mubr.f32.mxu0 %v33
  %7696 = vmatmul.mubr.f32.gmra.mxu0 %v32
  %v7697 = vpop.f32.mrf.mxu0
  %v7698 = vadd.f32 %v7628, %v7697
  %v7699 = vpop.f32.mrf.mxu0
  %7700 = vdwg.mxu0
  %7701 = vmatprep.subr.mxu0 0.0
  %7702 = vmatpush1.msra.mxu0 %v845
  %7703 = vmatprep.subr.mxu0 0.0
  %7704 = vmatpush1.msra.mxu0 %v838
  %7705 = vmatprep.subr.mxu0 0.0
  %7706 = vmatpush1.msra.mxu0 %v831
  %7707 = vmatprep.subr.mxu0 0.0
  %7708 = vmatpush1.msra.mxu0 %v824
  %7709 = vmatprep.subr.mxu0 0.0
  %7710 = vmatpush1.msra.mxu0 %v817
  %7711 = vmatprep.subr.mxu0 0.0
  %7712 = vmatpush1.msra.mxu0 %v810
  %7713 = vmatprep.subr.mxu0 0.0
  %7714 = vmatpush1.msra.mxu0 %v803
  %7715 = vmatprep.subr.mxu0 0.0
  %7716 = vmatpush1.msra.mxu0 %v796
  %7717 = vmatprep.subr.mxu0 0.0
  %7718 = vmatpush1.msra.mxu0 %v789
  %7719 = vmatprep.subr.mxu0 0.0
  %7720 = vmatpush1.msra.mxu0 %v782
  %7721 = vmatprep.subr.mxu0 0.0
  %7722 = vmatpush1.msra.mxu0 %v775
  %7723 = vmatprep.subr.mxu0 0.0
  %7724 = vmatpush1.msra.mxu0 %v768
  %7725 = vmatprep.subr.mxu0 0.0
  %7726 = vmatpush1.msra.mxu0 %v761
  %7727 = vmatprep.subr.mxu0 0.0
  %7728 = vmatpush1.msra.mxu0 %v754
  %7729 = vmatprep.subr.mxu0 0.0
  %7730 = vmatpush1.msra.mxu0 %v747
  %7731 = vmatprep.subr.mxu0 0.0
  %7732 = vmatpush1.msra.mxu0 %v740
  %7733 = vmatprep.subr.mxu0 0.0
  %7734 = vmatpush2.msra.mxu0 %v957
  %7735 = vmatprep.subr.mxu0 0.0
  %7736 = vmatpush2.msra.mxu0 %v950
  %7737 = vmatprep.subr.mxu0 0.0
  %7738 = vmatpush2.msra.mxu0 %v943
  %7739 = vmatprep.subr.mxu0 0.0
  %7740 = vmatpush2.msra.mxu0 %v936
  %7741 = vmatprep.subr.mxu0 0.0
  %7742 = vmatpush2.msra.mxu0 %v929
  %7743 = vmatprep.subr.mxu0 0.0
  %7744 = vmatpush2.msra.mxu0 %v922
  %7745 = vmatprep.subr.mxu0 0.0
  %7746 = vmatpush2.msra.mxu0 %v915
  %7747 = vmatprep.subr.mxu0 0.0
  %7748 = vmatpush2.msra.mxu0 %v908
  %7749 = vmatprep.subr.mxu0 0.0
  %7750 = vmatpush2.msra.mxu0 %v901
  %7751 = vmatprep.subr.mxu0 0.0
  %7752 = vmatpush2.msra.mxu0 %v894
  %7753 = vmatprep.subr.mxu0 0.0
  %7754 = vmatpush2.msra.mxu0 %v887
  %7755 = vmatprep.subr.mxu0 0.0
  %7756 = vmatpush2.msra.mxu0 %v880
  %7757 = vmatprep.subr.mxu0 0.0
  %7758 = vmatpush2.msra.mxu0 %v873
  %7759 = vmatprep.subr.mxu0 0.0
  %7760 = vmatpush2.msra.mxu0 %v866
  %7761 = vmatprep.subr.mxu0 0.0
  %7762 = vmatpush2.msra.mxu0 %v859
  %7763 = vmatprep.subr.mxu0 0.0
  %7764 = vmatpush2.msra.mxu0 %v852
  %7765 = vmatprep.mubr.f32.mxu0 %v35
  %7766 = vmatmul.mubr.f32.gmra.mxu0 %v34
  %v7767 = vpop.f32.mrf.mxu0
  %v7768 = vadd.f32 %v7698, %v7767
  %v7769 = vpop.f32.mrf.mxu0
  %7770 = vdwg.mxu0
  %7771 = vmatprep.subr.mxu0 0.0
  %7772 = vmatpush1.msra.mxu0 %v1069
  %7773 = vmatprep.subr.mxu0 0.0
  %7774 = vmatpush1.msra.mxu0 %v1062
  %7775 = vmatprep.subr.mxu0 0.0
  %7776 = vmatpush1.msra.mxu0 %v1055
  %7777 = vmatprep.subr.mxu0 0.0
  %7778 = vmatpush1.msra.mxu0 %v1048
  %7779 = vmatprep.subr.mxu0 0.0
  %7780 = vmatpush1.msra.mxu0 %v1041
  %7781 = vmatprep.subr.mxu0 0.0
  %7782 = vmatpush1.msra.mxu0 %v1034
  %7783 = vmatprep.subr.mxu0 0.0
  %7784 = vmatpush1.msra.mxu0 %v1027
  %7785 = vmatprep.subr.mxu0 0.0
  %7786 = vmatpush1.msra.mxu0 %v1020
  %7787 = vmatprep.subr.mxu0 0.0
  %7788 = vmatpush1.msra.mxu0 %v1013
  %7789 = vmatprep.subr.mxu0 0.0
  %7790 = vmatpush1.msra.mxu0 %v1006
  %7791 = vmatprep.subr.mxu0 0.0
  %7792 = vmatpush1.msra.mxu0 %v999
  %7793 = vmatprep.subr.mxu0 0.0
  %7794 = vmatpush1.msra.mxu0 %v992
  %7795 = vmatprep.subr.mxu0 0.0
  %7796 = vmatpush1.msra.mxu0 %v985
  %7797 = vmatprep.subr.mxu0 0.0
  %7798 = vmatpush1.msra.mxu0 %v978
  %7799 = vmatprep.subr.mxu0 0.0
  %7800 = vmatpush1.msra.mxu0 %v971
  %7801 = vmatprep.subr.mxu0 0.0
  %7802 = vmatpush1.msra.mxu0 %v964
  %7803 = vmatprep.subr.mxu0 0.0
  %7804 = vmatpush2.msra.mxu0 %v1181
  %7805 = vmatprep.subr.mxu0 0.0
  %7806 = vmatpush2.msra.mxu0 %v1174
  %7807 = vmatprep.subr.mxu0 0.0
  %7808 = vmatpush2.msra.mxu0 %v1167
  %7809 = vmatprep.subr.mxu0 0.0
  %7810 = vmatpush2.msra.mxu0 %v1160
  %7811 = vmatprep.subr.mxu0 0.0
  %7812 = vmatpush2.msra.mxu0 %v1153
  %7813 = vmatprep.subr.mxu0 0.0
  %7814 = vmatpush2.msra.mxu0 %v1146
  %7815 = vmatprep.subr.mxu0 0.0
  %7816 = vmatpush2.msra.mxu0 %v1139
  %7817 = vmatprep.subr.mxu0 0.0
  %7818 = vmatpush2.msra.mxu0 %v1132
  %7819 = vmatprep.subr.mxu0 0.0
  %7820 = vmatpush2.msra.mxu0 %v1125
  %7821 = vmatprep.subr.mxu0 0.0
  %7822 = vmatpush2.msra.mxu0 %v1118
  %7823 = vmatprep.subr.mxu0 0.0
  %7824 = vmatpush2.msra.mxu0 %v1111
  %7825 = vmatprep.subr.mxu0 0.0
  %7826 = vmatpush2.msra.mxu0 %v1104
  %7827 = vmatprep.subr.mxu0 0.0
  %7828 = vmatpush2.msra.mxu0 %v1097
  %7829 = vmatprep.subr.mxu0 0.0
  %7830 = vmatpush2.msra.mxu0 %v1090
  %7831 = vmatprep.subr.mxu0 0.0
  %7832 = vmatpush2.msra.mxu0 %v1083
  %7833 = vmatprep.subr.mxu0 0.0
  %7834 = vmatpush2.msra.mxu0 %v1076
  %7835 = vmatprep.mubr.f32.mxu0 %v37
  %7836 = vmatmul.mubr.f32.gmra.mxu0 %v36
  %v7837 = vpop.f32.mrf.mxu0
  %v7838 = vadd.f32 %v7768, %v7837
  %v7839 = vpop.f32.mrf.mxu0
  %7840 = vdwg.mxu0
  %7841 = vmatprep.subr.mxu0 0.0
  %7842 = vmatpush1.msra.mxu0 %v1293
  %7843 = vmatprep.subr.mxu0 0.0
  %7844 = vmatpush1.msra.mxu0 %v1286
  %7845 = vmatprep.subr.mxu0 0.0
  %7846 = vmatpush1.msra.mxu0 %v1279
  %7847 = vmatprep.subr.mxu0 0.0
  %7848 = vmatpush1.msra.mxu0 %v1272
  %7849 = vmatprep.subr.mxu0 0.0
  %7850 = vmatpush1.msra.mxu0 %v1265
  %7851 = vmatprep.subr.mxu0 0.0
  %7852 = vmatpush1.msra.mxu0 %v1258
  %7853 = vmatprep.subr.mxu0 0.0
  %7854 = vmatpush1.msra.mxu0 %v1251
  %7855 = vmatprep.subr.mxu0 0.0
  %7856 = vmatpush1.msra.mxu0 %v1244
  %7857 = vmatprep.subr.mxu0 0.0
  %7858 = vmatpush1.msra.mxu0 %v1237
  %7859 = vmatprep.subr.mxu0 0.0
  %7860 = vmatpush1.msra.mxu0 %v1230
  %7861 = vmatprep.subr.mxu0 0.0
  %7862 = vmatpush1.msra.mxu0 %v1223
  %7863 = vmatprep.subr.mxu0 0.0
  %7864 = vmatpush1.msra.mxu0 %v1216
  %7865 = vmatprep.subr.mxu0 0.0
  %7866 = vmatpush1.msra.mxu0 %v1209
  %7867 = vmatprep.subr.mxu0 0.0
  %7868 = vmatpush1.msra.mxu0 %v1202
  %7869 = vmatprep.subr.mxu0 0.0
  %7870 = vmatpush1.msra.mxu0 %v1195
  %7871 = vmatprep.subr.mxu0 0.0
  %7872 = vmatpush1.msra.mxu0 %v1188
  %7873 = vmatprep.subr.mxu0 0.0
  %7874 = vmatpush2.msra.mxu0 %v1405
  %7875 = vmatprep.subr.mxu0 0.0
  %7876 = vmatpush2.msra.mxu0 %v1398
  %7877 = vmatprep.subr.mxu0 0.0
  %7878 = vmatpush2.msra.mxu0 %v1391
  %7879 = vmatprep.subr.mxu0 0.0
  %7880 = vmatpush2.msra.mxu0 %v1384
  %7881 = vmatprep.subr.mxu0 0.0
  %7882 = vmatpush2.msra.mxu0 %v1377
  %7883 = vmatprep.subr.mxu0 0.0
  %7884 = vmatpush2.msra.mxu0 %v1370
  %7885 = vmatprep.subr.mxu0 0.0
  %7886 = vmatpush2.msra.mxu0 %v1363
  %7887 = vmatprep.subr.mxu0 0.0
  %7888 = vmatpush2.msra.mxu0 %v1356
  %7889 = vmatprep.subr.mxu0 0.0
  %7890 = vmatpush2.msra.mxu0 %v1349
  %7891 = vmatprep.subr.mxu0 0.0
  %7892 = vmatpush2.msra.mxu0 %v1342
  %7893 = vmatprep.subr.mxu0 0.0
  %7894 = vmatpush2.msra.mxu0 %v1335
  %7895 = vmatprep.subr.mxu0 0.0
  %7896 = vmatpush2.msra.mxu0 %v1328
  %7897 = vmatprep.subr.mxu0 0.0
  %7898 = vmatpush2.msra.mxu0 %v1321
  %7899 = vmatprep.subr.mxu0 0.0
  %7900 = vmatpush2.msra.mxu0 %v1314
  %7901 = vmatprep.subr.mxu0 0.0
  %7902 = vmatpush2.msra.mxu0 %v1307
  %7903 = vmatprep.subr.mxu0 0.0
  %7904 = vmatpush2.msra.mxu0 %v1300
  %7905 = vmatprep.mubr.f32.mxu0 %v39
  %7906 = vmatmul.mubr.f32.gmra.mxu0 %v38
  %v7907 = vpop.f32.mrf.mxu0
  %v7908 = vadd.f32 %v7838, %v7907
  %v7909 = vpop.f32.mrf.mxu0
  %7910 = vdwg.mxu0
  %7911 = vmatprep.subr.mxu0 0.0
  %7912 = vmatpush1.msra.mxu0 %v1517
  %7913 = vmatprep.subr.mxu0 0.0
  %7914 = vmatpush1.msra.mxu0 %v1510
  %7915 = vmatprep.subr.mxu0 0.0
  %7916 = vmatpush1.msra.mxu0 %v1503
  %7917 = vmatprep.subr.mxu0 0.0
  %7918 = vmatpush1.msra.mxu0 %v1496
  %7919 = vmatprep.subr.mxu0 0.0
  %7920 = vmatpush1.msra.mxu0 %v1489
  %7921 = vmatprep.subr.mxu0 0.0
  %7922 = vmatpush1.msra.mxu0 %v1482
  %7923 = vmatprep.subr.mxu0 0.0
  %7924 = vmatpush1.msra.mxu0 %v1475
  %7925 = vmatprep.subr.mxu0 0.0
  %7926 = vmatpush1.msra.mxu0 %v1468
  %7927 = vmatprep.subr.mxu0 0.0
  %7928 = vmatpush1.msra.mxu0 %v1461
  %7929 = vmatprep.subr.mxu0 0.0
  %7930 = vmatpush1.msra.mxu0 %v1454
  %7931 = vmatprep.subr.mxu0 0.0
  %7932 = vmatpush1.msra.mxu0 %v1447
  %7933 = vmatprep.subr.mxu0 0.0
  %7934 = vmatpush1.msra.mxu0 %v1440
  %7935 = vmatprep.subr.mxu0 0.0
  %7936 = vmatpush1.msra.mxu0 %v1433
  %7937 = vmatprep.subr.mxu0 0.0
  %7938 = vmatpush1.msra.mxu0 %v1426
  %7939 = vmatprep.subr.mxu0 0.0
  %7940 = vmatpush1.msra.mxu0 %v1419
  %7941 = vmatprep.subr.mxu0 0.0
  %7942 = vmatpush1.msra.mxu0 %v1412
  %7943 = vmatprep.subr.mxu0 0.0
  %7944 = vmatpush2.msra.mxu0 %v1629
  %7945 = vmatprep.subr.mxu0 0.0
  %7946 = vmatpush2.msra.mxu0 %v1622
  %7947 = vmatprep.subr.mxu0 0.0
  %7948 = vmatpush2.msra.mxu0 %v1615
  %7949 = vmatprep.subr.mxu0 0.0
  %7950 = vmatpush2.msra.mxu0 %v1608
  %7951 = vmatprep.subr.mxu0 0.0
  %7952 = vmatpush2.msra.mxu0 %v1601
  %7953 = vmatprep.subr.mxu0 0.0
  %7954 = vmatpush2.msra.mxu0 %v1594
  %7955 = vmatprep.subr.mxu0 0.0
  %7956 = vmatpush2.msra.mxu0 %v1587
  %7957 = vmatprep.subr.mxu0 0.0
  %7958 = vmatpush2.msra.mxu0 %v1580
  %7959 = vmatprep.subr.mxu0 0.0
  %7960 = vmatpush2.msra.mxu0 %v1573
  %7961 = vmatprep.subr.mxu0 0.0
  %7962 = vmatpush2.msra.mxu0 %v1566
  %7963 = vmatprep.subr.mxu0 0.0
  %7964 = vmatpush2.msra.mxu0 %v1559
  %7965 = vmatprep.subr.mxu0 0.0
  %7966 = vmatpush2.msra.mxu0 %v1552
  %7967 = vmatprep.subr.mxu0 0.0
  %7968 = vmatpush2.msra.mxu0 %v1545
  %7969 = vmatprep.subr.mxu0 0.0
  %7970 = vmatpush2.msra.mxu0 %v1538
  %7971 = vmatprep.subr.mxu0 0.0
  %7972 = vmatpush2.msra.mxu0 %v1531
  %7973 = vmatprep.subr.mxu0 0.0
  %7974 = vmatpush2.msra.mxu0 %v1524
  %7975 = vmatprep.mubr.f32.mxu0 %v41
  %7976 = vmatmul.mubr.f32.gmra.mxu0 %v40
  %v7977 = vpop.f32.mrf.mxu0
  %v7978 = vadd.f32 %v7908, %v7977
  %v7979 = vpop.f32.mrf.mxu0
  %7980 = vdwg.mxu0
  %7981 = vmatprep.subr.mxu0 0.0
  %7982 = vmatpush1.msra.mxu0 %v1741
  %7983 = vmatprep.subr.mxu0 0.0
  %7984 = vmatpush1.msra.mxu0 %v1734
  %7985 = vmatprep.subr.mxu0 0.0
  %7986 = vmatpush1.msra.mxu0 %v1727
  %7987 = vmatprep.subr.mxu0 0.0
  %7988 = vmatpush1.msra.mxu0 %v1720
  %7989 = vmatprep.subr.mxu0 0.0
  %7990 = vmatpush1.msra.mxu0 %v1713
  %7991 = vmatprep.subr.mxu0 0.0
  %7992 = vmatpush1.msra.mxu0 %v1706
  %7993 = vmatprep.subr.mxu0 0.0
  %7994 = vmatpush1.msra.mxu0 %v1699
  %7995 = vmatprep.subr.mxu0 0.0
  %7996 = vmatpush1.msra.mxu0 %v1692
  %7997 = vmatprep.subr.mxu0 0.0
  %7998 = vmatpush1.msra.mxu0 %v1685
  %7999 = vmatprep.subr.mxu0 0.0
  %8000 = vmatpush1.msra.mxu0 %v1678
  %8001 = vmatprep.subr.mxu0 0.0
  %8002 = vmatpush1.msra.mxu0 %v1671
  %8003 = vmatprep.subr.mxu0 0.0
  %8004 = vmatpush1.msra.mxu0 %v1664
  %8005 = vmatprep.subr.mxu0 0.0
  %8006 = vmatpush1.msra.mxu0 %v1657
  %8007 = vmatprep.subr.mxu0 0.0
  %8008 = vmatpush1.msra.mxu0 %v1650
  %8009 = vmatprep.subr.mxu0 0.0
  %8010 = vmatpush1.msra.mxu0 %v1643
  %8011 = vmatprep.subr.mxu0 0.0
  %8012 = vmatpush1.msra.mxu0 %v1636
  %8013 = vmatprep.subr.mxu0 0.0
  %8014 = vmatpush2.msra.mxu0 %v1853
  %8015 = vmatprep.subr.mxu0 0.0
  %8016 = vmatpush2.msra.mxu0 %v1846
  %8017 = vmatprep.subr.mxu0 0.0
  %8018 = vmatpush2.msra.mxu0 %v1839
  %8019 = vmatprep.subr.mxu0 0.0
  %8020 = vmatpush2.msra.mxu0 %v1832
  %8021 = vmatprep.subr.mxu0 0.0
  %8022 = vmatpush2.msra.mxu0 %v1825
  %8023 = vmatprep.subr.mxu0 0.0
  %8024 = vmatpush2.msra.mxu0 %v1818
  %8025 = vmatprep.subr.mxu0 0.0
  %8026 = vmatpush2.msra.mxu0 %v1811
  %8027 = vmatprep.subr.mxu0 0.0
  %8028 = vmatpush2.msra.mxu0 %v1804
  %8029 = vmatprep.subr.mxu0 0.0
  %8030 = vmatpush2.msra.mxu0 %v1797
  %8031 = vmatprep.subr.mxu0 0.0
  %8032 = vmatpush2.msra.mxu0 %v1790
  %8033 = vmatprep.subr.mxu0 0.0
  %8034 = vmatpush2.msra.mxu0 %v1783
  %8035 = vmatprep.subr.mxu0 0.0
  %8036 = vmatpush2.msra.mxu0 %v1776
  %8037 = vmatprep.subr.mxu0 0.0
  %8038 = vmatpush2.msra.mxu0 %v1769
  %8039 = vmatprep.subr.mxu0 0.0
  %8040 = vmatpush2.msra.mxu0 %v1762
  %8041 = vmatprep.subr.mxu0 0.0
  %8042 = vmatpush2.msra.mxu0 %v1755
  %8043 = vmatprep.subr.mxu0 0.0
  %8044 = vmatpush2.msra.mxu0 %v1748
  %8045 = vmatprep.mubr.f32.mxu0 %v43
  %8046 = vmatmul.mubr.f32.gmra.mxu0 %v42
  %v8047 = vpop.f32.mrf.mxu0
  %v8048 = vadd.f32 %v7978, %v8047
  %v8049 = vpop.f32.mrf.mxu0
  %8050 = vdwg.mxu0
  %8051 = vmatprep.subr.mxu0 0.0
  %8052 = vmatpush1.msra.mxu0 %v1965
  %8053 = vmatprep.subr.mxu0 0.0
  %8054 = vmatpush1.msra.mxu0 %v1958
  %8055 = vmatprep.subr.mxu0 0.0
  %8056 = vmatpush1.msra.mxu0 %v1951
  %8057 = vmatprep.subr.mxu0 0.0
  %8058 = vmatpush1.msra.mxu0 %v1944
  %8059 = vmatprep.subr.mxu0 0.0
  %8060 = vmatpush1.msra.mxu0 %v1937
  %8061 = vmatprep.subr.mxu0 0.0
  %8062 = vmatpush1.msra.mxu0 %v1930
  %8063 = vmatprep.subr.mxu0 0.0
  %8064 = vmatpush1.msra.mxu0 %v1923
  %8065 = vmatprep.subr.mxu0 0.0
  %8066 = vmatpush1.msra.mxu0 %v1916
  %8067 = vmatprep.subr.mxu0 0.0
  %8068 = vmatpush1.msra.mxu0 %v1909
  %8069 = vmatprep.subr.mxu0 0.0
  %8070 = vmatpush1.msra.mxu0 %v1902
  %8071 = vmatprep.subr.mxu0 0.0
  %8072 = vmatpush1.msra.mxu0 %v1895
  %8073 = vmatprep.subr.mxu0 0.0
  %8074 = vmatpush1.msra.mxu0 %v1888
  %8075 = vmatprep.subr.mxu0 0.0
  %8076 = vmatpush1.msra.mxu0 %v1881
  %8077 = vmatprep.subr.mxu0 0.0
  %8078 = vmatpush1.msra.mxu0 %v1874
  %8079 = vmatprep.subr.mxu0 0.0
  %8080 = vmatpush1.msra.mxu0 %v1867
  %8081 = vmatprep.subr.mxu0 0.0
  %8082 = vmatpush1.msra.mxu0 %v1860
  %8083 = vmatprep.subr.mxu0 0.0
  %8084 = vmatpush2.msra.mxu0 %v2077
  %8085 = vmatprep.subr.mxu0 0.0
  %8086 = vmatpush2.msra.mxu0 %v2070
  %8087 = vmatprep.subr.mxu0 0.0
  %8088 = vmatpush2.msra.mxu0 %v2063
  %8089 = vmatprep.subr.mxu0 0.0
  %8090 = vmatpush2.msra.mxu0 %v2056
  %8091 = vmatprep.subr.mxu0 0.0
  %8092 = vmatpush2.msra.mxu0 %v2049
  %8093 = vmatprep.subr.mxu0 0.0
  %8094 = vmatpush2.msra.mxu0 %v2042
  %8095 = vmatprep.subr.mxu0 0.0
  %8096 = vmatpush2.msra.mxu0 %v2035
  %8097 = vmatprep.subr.mxu0 0.0
  %8098 = vmatpush2.msra.mxu0 %v2028
  %8099 = vmatprep.subr.mxu0 0.0
  %8100 = vmatpush2.msra.mxu0 %v2021
  %8101 = vmatprep.subr.mxu0 0.0
  %8102 = vmatpush2.msra.mxu0 %v2014
  %8103 = vmatprep.subr.mxu0 0.0
  %8104 = vmatpush2.msra.mxu0 %v2007
  %8105 = vmatprep.subr.mxu0 0.0
  %8106 = vmatpush2.msra.mxu0 %v2000
  %8107 = vmatprep.subr.mxu0 0.0
  %8108 = vmatpush2.msra.mxu0 %v1993
  %8109 = vmatprep.subr.mxu0 0.0
  %8110 = vmatpush2.msra.mxu0 %v1986
  %8111 = vmatprep.subr.mxu0 0.0
  %8112 = vmatpush2.msra.mxu0 %v1979
  %8113 = vmatprep.subr.mxu0 0.0
  %8114 = vmatpush2.msra.mxu0 %v1972
  %8115 = vmatprep.mubr.f32.mxu0 %v45
  %8116 = vmatmul.mubr.f32.gmra.mxu0 %v44
  %v8117 = vpop.f32.mrf.mxu0
  %v8118 = vadd.f32 %v8048, %v8117
  %v8119 = vpop.f32.mrf.mxu0
  %8120 = vdwg.mxu0
  %8121 = vmatprep.subr.mxu0 0.0
  %8122 = vmatpush1.msra.mxu0 %v2189
  %8123 = vmatprep.subr.mxu0 0.0
  %8124 = vmatpush1.msra.mxu0 %v2182
  %8125 = vmatprep.subr.mxu0 0.0
  %8126 = vmatpush1.msra.mxu0 %v2175
  %8127 = vmatprep.subr.mxu0 0.0
  %8128 = vmatpush1.msra.mxu0 %v2168
  %8129 = vmatprep.subr.mxu0 0.0
  %8130 = vmatpush1.msra.mxu0 %v2161
  %8131 = vmatprep.subr.mxu0 0.0
  %8132 = vmatpush1.msra.mxu0 %v2154
  %8133 = vmatprep.subr.mxu0 0.0
  %8134 = vmatpush1.msra.mxu0 %v2147
  %8135 = vmatprep.subr.mxu0 0.0
  %8136 = vmatpush1.msra.mxu0 %v2140
  %8137 = vmatprep.subr.mxu0 0.0
  %8138 = vmatpush1.msra.mxu0 %v2133
  %8139 = vmatprep.subr.mxu0 0.0
  %8140 = vmatpush1.msra.mxu0 %v2126
  %8141 = vmatprep.subr.mxu0 0.0
  %8142 = vmatpush1.msra.mxu0 %v2119
  %8143 = vmatprep.subr.mxu0 0.0
  %8144 = vmatpush1.msra.mxu0 %v2112
  %8145 = vmatprep.subr.mxu0 0.0
  %8146 = vmatpush1.msra.mxu0 %v2105
  %8147 = vmatprep.subr.mxu0 0.0
  %8148 = vmatpush1.msra.mxu0 %v2098
  %8149 = vmatprep.subr.mxu0 0.0
  %8150 = vmatpush1.msra.mxu0 %v2091
  %8151 = vmatprep.subr.mxu0 0.0
  %8152 = vmatpush1.msra.mxu0 %v2084
  %8153 = vmatprep.subr.mxu0 0.0
  %8154 = vmatpush2.msra.mxu0 %v2301
  %8155 = vmatprep.subr.mxu0 0.0
  %8156 = vmatpush2.msra.mxu0 %v2294
  %8157 = vmatprep.subr.mxu0 0.0
  %8158 = vmatpush2.msra.mxu0 %v2287
  %8159 = vmatprep.subr.mxu0 0.0
  %8160 = vmatpush2.msra.mxu0 %v2280
  %8161 = vmatprep.subr.mxu0 0.0
  %8162 = vmatpush2.msra.mxu0 %v2273
  %8163 = vmatprep.subr.mxu0 0.0
  %8164 = vmatpush2.msra.mxu0 %v2266
  %8165 = vmatprep.subr.mxu0 0.0
  %8166 = vmatpush2.msra.mxu0 %v2259
  %8167 = vmatprep.subr.mxu0 0.0
  %8168 = vmatpush2.msra.mxu0 %v2252
  %8169 = vmatprep.subr.mxu0 0.0
  %8170 = vmatpush2.msra.mxu0 %v2245
  %8171 = vmatprep.subr.mxu0 0.0
  %8172 = vmatpush2.msra.mxu0 %v2238
  %8173 = vmatprep.subr.mxu0 0.0
  %8174 = vmatpush2.msra.mxu0 %v2231
  %8175 = vmatprep.subr.mxu0 0.0
  %8176 = vmatpush2.msra.mxu0 %v2224
  %8177 = vmatprep.subr.mxu0 0.0
  %8178 = vmatpush2.msra.mxu0 %v2217
  %8179 = vmatprep.subr.mxu0 0.0
  %8180 = vmatpush2.msra.mxu0 %v2210
  %8181 = vmatprep.subr.mxu0 0.0
  %8182 = vmatpush2.msra.mxu0 %v2203
  %8183 = vmatprep.subr.mxu0 0.0
  %8184 = vmatpush2.msra.mxu0 %v2196
  %8185 = vmatprep.mubr.f32.mxu0 %v47
  %8186 = vmatmul.mubr.f32.gmra.mxu0 %v46
  %v8187 = vpop.f32.mrf.mxu0
  %v8188 = vadd.f32 %v8118, %v8187
  %v8189 = vpop.f32.mrf.mxu0
  %8190 = vdwg.mxu0
  %8191 = vmatprep.subr.mxu0 0.0
  %8192 = vmatpush1.msra.mxu0 %v2413
  %8193 = vmatprep.subr.mxu0 0.0
  %8194 = vmatpush1.msra.mxu0 %v2406
  %8195 = vmatprep.subr.mxu0 0.0
  %8196 = vmatpush1.msra.mxu0 %v2399
  %8197 = vmatprep.subr.mxu0 0.0
  %8198 = vmatpush1.msra.mxu0 %v2392
  %8199 = vmatprep.subr.mxu0 0.0
  %8200 = vmatpush1.msra.mxu0 %v2385
  %8201 = vmatprep.subr.mxu0 0.0
  %8202 = vmatpush1.msra.mxu0 %v2378
  %8203 = vmatprep.subr.mxu0 0.0
  %8204 = vmatpush1.msra.mxu0 %v2371
  %8205 = vmatprep.subr.mxu0 0.0
  %8206 = vmatpush1.msra.mxu0 %v2364
  %8207 = vmatprep.subr.mxu0 0.0
  %8208 = vmatpush1.msra.mxu0 %v2357
  %8209 = vmatprep.subr.mxu0 0.0
  %8210 = vmatpush1.msra.mxu0 %v2350
  %8211 = vmatprep.subr.mxu0 0.0
  %8212 = vmatpush1.msra.mxu0 %v2343
  %8213 = vmatprep.subr.mxu0 0.0
  %8214 = vmatpush1.msra.mxu0 %v2336
  %8215 = vmatprep.subr.mxu0 0.0
  %8216 = vmatpush1.msra.mxu0 %v2329
  %8217 = vmatprep.subr.mxu0 0.0
  %8218 = vmatpush1.msra.mxu0 %v2322
  %8219 = vmatprep.subr.mxu0 0.0
  %8220 = vmatpush1.msra.mxu0 %v2315
  %8221 = vmatprep.subr.mxu0 0.0
  %8222 = vmatpush1.msra.mxu0 %v2308
  %8223 = vmatprep.subr.mxu0 0.0
  %8224 = vmatpush2.msra.mxu0 %v2525
  %8225 = vmatprep.subr.mxu0 0.0
  %8226 = vmatpush2.msra.mxu0 %v2518
  %8227 = vmatprep.subr.mxu0 0.0
  %8228 = vmatpush2.msra.mxu0 %v2511
  %8229 = vmatprep.subr.mxu0 0.0
  %8230 = vmatpush2.msra.mxu0 %v2504
  %8231 = vmatprep.subr.mxu0 0.0
  %8232 = vmatpush2.msra.mxu0 %v2497
  %8233 = vmatprep.subr.mxu0 0.0
  %8234 = vmatpush2.msra.mxu0 %v2490
  %8235 = vmatprep.subr.mxu0 0.0
  %8236 = vmatpush2.msra.mxu0 %v2483
  %8237 = vmatprep.subr.mxu0 0.0
  %8238 = vmatpush2.msra.mxu0 %v2476
  %8239 = vmatprep.subr.mxu0 0.0
  %8240 = vmatpush2.msra.mxu0 %v2469
  %8241 = vmatprep.subr.mxu0 0.0
  %8242 = vmatpush2.msra.mxu0 %v2462
  %8243 = vmatprep.subr.mxu0 0.0
  %8244 = vmatpush2.msra.mxu0 %v2455
  %8245 = vmatprep.subr.mxu0 0.0
  %8246 = vmatpush2.msra.mxu0 %v2448
  %8247 = vmatprep.subr.mxu0 0.0
  %8248 = vmatpush2.msra.mxu0 %v2441
  %8249 = vmatprep.subr.mxu0 0.0
  %8250 = vmatpush2.msra.mxu0 %v2434
  %8251 = vmatprep.subr.mxu0 0.0
  %8252 = vmatpush2.msra.mxu0 %v2427
  %8253 = vmatprep.subr.mxu0 0.0
  %8254 = vmatpush2.msra.mxu0 %v2420
  %8255 = vmatprep.mubr.f32.mxu0 %v49
  %8256 = vmatmul.mubr.f32.gmra.mxu0 %v48
  %v8257 = vpop.f32.mrf.mxu0
  %v8258 = vadd.f32 %v8188, %v8257
  %v8259 = vpop.f32.mrf.mxu0
  %8260 = vdwg.mxu0
  %8261 = vmatprep.subr.mxu0 0.0
  %8262 = vmatpush1.msra.mxu0 %v2637
  %8263 = vmatprep.subr.mxu0 0.0
  %8264 = vmatpush1.msra.mxu0 %v2630
  %8265 = vmatprep.subr.mxu0 0.0
  %8266 = vmatpush1.msra.mxu0 %v2623
  %8267 = vmatprep.subr.mxu0 0.0
  %8268 = vmatpush1.msra.mxu0 %v2616
  %8269 = vmatprep.subr.mxu0 0.0
  %8270 = vmatpush1.msra.mxu0 %v2609
  %8271 = vmatprep.subr.mxu0 0.0
  %8272 = vmatpush1.msra.mxu0 %v2602
  %8273 = vmatprep.subr.mxu0 0.0
  %8274 = vmatpush1.msra.mxu0 %v2595
  %8275 = vmatprep.subr.mxu0 0.0
  %8276 = vmatpush1.msra.mxu0 %v2588
  %8277 = vmatprep.subr.mxu0 0.0
  %8278 = vmatpush1.msra.mxu0 %v2581
  %8279 = vmatprep.subr.mxu0 0.0
  %8280 = vmatpush1.msra.mxu0 %v2574
  %8281 = vmatprep.subr.mxu0 0.0
  %8282 = vmatpush1.msra.mxu0 %v2567
  %8283 = vmatprep.subr.mxu0 0.0
  %8284 = vmatpush1.msra.mxu0 %v2560
  %8285 = vmatprep.subr.mxu0 0.0
  %8286 = vmatpush1.msra.mxu0 %v2553
  %8287 = vmatprep.subr.mxu0 0.0
  %8288 = vmatpush1.msra.mxu0 %v2546
  %8289 = vmatprep.subr.mxu0 0.0
  %8290 = vmatpush1.msra.mxu0 %v2539
  %8291 = vmatprep.subr.mxu0 0.0
  %8292 = vmatpush1.msra.mxu0 %v2532
  %8293 = vmatprep.subr.mxu0 0.0
  %8294 = vmatpush2.msra.mxu0 %v2749
  %8295 = vmatprep.subr.mxu0 0.0
  %8296 = vmatpush2.msra.mxu0 %v2742
  %8297 = vmatprep.subr.mxu0 0.0
  %8298 = vmatpush2.msra.mxu0 %v2735
  %8299 = vmatprep.subr.mxu0 0.0
  %8300 = vmatpush2.msra.mxu0 %v2728
  %8301 = vmatprep.subr.mxu0 0.0
  %8302 = vmatpush2.msra.mxu0 %v2721
  %8303 = vmatprep.subr.mxu0 0.0
  %8304 = vmatpush2.msra.mxu0 %v2714
  %8305 = vmatprep.subr.mxu0 0.0
  %8306 = vmatpush2.msra.mxu0 %v2707
  %8307 = vmatprep.subr.mxu0 0.0
  %8308 = vmatpush2.msra.mxu0 %v2700
  %8309 = vmatprep.subr.mxu0 0.0
  %8310 = vmatpush2.msra.mxu0 %v2693
  %8311 = vmatprep.subr.mxu0 0.0
  %8312 = vmatpush2.msra.mxu0 %v2686
  %8313 = vmatprep.subr.mxu0 0.0
  %8314 = vmatpush2.msra.mxu0 %v2679
  %8315 = vmatprep.subr.mxu0 0.0
  %8316 = vmatpush2.msra.mxu0 %v2672
  %8317 = vmatprep.subr.mxu0 0.0
  %8318 = vmatpush2.msra.mxu0 %v2665
  %8319 = vmatprep.subr.mxu0 0.0
  %8320 = vmatpush2.msra.mxu0 %v2658
  %8321 = vmatprep.subr.mxu0 0.0
  %8322 = vmatpush2.msra.mxu0 %v2651
  %8323 = vmatprep.subr.mxu0 0.0
  %8324 = vmatpush2.msra.mxu0 %v2644
  %8325 = vmatprep.mubr.f32.mxu0 %v51
  %8326 = vmatmul.mubr.f32.gmra.mxu0 %v50
  %v8327 = vpop.f32.mrf.mxu0
  %v8328 = vadd.f32 %v8258, %v8327
  %v8329 = vpop.f32.mrf.mxu0
  %8330 = vdwg.mxu0
  %8331 = vmatprep.subr.mxu0 0.0
  %8332 = vmatpush1.msra.mxu0 %v2861
  %8333 = vmatprep.subr.mxu0 0.0
  %8334 = vmatpush1.msra.mxu0 %v2854
  %8335 = vmatprep.subr.mxu0 0.0
  %8336 = vmatpush1.msra.mxu0 %v2847
  %8337 = vmatprep.subr.mxu0 0.0
  %8338 = vmatpush1.msra.mxu0 %v2840
  %8339 = vmatprep.subr.mxu0 0.0
  %8340 = vmatpush1.msra.mxu0 %v2833
  %8341 = vmatprep.subr.mxu0 0.0
  %8342 = vmatpush1.msra.mxu0 %v2826
  %8343 = vmatprep.subr.mxu0 0.0
  %8344 = vmatpush1.msra.mxu0 %v2819
  %8345 = vmatprep.subr.mxu0 0.0
  %8346 = vmatpush1.msra.mxu0 %v2812
  %8347 = vmatprep.subr.mxu0 0.0
  %8348 = vmatpush1.msra.mxu0 %v2805
  %8349 = vmatprep.subr.mxu0 0.0
  %8350 = vmatpush1.msra.mxu0 %v2798
  %8351 = vmatprep.subr.mxu0 0.0
  %8352 = vmatpush1.msra.mxu0 %v2791
  %8353 = vmatprep.subr.mxu0 0.0
  %8354 = vmatpush1.msra.mxu0 %v2784
  %8355 = vmatprep.subr.mxu0 0.0
  %8356 = vmatpush1.msra.mxu0 %v2777
  %8357 = vmatprep.subr.mxu0 0.0
  %8358 = vmatpush1.msra.mxu0 %v2770
  %8359 = vmatprep.subr.mxu0 0.0
  %8360 = vmatpush1.msra.mxu0 %v2763
  %8361 = vmatprep.subr.mxu0 0.0
  %8362 = vmatpush1.msra.mxu0 %v2756
  %8363 = vmatprep.subr.mxu0 0.0
  %8364 = vmatpush2.msra.mxu0 %v2973
  %8365 = vmatprep.subr.mxu0 0.0
  %8366 = vmatpush2.msra.mxu0 %v2966
  %8367 = vmatprep.subr.mxu0 0.0
  %8368 = vmatpush2.msra.mxu0 %v2959
  %8369 = vmatprep.subr.mxu0 0.0
  %8370 = vmatpush2.msra.mxu0 %v2952
  %8371 = vmatprep.subr.mxu0 0.0
  %8372 = vmatpush2.msra.mxu0 %v2945
  %8373 = vmatprep.subr.mxu0 0.0
  %8374 = vmatpush2.msra.mxu0 %v2938
  %8375 = vmatprep.subr.mxu0 0.0
  %8376 = vmatpush2.msra.mxu0 %v2931
  %8377 = vmatprep.subr.mxu0 0.0
  %8378 = vmatpush2.msra.mxu0 %v2924
  %8379 = vmatprep.subr.mxu0 0.0
  %8380 = vmatpush2.msra.mxu0 %v2917
  %8381 = vmatprep.subr.mxu0 0.0
  %8382 = vmatpush2.msra.mxu0 %v2910
  %8383 = vmatprep.subr.mxu0 0.0
  %8384 = vmatpush2.msra.mxu0 %v2903
  %8385 = vmatprep.subr.mxu0 0.0
  %8386 = vmatpush2.msra.mxu0 %v2896
  %8387 = vmatprep.subr.mxu0 0.0
  %8388 = vmatpush2.msra.mxu0 %v2889
  %8389 = vmatprep.subr.mxu0 0.0
  %8390 = vmatpush2.msra.mxu0 %v2882
  %8391 = vmatprep.subr.mxu0 0.0
  %8392 = vmatpush2.msra.mxu0 %v2875
  %8393 = vmatprep.subr.mxu0 0.0
  %8394 = vmatpush2.msra.mxu0 %v2868
  %8395 = vmatprep.mubr.f32.mxu0 %v53
  %8396 = vmatmul.mubr.f32.gmra.mxu0 %v52
  %v8397 = vpop.f32.mrf.mxu0
  %v8398 = vadd.f32 %v8328, %v8397
  %v8399 = vpop.f32.mrf.mxu0
  %8400 = vdwg.mxu0
  %8401 = vmatprep.subr.mxu0 0.0
  %8402 = vmatpush1.msra.mxu0 %v3085
  %8403 = vmatprep.subr.mxu0 0.0
  %8404 = vmatpush1.msra.mxu0 %v3078
  %8405 = vmatprep.subr.mxu0 0.0
  %8406 = vmatpush1.msra.mxu0 %v3071
  %8407 = vmatprep.subr.mxu0 0.0
  %8408 = vmatpush1.msra.mxu0 %v3064
  %8409 = vmatprep.subr.mxu0 0.0
  %8410 = vmatpush1.msra.mxu0 %v3057
  %8411 = vmatprep.subr.mxu0 0.0
  %8412 = vmatpush1.msra.mxu0 %v3050
  %8413 = vmatprep.subr.mxu0 0.0
  %8414 = vmatpush1.msra.mxu0 %v3043
  %8415 = vmatprep.subr.mxu0 0.0
  %8416 = vmatpush1.msra.mxu0 %v3036
  %8417 = vmatprep.subr.mxu0 0.0
  %8418 = vmatpush1.msra.mxu0 %v3029
  %8419 = vmatprep.subr.mxu0 0.0
  %8420 = vmatpush1.msra.mxu0 %v3022
  %8421 = vmatprep.subr.mxu0 0.0
  %8422 = vmatpush1.msra.mxu0 %v3015
  %8423 = vmatprep.subr.mxu0 0.0
  %8424 = vmatpush1.msra.mxu0 %v3008
  %8425 = vmatprep.subr.mxu0 0.0
  %8426 = vmatpush1.msra.mxu0 %v3001
  %8427 = vmatprep.subr.mxu0 0.0
  %8428 = vmatpush1.msra.mxu0 %v2994
  %8429 = vmatprep.subr.mxu0 0.0
  %8430 = vmatpush1.msra.mxu0 %v2987
  %8431 = vmatprep.subr.mxu0 0.0
  %8432 = vmatpush1.msra.mxu0 %v2980
  %8433 = vmatprep.subr.mxu0 0.0
  %8434 = vmatpush2.msra.mxu0 %v3197
  %8435 = vmatprep.subr.mxu0 0.0
  %8436 = vmatpush2.msra.mxu0 %v3190
  %8437 = vmatprep.subr.mxu0 0.0
  %8438 = vmatpush2.msra.mxu0 %v3183
  %8439 = vmatprep.subr.mxu0 0.0
  %8440 = vmatpush2.msra.mxu0 %v3176
  %8441 = vmatprep.subr.mxu0 0.0
  %8442 = vmatpush2.msra.mxu0 %v3169
  %8443 = vmatprep.subr.mxu0 0.0
  %8444 = vmatpush2.msra.mxu0 %v3162
  %8445 = vmatprep.subr.mxu0 0.0
  %8446 = vmatpush2.msra.mxu0 %v3155
  %8447 = vmatprep.subr.mxu0 0.0
  %8448 = vmatpush2.msra.mxu0 %v3148
  %8449 = vmatprep.subr.mxu0 0.0
  %8450 = vmatpush2.msra.mxu0 %v3141
  %8451 = vmatprep.subr.mxu0 0.0
  %8452 = vmatpush2.msra.mxu0 %v3134
  %8453 = vmatprep.subr.mxu0 0.0
  %8454 = vmatpush2.msra.mxu0 %v3127
  %8455 = vmatprep.subr.mxu0 0.0
  %8456 = vmatpush2.msra.mxu0 %v3120
  %8457 = vmatprep.subr.mxu0 0.0
  %8458 = vmatpush2.msra.mxu0 %v3113
  %8459 = vmatprep.subr.mxu0 0.0
  %8460 = vmatpush2.msra.mxu0 %v3106
  %8461 = vmatprep.subr.mxu0 0.0
  %8462 = vmatpush2.msra.mxu0 %v3099
  %8463 = vmatprep.subr.mxu0 0.0
  %8464 = vmatpush2.msra.mxu0 %v3092
  %8465 = vmatprep.mubr.f32.mxu0 %v55
  %8466 = vmatmul.mubr.f32.gmra.mxu0 %v54
  %v8467 = vpop.f32.mrf.mxu0
  %v8468 = vadd.f32 %v8398, %v8467
  %v8469 = vpop.f32.mrf.mxu0
  %8470 = vdwg.mxu0
  %8471 = vmatprep.subr.mxu0 0.0
  %8472 = vmatpush1.msra.mxu0 %v3309
  %8473 = vmatprep.subr.mxu0 0.0
  %8474 = vmatpush1.msra.mxu0 %v3302
  %8475 = vmatprep.subr.mxu0 0.0
  %8476 = vmatpush1.msra.mxu0 %v3295
  %8477 = vmatprep.subr.mxu0 0.0
  %8478 = vmatpush1.msra.mxu0 %v3288
  %8479 = vmatprep.subr.mxu0 0.0
  %8480 = vmatpush1.msra.mxu0 %v3281
  %8481 = vmatprep.subr.mxu0 0.0
  %8482 = vmatpush1.msra.mxu0 %v3274
  %8483 = vmatprep.subr.mxu0 0.0
  %8484 = vmatpush1.msra.mxu0 %v3267
  %8485 = vmatprep.subr.mxu0 0.0
  %8486 = vmatpush1.msra.mxu0 %v3260
  %8487 = vmatprep.subr.mxu0 0.0
  %8488 = vmatpush1.msra.mxu0 %v3253
  %8489 = vmatprep.subr.mxu0 0.0
  %8490 = vmatpush1.msra.mxu0 %v3246
  %8491 = vmatprep.subr.mxu0 0.0
  %8492 = vmatpush1.msra.mxu0 %v3239
  %8493 = vmatprep.subr.mxu0 0.0
  %8494 = vmatpush1.msra.mxu0 %v3232
  %8495 = vmatprep.subr.mxu0 0.0
  %8496 = vmatpush1.msra.mxu0 %v3225
  %8497 = vmatprep.subr.mxu0 0.0
  %8498 = vmatpush1.msra.mxu0 %v3218
  %8499 = vmatprep.subr.mxu0 0.0
  %8500 = vmatpush1.msra.mxu0 %v3211
  %8501 = vmatprep.subr.mxu0 0.0
  %8502 = vmatpush1.msra.mxu0 %v3204
  %8503 = vmatprep.subr.mxu0 0.0
  %8504 = vmatpush2.msra.mxu0 %v3421
  %8505 = vmatprep.subr.mxu0 0.0
  %8506 = vmatpush2.msra.mxu0 %v3414
  %8507 = vmatprep.subr.mxu0 0.0
  %8508 = vmatpush2.msra.mxu0 %v3407
  %8509 = vmatprep.subr.mxu0 0.0
  %8510 = vmatpush2.msra.mxu0 %v3400
  %8511 = vmatprep.subr.mxu0 0.0
  %8512 = vmatpush2.msra.mxu0 %v3393
  %8513 = vmatprep.subr.mxu0 0.0
  %8514 = vmatpush2.msra.mxu0 %v3386
  %8515 = vmatprep.subr.mxu0 0.0
  %8516 = vmatpush2.msra.mxu0 %v3379
  %8517 = vmatprep.subr.mxu0 0.0
  %8518 = vmatpush2.msra.mxu0 %v3372
  %8519 = vmatprep.subr.mxu0 0.0
  %8520 = vmatpush2.msra.mxu0 %v3365
  %8521 = vmatprep.subr.mxu0 0.0
  %8522 = vmatpush2.msra.mxu0 %v3358
  %8523 = vmatprep.subr.mxu0 0.0
  %8524 = vmatpush2.msra.mxu0 %v3351
  %8525 = vmatprep.subr.mxu0 0.0
  %8526 = vmatpush2.msra.mxu0 %v3344
  %8527 = vmatprep.subr.mxu0 0.0
  %8528 = vmatpush2.msra.mxu0 %v3337
  %8529 = vmatprep.subr.mxu0 0.0
  %8530 = vmatpush2.msra.mxu0 %v3330
  %8531 = vmatprep.subr.mxu0 0.0
  %8532 = vmatpush2.msra.mxu0 %v3323
  %8533 = vmatprep.subr.mxu0 0.0
  %8534 = vmatpush2.msra.mxu0 %v3316
  %8535 = vmatprep.mubr.f32.mxu0 %v57
  %8536 = vmatmul.mubr.f32.gmra.mxu0 %v56
  %v8537 = vpop.f32.mrf.mxu0
  %v8538 = vadd.f32 %v8468, %v8537
  %v8539 = vpop.f32.mrf.mxu0
  %8540 = vdwg.mxu0
  %8541 = vmatprep.subr.mxu0 0.0
  %8542 = vmatpush1.msra.mxu0 %v3533
  %8543 = vmatprep.subr.mxu0 0.0
  %8544 = vmatpush1.msra.mxu0 %v3526
  %8545 = vmatprep.subr.mxu0 0.0
  %8546 = vmatpush1.msra.mxu0 %v3519
  %8547 = vmatprep.subr.mxu0 0.0
  %8548 = vmatpush1.msra.mxu0 %v3512
  %8549 = vmatprep.subr.mxu0 0.0
  %8550 = vmatpush1.msra.mxu0 %v3505
  %8551 = vmatprep.subr.mxu0 0.0
  %8552 = vmatpush1.msra.mxu0 %v3498
  %8553 = vmatprep.subr.mxu0 0.0
  %8554 = vmatpush1.msra.mxu0 %v3491
  %8555 = vmatprep.subr.mxu0 0.0
  %8556 = vmatpush1.msra.mxu0 %v3484
  %8557 = vmatprep.subr.mxu0 0.0
  %8558 = vmatpush1.msra.mxu0 %v3477
  %8559 = vmatprep.subr.mxu0 0.0
  %8560 = vmatpush1.msra.mxu0 %v3470
  %8561 = vmatprep.subr.mxu0 0.0
  %8562 = vmatpush1.msra.mxu0 %v3463
  %8563 = vmatprep.subr.mxu0 0.0
  %8564 = vmatpush1.msra.mxu0 %v3456
  %8565 = vmatprep.subr.mxu0 0.0
  %8566 = vmatpush1.msra.mxu0 %v3449
  %8567 = vmatprep.subr.mxu0 0.0
  %8568 = vmatpush1.msra.mxu0 %v3442
  %8569 = vmatprep.subr.mxu0 0.0
  %8570 = vmatpush1.msra.mxu0 %v3435
  %8571 = vmatprep.subr.mxu0 0.0
  %8572 = vmatpush1.msra.mxu0 %v3428
  %8573 = vmatprep.subr.mxu0 0.0
  %8574 = vmatpush2.msra.mxu0 %v3645
  %8575 = vmatprep.subr.mxu0 0.0
  %8576 = vmatpush2.msra.mxu0 %v3638
  %8577 = vmatprep.subr.mxu0 0.0
  %8578 = vmatpush2.msra.mxu0 %v3631
  %8579 = vmatprep.subr.mxu0 0.0
  %8580 = vmatpush2.msra.mxu0 %v3624
  %8581 = vmatprep.subr.mxu0 0.0
  %8582 = vmatpush2.msra.mxu0 %v3617
  %8583 = vmatprep.subr.mxu0 0.0
  %8584 = vmatpush2.msra.mxu0 %v3610
  %8585 = vmatprep.subr.mxu0 0.0
  %8586 = vmatpush2.msra.mxu0 %v3603
  %8587 = vmatprep.subr.mxu0 0.0
  %8588 = vmatpush2.msra.mxu0 %v3596
  %8589 = vmatprep.subr.mxu0 0.0
  %8590 = vmatpush2.msra.mxu0 %v3589
  %8591 = vmatprep.subr.mxu0 0.0
  %8592 = vmatpush2.msra.mxu0 %v3582
  %8593 = vmatprep.subr.mxu0 0.0
  %8594 = vmatpush2.msra.mxu0 %v3575
  %8595 = vmatprep.subr.mxu0 0.0
  %8596 = vmatpush2.msra.mxu0 %v3568
  %8597 = vmatprep.subr.mxu0 0.0
  %8598 = vmatpush2.msra.mxu0 %v3561
  %8599 = vmatprep.subr.mxu0 0.0
  %8600 = vmatpush2.msra.mxu0 %v3554
  %8601 = vmatprep.subr.mxu0 0.0
  %8602 = vmatpush2.msra.mxu0 %v3547
  %8603 = vmatprep.subr.mxu0 0.0
  %8604 = vmatpush2.msra.mxu0 %v3540
  %8605 = vmatprep.mubr.f32.mxu0 %v59
  %8606 = vmatmul.mubr.f32.gmra.mxu0 %v58
  %v8607 = vpop.f32.mrf.mxu0
  %v8608 = vadd.f32 %v8538, %v8607
  %v8609 = vpop.f32.mrf.mxu0
  %8610 = vdwg.mxu0
  %8611 = vmatprep.subr.mxu0 0.0
  %8612 = vmatpush1.msra.mxu0 %v3757
  %8613 = vmatprep.subr.mxu0 0.0
  %8614 = vmatpush1.msra.mxu0 %v3750
  %8615 = vmatprep.subr.mxu0 0.0
  %8616 = vmatpush1.msra.mxu0 %v3743
  %8617 = vmatprep.subr.mxu0 0.0
  %8618 = vmatpush1.msra.mxu0 %v3736
  %8619 = vmatprep.subr.mxu0 0.0
  %8620 = vmatpush1.msra.mxu0 %v3729
  %8621 = vmatprep.subr.mxu0 0.0
  %8622 = vmatpush1.msra.mxu0 %v3722
  %8623 = vmatprep.subr.mxu0 0.0
  %8624 = vmatpush1.msra.mxu0 %v3715
  %8625 = vmatprep.subr.mxu0 0.0
  %8626 = vmatpush1.msra.mxu0 %v3708
  %8627 = vmatprep.subr.mxu0 0.0
  %8628 = vmatpush1.msra.mxu0 %v3701
  %8629 = vmatprep.subr.mxu0 0.0
  %8630 = vmatpush1.msra.mxu0 %v3694
  %8631 = vmatprep.subr.mxu0 0.0
  %8632 = vmatpush1.msra.mxu0 %v3687
  %8633 = vmatprep.subr.mxu0 0.0
  %8634 = vmatpush1.msra.mxu0 %v3680
  %8635 = vmatprep.subr.mxu0 0.0
  %8636 = vmatpush1.msra.mxu0 %v3673
  %8637 = vmatprep.subr.mxu0 0.0
  %8638 = vmatpush1.msra.mxu0 %v3666
  %8639 = vmatprep.subr.mxu0 0.0
  %8640 = vmatpush1.msra.mxu0 %v3659
  %8641 = vmatprep.subr.mxu0 0.0
  %8642 = vmatpush1.msra.mxu0 %v3652
  %8643 = vmatprep.subr.mxu0 0.0
  %8644 = vmatpush2.msra.mxu0 0.0
  %8645 = vmatprep.subr.mxu0 0.0
  %8646 = vmatpush2.msra.mxu0 0.0
  %8647 = vmatprep.subr.mxu0 0.0
  %8648 = vmatpush2.msra.mxu0 0.0
  %8649 = vmatprep.subr.mxu0 0.0
  %8650 = vmatpush2.msra.mxu0 0.0
  %8651 = vmatprep.subr.mxu0 0.0
  %8652 = vmatpush2.msra.mxu0 0.0
  %8653 = vmatprep.subr.mxu0 0.0
  %8654 = vmatpush2.msra.mxu0 0.0
  %8655 = vmatprep.subr.mxu0 0.0
  %8656 = vmatpush2.msra.mxu0 0.0
  %8657 = vmatprep.subr.mxu0 0.0
  %8658 = vmatpush2.msra.mxu0 0.0
  %8659 = vmatprep.subr.mxu0 0.0
  %8660 = vmatpush2.msra.mxu0 0.0
  %8661 = vmatprep.subr.mxu0 0.0
  %8662 = vmatpush2.msra.mxu0 %v3868
  %8663 = vmatprep.subr.mxu0 0.0
  %8664 = vmatpush2.msra.mxu0 %v3799
  %8665 = vmatprep.subr.mxu0 0.0
  %8666 = vmatpush2.msra.mxu0 %v3792
  %8667 = vmatprep.subr.mxu0 0.0
  %8668 = vmatpush2.msra.mxu0 %v3785
  %8669 = vmatprep.subr.mxu0 0.0
  %8670 = vmatpush2.msra.mxu0 %v3778
  %8671 = vmatprep.subr.mxu0 0.0
  %8672 = vmatpush2.msra.mxu0 %v3771
  %8673 = vmatprep.subr.mxu0 0.0
  %8674 = vmatpush2.msra.mxu0 %v3764
  %8675 = vmatprep.mubr.f32.mxu0 %v3846
  %8676 = vmatmul.mubr.f32.gmra.mxu0 %v60
  %v8677 = vpop.f32.mrf.mxu0
  %v8678 = vadd.f32 %v8608, %v8677
  %v8679 = vpop.f32.mrf.mxu0
  %8680 = vdwg.mxu0
  %v8681 = vmax.f32 %v5073, 0.0
  %v8682 = vmax.f32 %v5075, 0.0
  %v8683 = vmax.f32 %v6280, 0.0
  %v8684 = vmax.f32 %v6282, 0.0
  %v8685 = vmax.f32 %v7487, 0.0
  %v8686 = vmax.f32 %v7489, 0.0
  %v8687 = vmax.f32 %v8678, 0.0
  %v8688 = vld [vmem:[%s3] sm:$0xff]
  %v8689 = vld [vmem:[%s3 + $0x8] sm:$0xff]
  %v8690 = vld [vmem:[%s3 + $0x10] sm:$0xff]
  %v8691 = vld [vmem:[%s3 + $0x18] sm:$0xff]
  %v8692 = vld [vmem:[%s3 + $0x20] sm:$0xff]
  %v8693 = vld [vmem:[%s3 + $0x28] sm:$0xff]
  %v8694 = vld [vmem:[%s3 + $0x30] sm:$0xff]
  %v8695 = vld [vmem:[%s3 + $0x38] sm:$0xff]
  %v8696 = vld [vmem:[%s3 + $0x40] sm:$0xff]
  %v8697 = vld [vmem:[%s3 + $0x48] sm:$0xff]
  %v8698 = vld [vmem:[%s3 + $0x50] sm:$0xff]
  %v8699 = vld [vmem:[%s3 + $0x58] sm:$0xff]
  %v8700 = vld [vmem:[%s3 + $0x60] sm:$0xff]
  %v8701 = vld [vmem:[%s3 + $0x68] sm:$0xff]
  %v8702 = vld [vmem:[%s3 + $0x70] sm:$0xff]
  %v8703 = vld [vmem:[%s3 + $0x78] sm:$0xff]
  %v8704 = vld [vmem:[%s3 + $0x80] sm:$0xff]
  %v8705 = vld [vmem:[%s3 + $0x88] sm:$0xff]
  %v8706 = vld [vmem:[%s3 + $0x90] sm:$0xff]
  %v8707 = vld [vmem:[%s3 + $0x98] sm:$0xff]
  %v8708 = vld [vmem:[%s3 + $0xa0] sm:$0xff]
  %v8709 = vld [vmem:[%s3 + $0xa8] sm:$0xff]
  %v8710 = vld [vmem:[%s3 + $0xb0] sm:$0xff]
  %v8711 = vld [vmem:[%s3 + $0xb8] sm:$0xff]
  %v8712 = vld [vmem:[%s3 + $0xc0] sm:$0xff]
  %v8713 = vld [vmem:[%s3 + $0xc8] sm:$0xff]
  %v8714 = vld [vmem:[%s3 + $0xd0] sm:$0xff]
  %v8715 = vld [vmem:[%s3 + $0xd8] sm:$0xff]
  %v8716 = vld [vmem:[%s3 + $0xe0] sm:$0xff]
  %v8717 = vld [vmem:[%s3 + $0xe8] sm:$0xff]
  %v8718 = vld [vmem:[%s3 + $0xf0] sm:$0xff]
  %v8719 = vld [vmem:[%s3 + $0xf8] sm:$0xff]
  %v8720 = vld [vmem:[%s3 + $0x100] sm:$0xff]
  %v8721 = vld [vmem:[%s3 + $0x108] sm:$0xff]
  %v8722 = vld [vmem:[%s3 + $0x110] sm:$0xff]
  %v8723 = vld [vmem:[%s3 + $0x118] sm:$0xff]
  %v8724 = vld [vmem:[%s3 + $0x120] sm:$0xff]
  %v8725 = vld [vmem:[%s3 + $0x128] sm:$0xff]
  %v8726 = vld [vmem:[%s3 + $0x130] sm:$0xff]
  %v8727 = vld [vmem:[%s3 + $0x138] sm:$0xff]
  %v8728 = vld [vmem:[%s3 + $0x140] sm:$0xff]
  %v8729 = vld [vmem:[%s3 + $0x148] sm:$0xff]
  %v8730 = vld [vmem:[%s3 + $0x150] sm:$0xff]
  %v8731 = vld [vmem:[%s3 + $0x158] sm:$0xff]
  %v8732 = vld [vmem:[%s3 + $0x160] sm:$0xff]
  %v8733 = vld [vmem:[%s3 + $0x168] sm:$0xff]
  %v8734 = vld [vmem:[%s3 + $0x170] sm:$0xff]
  %v8735 = vld [vmem:[%s3 + $0x178] sm:$0xff]
  %v8736 = vld [vmem:[%s3 + $0x180] sm:$0xff]
  %v8737 = vld [vmem:[%s3 + $0x188] sm:$0xff]
  %v8738 = vld [vmem:[%s3 + $0x190] sm:$0xff]
  %v8739 = vld [vmem:[%s3 + $0x198] sm:$0xff]
  %v8740 = vld [vmem:[%s3 + $0x1a0] sm:$0xff]
  %v8741 = vld [vmem:[%s3 + $0x1a8] sm:$0xff]
  %v8742 = vld [vmem:[%s3 + $0x1b0] sm:$0xff]
  %v8743 = vld [vmem:[%s3 + $0x1b8] sm:$0xff]
  %v8744 = vld [vmem:[%s3 + $0x1c0] sm:$0xff]
  %v8745 = vld [vmem:[%s3 + $0x1c8] sm:$0xff]
  %v8746 = vld [vmem:[%s3 + $0x1d0] sm:$0xff]
  %v8747 = vld [vmem:[%s3 + $0x1d8] sm:$0xff]
  %v8748 = vld [vmem:[%s3 + $0x1e0] sm:$0xff]
  %v8749 = vld [vmem:[%s3 + $0x1e8] sm:$0xff]
  %v8750 = vld [vmem:[%s3 + $0x1f0] sm:$0xff]
  %v8751 = vld [vmem:[%s3 + $0x1f8] sm:$0xff]
  %v8752 = vld [vmem:[%s3 + $0x200] sm:$0xff]
  %v8753 = vld [vmem:[%s3 + $0x208] sm:$0xff]
  %v8754 = vld [vmem:[%s3 + $0x210] sm:$0xff]
  %v8755 = vld [vmem:[%s3 + $0x218] sm:$0xff]
  %v8756 = vld [vmem:[%s3 + $0x220] sm:$0xff]
  %v8757 = vld [vmem:[%s3 + $0x228] sm:$0xff]
  %v8758 = vld [vmem:[%s3 + $0x230] sm:$0xff]
  %v8759 = vld [vmem:[%s3 + $0x238] sm:$0xff]
  %v8760 = vld [vmem:[%s3 + $0x240] sm:$0xff]
  %v8761 = vld [vmem:[%s3 + $0x248] sm:$0xff]
  %v8762 = vld [vmem:[%s3 + $0x250] sm:$0xff]
  %v8763 = vld [vmem:[%s3 + $0x258] sm:$0xff]
  %v8764 = vld [vmem:[%s3 + $0x260] sm:$0xff]
  %v8765 = vld [vmem:[%s3 + $0x268] sm:$0xff]
  %v8766 = vld [vmem:[%s3 + $0x270] sm:$0xff]
  %v8767 = vld [vmem:[%s3 + $0x278] sm:$0xff]
  %v8768 = vld [vmem:[%s3 + $0x280] sm:$0xff]
  %v8769 = vld [vmem:[%s3 + $0x288] sm:$0xff]
  %v8770 = vld [vmem:[%s3 + $0x290] sm:$0xff]
  %v8771 = vld [vmem:[%s3 + $0x298] sm:$0xff]
  %v8772 = vld [vmem:[%s3 + $0x2a0] sm:$0xff]
  %v8773 = vld [vmem:[%s3 + $0x2a8] sm:$0xff]
  %v8774 = vld [vmem:[%s3 + $0x2b0] sm:$0xff]
  %v8775 = vld [vmem:[%s3 + $0x2b8] sm:$0xff]
  %v8776 = vld [vmem:[%s3 + $0x2c0] sm:$0xff]
  %v8777 = vld [vmem:[%s3 + $0x2c8] sm:$0xff]
  %v8778 = vld [vmem:[%s3 + $0x2d0] sm:$0xff]
  %v8779 = vld [vmem:[%s3 + $0x2d8] sm:$0xff]
  %v8780 = vld [vmem:[%s3 + $0x2e0] sm:$0xff]
  %v8781 = vld [vmem:[%s3 + $0x2e8] sm:$0xff]
  %v8782 = vld [vmem:[%s3 + $0x2f0] sm:$0xff]
  %v8783 = vld [vmem:[%s3 + $0x2f8] sm:$0xff]
  %v8784 = vld [vmem:[%s3 + $0x300] sm:$0xff]
  %v8785 = vld [vmem:[%s3 + $0x308] sm:$0xff]
  %v8786 = vld [vmem:[%s3 + $0x310] sm:$0xff]
  %v8787 = vld [vmem:[%s3 + $0x318] sm:$0xff]
  %v8788 = vld [vmem:[%s3 + $0x320] sm:$0xff]
  %v8789 = vld [vmem:[%s3 + $0x328] sm:$0xff]
  %v8790 = vld [vmem:[%s4] sm:$0x1]
  %v8792 = vlaneseq
  %v8793 = vshrl.u32 %v8792, 7
  %v8794 = vsub.s32 0, %v8793
  %v8795 = vrot.slane %v8790, %v8794
  %vm8797 = vcmask 392192
  %v8799 = vsel %vm8797, %v8687, 0
  %8801 = vmatprep.subr.mxu0 0.0
  %8802 = vmatpush1.msra.mxu0 %v8703
  %8803 = vmatprep.subr.mxu0 0.0
  %8804 = vmatpush1.msra.mxu0 %v8702
  %8805 = vmatprep.subr.mxu0 0.0
  %8806 = vmatpush1.msra.mxu0 %v8701
  %8807 = vmatprep.subr.mxu0 0.0
  %8808 = vmatpush1.msra.mxu0 %v8700
  %8809 = vmatprep.subr.mxu0 0.0
  %8810 = vmatpush1.msra.mxu0 %v8699
  %8811 = vmatprep.subr.mxu0 0.0
  %8812 = vmatpush1.msra.mxu0 %v8698
  %8813 = vmatprep.subr.mxu0 0.0
  %8814 = vmatpush1.msra.mxu0 %v8697
  %8815 = vmatprep.subr.mxu0 0.0
  %8816 = vmatpush1.msra.mxu0 %v8696
  %8817 = vmatprep.subr.mxu0 0.0
  %8818 = vmatpush1.msra.mxu0 %v8695
  %8819 = vmatprep.subr.mxu0 0.0
  %8820 = vmatpush1.msra.mxu0 %v8694
  %8821 = vmatprep.subr.mxu0 0.0
  %8822 = vmatpush1.msra.mxu0 %v8693
  %8823 = vmatprep.subr.mxu0 0.0
  %8824 = vmatpush1.msra.mxu0 %v8692
  %8825 = vmatprep.subr.mxu0 0.0
  %8826 = vmatpush1.msra.mxu0 %v8691
  %8827 = vmatprep.subr.mxu0 0.0
  %8828 = vmatpush1.msra.mxu0 %v8690
  %8829 = vmatprep.subr.mxu0 0.0
  %8830 = vmatpush1.msra.mxu0 %v8689
  %8831 = vmatprep.subr.mxu0 0.0
  %8832 = vmatpush1.msra.mxu0 %v8688
  %8833 = vmatprep.subr.mxu0 0.0
  %8834 = vmatpush2.msra.mxu0 %v8719
  %8835 = vmatprep.subr.mxu0 0.0
  %8836 = vmatpush2.msra.mxu0 %v8718
  %8837 = vmatprep.subr.mxu0 0.0
  %8838 = vmatpush2.msra.mxu0 %v8717
  %8839 = vmatprep.subr.mxu0 0.0
  %8840 = vmatpush2.msra.mxu0 %v8716
  %8841 = vmatprep.subr.mxu0 0.0
  %8842 = vmatpush2.msra.mxu0 %v8715
  %8843 = vmatprep.subr.mxu0 0.0
  %8844 = vmatpush2.msra.mxu0 %v8714
  %8845 = vmatprep.subr.mxu0 0.0
  %8846 = vmatpush2.msra.mxu0 %v8713
  %8847 = vmatprep.subr.mxu0 0.0
  %8848 = vmatpush2.msra.mxu0 %v8712
  %8849 = vmatprep.subr.mxu0 0.0
  %8850 = vmatpush2.msra.mxu0 %v8711
  %8851 = vmatprep.subr.mxu0 0.0
  %8852 = vmatpush2.msra.mxu0 %v8710
  %8853 = vmatprep.subr.mxu0 0.0
  %8854 = vmatpush2.msra.mxu0 %v8709
  %8855 = vmatprep.subr.mxu0 0.0
  %8856 = vmatpush2.msra.mxu0 %v8708
  %8857 = vmatprep.subr.mxu0 0.0
  %8858 = vmatpush2.msra.mxu0 %v8707
  %8859 = vmatprep.subr.mxu0 0.0
  %8860 = vmatpush2.msra.mxu0 %v8706
  %8861 = vmatprep.subr.mxu0 0.0
  %8862 = vmatpush2.msra.mxu0 %v8705
  %8863 = vmatprep.subr.mxu0 0.0
  %8864 = vmatpush2.msra.mxu0 %v8704
  %8865 = vmatprep.mubr.f32.mxu0 %v8682
  %8866 = vmatmul.mubr.f32.gmra.mxu0 %v8681
  %v8867 = vpop.f32.mrf.mxu0
  %v8868 = vadd.f32 %v8795, %v8867
  %v8869 = vpop.f32.mrf.mxu0
  %8870 = vdwg.mxu0
  %8871 = vmatprep.subr.mxu0 0.0
  %8872 = vmatpush1.msra.mxu0 %v8735
  %8873 = vmatprep.subr.mxu0 0.0
  %8874 = vmatpush1.msra.mxu0 %v8734
  %8875 = vmatprep.subr.mxu0 0.0
  %8876 = vmatpush1.msra.mxu0 %v8733
  %8877 = vmatprep.subr.mxu0 0.0
  %8878 = vmatpush1.msra.mxu0 %v8732
  %8879 = vmatprep.subr.mxu0 0.0
  %8880 = vmatpush1.msra.mxu0 %v8731
  %8881 = vmatprep.subr.mxu0 0.0
  %8882 = vmatpush1.msra.mxu0 %v8730
  %8883 = vmatprep.subr.mxu0 0.0
  %8884 = vmatpush1.msra.mxu0 %v8729
  %8885 = vmatprep.subr.mxu0 0.0
  %8886 = vmatpush1.msra.mxu0 %v8728
  %8887 = vmatprep.subr.mxu0 0.0
  %8888 = vmatpush1.msra.mxu0 %v8727
  %8889 = vmatprep.subr.mxu0 0.0
  %8890 = vmatpush1.msra.mxu0 %v8726
  %8891 = vmatprep.subr.mxu0 0.0
  %8892 = vmatpush1.msra.mxu0 %v8725
  %8893 = vmatprep.subr.mxu0 0.0
  %8894 = vmatpush1.msra.mxu0 %v8724
  %8895 = vmatprep.subr.mxu0 0.0
  %8896 = vmatpush1.msra.mxu0 %v8723
  %8897 = vmatprep.subr.mxu0 0.0
  %8898 = vmatpush1.msra.mxu0 %v8722
  %8899 = vmatprep.subr.mxu0 0.0
  %8900 = vmatpush1.msra.mxu0 %v8721
  %8901 = vmatprep.subr.mxu0 0.0
  %8902 = vmatpush1.msra.mxu0 %v8720
  %8903 = vmatprep.subr.mxu0 0.0
  %8904 = vmatpush2.msra.mxu0 %v8751
  %8905 = vmatprep.subr.mxu0 0.0
  %8906 = vmatpush2.msra.mxu0 %v8750
  %8907 = vmatprep.subr.mxu0 0.0
  %8908 = vmatpush2.msra.mxu0 %v8749
  %8909 = vmatprep.subr.mxu0 0.0
  %8910 = vmatpush2.msra.mxu0 %v8748
  %8911 = vmatprep.subr.mxu0 0.0
  %8912 = vmatpush2.msra.mxu0 %v8747
  %8913 = vmatprep.subr.mxu0 0.0
  %8914 = vmatpush2.msra.mxu0 %v8746
  %8915 = vmatprep.subr.mxu0 0.0
  %8916 = vmatpush2.msra.mxu0 %v8745
  %8917 = vmatprep.subr.mxu0 0.0
  %8918 = vmatpush2.msra.mxu0 %v8744
  %8919 = vmatprep.subr.mxu0 0.0
  %8920 = vmatpush2.msra.mxu0 %v8743
  %8921 = vmatprep.subr.mxu0 0.0
  %8922 = vmatpush2.msra.mxu0 %v8742
  %8923 = vmatprep.subr.mxu0 0.0
  %8924 = vmatpush2.msra.mxu0 %v8741
  %8925 = vmatprep.subr.mxu0 0.0
  %8926 = vmatpush2.msra.mxu0 %v8740
  %8927 = vmatprep.subr.mxu0 0.0
  %8928 = vmatpush2.msra.mxu0 %v8739
  %8929 = vmatprep.subr.mxu0 0.0
  %8930 = vmatpush2.msra.mxu0 %v8738
  %8931 = vmatprep.subr.mxu0 0.0
  %8932 = vmatpush2.msra.mxu0 %v8737
  %8933 = vmatprep.subr.mxu0 0.0
  %8934 = vmatpush2.msra.mxu0 %v8736
  %8935 = vmatprep.mubr.f32.mxu0 %v8684
  %8936 = vmatmul.mubr.f32.gmra.mxu0 %v8683
  %v8937 = vpop.f32.mrf.mxu0
  %v8938 = vadd.f32 %v8868, %v8937
  %v8939 = vpop.f32.mrf.mxu0
  %8940 = vdwg.mxu0
  %8941 = vmatprep.subr.mxu0 0.0
  %8942 = vmatpush1.msra.mxu0 %v8767
  %8943 = vmatprep.subr.mxu0 0.0
  %8944 = vmatpush1.msra.mxu0 %v8766
  %8945 = vmatprep.subr.mxu0 0.0
  %8946 = vmatpush1.msra.mxu0 %v8765
  %8947 = vmatprep.subr.mxu0 0.0
  %8948 = vmatpush1.msra.mxu0 %v8764
  %8949 = vmatprep.subr.mxu0 0.0
  %8950 = vmatpush1.msra.mxu0 %v8763
  %8951 = vmatprep.subr.mxu0 0.0
  %8952 = vmatpush1.msra.mxu0 %v8762
  %8953 = vmatprep.subr.mxu0 0.0
  %8954 = vmatpush1.msra.mxu0 %v8761
  %8955 = vmatprep.subr.mxu0 0.0
  %8956 = vmatpush1.msra.mxu0 %v8760
  %8957 = vmatprep.subr.mxu0 0.0
  %8958 = vmatpush1.msra.mxu0 %v8759
  %8959 = vmatprep.subr.mxu0 0.0
  %8960 = vmatpush1.msra.mxu0 %v8758
  %8961 = vmatprep.subr.mxu0 0.0
  %8962 = vmatpush1.msra.mxu0 %v8757
  %8963 = vmatprep.subr.mxu0 0.0
  %8964 = vmatpush1.msra.mxu0 %v8756
  %8965 = vmatprep.subr.mxu0 0.0
  %8966 = vmatpush1.msra.mxu0 %v8755
  %8967 = vmatprep.subr.mxu0 0.0
  %8968 = vmatpush1.msra.mxu0 %v8754
  %8969 = vmatprep.subr.mxu0 0.0
  %8970 = vmatpush1.msra.mxu0 %v8753
  %8971 = vmatprep.subr.mxu0 0.0
  %8972 = vmatpush1.msra.mxu0 %v8752
  %8973 = vmatprep.subr.mxu0 0.0
  %8974 = vmatpush2.msra.mxu0 %v8783
  %8975 = vmatprep.subr.mxu0 0.0
  %8976 = vmatpush2.msra.mxu0 %v8782
  %8977 = vmatprep.subr.mxu0 0.0
  %8978 = vmatpush2.msra.mxu0 %v8781
  %8979 = vmatprep.subr.mxu0 0.0
  %8980 = vmatpush2.msra.mxu0 %v8780
  %8981 = vmatprep.subr.mxu0 0.0
  %8982 = vmatpush2.msra.mxu0 %v8779
  %8983 = vmatprep.subr.mxu0 0.0
  %8984 = vmatpush2.msra.mxu0 %v8778
  %8985 = vmatprep.subr.mxu0 0.0
  %8986 = vmatpush2.msra.mxu0 %v8777
  %8987 = vmatprep.subr.mxu0 0.0
  %8988 = vmatpush2.msra.mxu0 %v8776
  %8989 = vmatprep.subr.mxu0 0.0
  %8990 = vmatpush2.msra.mxu0 %v8775
  %8991 = vmatprep.subr.mxu0 0.0
  %8992 = vmatpush2.msra.mxu0 %v8774
  %8993 = vmatprep.subr.mxu0 0.0
  %8994 = vmatpush2.msra.mxu0 %v8773
  %8995 = vmatprep.subr.mxu0 0.0
  %8996 = vmatpush2.msra.mxu0 %v8772
  %8997 = vmatprep.subr.mxu0 0.0
  %8998 = vmatpush2.msra.mxu0 %v8771
  %8999 = vmatprep.subr.mxu0 0.0
  %9000 = vmatpush2.msra.mxu0 %v8770
  %9001 = vmatprep.subr.mxu0 0.0
  %9002 = vmatpush2.msra.mxu0 %v8769
  %9003 = vmatprep.subr.mxu0 0.0
  %9004 = vmatpush2.msra.mxu0 %v8768
  %9005 = vmatprep.mubr.f32.mxu0 %v8686
  %9006 = vmatmul.mubr.f32.gmra.mxu0 %v8685
  %v9007 = vpop.f32.mrf.mxu0
  %v9008 = vadd.f32 %v8938, %v9007
  %v9009 = vpop.f32.mrf.mxu0
  %9010 = vdwg.mxu0
  %9011 = vmatprep.subr.mxu0 0.0
  %9012 = vmatpush1.msra.mxu0 0.0
  %9013 = vmatprep.subr.mxu0 0.0
  %9014 = vmatpush1.msra.mxu0 0.0
  %9015 = vmatprep.subr.mxu0 0.0
  %9016 = vmatpush1.msra.mxu0 0.0
  %9017 = vmatprep.subr.mxu0 0.0
  %9018 = vmatpush1.msra.mxu0 0.0
  %9019 = vmatprep.subr.mxu0 0.0
  %9020 = vmatpush1.msra.mxu0 0.0
  %9021 = vmatprep.subr.mxu0 0.0
  %9022 = vmatpush1.msra.mxu0 0.0
  %9023 = vmatprep.subr.mxu0 0.0
  %9024 = vmatpush1.msra.mxu0 0.0
  %9025 = vmatprep.subr.mxu0 0.0
  %9026 = vmatpush1.msra.mxu0 0.0
  %9027 = vmatprep.subr.mxu0 0.0
  %9028 = vmatpush1.msra.mxu0 0.0
  %9029 = vmatprep.subr.mxu0 0.0
  %9030 = vmatpush1.msra.mxu0 0.0
  %9031 = vmatprep.subr.mxu0 0.0
  %9032 = vmatpush1.msra.mxu0 %v8789
  %9033 = vmatprep.subr.mxu0 0.0
  %9034 = vmatpush1.msra.mxu0 %v8788
  %9035 = vmatprep.subr.mxu0 0.0
  %9036 = vmatpush1.msra.mxu0 %v8787
  %9037 = vmatprep.subr.mxu0 0.0
  %9038 = vmatpush1.msra.mxu0 %v8786
  %9039 = vmatprep.subr.mxu0 0.0
  %9040 = vmatpush1.msra.mxu0 %v8785
  %9041 = vmatprep.subr.mxu0 0.0
  %9042 = vmatpush1.msra.mxu0 %v8784
  %9043 = vmatprep.subr.mxu0 0.0
  %9044 = vmatpush2.msra.mxu0 0.0
  %9045 = vmatprep.subr.mxu0 0.0
  %9046 = vmatpush2.msra.mxu0 0.0
  %9047 = vmatprep.subr.mxu0 0.0
  %9048 = vmatpush2.msra.mxu0 0.0
  %9049 = vmatprep.subr.mxu0 0.0
  %9050 = vmatpush2.msra.mxu0 0.0
  %9051 = vmatprep.subr.mxu0 0.0
  %9052 = vmatpush2.msra.mxu0 0.0
  %9053 = vmatprep.subr.mxu0 0.0
  %9054 = vmatpush2.msra.mxu0 0.0
  %9055 = vmatprep.subr.mxu0 0.0
  %9056 = vmatpush2.msra.mxu0 0.0
  %9057 = vmatprep.subr.mxu0 0.0
  %9058 = vmatpush2.msra.mxu0 0.0
  %9059 = vmatprep.subr.mxu0 0.0
  %9060 = vmatpush2.msra.mxu0 0.0
  %9061 = vmatprep.subr.mxu0 0.0
  %9062 = vmatpush2.msra.mxu0 0.0
  %9063 = vmatprep.subr.mxu0 0.0
  %9064 = vmatpush2.msra.mxu0 0.0
  %9065 = vmatprep.subr.mxu0 0.0
  %9066 = vmatpush2.msra.mxu0 0.0
  %9067 = vmatprep.subr.mxu0 0.0
  %9068 = vmatpush2.msra.mxu0 0.0
  %9069 = vmatprep.subr.mxu0 0.0
  %9070 = vmatpush2.msra.mxu0 0.0
  %9071 = vmatprep.subr.mxu0 0.0
  %9072 = vmatpush2.msra.mxu0 0.0
  %9073 = vmatprep.subr.mxu0 0.0
  %9074 = vmatpush2.msra.mxu0 0.0
  %9075 = vmatprep.mubr.f32.mxu0 0.0
  %9076 = vmatmul.mubr.f32.gmra.mxu0 %v8799
  %v9077 = vpop.f32.mrf.mxu0
  %v9078 = vadd.f32 %v9008, %v9077
  %v9079 = vpop.f32.mrf.mxu0
  %9080 = vdwg.mxu0
  %v9081 = vmax.f32 %v9078, 0.0
  %v9082 = vld [vmem:[%s5] sm:$0xff]
  %v9083 = vld [vmem:[%s5 + $0x8] sm:$0xff]
  %v9084 = vld [vmem:[%s5 + $0x10] sm:$0xf]
  %v9085 = vld [vmem:[#allocation2] sm:$0x1]
  %v9087 = vlaneseq
  %v9088 = vshrl.u32 %v9087, 7
  %v9089 = vsub.s32 0, %v9088
  %v9090 = vrot.slane %v9085, %v9089
  %vm9092 = vcmask 162816
  %v9094 = vsel %vm9092, %v9081, 0
  %vm9096 = vcmask 1043456
  %v9098 = vsel %vm9096, %v9084, 0
  %9100 = vmatprep.subr.mxu0 0.0
  %9101 = vmatpush1.msra.mxu0 0.0
  %9102 = vmatprep.subr.mxu0 0.0
  %9103 = vmatpush1.msra.mxu0 0.0
  %9104 = vmatprep.subr.mxu0 0.0
  %9105 = vmatpush1.msra.mxu0 0.0
  %9106 = vmatprep.subr.mxu0 0.0
  %9107 = vmatpush1.msra.mxu0 0.0
  %9108 = vmatprep.subr.mxu0 0.0
  %9109 = vmatpush1.msra.mxu0 0.0
  %9110 = vmatprep.subr.mxu0 0.0
  %9111 = vmatpush1.msra.mxu0 0.0
  %9112 = vmatprep.subr.mxu0 0.0
  %9113 = vmatpush1.msra.mxu0 0.0
  %9114 = vmatprep.subr.mxu0 0.0
  %9115 = vmatpush1.msra.mxu0 0.0
  %9116 = vmatprep.subr.mxu0 0.0
  %9117 = vmatpush1.msra.mxu0 0.0
  %9118 = vmatprep.subr.mxu0 0.0
  %9119 = vmatpush1.msra.mxu0 0.0
  %9120 = vmatprep.subr.mxu0 0.0
  %9121 = vmatpush1.msra.mxu0 0.0
  %9122 = vmatprep.subr.mxu0 0.0
  %9123 = vmatpush1.msra.mxu0 0.0
  %9124 = vmatprep.subr.mxu0 0.0
  %9125 = vmatpush1.msra.mxu0 0.0
  %9126 = vmatprep.subr.mxu0 0.0
  %9127 = vmatpush1.msra.mxu0 %v9098
  %9128 = vmatprep.subr.mxu0 0.0
  %9129 = vmatpush1.msra.mxu0 %v9083
  %9130 = vmatprep.subr.mxu0 0.0
  %9131 = vmatpush1.msra.mxu0 %v9082
  %9132 = vmatprep.subr.mxu0 0.0
  %9133 = vmatpush2.msra.mxu0 0.0
  %9134 = vmatprep.subr.mxu0 0.0
  %9135 = vmatpush2.msra.mxu0 0.0
  %9136 = vmatprep.subr.mxu0 0.0
  %9137 = vmatpush2.msra.mxu0 0.0
  %9138 = vmatprep.subr.mxu0 0.0
  %9139 = vmatpush2.msra.mxu0 0.0
  %9140 = vmatprep.subr.mxu0 0.0
  %9141 = vmatpush2.msra.mxu0 0.0
  %9142 = vmatprep.subr.mxu0 0.0
  %9143 = vmatpush2.msra.mxu0 0.0
  %9144 = vmatprep.subr.mxu0 0.0
  %9145 = vmatpush2.msra.mxu0 0.0
  %9146 = vmatprep.subr.mxu0 0.0
  %9147 = vmatpush2.msra.mxu0 0.0
  %9148 = vmatprep.subr.mxu0 0.0
  %9149 = vmatpush2.msra.mxu0 0.0
  %9150 = vmatprep.subr.mxu0 0.0
  %9151 = vmatpush2.msra.mxu0 0.0
  %9152 = vmatprep.subr.mxu0 0.0
  %9153 = vmatpush2.msra.mxu0 0.0
  %9154 = vmatprep.subr.mxu0 0.0
  %9155 = vmatpush2.msra.mxu0 0.0
  %9156 = vmatprep.subr.mxu0 0.0
  %9157 = vmatpush2.msra.mxu0 0.0
  %9158 = vmatprep.subr.mxu0 0.0
  %9159 = vmatpush2.msra.mxu0 0.0
  %9160 = vmatprep.subr.mxu0 0.0
  %9161 = vmatpush2.msra.mxu0 0.0
  %9162 = vmatprep.subr.mxu0 0.0
  %9163 = vmatpush2.msra.mxu0 0.0
  %9164 = vmatprep.mubr.f32.mxu0 0.0
  %9165 = vmatmul.mubr.f32.gmra.mxu0 %v9094
  %v9166 = vpop.f32.mrf.mxu0
  %v9167 = vadd.f32 %v9090, %v9166
  %v9168 = vpop.f32.mrf.mxu0
  %9169 = vdwg.mxu0
  %vm9170 = vcmask 7168
  %9171 = vst.msk [vmem:[%s7] sm:$0xff] %vm9170, %v9167
  // Predicated region
  $region30: #{net_translational_forward.1} parent=0 // pred_check
    _
  $region31: #{net_translational_forward.1} parent=0 // pred_check_branch
    %9173 = sbr.rel (0) target = $region33
  $region32: #{net_translational_forward.1} parent=0 // pred_region
    _
  $region33: #{net_translational_forward.1} parent=0 // pred_fallthru
    _
  // Predicated region
  $region34: #{net_translational_forward.1} parent=0 // pred_check
    _
  $region35: #{net_translational_forward.1} parent=0 // pred_check_branch
    %9175 = sbr.rel (0) target = $region37
  $region36: #{net_translational_forward.1} parent=0 // pred_region
    _
  $region37: #{net_translational_forward.1} parent=0 // pred_fallthru
    _

</llo_original>
